<compile_context>
chip_gen: v5e
topology: v5e:2x2
jax: 0.10.0
libtpu: 0.0.40
codegen_flags: <defaults>
</compile_context>

<pallas_src>
import jax
import jax.numpy as jnp
from jax.experimental import pallas as pl
from jax.experimental.pallas import tpu as pltpu


def _round_up(n, m):
    return ((n + m - 1) // m) * m


def _make_kernel(a, inv_b0, inv_b1):
    """Kernel factory: parameters baked in as trace-time constants."""
    a = float(a)
    inv_b0 = float(inv_b0)
    inv_b1 = float(inv_b1)

    def kernel(lhs_ref, rhs_ref, o_ref):
        # lhs_ref: (1, TM, F+2) = [x_i, 1, ||x_i||^2]
        # rhs_ref: (1, F+2, TN) = [-2 x_j ; ||x_j||^2 ; 1]
        # => dot gives d2[i,j] = ||x_i||^2 + ||x_j||^2 - 2 x_i.x_j directly (MXU).
        d2 = jnp.maximum(
            jnp.dot(lhs_ref[0], rhs_ref[0], preferred_element_type=jnp.float32),
            0.0)  # clamp is load-bearing (cancellation can go slightly negative)

        # torch: quad = norm**2 with norm = sqrt(d2)  ==>  quad == d2.
        s = jnp.sin(d2 * a)                       # VPU polynomial (binding unit)
        # exp(-s^2/b0)*exp(-d2/b1) == exp(-(s^2*inv_b0 + d2*inv_b1)): one EUP exp.
        # With default b0=b1=1 the two multiplies constant-fold away.
        o_ref[0] = jnp.exp(-(s * s * inv_b0 + d2 * inv_b1)).astype(o_ref.dtype)

    return kernel


def expsinexp_kernel_layer_forward(x,
                                   ori_kernel_fish=1.2,
                                   ori_kernel_fish_posnum=(1.0, 1.0),
                                   tm=256, tn=1024,
                                   out_dtype=jnp.float32):
    """x: (B, N, F) float -> (B, N, N) kernel matrices (default float32).

    tm / tn are preferred tile sizes (rows / lanes of the output tile);
    out_dtype=jnp.bfloat16 is available if downstream tolerates it (halves the
    N^2 writeback, mainly relevant on v5e).
    """
    B, N, F = x.shape
    x = x.astype(jnp.float32)

    # Bounded tiles for arbitrary N: sublane-aligned TM, lane-aligned TN, then
    # pad N up to tile multiples (never fall back to a full-N tile -> no VMEM
    # blowup on v7x for large non-divisible N).
    TM = _round_up(min(int(tm), _round_up(N, 8)), 8)
    TN = _round_up(min(int(tn), _round_up(N, 128)), 128)
    Nr = _round_up(N, TM)   # padded row extent
    Nc = _round_up(N, TN)   # padded column extent

    # Static module-init parameters baked in as constants.
    a = float(ori_kernel_fish)
    inv_b0 = 1.0 / (float(ori_kernel_fish_posnum[0]) + 1e-40)
    inv_b1 = 1.0 / (float(ori_kernel_fish_posnum[1]) + 1e-40)

    # One-time XLA-side prep: augmented operands so the MXU dot emits d2.
    #   lhs[b, i, :] = [ x_i, 1, ||x_i||^2 ]            (B, N, F+2)
    #   rhs[b, :, j] = [ -2 x_j ; ||x_j||^2 ; 1 ]        (B, F+2, N)
    sq = jnp.sum(x * x, axis=-1)                                    # (B, N)
    ones_r = jnp.ones((B, N, 1), jnp.float32)
    lhs = jnp.concatenate([x, ones_r, sq[..., None]], axis=-1)      # (B, N, F+2)
    rhs = jnp.concatenate([-2.0 * jnp.transpose(x, (0, 2, 1)),
                           sq[:, None, :],
                           jnp.ones((B, 1, N), jnp.float32)], axis=1)  # (B, F+2, N)

    if Nr != N:
        lhs = jnp.pad(lhs, ((0, 0), (0, Nr - N), (0, 0)))
    if Nc != N:
        rhs = jnp.pad(rhs, ((0, 0), (0, 0), (0, Nc - N)))

    Fp = F + 2
    grid = (B, Nr // TM, Nc // TN)

    out = pl.pallas_call(
        _make_kernel(a, inv_b0, inv_b1),
        out_shape=jax.ShapeDtypeStruct((B, Nr, Nc), out_dtype),
        grid=grid,
        in_specs=[
            # Row tile index is constant across j -> its DMA is not re-issued.
            pl.BlockSpec((1, TM, Fp), lambda b, i, j: (b, i, 0)),   # augmented rows
            pl.BlockSpec((1, Fp, TN), lambda b, i, j: (b, 0, j)),   # augmented cols
        ],
        out_specs=pl.BlockSpec((1, TM, TN), lambda b, i, j: (b, i, j)),
        compiler_params=pltpu.CompilerParams(
            dimension_semantics=("parallel", "parallel", "parallel"),
            vmem_limit_bytes=32 * 1024 * 1024,
        ),
    )(lhs, rhs)

    if Nr != N or Nc != N:
        out = out[:, :N, :N]
    return out


def _reference(x, a=1.2, b0=1.0, b1=1.0):
    # Pure-JAX replica of the PyTorch forward (diff-based, for checking).
    x = x.astype(jnp.float32)
    diff = x[:, :, None, :] - x[:, None, :, :]            # (B, N, N, F)
    norm = jnp.sqrt(jnp.sum(diff * diff, axis=-1))        # (B, N, N)
    quad = norm ** 2
    return (jnp.exp(-jnp.sin(quad * a) ** 2 / (b0 + 1e-40))
            * jnp.exp(-quad / (b1 + 1e-40)))


if __name__ == "__main__":
    key = jax.random.PRNGKey(0)
    k1, k2 = jax.random.split(key)

    # Default tiles: N divides evenly, single (256, 256) tile per batch element.
    B, N, F = 2, 256, 8
    x = jax.random.normal(k1, (B, N, F), dtype=jnp.float32)
    out = jax.block_until_ready(expsinexp_kernel_layer_forward(x))
    ref = _reference(x)
    assert out.shape == (B, N, N)
    assert jnp.allclose(out, ref, atol=1e-3, rtol=1e-3)

    # Non-divisible N with small tiles: exercises the padded multi-tile path
    # (grid (2, 2, 2)) and the wrapper-side output slice.
    x2 = jax.random.normal(k2, (2, 200, 8), dtype=jnp.float32)
    out2 = jax.block_until_ready(
        expsinexp_kernel_layer_forward(x2, tm=128, tn=128))
    ref2 = _reference(x2)
    assert out2.shape == (2, 200, 200)
    assert jnp.allclose(out2, ref2, atol=1e-3, rtol=1e-3)

    print("KERNEL_OK")
</pallas_src>

<mosaic_0001>
module attributes {stable_mosaic.version = 11 : i64} {
  func.func @kernel(%arg0: i32, %arg1: i32, %arg2: i32, %arg3: memref<1x256x10xf32, #tpu.memory_space<vmem>>, %arg4: memref<1x10x256xf32, #tpu.memory_space<vmem>>, %arg5: memref<1x256x256xf32, #tpu.memory_space<vmem>>) attributes {dimension_semantics = [#tpu.dimension_semantics<parallel>, #tpu.dimension_semantics<parallel>, #tpu.dimension_semantics<parallel>], iteration_bounds = array<i64: 2, 1, 1>, scalar_prefetch = 0 : i64, scratch_operands = 0 : i64, tpu.core_type = #tpu.core_type<tc>, window_params = [{transform_indices = @transform_0, window_bounds = array<i64: 1, 256, 10>}, {transform_indices = @transform_1, window_bounds = array<i64: 1, 10, 256>}, {transform_indices = @transform_2, window_bounds = array<i64: 1, 256, 256>}]} {
    %c0 = arith.constant 0 : index
    %c0_0 = arith.constant 0 : index
    %c0_1 = arith.constant 0 : index
    %0 = vector.load %arg3[%c0, %c0_0, %c0_1] : memref<1x256x10xf32, #tpu.memory_space<vmem>>, vector<1x256x10xf32>
    %1 = vector.shape_cast %0 : vector<1x256x10xf32> to vector<256x10xf32>
    %c0_2 = arith.constant 0 : index
    %c0_3 = arith.constant 0 : index
    %c0_4 = arith.constant 0 : index
    %2 = vector.load %arg4[%c0_2, %c0_3, %c0_4] : memref<1x10x256xf32, #tpu.memory_space<vmem>>, vector<1x10x256xf32>
    %3 = vector.shape_cast %2 : vector<1x10x256xf32> to vector<10x256xf32>
    %cst = arith.constant dense<0.000000e+00> : vector<256x256xf32>
    %4 = tpu.matmul %1, %3, %cst {dimension_numbers = #tpu.dot_dimension_numbers<[1], [0], [0], [1], [0, 0, 1, 1], [], []>} : vector<256x10xf32>, vector<10x256xf32>, vector<256x256xf32> -> vector<256x256xf32>
    %cst_5 = arith.constant 0.000000e+00 : f32
    %5 = vector.broadcast %cst_5 : f32 to vector<256x256xf32>
    %6 = arith.maximumf %4, %5 : vector<256x256xf32>
    %cst_6 = arith.constant 1.200000e+00 : f32
    %7 = vector.broadcast %cst_6 : f32 to vector<256x256xf32>
    %8 = arith.mulf %6, %7 : vector<256x256xf32>
    %9 = math.sin %8 : vector<256x256xf32>
    %10 = arith.mulf %9, %9 : vector<256x256xf32>
    %cst_7 = arith.constant 1.000000e+00 : f32
    %11 = vector.broadcast %cst_7 : f32 to vector<256x256xf32>
    %12 = arith.mulf %10, %11 : vector<256x256xf32>
    %cst_8 = arith.constant 1.000000e+00 : f32
    %13 = vector.broadcast %cst_8 : f32 to vector<256x256xf32>
    %14 = arith.mulf %6, %13 : vector<256x256xf32>
    %15 = arith.addf %12, %14 : vector<256x256xf32>
    %cst_9 = arith.constant 0.000000e+00 : f32
    %16 = vector.broadcast %cst_9 : f32 to vector<256x256xf32>
    %17 = arith.subf %16, %15 : vector<256x256xf32>
    %18 = math.exp %17 : vector<256x256xf32>
    %c0_10 = arith.constant 0 : index
    %c0_11 = arith.constant 0 : index
    %c0_12 = arith.constant 0 : index
    %19 = vector.load %arg5[%c0_10, %c0_11, %c0_12] : memref<1x256x256xf32, #tpu.memory_space<vmem>>, vector<1x256x256xf32>
    %20 = vector.shape_cast %19 : vector<1x256x256xf32> to vector<256x256xf32>
    %21 = vector.shape_cast %18 : vector<256x256xf32> to vector<1x256x256xf32>
    tpu.vector_store %arg5[%c0_10, %c0_11, %c0_12], %21 {strides = array<i32>} : memref<1x256x256xf32, #tpu.memory_space<vmem>>, vector<1x256x256xf32>,
    return
  }
  func.func @transform_0(%arg0: i32, %arg1: i32, %arg2: i32) -> (i32, i32, i32) {
    %c0_i32 = arith.constant 0 : i32
    %c0_i32_0 = arith.constant 0 : i32
    return %arg0, %arg1, %c0_i32 : i32, i32, i32
  }
  func.func @transform_1(%arg0: i32, %arg1: i32, %arg2: i32) -> (i32, i32, i32) {
    %c0_i32 = arith.constant 0 : i32
    %c0_i32_0 = arith.constant 0 : i32
    return %arg0, %c0_i32, %arg2 : i32, i32, i32
  }
  func.func @transform_2(%arg0: i32, %arg1: i32, %arg2: i32) -> (i32, i32, i32) {
    %c0_i32 = arith.constant 0 : i32
    return %arg0, %arg1, %arg2 : i32, i32, i32
  }
}

</mosaic_0001>

<llo_original>
// kernel: tpu_custom_call.1
$region0: #{tpu_custom_call.1}
  #allocation0 [shape = 'u32[]', space=smem, size = 0x4, offset = 0x4, fixed_abs, tag = 'smem constant byte address 0x4 - core index']
  #allocation1 [shape = 'u32[72,128]{1,0:T(1,128)}', space=vmem, size = 0x9000, scoped, tag = 'internal scratch']
  %s0 = inlined_call_operand.vmem [shape: f32[2,256,10], index: 0, kind: input, shape index: {}]
  %s1 = inlined_call_operand.vmem [shape: f32[2,10,256], index: 1, kind: input, shape index: {}]
  %s2 = inlined_call_operand.hbm [shape: f32[2,256,256], index: 2, kind: output, shape index: {}]
  %s3 = sld [smem:[#allocation0]]
  $region41: #{tpu_custom_call.1} parent=0
    _
  %s5 = ssub.s32 1, %s3
  %s6 = scalar_select 0, %s5, %s3
  $region1: #{tpu_custom_call.1} parent=0
    #allocation2 [shape = 'u8[524288]{0}', space=vmem, size = 0x80000, scoped, tag = 'output window, operand 0']
    #allocation3 [shape = 's32[2]{0}', space=sflag, size = 0x8, scoped, tag = 'scoped memory for tpu_custom_call.1']
    %7 = vsyncpa [#allocation3], 0
    %s8 = scalar_lea.sflag [#allocation3], 1
    %9 = vsyncpa %s8, 0
    loop: start=0, step=1, limit=4
    $region2: #{tpu_custom_call.1} parent=1 // loop_pre_header
      _
    $region3: #{tpu_custom_call.1} parent=1 // loop_header
      %s11 = sphi 0, %s15
      %p12 = scmp.ge.s32.totalorder %s11, 4
      %s18 = sphi 0, %s37
      %s19 = sphi 0, %s33
      %s20 = sphi 0, %s29
      %s21 = sphi 0, %s18
      %s22 = sphi 0, %s19
      %s23 = sphi 0, %s20
      %s24 = sphi 0, %s21
      %s25 = sphi 0, %s22
      %s26 = sphi 0, %s23
      %s42 = sphi 0, %s44
      %s45 = sphi 0, %s42
      %s46 = sphi 0, %s45
      %s62 = sphi 0, %s46
      %s70 = sphi 0, %s72
      %s73 = sphi 0, %s70
      %s74 = sphi 0, %s73
      %s90 = sphi 0, %s74
      %s100 = sphi 0, %s102
      %s103 = sphi 0, %s100
      %s104 = sphi 0, %s103
      %s120 = sphi 0, %s104
    $region4: #{tpu_custom_call.1} parent=1 // loop_header_branch
      %14 = sbr.rel (%p12) target = $region8
    $region5: #{tpu_custom_call.1} parent=1 // loop_body
      %s16 = ssub.s32 %s11, 1
      %s17 = ssub.s32 %s11, 2
      %s27 = sadd.s32 1, %s20
      %p28 = scmp.ge.s32.totalorder %s27, 1
      %s29 = scalar_select %p28, 0, %s27
      %s30 = sadd.s32 1, %s19
      %s31 = scalar_select %p28, %s30, %s19
      %p32 = scmp.ge.s32.totalorder %s31, 1
      %s33 = scalar_select %p32, 0, %s31
      %s34 = sadd.s32 1, %s18
      %s35 = scalar_select %p32, %s34, %s18
      %p36 = scmp.ge.s32.totalorder %s35, 2
      %s37 = scalar_select %p36, 0, %s35
      %s38 = ssub.s32 %s18, %s37
      %s39 = ssub.s32 %s19, %s33
      %s40 = sor.u32 %s38, %s39
      %p41 = scmp.eq.s32.totalorder %s40, 0
      %s43 = sadd.s32 %s42, 1
      %s44 = scalar_select %p41, %s42, %s43
      %p47 = pneg %p41
      %p48 = scmp.eq.s32.totalorder %s11, 1
      %p49 = por %p47, %p48
      %p50 = scmp.ne.s32.totalorder %s42, %s45
      %p51 = scmp.eq.s32.totalorder %s11, 0
      %p52 = por %p50, %p51
      %p53 = scmp.ne.s32.totalorder %s42, %s45
      %p54 = scmp.eq.s32.totalorder %s16, 1
      %p55 = por %p53, %p54
      %p56 = scmp.ne.s32.totalorder %s45, %s46
      %p57 = scmp.eq.s32.totalorder %s16, 0
      %p58 = por %p56, %p57
      %p59 = scmp.ne.s32.totalorder %s45, %s46
      %p60 = scmp.eq.s32.totalorder %s17, 1
      %p61 = por %p59, %p60
      %p63 = scmp.ne.s32.totalorder %s46, %s62
      %p64 = scmp.eq.s32.totalorder %s17, 0
      %p65 = por %p63, %p64
      %s66 = ssub.s32 %s18, %s37
      %s67 = ssub.s32 %s20, %s29
      %s68 = sor.u32 %s66, %s67
      %p69 = scmp.eq.s32.totalorder %s68, 0
      %s71 = sadd.s32 %s70, 1
      %s72 = scalar_select %p69, %s70, %s71
      %p75 = pneg %p69
      %p76 = scmp.eq.s32.totalorder %s11, 1
      %p77 = por %p75, %p76
      %p78 = scmp.ne.s32.totalorder %s70, %s73
      %p79 = scmp.eq.s32.totalorder %s11, 0
      %p80 = por %p78, %p79
      %p81 = scmp.ne.s32.totalorder %s70, %s73
      %p82 = scmp.eq.s32.totalorder %s16, 1
      %p83 = por %p81, %p82
      %p84 = scmp.ne.s32.totalorder %s73, %s74
      %p85 = scmp.eq.s32.totalorder %s16, 0
      %p86 = por %p84, %p85
      %p87 = scmp.ne.s32.totalorder %s73, %s74
      %p88 = scmp.eq.s32.totalorder %s17, 1
      %p89 = por %p87, %p88
      %p91 = scmp.ne.s32.totalorder %s74, %s90
      %p92 = scmp.eq.s32.totalorder %s17, 0
      %p93 = por %p91, %p92
      %s94 = ssub.s32 %s18, %s37
      %s95 = ssub.s32 %s19, %s33
      %s96 = sor.u32 %s94, %s95
      %s97 = ssub.s32 %s20, %s29
      %s98 = sor.u32 %s96, %s97
      %p99 = scmp.eq.s32.totalorder %s98, 0
      %s101 = sadd.s32 %s100, 1
      %s102 = scalar_select %p99, %s100, %s101
      %p105 = pneg %p99
      %p106 = scmp.eq.s32.totalorder %s11, 1
      %p107 = por %p105, %p106
      %p108 = scmp.ne.s32.totalorder %s100, %s103
      %p109 = scmp.eq.s32.totalorder %s11, 0
      %p110 = por %p108, %p109
      %p111 = scmp.ne.s32.totalorder %s100, %s103
      %p112 = scmp.eq.s32.totalorder %s16, 1
      %p113 = por %p111, %p112
      %p114 = scmp.ne.s32.totalorder %s103, %s104
      %p115 = scmp.eq.s32.totalorder %s16, 0
      %p116 = por %p114, %p115
      %p117 = scmp.ne.s32.totalorder %s103, %s104
      %p118 = scmp.eq.s32.totalorder %s17, 1
      %p119 = por %p117, %p118
      %p121 = scmp.ne.s32.totalorder %s104, %s120
      %p122 = scmp.eq.s32.totalorder %s17, 0
      %p123 = por %p121, %p122
      %p124 = scmp.le.s32.totalorder 1, %s11
      %p125 = scmp.lt.s32.totalorder %s11, 3
      %p126 = pnand %p124, %p125
      %p127 = pneg %p126
      // Predicated region
      $region9: #{tpu_custom_call.1} parent=5 // pred_check
        _
      $region10: #{tpu_custom_call.1} parent=5 // pred_check_branch
        %129 = sbr.rel (%p126) target = $region12
      $region11: #{tpu_custom_call.1} parent=5 // pred_region
        %s130 = ssub.s32 %s11, 1
      $region12: #{tpu_custom_call.1} parent=5 // pred_fallthru
        _
      %p131 = scmp.lt.s32.totalorder %s11, 2
      // Predicated region
      $region13: #{tpu_custom_call.1} parent=5 // pred_check
        %p132 = pneg %p131
      $region14: #{tpu_custom_call.1} parent=5 // pred_check_branch
        %134 = sbr.rel (%p132) target = $region16
      $region15: #{tpu_custom_call.1} parent=5 // pred_region
        // Predicated region
        $region17: #{tpu_custom_call.1} parent=15 // pred_check
          %p135 = pneg %p52
        $region18: #{tpu_custom_call.1} parent=15 // pred_check_branch
          %137 = sbr.rel (%p135) target = $region20
        $region19: #{tpu_custom_call.1} parent=15 // pred_region
          %s138 = smul.u32 32, %s19
          %p139 = scmp.lt.s32.totalorder %s18, 1
          %s140 = scalar_select %p139, %s18, 1
          %p141 = scmp.lt.s32.totalorder %s138, 31
          %s142 = scalar_select %p141, %s138, 31
          %s143 = smul.addr %s140, 32
          %s144 = sadd.s32 %s142, %s143
          %s145 = smul.addr %s144, 8
          %s146 = scalar_lea.vmem %s0, %s145
          %s147 = smul.u32 32, %s19
        $region20: #{tpu_custom_call.1} parent=15 // pred_fallthru
          _
        // Predicated region
        $region21: #{tpu_custom_call.1} parent=15 // pred_check
          %p148 = pneg %p80
        $region22: #{tpu_custom_call.1} parent=15 // pred_check_branch
          %150 = sbr.rel (%p148) target = $region24
        $region23: #{tpu_custom_call.1} parent=15 // pred_region
          %s151 = smul.u32 2, %s20
          %p152 = scmp.lt.s32.totalorder %s18, 1
          %s153 = scalar_select %p152, %s18, 1
          %p154 = scmp.lt.s32.totalorder %s151, 1
          %s155 = scalar_select %p154, %s151, 1
          %s156 = smul.addr %s153, 4
          %s157 = sadd.s32 %s155, %s156
          %s158 = smul.addr %s157, 8
          %s159 = scalar_lea.vmem %s1, %s158
          %s160 = smul.u32 2, %s20
        $region24: #{tpu_custom_call.1} parent=15 // pred_fallthru
          _
      $region16: #{tpu_custom_call.1} parent=5 // pred_fallthru
        _
      %p161 = scmp.le.s32.totalorder 1, %s11
      %p162 = scmp.lt.s32.totalorder %s11, 3
      %p163 = pnand %p161, %p162
      %p164 = pneg %p163
      // Predicated region
      $region25: #{tpu_custom_call.1} parent=5 // pred_check
        _
      $region26: #{tpu_custom_call.1} parent=5 // pred_check_branch
        %166 = sbr.rel (%p163) target = $region28
      $region27: #{tpu_custom_call.1} parent=5 // pred_region
        %s167 = ssub.s32 %s11, 1
        %s168 = smul.u32 32, %s22
        %p169 = scmp.lt.s32.totalorder %s21, 1
        %s170 = scalar_select %p169, %s21, 1
        %p171 = scmp.lt.s32.totalorder %s168, 31
        %s172 = scalar_select %p171, %s168, 31
        %s173 = smul.addr %s170, 32
        %s174 = sadd.s32 %s172, %s173
        %s175 = smul.addr %s174, 8
        %s176 = scalar_lea.vmem %s0, %s175
        %p177 = pneg %p58
        %p178 = pneg %p55
        %s179 = smul.u32 2, %s23
        %p180 = scmp.lt.s32.totalorder %s21, 1
        %s181 = scalar_select %p180, %s21, 1
        %p182 = scmp.lt.s32.totalorder %s179, 1
        %s183 = scalar_select %p182, %s179, 1
        %s184 = smul.addr %s181, 4
        %s185 = sadd.s32 %s183, %s184
        %s186 = smul.addr %s185, 8
        %s187 = scalar_lea.vmem %s1, %s186
        %p188 = pneg %p86
        %p189 = pneg %p83
        %p190 = pneg %p116
        %p191 = pneg %p113
        %s192 = sand.u32 %s103, 1
        %s193 = scalar_lea.sflag [#allocation3], %s192
        %s194 = sand.u32 %s103, 1
        %s195 = smul.addr %s194, 512
        %s196 = scalar_lea.vmem [#allocation2], %s195
        %s197 = smul.u32 32, %s22
        %p198 = scmp.lt.s32.totalorder %s21, 1
        %s199 = scalar_select %p198, %s21, 1
        %p200 = scmp.lt.s32.totalorder %s197, 31
        %s201 = scalar_select %p200, %s197, 31
        %s202 = smul.addr %s199, 32
        %s203 = sadd.s32 %s201, %s202
        %s204 = smul.addr %s203, 8
        %s205 = scalar_lea.vmem %s0, %s204
        %s206 = smul.u32 32, %s22
        %s207 = smul.u32 2, %s23
        %p208 = scmp.lt.s32.totalorder %s21, 1
        %s209 = scalar_select %p208, %s21, 1
        %p210 = scmp.lt.s32.totalorder %s207, 1
        %s211 = scalar_select %p210, %s207, 1
        %s212 = smul.addr %s209, 4
        %s213 = sadd.s32 %s211, %s212
        %s214 = smul.addr %s213, 8
        %s215 = scalar_lea.vmem %s1, %s214
        %s216 = smul.u32 2, %s23
        %s217 = smul.u32 32, %s22
        %s218 = smul.u32 2, %s23
        %v219 = vld [vmem:[%s205] sm:$0xff]
        %v220 = vld [vmem:[%s205 + $0x8] sm:$0xff]
        %v221 = vld [vmem:[%s205 + $0x10] sm:$0xff]
        %v222 = vld [vmem:[%s205 + $0x18] sm:$0xff]
        %v223 = vld [vmem:[%s205 + $0x20] sm:$0xff]
        %v224 = vld [vmem:[%s205 + $0x28] sm:$0xff]
        %v225 = vld [vmem:[%s205 + $0x30] sm:$0xff]
        %v226 = vld [vmem:[%s205 + $0x38] sm:$0xff]
        %v227 = vld [vmem:[%s205 + $0x40] sm:$0xff]
        %v228 = vld [vmem:[%s205 + $0x48] sm:$0xff]
        %v229 = vld [vmem:[%s205 + $0x50] sm:$0xff]
        %v230 = vld [vmem:[%s205 + $0x58] sm:$0xff]
        %v231 = vld [vmem:[%s205 + $0x60] sm:$0xff]
        %v232 = vld [vmem:[%s205 + $0x68] sm:$0xff]
        %v233 = vld [vmem:[%s205 + $0x70] sm:$0xff]
        %v234 = vld [vmem:[%s205 + $0x78] sm:$0xff]
        %v235 = vld [vmem:[%s205 + $0x80] sm:$0xff]
        %v236 = vld [vmem:[%s205 + $0x88] sm:$0xff]
        %v237 = vld [vmem:[%s205 + $0x90] sm:$0xff]
        %v238 = vld [vmem:[%s205 + $0x98] sm:$0xff]
        %v239 = vld [vmem:[%s205 + $0xa0] sm:$0xff]
        %v240 = vld [vmem:[%s205 + $0xa8] sm:$0xff]
        %v241 = vld [vmem:[%s205 + $0xb0] sm:$0xff]
        %v242 = vld [vmem:[%s205 + $0xb8] sm:$0xff]
        %v243 = vld [vmem:[%s205 + $0xc0] sm:$0xff]
        %v244 = vld [vmem:[%s205 + $0xc8] sm:$0xff]
        %v245 = vld [vmem:[%s205 + $0xd0] sm:$0xff]
        %v246 = vld [vmem:[%s205 + $0xd8] sm:$0xff]
        %v247 = vld [vmem:[%s205 + $0xe0] sm:$0xff]
        %v248 = vld [vmem:[%s205 + $0xe8] sm:$0xff]
        %v249 = vld [vmem:[%s205 + $0xf0] sm:$0xff]
        %v250 = vld [vmem:[%s205 + $0xf8] sm:$0xff]
        %v251 = vld [vmem:[%s215] sm:$0xff]
        %v252 = vld [vmem:[%s215 + $0x8] sm:$0xff]
        %v253 = vld [vmem:[%s215 + $0x10] sm:$0x3]
        %v254 = vld [vmem:[%s215 + $0x18] sm:$0x3]
        %vm255 = vcmask 80896
        %v257 = vsel %vm255, %v219, 0
        %v260 = vsel %vm255, %v220, 0
        %v263 = vsel %vm255, %v221, 0
        %v266 = vsel %vm255, %v222, 0
        %v269 = vsel %vm255, %v223, 0
        %v272 = vsel %vm255, %v224, 0
        %v275 = vsel %vm255, %v225, 0
        %v278 = vsel %vm255, %v226, 0
        %v281 = vsel %vm255, %v227, 0
        %v284 = vsel %vm255, %v228, 0
        %v287 = vsel %vm255, %v229, 0
        %v290 = vsel %vm255, %v230, 0
        %v293 = vsel %vm255, %v231, 0
        %v296 = vsel %vm255, %v232, 0
        %v299 = vsel %vm255, %v233, 0
        %v302 = vsel %vm255, %v234, 0
        %v305 = vsel %vm255, %v235, 0
        %v308 = vsel %vm255, %v236, 0
        %v311 = vsel %vm255, %v237, 0
        %v314 = vsel %vm255, %v238, 0
        %v317 = vsel %vm255, %v239, 0
        %v320 = vsel %vm255, %v240, 0
        %v323 = vsel %vm255, %v241, 0
        %v326 = vsel %vm255, %v242, 0
        %v329 = vsel %vm255, %v243, 0
        %v332 = vsel %vm255, %v244, 0
        %v335 = vsel %vm255, %v245, 0
        %v338 = vsel %vm255, %v246, 0
        %v341 = vsel %vm255, %v247, 0
        %v344 = vsel %vm255, %v248, 0
        %v347 = vsel %vm255, %v249, 0
        %v350 = vsel %vm255, %v250, 0
        %vm352 = vcmask 1041408
        %v354 = vsel %vm352, %v253, 0
        %v357 = vsel %vm352, %v254, 0
        %359 = vmatpush.msra.mxu0 0.0
        %360 = vmatpush.msra.mxu0 0.0
        %361 = vmatpush.msra.mxu0 0.0
        %362 = vmatpush.msra.mxu0 0.0
        %363 = vmatpush.msra.mxu0 0.0
        %364 = vmatpush.msra.mxu0 0.0
        %365 = vmatpush.msra.mxu0 0.0
        %366 = vmatpush.msra.mxu0 0.0
        %367 = vmatpush.msra.mxu0 0.0
        %368 = vmatpush.msra.mxu0 0.0
        %369 = vmatpush.msra.mxu0 0.0
        %370 = vmatpush.msra.mxu0 0.0
        %371 = vmatpush.msra.mxu0 0.0
        %372 = vmatpush.msra.mxu0 0.0
        %373 = vmatpush.msra.mxu0 %v354
        %374 = vmatpush.msra.mxu0 %v251
        %375 = vmatmul.f32.gmra.mxu0 %v257
        %v376 = vpop.f32.mrf.mxu0
        %v377 = vadd.f32 0.0, %v376
        %378 = vmatmul.f32.gmra.mxu0 %v260
        %v379 = vpop.f32.mrf.mxu0
        %v380 = vadd.f32 0.0, %v379
        %381 = vmatmul.f32.gmra.mxu0 %v263
        %v382 = vpop.f32.mrf.mxu0
        %v383 = vadd.f32 0.0, %v382
        %384 = vmatmul.f32.gmra.mxu0 %v266
        %v385 = vpop.f32.mrf.mxu0
        %v386 = vadd.f32 0.0, %v385
        %387 = vmatmul.f32.gmra.mxu0 %v269
        %v388 = vpop.f32.mrf.mxu0
        %v389 = vadd.f32 0.0, %v388
        %390 = vmatmul.f32.gmra.mxu0 %v272
        %v391 = vpop.f32.mrf.mxu0
        %v392 = vadd.f32 0.0, %v391
        %393 = vmatmul.f32.gmra.mxu0 %v275
        %v394 = vpop.f32.mrf.mxu0
        %v395 = vadd.f32 0.0, %v394
        %396 = vmatmul.f32.gmra.mxu0 %v278
        %v397 = vpop.f32.mrf.mxu0
        %v398 = vadd.f32 0.0, %v397
        %399 = vmatmul.f32.gmra.mxu0 %v281
        %v400 = vpop.f32.mrf.mxu0
        %v401 = vadd.f32 0.0, %v400
        %402 = vmatmul.f32.gmra.mxu0 %v284
        %v403 = vpop.f32.mrf.mxu0
        %v404 = vadd.f32 0.0, %v403
        %405 = vmatmul.f32.gmra.mxu0 %v287
        %v406 = vpop.f32.mrf.mxu0
        %v407 = vadd.f32 0.0, %v406
        %408 = vmatmul.f32.gmra.mxu0 %v290
        %v409 = vpop.f32.mrf.mxu0
        %v410 = vadd.f32 0.0, %v409
        %411 = vmatmul.f32.gmra.mxu0 %v293
        %v412 = vpop.f32.mrf.mxu0
        %v413 = vadd.f32 0.0, %v412
        %414 = vmatmul.f32.gmra.mxu0 %v296
        %v415 = vpop.f32.mrf.mxu0
        %v416 = vadd.f32 0.0, %v415
        %417 = vmatmul.f32.gmra.mxu0 %v299
        %v418 = vpop.f32.mrf.mxu0
        %v419 = vadd.f32 0.0, %v418
        %420 = vmatmul.f32.gmra.mxu0 %v302
        %v421 = vpop.f32.mrf.mxu0
        %v422 = vadd.f32 0.0, %v421
        %423 = vmatmul.f32.gmra.mxu0 %v305
        %v424 = vpop.f32.mrf.mxu0
        %v425 = vadd.f32 0.0, %v424
        %426 = vmatmul.f32.gmra.mxu0 %v308
        %v427 = vpop.f32.mrf.mxu0
        %v428 = vadd.f32 0.0, %v427
        %429 = vmatmul.f32.gmra.mxu0 %v311
        %v430 = vpop.f32.mrf.mxu0
        %v431 = vadd.f32 0.0, %v430
        %432 = vmatmul.f32.gmra.mxu0 %v314
        %v433 = vpop.f32.mrf.mxu0
        %v434 = vadd.f32 0.0, %v433
        %435 = vmatmul.f32.gmra.mxu0 %v317
        %v436 = vpop.f32.mrf.mxu0
        %v437 = vadd.f32 0.0, %v436
        %438 = vmatmul.f32.gmra.mxu0 %v320
        %v439 = vpop.f32.mrf.mxu0
        %v440 = vadd.f32 0.0, %v439
        %441 = vmatmul.f32.gmra.mxu0 %v323
        %v442 = vpop.f32.mrf.mxu0
        %v443 = vadd.f32 0.0, %v442
        %444 = vmatmul.f32.gmra.mxu0 %v326
        %v445 = vpop.f32.mrf.mxu0
        %v446 = vadd.f32 0.0, %v445
        %447 = vmatmul.f32.gmra.mxu0 %v329
        %v448 = vpop.f32.mrf.mxu0
        %v449 = vadd.f32 0.0, %v448
        %450 = vmatmul.f32.gmra.mxu0 %v332
        %v451 = vpop.f32.mrf.mxu0
        %v452 = vadd.f32 0.0, %v451
        %453 = vmatmul.f32.gmra.mxu0 %v335
        %v454 = vpop.f32.mrf.mxu0
        %v455 = vadd.f32 0.0, %v454
        %456 = vmatmul.f32.gmra.mxu0 %v338
        %v457 = vpop.f32.mrf.mxu0
        %v458 = vadd.f32 0.0, %v457
        %459 = vmatmul.f32.gmra.mxu0 %v341
        %v460 = vpop.f32.mrf.mxu0
        %v461 = vadd.f32 0.0, %v460
        %462 = vmatmul.f32.gmra.mxu0 %v344
        %v463 = vpop.f32.mrf.mxu0
        %v464 = vadd.f32 0.0, %v463
        %465 = vmatmul.f32.gmra.mxu0 %v347
        %v466 = vpop.f32.mrf.mxu0
        %v467 = vadd.f32 0.0, %v466
        %468 = vmatmul.f32.gmra.mxu0 %v350
        %v469 = vpop.f32.mrf.mxu0
        %v470 = vadd.f32 0.0, %v469
        %471 = vdwg.mxu0
        %472 = vmatpush.msra.mxu0 0.0
        %473 = vmatpush.msra.mxu0 0.0
        %474 = vmatpush.msra.mxu0 0.0
        %475 = vmatpush.msra.mxu0 0.0
        %476 = vmatpush.msra.mxu0 0.0
        %477 = vmatpush.msra.mxu0 0.0
        %478 = vmatpush.msra.mxu0 0.0
        %479 = vmatpush.msra.mxu0 0.0
        %480 = vmatpush.msra.mxu0 0.0
        %481 = vmatpush.msra.mxu0 0.0
        %482 = vmatpush.msra.mxu0 0.0
        %483 = vmatpush.msra.mxu0 0.0
        %484 = vmatpush.msra.mxu0 0.0
        %485 = vmatpush.msra.mxu0 0.0
        %486 = vmatpush.msra.mxu0 %v357
        %487 = vmatpush.msra.mxu0 %v252
        %488 = vmatmul.f32.gmra.mxu0 %v257
        %v489 = vpop.f32.mrf.mxu0
        %v490 = vadd.f32 0.0, %v489
        %491 = vmatmul.f32.gmra.mxu0 %v260
        %v492 = vpop.f32.mrf.mxu0
        %v493 = vadd.f32 0.0, %v492
        %494 = vmatmul.f32.gmra.mxu0 %v263
        %v495 = vpop.f32.mrf.mxu0
        %v496 = vadd.f32 0.0, %v495
        %497 = vmatmul.f32.gmra.mxu0 %v266
        %v498 = vpop.f32.mrf.mxu0
        %v499 = vadd.f32 0.0, %v498
        %500 = vmatmul.f32.gmra.mxu0 %v269
        %v501 = vpop.f32.mrf.mxu0
        %v502 = vadd.f32 0.0, %v501
        %503 = vmatmul.f32.gmra.mxu0 %v272
        %v504 = vpop.f32.mrf.mxu0
        %v505 = vadd.f32 0.0, %v504
        %506 = vmatmul.f32.gmra.mxu0 %v275
        %v507 = vpop.f32.mrf.mxu0
        %v508 = vadd.f32 0.0, %v507
        %509 = vmatmul.f32.gmra.mxu0 %v278
        %v510 = vpop.f32.mrf.mxu0
        %v511 = vadd.f32 0.0, %v510
        %512 = vmatmul.f32.gmra.mxu0 %v281
        %v513 = vpop.f32.mrf.mxu0
        %v514 = vadd.f32 0.0, %v513
        %515 = vmatmul.f32.gmra.mxu0 %v284
        %v516 = vpop.f32.mrf.mxu0
        %v517 = vadd.f32 0.0, %v516
        %518 = vmatmul.f32.gmra.mxu0 %v287
        %v519 = vpop.f32.mrf.mxu0
        %v520 = vadd.f32 0.0, %v519
        %521 = vmatmul.f32.gmra.mxu0 %v290
        %v522 = vpop.f32.mrf.mxu0
        %v523 = vadd.f32 0.0, %v522
        %524 = vmatmul.f32.gmra.mxu0 %v293
        %v525 = vpop.f32.mrf.mxu0
        %v526 = vadd.f32 0.0, %v525
        %527 = vmatmul.f32.gmra.mxu0 %v296
        %v528 = vpop.f32.mrf.mxu0
        %v529 = vadd.f32 0.0, %v528
        %530 = vmatmul.f32.gmra.mxu0 %v299
        %v531 = vpop.f32.mrf.mxu0
        %v532 = vadd.f32 0.0, %v531
        %533 = vmatmul.f32.gmra.mxu0 %v302
        %v534 = vpop.f32.mrf.mxu0
        %v535 = vadd.f32 0.0, %v534
        %536 = vmatmul.f32.gmra.mxu0 %v305
        %v537 = vpop.f32.mrf.mxu0
        %v538 = vadd.f32 0.0, %v537
        %539 = vmatmul.f32.gmra.mxu0 %v308
        %v540 = vpop.f32.mrf.mxu0
        %v541 = vadd.f32 0.0, %v540
        %542 = vmatmul.f32.gmra.mxu0 %v311
        %v543 = vpop.f32.mrf.mxu0
        %v544 = vadd.f32 0.0, %v543
        %545 = vmatmul.f32.gmra.mxu0 %v314
        %v546 = vpop.f32.mrf.mxu0
        %v547 = vadd.f32 0.0, %v546
        %548 = vmatmul.f32.gmra.mxu0 %v317
        %v549 = vpop.f32.mrf.mxu0
        %v550 = vadd.f32 0.0, %v549
        %551 = vmatmul.f32.gmra.mxu0 %v320
        %v552 = vpop.f32.mrf.mxu0
        %v553 = vadd.f32 0.0, %v552
        %554 = vmatmul.f32.gmra.mxu0 %v323
        %v555 = vpop.f32.mrf.mxu0
        %v556 = vadd.f32 0.0, %v555
        %557 = vmatmul.f32.gmra.mxu0 %v326
        %v558 = vpop.f32.mrf.mxu0
        %v559 = vadd.f32 0.0, %v558
        %560 = vmatmul.f32.gmra.mxu0 %v329
        %v561 = vpop.f32.mrf.mxu0
        %v562 = vadd.f32 0.0, %v561
        %563 = vmatmul.f32.gmra.mxu0 %v332
        %v564 = vpop.f32.mrf.mxu0
        %v565 = vadd.f32 0.0, %v564
        %566 = vmatmul.f32.gmra.mxu0 %v335
        %v567 = vpop.f32.mrf.mxu0
        %v568 = vadd.f32 0.0, %v567
        %569 = vmatmul.f32.gmra.mxu0 %v338
        %v570 = vpop.f32.mrf.mxu0
        %v571 = vadd.f32 0.0, %v570
        %572 = vmatmul.f32.gmra.mxu0 %v341
        %v573 = vpop.f32.mrf.mxu0
        %v574 = vadd.f32 0.0, %v573
        %575 = vmatmul.f32.gmra.mxu0 %v344
        %v576 = vpop.f32.mrf.mxu0
        %v577 = vadd.f32 0.0, %v576
        %578 = vmatmul.f32.gmra.mxu0 %v347
        %v579 = vpop.f32.mrf.mxu0
        %v580 = vadd.f32 0.0, %v579
        %581 = vmatmul.f32.gmra.mxu0 %v350
        %v582 = vpop.f32.mrf.mxu0
        %v583 = vadd.f32 0.0, %v582
        %584 = vdwg.mxu0
        %v585 = vmax.f32 %v377, 0.0
        %v586 = vmax.f32 %v490, 0.0
        %v587 = vmax.f32 %v380, 0.0
        %v588 = vmax.f32 %v493, 0.0
        %v589 = vmax.f32 %v383, 0.0
        %v590 = vmax.f32 %v496, 0.0
        %v591 = vmax.f32 %v386, 0.0
        %v592 = vmax.f32 %v499, 0.0
        %v593 = vmax.f32 %v389, 0.0
        %v594 = vmax.f32 %v502, 0.0
        %v595 = vmax.f32 %v392, 0.0
        %v596 = vmax.f32 %v505, 0.0
        %v597 = vmax.f32 %v395, 0.0
        %v598 = vmax.f32 %v508, 0.0
        %v599 = vmax.f32 %v398, 0.0
        %v600 = vmax.f32 %v511, 0.0
        %v601 = vmax.f32 %v401, 0.0
        %v602 = vmax.f32 %v514, 0.0
        %v603 = vmax.f32 %v404, 0.0
        %v604 = vmax.f32 %v517, 0.0
        %v605 = vmax.f32 %v407, 0.0
        %v606 = vmax.f32 %v520, 0.0
        %v607 = vmax.f32 %v410, 0.0
        %v608 = vmax.f32 %v523, 0.0
        %v609 = vmax.f32 %v413, 0.0
        %v610 = vmax.f32 %v526, 0.0
        %v611 = vmax.f32 %v416, 0.0
        %v612 = vmax.f32 %v529, 0.0
        %v613 = vmax.f32 %v419, 0.0
        %v614 = vmax.f32 %v532, 0.0
        %v615 = vmax.f32 %v422, 0.0
        %v616 = vmax.f32 %v535, 0.0
        %v617 = vmax.f32 %v425, 0.0
        %v618 = vmax.f32 %v538, 0.0
        %v619 = vmax.f32 %v428, 0.0
        %v620 = vmax.f32 %v541, 0.0
        %v621 = vmax.f32 %v431, 0.0
        %v622 = vmax.f32 %v544, 0.0
        %v623 = vmax.f32 %v434, 0.0
        %v624 = vmax.f32 %v547, 0.0
        %v625 = vmax.f32 %v437, 0.0
        %v626 = vmax.f32 %v550, 0.0
        %v627 = vmax.f32 %v440, 0.0
        %v628 = vmax.f32 %v553, 0.0
        %v629 = vmax.f32 %v443, 0.0
        %v630 = vmax.f32 %v556, 0.0
        %v631 = vmax.f32 %v446, 0.0
        %v632 = vmax.f32 %v559, 0.0
        %v633 = vmax.f32 %v449, 0.0
        %v634 = vmax.f32 %v562, 0.0
        %v635 = vmax.f32 %v452, 0.0
        %v636 = vmax.f32 %v565, 0.0
        %v637 = vmax.f32 %v455, 0.0
        %v638 = vmax.f32 %v568, 0.0
        %v639 = vmax.f32 %v458, 0.0
        %v640 = vmax.f32 %v571, 0.0
        %v641 = vmax.f32 %v461, 0.0
        %v642 = vmax.f32 %v574, 0.0
        %v643 = vmax.f32 %v464, 0.0
        %v644 = vmax.f32 %v577, 0.0
        %v645 = vmax.f32 %v467, 0.0
        %v646 = vmax.f32 %v580, 0.0
        %v647 = vmax.f32 %v470, 0.0
        %v648 = vmax.f32 %v583, 0.0
        %v649 = vmul.f32 %v585, 1.2
        %v650 = vmul.f32 %v586, 1.2
        %v651 = vmul.f32 %v587, 1.2
        %v652 = vmul.f32 %v588, 1.2
        %v653 = vmul.f32 %v589, 1.2
        %v654 = vmul.f32 %v590, 1.2
        %v655 = vmul.f32 %v591, 1.2
        %v656 = vmul.f32 %v592, 1.2
        %v657 = vmul.f32 %v593, 1.2
        %v658 = vmul.f32 %v594, 1.2
        %v659 = vmul.f32 %v595, 1.2
        %v660 = vmul.f32 %v596, 1.2
        %v661 = vmul.f32 %v597, 1.2
        %v662 = vmul.f32 %v598, 1.2
        %v663 = vmul.f32 %v599, 1.2
        %v664 = vmul.f32 %v600, 1.2
        %v665 = vmul.f32 %v601, 1.2
        %v666 = vmul.f32 %v602, 1.2
        %v667 = vmul.f32 %v603, 1.2
        %v668 = vmul.f32 %v604, 1.2
        %v669 = vmul.f32 %v605, 1.2
        %v670 = vmul.f32 %v606, 1.2
        %v671 = vmul.f32 %v607, 1.2
        %v672 = vmul.f32 %v608, 1.2
        %v673 = vmul.f32 %v609, 1.2
        %v674 = vmul.f32 %v610, 1.2
        %v675 = vmul.f32 %v611, 1.2
        %v676 = vmul.f32 %v612, 1.2
        %v677 = vmul.f32 %v613, 1.2
        %v678 = vmul.f32 %v614, 1.2
        %v679 = vmul.f32 %v615, 1.2
        %v680 = vmul.f32 %v616, 1.2
        %v681 = vmul.f32 %v617, 1.2
        %v682 = vmul.f32 %v618, 1.2
        %v683 = vmul.f32 %v619, 1.2
        %v684 = vmul.f32 %v620, 1.2
        %v685 = vmul.f32 %v621, 1.2
        %v686 = vmul.f32 %v622, 1.2
        %v687 = vmul.f32 %v623, 1.2
        %v688 = vmul.f32 %v624, 1.2
        %v689 = vmul.f32 %v625, 1.2
        %v690 = vmul.f32 %v626, 1.2
        %v691 = vmul.f32 %v627, 1.2
        %v692 = vmul.f32 %v628, 1.2
        %v693 = vmul.f32 %v629, 1.2
        %v694 = vmul.f32 %v630, 1.2
        %v695 = vmul.f32 %v631, 1.2
        %v696 = vmul.f32 %v632, 1.2
        %v697 = vmul.f32 %v633, 1.2
        %v698 = vmul.f32 %v634, 1.2
        %v699 = vmul.f32 %v635, 1.2
        %v700 = vmul.f32 %v636, 1.2
        %v701 = vmul.f32 %v637, 1.2
        %v702 = vmul.f32 %v638, 1.2
        %v703 = vmul.f32 %v639, 1.2
        %v704 = vmul.f32 %v640, 1.2
        %v705 = vmul.f32 %v641, 1.2
        %v706 = vmul.f32 %v642, 1.2
        %v707 = vmul.f32 %v643, 1.2
        %v708 = vmul.f32 %v644, 1.2
        %v709 = vmul.f32 %v645, 1.2
        %v710 = vmul.f32 %v646, 1.2
        %v711 = vmul.f32 %v647, 1.2
        %v712 = vmul.f32 %v648, 1.2
        %v713 = vand.u32 2147483647, %v649
        %vm714 = vcmp.le.f32.partialorder %v713, 0.7853982
        %vm715 = vcmp.lt.s32.totalorder %v649, 0
        %v716 = vand.u32 %v649, 2139095040
        %v717 = vshrl.u32 %v716, 23
        %v718 = vsub.s32 %v717, 127
        %v719 = vand.u32 2147483647, %v649
        %v720 = vand.u32 %v719, 8388607
        %v721 = vor.u32 %v720, 8388608
        %v722 = vsub.s32 0, %v721
        %v723 = vadd.s32 %v718, 1
        %vm724 = vcmp.gt.s32.totalorder %v723, 0
        %v725 = vsel %vm724, %v723, 0
        %v726 = vshrl.u32 %v725, 5
        %v727 = vand.u32 %v725, 31
        %v728 = vsub.s32 32, %v727
        %v729 = vshrl.u32 683565275, %v728
        %v730 = vshll.u32 683565275, %v727
        %v731 = vshrl.u32 2475754826, %v728
        %v732 = vor.u32 %v730, %v731
        %v733 = vshll.u32 2475754826, %v727
        %v734 = vshrl.u32 2131351028, %v728
        %v735 = vor.u32 %v733, %v734
        %v736 = vshll.u32 2131351028, %v727
        %v737 = vshrl.u32 2102212464, %v728
        %v738 = vor.u32 %v736, %v737
        %v739 = vshll.u32 2102212464, %v727
        %v740 = vshrl.u32 920167782, %v728
        %v741 = vor.u32 %v739, %v740
        %v742 = vshll.u32 920167782, %v727
        %v743 = vshrl.u32 1326507024, %v728
        %v744 = vor.u32 %v742, %v743
        %vm745 = vcmp.lt.s32.totalorder %v726, 1
        %vm746 = vcmp.lt.s32.totalorder %v726, 2
        %vm747 = vcmp.lt.s32.totalorder %v726, 3
        %vm748 = vcmp.lt.s32.totalorder %v726, 4
        %v749 = vsel %vm745, %v729, %v732
        %v750 = vsel %vm748, %v738, 2102212464
        %v751 = vsel %vm747, %v735, %v750
        %v752 = vsel %vm746, %v749, %v751
        %v753 = vsel %vm745, %v732, %v735
        %v754 = vsel %vm748, %v741, 920167782
        %v755 = vsel %vm747, %v738, %v754
        %v756 = vsel %vm746, %v753, %v755
        %v757 = vsel %vm745, %v735, %v738
        %v758 = vsel %vm748, %v744, 1326507024
        %v759 = vsel %vm747, %v741, %v758
        %v760 = vsel %vm746, %v757, %v759
        %v761 = vshll.u32 %v721, 8
        %v762 = vand.u32 %v761, 65535
        %v763 = vshrl.u32 %v761, 16
        %v764 = vand.u32 %v760, 65535
        %v765 = vshrl.u32 %v760, 16
        %v766 = vmul.u32 %v762, %v764
        %v767 = vmul.u32 %v762, %v765
        %v768 = vmul.u32 %v763, %v764
        %v769 = vmul.u32 %v763, %v765
        %v770 = vshll.u32 %v767, 16
        %v771 = vshrl.u32 %v767, 16
        %v772 = vshll.u32 %v768, 16
        %v773 = vshrl.u32 %v768, 16
        %vm774 = vc.u32 %v766, %v770
        %v775 = vsel %vm774, 1, 0
        %v776 = vadd.s32 %v766, %v770
        %v777 = vadd.s32 %v769, %v775
        %vm778 = vc.u32 %v776, %v772
        %v779 = vsel %vm778, 1, 0
        %v780 = vadd.s32 %v776, %v772
        %v781 = vadd.s32 %v777, %v779
        %v782 = vadd.s32 %v781, %v771
        %v783 = vadd.s32 %v782, %v773
        %v784 = vand.u32 %v761, 65535
        %v785 = vshrl.u32 %v761, 16
        %v786 = vand.u32 %v756, 65535
        %v787 = vshrl.u32 %v756, 16
        %v788 = vmul.u32 %v784, %v786
        %v789 = vmul.u32 %v784, %v787
        %v790 = vmul.u32 %v785, %v786
        %v791 = vmul.u32 %v785, %v787
        %v792 = vshll.u32 %v789, 16
        %v793 = vshrl.u32 %v789, 16
        %v794 = vshll.u32 %v790, 16
        %v795 = vshrl.u32 %v790, 16
        %vm796 = vc.u32 %v788, %v792
        %v797 = vsel %vm796, 1, 0
        %v798 = vadd.s32 %v788, %v792
        %v799 = vadd.s32 %v791, %v797
        %vm800 = vc.u32 %v798, %v794
        %v801 = vsel %vm800, 1, 0
        %v802 = vadd.s32 %v798, %v794
        %v803 = vadd.s32 %v799, %v801
        %v804 = vadd.s32 %v803, %v793
        %v805 = vadd.s32 %v804, %v795
        %v806 = vmul.u32 %v761, %v752
        %v807 = vadd.s32 %v783, %v802
        %vm808 = vc.u32 %v783, %v802
        %v809 = vadd.s32 %v805, 1
        %v810 = vsel %vm808, %v809, %v805
        %v811 = vadd.s32 %v806, %v810
        %v812 = vadd.s32 %v811, 536870912
        %v813 = vshrl.u32 %v812, 30
        %v814 = vshll.u32 %v813, 30
        %v815 = vsub.s32 %v811, %v814
        %vm816 = vcmp.lt.s32.totalorder %v815, 0
        %v817 = vsub.s32 0, %v815
        %v818 = vsel %vm816, %v817, %v815
        %v819 = vclz %v818
        %v820 = vsub.s32 %v819, 2
        %vm821 = vcmp.gt.s32.totalorder 0, %v820
        %v822 = vsel %vm821, 0, %v820
        %v823 = vsub.s32 32, %v822
        %v824 = vshll.u32 %v815, %v822
        %v825 = vshrl.u32 %v807, %v823
        %v826 = vor.u32 %v824, %v825
        %v827 = vsub.s32 4294967266, %v822
        %v828 = vadd.s32 %v827, 127
        %v829 = vshll.u32 %v828, 23
        %v830 = vor.u32 4788187, %v829
        %v831 = vand.u32 2147483647, %v830
        %v833 = vcvt.s32.f32 %v826
        %v834 = vmul.f32 %v833, %v831
        %v835 = vxor.u32 %v834, 2147483648
        %v836 = vsel %vm715, %v835, %v834
        %v837 = vsub.s32 4, %v813
        %v838 = vsel %vm715, %v837, %v813
        %v839 = vsel %vm714, %v649, %v836
        %v840 = vsel %vm714, 0, %v838
        %v841 = vmul.f32 %v839, %v839
        %v842 = vmul.f32 %v841, -0.001358992
        %v843 = vadd.f32 %v842, 0.041655596
        %v844 = vmul.f32 %v841, %v843
        %v845 = vadd.f32 %v844, -0.4999988
        %v846 = vmul.f32 %v841, %v845
        %v847 = vadd.f32 1.0, %v846
        %v848 = vmul.f32 %v839, %v839
        %v849 = vmul.f32 %v848, -0.00019511016
        %v850 = vadd.f32 %v849, 0.008332121
        %v851 = vmul.f32 %v848, %v850
        %v852 = vadd.f32 %v851, -0.16666654
        %v853 = vmul.f32 %v848, %v852
        %v854 = vadd.f32 %v853, 1.0
        %v855 = vmul.f32 %v854, %v839
        %vm856 = vweird.f32 %v649
        %v857 = vadd.s32 %v840, 3
        %v858 = vand.u32 %v857, 3
        %vm859 = vcmp.lt.s32.totalorder %v858, 2
        %vm860 = vcmp.eq.s32.totalorder %v858, 0
        %v861 = vxor.u32 %v855, 2147483648
        %v862 = vsel %vm860, %v847, %v861
        %vm863 = vcmp.eq.s32.totalorder %v858, 2
        %v864 = vxor.u32 %v847, 2147483648
        %v865 = vsel %vm863, %v864, %v855
        %v866 = vsel %vm859, %v862, %v865
        %v867 = vsel %vm856, nan, %v866
        %v868 = vand.u32 2147483647, %v650
        %vm869 = vcmp.le.f32.partialorder %v868, 0.7853982
        %vm870 = vcmp.lt.s32.totalorder %v650, 0
        %v871 = vand.u32 %v650, 2139095040
        %v872 = vshrl.u32 %v871, 23
        %v873 = vsub.s32 %v872, 127
        %v874 = vand.u32 2147483647, %v650
        %v875 = vand.u32 %v874, 8388607
        %v876 = vor.u32 %v875, 8388608
        %v877 = vsub.s32 0, %v876
        %v878 = vadd.s32 %v873, 1
        %vm879 = vcmp.gt.s32.totalorder %v878, 0
        %v880 = vsel %vm879, %v878, 0
        %v881 = vshrl.u32 %v880, 5
        %v882 = vand.u32 %v880, 31
        %v883 = vsub.s32 32, %v882
        %v884 = vshrl.u32 683565275, %v883
        %v885 = vshll.u32 683565275, %v882
        %v886 = vshrl.u32 2475754826, %v883
        %v887 = vor.u32 %v885, %v886
        %v888 = vshll.u32 2475754826, %v882
        %v889 = vshrl.u32 2131351028, %v883
        %v890 = vor.u32 %v888, %v889
        %v891 = vshll.u32 2131351028, %v882
        %v892 = vshrl.u32 2102212464, %v883
        %v893 = vor.u32 %v891, %v892
        %v894 = vshll.u32 2102212464, %v882
        %v895 = vshrl.u32 920167782, %v883
        %v896 = vor.u32 %v894, %v895
        %v897 = vshll.u32 920167782, %v882
        %v898 = vshrl.u32 1326507024, %v883
        %v899 = vor.u32 %v897, %v898
        %vm900 = vcmp.lt.s32.totalorder %v881, 1
        %vm901 = vcmp.lt.s32.totalorder %v881, 2
        %vm902 = vcmp.lt.s32.totalorder %v881, 3
        %vm903 = vcmp.lt.s32.totalorder %v881, 4
        %v904 = vsel %vm900, %v884, %v887
        %v905 = vsel %vm903, %v893, 2102212464
        %v906 = vsel %vm902, %v890, %v905
        %v907 = vsel %vm901, %v904, %v906
        %v908 = vsel %vm900, %v887, %v890
        %v909 = vsel %vm903, %v896, 920167782
        %v910 = vsel %vm902, %v893, %v909
        %v911 = vsel %vm901, %v908, %v910
        %v912 = vsel %vm900, %v890, %v893
        %v913 = vsel %vm903, %v899, 1326507024
        %v914 = vsel %vm902, %v896, %v913
        %v915 = vsel %vm901, %v912, %v914
        %v916 = vshll.u32 %v876, 8
        %v917 = vand.u32 %v916, 65535
        %v918 = vshrl.u32 %v916, 16
        %v919 = vand.u32 %v915, 65535
        %v920 = vshrl.u32 %v915, 16
        %v921 = vmul.u32 %v917, %v919
        %v922 = vmul.u32 %v917, %v920
        %v923 = vmul.u32 %v918, %v919
        %v924 = vmul.u32 %v918, %v920
        %v925 = vshll.u32 %v922, 16
        %v926 = vshrl.u32 %v922, 16
        %v927 = vshll.u32 %v923, 16
        %v928 = vshrl.u32 %v923, 16
        %vm929 = vc.u32 %v921, %v925
        %v930 = vsel %vm929, 1, 0
        %v931 = vadd.s32 %v921, %v925
        %v932 = vadd.s32 %v924, %v930
        %vm933 = vc.u32 %v931, %v927
        %v934 = vsel %vm933, 1, 0
        %v935 = vadd.s32 %v931, %v927
        %v936 = vadd.s32 %v932, %v934
        %v937 = vadd.s32 %v936, %v926
        %v938 = vadd.s32 %v937, %v928
        %v939 = vand.u32 %v916, 65535
        %v940 = vshrl.u32 %v916, 16
        %v941 = vand.u32 %v911, 65535
        %v942 = vshrl.u32 %v911, 16
        %v943 = vmul.u32 %v939, %v941
        %v944 = vmul.u32 %v939, %v942
        %v945 = vmul.u32 %v940, %v941
        %v946 = vmul.u32 %v940, %v942
        %v947 = vshll.u32 %v944, 16
        %v948 = vshrl.u32 %v944, 16
        %v949 = vshll.u32 %v945, 16
        %v950 = vshrl.u32 %v945, 16
        %vm951 = vc.u32 %v943, %v947
        %v952 = vsel %vm951, 1, 0
        %v953 = vadd.s32 %v943, %v947
        %v954 = vadd.s32 %v946, %v952
        %vm955 = vc.u32 %v953, %v949
        %v956 = vsel %vm955, 1, 0
        %v957 = vadd.s32 %v953, %v949
        %v958 = vadd.s32 %v954, %v956
        %v959 = vadd.s32 %v958, %v948
        %v960 = vadd.s32 %v959, %v950
        %v961 = vmul.u32 %v916, %v907
        %v962 = vadd.s32 %v938, %v957
        %vm963 = vc.u32 %v938, %v957
        %v964 = vadd.s32 %v960, 1
        %v965 = vsel %vm963, %v964, %v960
        %v966 = vadd.s32 %v961, %v965
        %v967 = vadd.s32 %v966, 536870912
        %v968 = vshrl.u32 %v967, 30
        %v969 = vshll.u32 %v968, 30
        %v970 = vsub.s32 %v966, %v969
        %vm971 = vcmp.lt.s32.totalorder %v970, 0
        %v972 = vsub.s32 0, %v970
        %v973 = vsel %vm971, %v972, %v970
        %v974 = vclz %v973
        %v975 = vsub.s32 %v974, 2
        %vm976 = vcmp.gt.s32.totalorder 0, %v975
        %v977 = vsel %vm976, 0, %v975
        %v978 = vsub.s32 32, %v977
        %v979 = vshll.u32 %v970, %v977
        %v980 = vshrl.u32 %v962, %v978
        %v981 = vor.u32 %v979, %v980
        %v982 = vsub.s32 4294967266, %v977
        %v983 = vadd.s32 %v982, 127
        %v984 = vshll.u32 %v983, 23
        %v985 = vor.u32 4788187, %v984
        %v986 = vand.u32 2147483647, %v985
        %v988 = vcvt.s32.f32 %v981
        %v989 = vmul.f32 %v988, %v986
        %v990 = vxor.u32 %v989, 2147483648
        %v991 = vsel %vm870, %v990, %v989
        %v992 = vsub.s32 4, %v968
        %v993 = vsel %vm870, %v992, %v968
        %v994 = vsel %vm869, %v650, %v991
        %v995 = vsel %vm869, 0, %v993
        %v996 = vmul.f32 %v994, %v994
        %v997 = vmul.f32 %v996, -0.001358992
        %v998 = vadd.f32 %v997, 0.041655596
        %v999 = vmul.f32 %v996, %v998
        %v1000 = vadd.f32 %v999, -0.4999988
        %v1001 = vmul.f32 %v996, %v1000
        %v1002 = vadd.f32 1.0, %v1001
        %v1003 = vmul.f32 %v994, %v994
        %v1004 = vmul.f32 %v1003, -0.00019511016
        %v1005 = vadd.f32 %v1004, 0.008332121
        %v1006 = vmul.f32 %v1003, %v1005
        %v1007 = vadd.f32 %v1006, -0.16666654
        %v1008 = vmul.f32 %v1003, %v1007
        %v1009 = vadd.f32 %v1008, 1.0
        %v1010 = vmul.f32 %v1009, %v994
        %vm1011 = vweird.f32 %v650
        %v1012 = vadd.s32 %v995, 3
        %v1013 = vand.u32 %v1012, 3
        %vm1014 = vcmp.lt.s32.totalorder %v1013, 2
        %vm1015 = vcmp.eq.s32.totalorder %v1013, 0
        %v1016 = vxor.u32 %v1010, 2147483648
        %v1017 = vsel %vm1015, %v1002, %v1016
        %vm1018 = vcmp.eq.s32.totalorder %v1013, 2
        %v1019 = vxor.u32 %v1002, 2147483648
        %v1020 = vsel %vm1018, %v1019, %v1010
        %v1021 = vsel %vm1014, %v1017, %v1020
        %v1022 = vsel %vm1011, nan, %v1021
        %v1023 = vand.u32 2147483647, %v651
        %vm1024 = vcmp.le.f32.partialorder %v1023, 0.7853982
        %vm1025 = vcmp.lt.s32.totalorder %v651, 0
        %v1026 = vand.u32 %v651, 2139095040
        %v1027 = vshrl.u32 %v1026, 23
        %v1028 = vsub.s32 %v1027, 127
        %v1029 = vand.u32 2147483647, %v651
        %v1030 = vand.u32 %v1029, 8388607
        %v1031 = vor.u32 %v1030, 8388608
        %v1032 = vsub.s32 0, %v1031
        %v1033 = vadd.s32 %v1028, 1
        %vm1034 = vcmp.gt.s32.totalorder %v1033, 0
        %v1035 = vsel %vm1034, %v1033, 0
        %v1036 = vshrl.u32 %v1035, 5
        %v1037 = vand.u32 %v1035, 31
        %v1038 = vsub.s32 32, %v1037
        %v1039 = vshrl.u32 683565275, %v1038
        %v1040 = vshll.u32 683565275, %v1037
        %v1041 = vshrl.u32 2475754826, %v1038
        %v1042 = vor.u32 %v1040, %v1041
        %v1043 = vshll.u32 2475754826, %v1037
        %v1044 = vshrl.u32 2131351028, %v1038
        %v1045 = vor.u32 %v1043, %v1044
        %v1046 = vshll.u32 2131351028, %v1037
        %v1047 = vshrl.u32 2102212464, %v1038
        %v1048 = vor.u32 %v1046, %v1047
        %v1049 = vshll.u32 2102212464, %v1037
        %v1050 = vshrl.u32 920167782, %v1038
        %v1051 = vor.u32 %v1049, %v1050
        %v1052 = vshll.u32 920167782, %v1037
        %v1053 = vshrl.u32 1326507024, %v1038
        %v1054 = vor.u32 %v1052, %v1053
        %vm1055 = vcmp.lt.s32.totalorder %v1036, 1
        %vm1056 = vcmp.lt.s32.totalorder %v1036, 2
        %vm1057 = vcmp.lt.s32.totalorder %v1036, 3
        %vm1058 = vcmp.lt.s32.totalorder %v1036, 4
        %v1059 = vsel %vm1055, %v1039, %v1042
        %v1060 = vsel %vm1058, %v1048, 2102212464
        %v1061 = vsel %vm1057, %v1045, %v1060
        %v1062 = vsel %vm1056, %v1059, %v1061
        %v1063 = vsel %vm1055, %v1042, %v1045
        %v1064 = vsel %vm1058, %v1051, 920167782
        %v1065 = vsel %vm1057, %v1048, %v1064
        %v1066 = vsel %vm1056, %v1063, %v1065
        %v1067 = vsel %vm1055, %v1045, %v1048
        %v1068 = vsel %vm1058, %v1054, 1326507024
        %v1069 = vsel %vm1057, %v1051, %v1068
        %v1070 = vsel %vm1056, %v1067, %v1069
        %v1071 = vshll.u32 %v1031, 8
        %v1072 = vand.u32 %v1071, 65535
        %v1073 = vshrl.u32 %v1071, 16
        %v1074 = vand.u32 %v1070, 65535
        %v1075 = vshrl.u32 %v1070, 16
        %v1076 = vmul.u32 %v1072, %v1074
        %v1077 = vmul.u32 %v1072, %v1075
        %v1078 = vmul.u32 %v1073, %v1074
        %v1079 = vmul.u32 %v1073, %v1075
        %v1080 = vshll.u32 %v1077, 16
        %v1081 = vshrl.u32 %v1077, 16
        %v1082 = vshll.u32 %v1078, 16
        %v1083 = vshrl.u32 %v1078, 16
        %vm1084 = vc.u32 %v1076, %v1080
        %v1085 = vsel %vm1084, 1, 0
        %v1086 = vadd.s32 %v1076, %v1080
        %v1087 = vadd.s32 %v1079, %v1085
        %vm1088 = vc.u32 %v1086, %v1082
        %v1089 = vsel %vm1088, 1, 0
        %v1090 = vadd.s32 %v1086, %v1082
        %v1091 = vadd.s32 %v1087, %v1089
        %v1092 = vadd.s32 %v1091, %v1081
        %v1093 = vadd.s32 %v1092, %v1083
        %v1094 = vand.u32 %v1071, 65535
        %v1095 = vshrl.u32 %v1071, 16
        %v1096 = vand.u32 %v1066, 65535
        %v1097 = vshrl.u32 %v1066, 16
        %v1098 = vmul.u32 %v1094, %v1096
        %v1099 = vmul.u32 %v1094, %v1097
        %v1100 = vmul.u32 %v1095, %v1096
        %v1101 = vmul.u32 %v1095, %v1097
        %v1102 = vshll.u32 %v1099, 16
        %v1103 = vshrl.u32 %v1099, 16
        %v1104 = vshll.u32 %v1100, 16
        %v1105 = vshrl.u32 %v1100, 16
        %vm1106 = vc.u32 %v1098, %v1102
        %v1107 = vsel %vm1106, 1, 0
        %v1108 = vadd.s32 %v1098, %v1102
        %v1109 = vadd.s32 %v1101, %v1107
        %vm1110 = vc.u32 %v1108, %v1104
        %v1111 = vsel %vm1110, 1, 0
        %v1112 = vadd.s32 %v1108, %v1104
        %v1113 = vadd.s32 %v1109, %v1111
        %v1114 = vadd.s32 %v1113, %v1103
        %v1115 = vadd.s32 %v1114, %v1105
        %v1116 = vmul.u32 %v1071, %v1062
        %v1117 = vadd.s32 %v1093, %v1112
        %vm1118 = vc.u32 %v1093, %v1112
        %v1119 = vadd.s32 %v1115, 1
        %v1120 = vsel %vm1118, %v1119, %v1115
        %v1121 = vadd.s32 %v1116, %v1120
        %v1122 = vadd.s32 %v1121, 536870912
        %v1123 = vshrl.u32 %v1122, 30
        %v1124 = vshll.u32 %v1123, 30
        %v1125 = vsub.s32 %v1121, %v1124
        %vm1126 = vcmp.lt.s32.totalorder %v1125, 0
        %v1127 = vsub.s32 0, %v1125
        %v1128 = vsel %vm1126, %v1127, %v1125
        %v1129 = vclz %v1128
        %v1130 = vsub.s32 %v1129, 2
        %vm1131 = vcmp.gt.s32.totalorder 0, %v1130
        %v1132 = vsel %vm1131, 0, %v1130
        %v1133 = vsub.s32 32, %v1132
        %v1134 = vshll.u32 %v1125, %v1132
        %v1135 = vshrl.u32 %v1117, %v1133
        %v1136 = vor.u32 %v1134, %v1135
        %v1137 = vsub.s32 4294967266, %v1132
        %v1138 = vadd.s32 %v1137, 127
        %v1139 = vshll.u32 %v1138, 23
        %v1140 = vor.u32 4788187, %v1139
        %v1141 = vand.u32 2147483647, %v1140
        %v1143 = vcvt.s32.f32 %v1136
        %v1144 = vmul.f32 %v1143, %v1141
        %v1145 = vxor.u32 %v1144, 2147483648
        %v1146 = vsel %vm1025, %v1145, %v1144
        %v1147 = vsub.s32 4, %v1123
        %v1148 = vsel %vm1025, %v1147, %v1123
        %v1149 = vsel %vm1024, %v651, %v1146
        %v1150 = vsel %vm1024, 0, %v1148
        %v1151 = vmul.f32 %v1149, %v1149
        %v1152 = vmul.f32 %v1151, -0.001358992
        %v1153 = vadd.f32 %v1152, 0.041655596
        %v1154 = vmul.f32 %v1151, %v1153
        %v1155 = vadd.f32 %v1154, -0.4999988
        %v1156 = vmul.f32 %v1151, %v1155
        %v1157 = vadd.f32 1.0, %v1156
        %v1158 = vmul.f32 %v1149, %v1149
        %v1159 = vmul.f32 %v1158, -0.00019511016
        %v1160 = vadd.f32 %v1159, 0.008332121
        %v1161 = vmul.f32 %v1158, %v1160
        %v1162 = vadd.f32 %v1161, -0.16666654
        %v1163 = vmul.f32 %v1158, %v1162
        %v1164 = vadd.f32 %v1163, 1.0
        %v1165 = vmul.f32 %v1164, %v1149
        %vm1166 = vweird.f32 %v651
        %v1167 = vadd.s32 %v1150, 3
        %v1168 = vand.u32 %v1167, 3
        %vm1169 = vcmp.lt.s32.totalorder %v1168, 2
        %vm1170 = vcmp.eq.s32.totalorder %v1168, 0
        %v1171 = vxor.u32 %v1165, 2147483648
        %v1172 = vsel %vm1170, %v1157, %v1171
        %vm1173 = vcmp.eq.s32.totalorder %v1168, 2
        %v1174 = vxor.u32 %v1157, 2147483648
        %v1175 = vsel %vm1173, %v1174, %v1165
        %v1176 = vsel %vm1169, %v1172, %v1175
        %v1177 = vsel %vm1166, nan, %v1176
        %v1178 = vand.u32 2147483647, %v652
        %vm1179 = vcmp.le.f32.partialorder %v1178, 0.7853982
        %vm1180 = vcmp.lt.s32.totalorder %v652, 0
        %v1181 = vand.u32 %v652, 2139095040
        %v1182 = vshrl.u32 %v1181, 23
        %v1183 = vsub.s32 %v1182, 127
        %v1184 = vand.u32 2147483647, %v652
        %v1185 = vand.u32 %v1184, 8388607
        %v1186 = vor.u32 %v1185, 8388608
        %v1187 = vsub.s32 0, %v1186
        %v1188 = vadd.s32 %v1183, 1
        %vm1189 = vcmp.gt.s32.totalorder %v1188, 0
        %v1190 = vsel %vm1189, %v1188, 0
        %v1191 = vshrl.u32 %v1190, 5
        %v1192 = vand.u32 %v1190, 31
        %v1193 = vsub.s32 32, %v1192
        %v1194 = vshrl.u32 683565275, %v1193
        %v1195 = vshll.u32 683565275, %v1192
        %v1196 = vshrl.u32 2475754826, %v1193
        %v1197 = vor.u32 %v1195, %v1196
        %v1198 = vshll.u32 2475754826, %v1192
        %v1199 = vshrl.u32 2131351028, %v1193
        %v1200 = vor.u32 %v1198, %v1199
        %v1201 = vshll.u32 2131351028, %v1192
        %v1202 = vshrl.u32 2102212464, %v1193
        %v1203 = vor.u32 %v1201, %v1202
        %v1204 = vshll.u32 2102212464, %v1192
        %v1205 = vshrl.u32 920167782, %v1193
        %v1206 = vor.u32 %v1204, %v1205
        %v1207 = vshll.u32 920167782, %v1192
        %v1208 = vshrl.u32 1326507024, %v1193
        %v1209 = vor.u32 %v1207, %v1208
        %vm1210 = vcmp.lt.s32.totalorder %v1191, 1
        %vm1211 = vcmp.lt.s32.totalorder %v1191, 2
        %vm1212 = vcmp.lt.s32.totalorder %v1191, 3
        %vm1213 = vcmp.lt.s32.totalorder %v1191, 4
        %v1214 = vsel %vm1210, %v1194, %v1197
        %v1215 = vsel %vm1213, %v1203, 2102212464
        %v1216 = vsel %vm1212, %v1200, %v1215
        %v1217 = vsel %vm1211, %v1214, %v1216
        %v1218 = vsel %vm1210, %v1197, %v1200
        %v1219 = vsel %vm1213, %v1206, 920167782
        %v1220 = vsel %vm1212, %v1203, %v1219
        %v1221 = vsel %vm1211, %v1218, %v1220
        %v1222 = vsel %vm1210, %v1200, %v1203
        %v1223 = vsel %vm1213, %v1209, 1326507024
        %v1224 = vsel %vm1212, %v1206, %v1223
        %v1225 = vsel %vm1211, %v1222, %v1224
        %v1226 = vshll.u32 %v1186, 8
        %v1227 = vand.u32 %v1226, 65535
        %v1228 = vshrl.u32 %v1226, 16
        %v1229 = vand.u32 %v1225, 65535
        %v1230 = vshrl.u32 %v1225, 16
        %v1231 = vmul.u32 %v1227, %v1229
        %v1232 = vmul.u32 %v1227, %v1230
        %v1233 = vmul.u32 %v1228, %v1229
        %v1234 = vmul.u32 %v1228, %v1230
        %v1235 = vshll.u32 %v1232, 16
        %v1236 = vshrl.u32 %v1232, 16
        %v1237 = vshll.u32 %v1233, 16
        %v1238 = vshrl.u32 %v1233, 16
        %vm1239 = vc.u32 %v1231, %v1235
        %v1240 = vsel %vm1239, 1, 0
        %v1241 = vadd.s32 %v1231, %v1235
        %v1242 = vadd.s32 %v1234, %v1240
        %vm1243 = vc.u32 %v1241, %v1237
        %v1244 = vsel %vm1243, 1, 0
        %v1245 = vadd.s32 %v1241, %v1237
        %v1246 = vadd.s32 %v1242, %v1244
        %v1247 = vadd.s32 %v1246, %v1236
        %v1248 = vadd.s32 %v1247, %v1238
        %v1249 = vand.u32 %v1226, 65535
        %v1250 = vshrl.u32 %v1226, 16
        %v1251 = vand.u32 %v1221, 65535
        %v1252 = vshrl.u32 %v1221, 16
        %v1253 = vmul.u32 %v1249, %v1251
        %v1254 = vmul.u32 %v1249, %v1252
        %v1255 = vmul.u32 %v1250, %v1251
        %v1256 = vmul.u32 %v1250, %v1252
        %v1257 = vshll.u32 %v1254, 16
        %v1258 = vshrl.u32 %v1254, 16
        %v1259 = vshll.u32 %v1255, 16
        %v1260 = vshrl.u32 %v1255, 16
        %vm1261 = vc.u32 %v1253, %v1257
        %v1262 = vsel %vm1261, 1, 0
        %v1263 = vadd.s32 %v1253, %v1257
        %v1264 = vadd.s32 %v1256, %v1262
        %vm1265 = vc.u32 %v1263, %v1259
        %v1266 = vsel %vm1265, 1, 0
        %v1267 = vadd.s32 %v1263, %v1259
        %v1268 = vadd.s32 %v1264, %v1266
        %v1269 = vadd.s32 %v1268, %v1258
        %v1270 = vadd.s32 %v1269, %v1260
        %v1271 = vmul.u32 %v1226, %v1217
        %v1272 = vadd.s32 %v1248, %v1267
        %vm1273 = vc.u32 %v1248, %v1267
        %v1274 = vadd.s32 %v1270, 1
        %v1275 = vsel %vm1273, %v1274, %v1270
        %v1276 = vadd.s32 %v1271, %v1275
        %v1277 = vadd.s32 %v1276, 536870912
        %v1278 = vshrl.u32 %v1277, 30
        %v1279 = vshll.u32 %v1278, 30
        %v1280 = vsub.s32 %v1276, %v1279
        %vm1281 = vcmp.lt.s32.totalorder %v1280, 0
        %v1282 = vsub.s32 0, %v1280
        %v1283 = vsel %vm1281, %v1282, %v1280
        %v1284 = vclz %v1283
        %v1285 = vsub.s32 %v1284, 2
        %vm1286 = vcmp.gt.s32.totalorder 0, %v1285
        %v1287 = vsel %vm1286, 0, %v1285
        %v1288 = vsub.s32 32, %v1287
        %v1289 = vshll.u32 %v1280, %v1287
        %v1290 = vshrl.u32 %v1272, %v1288
        %v1291 = vor.u32 %v1289, %v1290
        %v1292 = vsub.s32 4294967266, %v1287
        %v1293 = vadd.s32 %v1292, 127
        %v1294 = vshll.u32 %v1293, 23
        %v1295 = vor.u32 4788187, %v1294
        %v1296 = vand.u32 2147483647, %v1295
        %v1298 = vcvt.s32.f32 %v1291
        %v1299 = vmul.f32 %v1298, %v1296
        %v1300 = vxor.u32 %v1299, 2147483648
        %v1301 = vsel %vm1180, %v1300, %v1299
        %v1302 = vsub.s32 4, %v1278
        %v1303 = vsel %vm1180, %v1302, %v1278
        %v1304 = vsel %vm1179, %v652, %v1301
        %v1305 = vsel %vm1179, 0, %v1303
        %v1306 = vmul.f32 %v1304, %v1304
        %v1307 = vmul.f32 %v1306, -0.001358992
        %v1308 = vadd.f32 %v1307, 0.041655596
        %v1309 = vmul.f32 %v1306, %v1308
        %v1310 = vadd.f32 %v1309, -0.4999988
        %v1311 = vmul.f32 %v1306, %v1310
        %v1312 = vadd.f32 1.0, %v1311
        %v1313 = vmul.f32 %v1304, %v1304
        %v1314 = vmul.f32 %v1313, -0.00019511016
        %v1315 = vadd.f32 %v1314, 0.008332121
        %v1316 = vmul.f32 %v1313, %v1315
        %v1317 = vadd.f32 %v1316, -0.16666654
        %v1318 = vmul.f32 %v1313, %v1317
        %v1319 = vadd.f32 %v1318, 1.0
        %v1320 = vmul.f32 %v1319, %v1304
        %vm1321 = vweird.f32 %v652
        %v1322 = vadd.s32 %v1305, 3
        %v1323 = vand.u32 %v1322, 3
        %vm1324 = vcmp.lt.s32.totalorder %v1323, 2
        %vm1325 = vcmp.eq.s32.totalorder %v1323, 0
        %v1326 = vxor.u32 %v1320, 2147483648
        %v1327 = vsel %vm1325, %v1312, %v1326
        %vm1328 = vcmp.eq.s32.totalorder %v1323, 2
        %v1329 = vxor.u32 %v1312, 2147483648
        %v1330 = vsel %vm1328, %v1329, %v1320
        %v1331 = vsel %vm1324, %v1327, %v1330
        %v1332 = vsel %vm1321, nan, %v1331
        %v1333 = vand.u32 2147483647, %v653
        %vm1334 = vcmp.le.f32.partialorder %v1333, 0.7853982
        %vm1335 = vcmp.lt.s32.totalorder %v653, 0
        %v1336 = vand.u32 %v653, 2139095040
        %v1337 = vshrl.u32 %v1336, 23
        %v1338 = vsub.s32 %v1337, 127
        %v1339 = vand.u32 2147483647, %v653
        %v1340 = vand.u32 %v1339, 8388607
        %v1341 = vor.u32 %v1340, 8388608
        %v1342 = vsub.s32 0, %v1341
        %v1343 = vadd.s32 %v1338, 1
        %vm1344 = vcmp.gt.s32.totalorder %v1343, 0
        %v1345 = vsel %vm1344, %v1343, 0
        %v1346 = vshrl.u32 %v1345, 5
        %v1347 = vand.u32 %v1345, 31
        %v1348 = vsub.s32 32, %v1347
        %v1349 = vshrl.u32 683565275, %v1348
        %v1350 = vshll.u32 683565275, %v1347
        %v1351 = vshrl.u32 2475754826, %v1348
        %v1352 = vor.u32 %v1350, %v1351
        %v1353 = vshll.u32 2475754826, %v1347
        %v1354 = vshrl.u32 2131351028, %v1348
        %v1355 = vor.u32 %v1353, %v1354
        %v1356 = vshll.u32 2131351028, %v1347
        %v1357 = vshrl.u32 2102212464, %v1348
        %v1358 = vor.u32 %v1356, %v1357
        %v1359 = vshll.u32 2102212464, %v1347
        %v1360 = vshrl.u32 920167782, %v1348
        %v1361 = vor.u32 %v1359, %v1360
        %v1362 = vshll.u32 920167782, %v1347
        %v1363 = vshrl.u32 1326507024, %v1348
        %v1364 = vor.u32 %v1362, %v1363
        %vm1365 = vcmp.lt.s32.totalorder %v1346, 1
        %vm1366 = vcmp.lt.s32.totalorder %v1346, 2
        %vm1367 = vcmp.lt.s32.totalorder %v1346, 3
        %vm1368 = vcmp.lt.s32.totalorder %v1346, 4
        %v1369 = vsel %vm1365, %v1349, %v1352
        %v1370 = vsel %vm1368, %v1358, 2102212464
        %v1371 = vsel %vm1367, %v1355, %v1370
        %v1372 = vsel %vm1366, %v1369, %v1371
        %v1373 = vsel %vm1365, %v1352, %v1355
        %v1374 = vsel %vm1368, %v1361, 920167782
        %v1375 = vsel %vm1367, %v1358, %v1374
        %v1376 = vsel %vm1366, %v1373, %v1375
        %v1377 = vsel %vm1365, %v1355, %v1358
        %v1378 = vsel %vm1368, %v1364, 1326507024
        %v1379 = vsel %vm1367, %v1361, %v1378
        %v1380 = vsel %vm1366, %v1377, %v1379
        %v1381 = vshll.u32 %v1341, 8
        %v1382 = vand.u32 %v1381, 65535
        %v1383 = vshrl.u32 %v1381, 16
        %v1384 = vand.u32 %v1380, 65535
        %v1385 = vshrl.u32 %v1380, 16
        %v1386 = vmul.u32 %v1382, %v1384
        %v1387 = vmul.u32 %v1382, %v1385
        %v1388 = vmul.u32 %v1383, %v1384
        %v1389 = vmul.u32 %v1383, %v1385
        %v1390 = vshll.u32 %v1387, 16
        %v1391 = vshrl.u32 %v1387, 16
        %v1392 = vshll.u32 %v1388, 16
        %v1393 = vshrl.u32 %v1388, 16
        %vm1394 = vc.u32 %v1386, %v1390
        %v1395 = vsel %vm1394, 1, 0
        %v1396 = vadd.s32 %v1386, %v1390
        %v1397 = vadd.s32 %v1389, %v1395
        %vm1398 = vc.u32 %v1396, %v1392
        %v1399 = vsel %vm1398, 1, 0
        %v1400 = vadd.s32 %v1396, %v1392
        %v1401 = vadd.s32 %v1397, %v1399
        %v1402 = vadd.s32 %v1401, %v1391
        %v1403 = vadd.s32 %v1402, %v1393
        %v1404 = vand.u32 %v1381, 65535
        %v1405 = vshrl.u32 %v1381, 16
        %v1406 = vand.u32 %v1376, 65535
        %v1407 = vshrl.u32 %v1376, 16
        %v1408 = vmul.u32 %v1404, %v1406
        %v1409 = vmul.u32 %v1404, %v1407
        %v1410 = vmul.u32 %v1405, %v1406
        %v1411 = vmul.u32 %v1405, %v1407
        %v1412 = vshll.u32 %v1409, 16
        %v1413 = vshrl.u32 %v1409, 16
        %v1414 = vshll.u32 %v1410, 16
        %v1415 = vshrl.u32 %v1410, 16
        %vm1416 = vc.u32 %v1408, %v1412
        %v1417 = vsel %vm1416, 1, 0
        %v1418 = vadd.s32 %v1408, %v1412
        %v1419 = vadd.s32 %v1411, %v1417
        %vm1420 = vc.u32 %v1418, %v1414
        %v1421 = vsel %vm1420, 1, 0
        %v1422 = vadd.s32 %v1418, %v1414
        %v1423 = vadd.s32 %v1419, %v1421
        %v1424 = vadd.s32 %v1423, %v1413
        %v1425 = vadd.s32 %v1424, %v1415
        %v1426 = vmul.u32 %v1381, %v1372
        %v1427 = vadd.s32 %v1403, %v1422
        %vm1428 = vc.u32 %v1403, %v1422
        %v1429 = vadd.s32 %v1425, 1
        %v1430 = vsel %vm1428, %v1429, %v1425
        %v1431 = vadd.s32 %v1426, %v1430
        %v1432 = vadd.s32 %v1431, 536870912
        %v1433 = vshrl.u32 %v1432, 30
        %v1434 = vshll.u32 %v1433, 30
        %v1435 = vsub.s32 %v1431, %v1434
        %vm1436 = vcmp.lt.s32.totalorder %v1435, 0
        %v1437 = vsub.s32 0, %v1435
        %v1438 = vsel %vm1436, %v1437, %v1435
        %v1439 = vclz %v1438
        %v1440 = vsub.s32 %v1439, 2
        %vm1441 = vcmp.gt.s32.totalorder 0, %v1440
        %v1442 = vsel %vm1441, 0, %v1440
        %v1443 = vsub.s32 32, %v1442
        %v1444 = vshll.u32 %v1435, %v1442
        %v1445 = vshrl.u32 %v1427, %v1443
        %v1446 = vor.u32 %v1444, %v1445
        %v1447 = vsub.s32 4294967266, %v1442
        %v1448 = vadd.s32 %v1447, 127
        %v1449 = vshll.u32 %v1448, 23
        %v1450 = vor.u32 4788187, %v1449
        %v1451 = vand.u32 2147483647, %v1450
        %v1453 = vcvt.s32.f32 %v1446
        %v1454 = vmul.f32 %v1453, %v1451
        %v1455 = vxor.u32 %v1454, 2147483648
        %v1456 = vsel %vm1335, %v1455, %v1454
        %v1457 = vsub.s32 4, %v1433
        %v1458 = vsel %vm1335, %v1457, %v1433
        %v1459 = vsel %vm1334, %v653, %v1456
        %v1460 = vsel %vm1334, 0, %v1458
        %v1461 = vmul.f32 %v1459, %v1459
        %v1462 = vmul.f32 %v1461, -0.001358992
        %v1463 = vadd.f32 %v1462, 0.041655596
        %v1464 = vmul.f32 %v1461, %v1463
        %v1465 = vadd.f32 %v1464, -0.4999988
        %v1466 = vmul.f32 %v1461, %v1465
        %v1467 = vadd.f32 1.0, %v1466
        %v1468 = vmul.f32 %v1459, %v1459
        %v1469 = vmul.f32 %v1468, -0.00019511016
        %v1470 = vadd.f32 %v1469, 0.008332121
        %v1471 = vmul.f32 %v1468, %v1470
        %v1472 = vadd.f32 %v1471, -0.16666654
        %v1473 = vmul.f32 %v1468, %v1472
        %v1474 = vadd.f32 %v1473, 1.0
        %v1475 = vmul.f32 %v1474, %v1459
        %vm1476 = vweird.f32 %v653
        %v1477 = vadd.s32 %v1460, 3
        %v1478 = vand.u32 %v1477, 3
        %vm1479 = vcmp.lt.s32.totalorder %v1478, 2
        %vm1480 = vcmp.eq.s32.totalorder %v1478, 0
        %v1481 = vxor.u32 %v1475, 2147483648
        %v1482 = vsel %vm1480, %v1467, %v1481
        %vm1483 = vcmp.eq.s32.totalorder %v1478, 2
        %v1484 = vxor.u32 %v1467, 2147483648
        %v1485 = vsel %vm1483, %v1484, %v1475
        %v1486 = vsel %vm1479, %v1482, %v1485
        %v1487 = vsel %vm1476, nan, %v1486
        %v1488 = vand.u32 2147483647, %v654
        %vm1489 = vcmp.le.f32.partialorder %v1488, 0.7853982
        %vm1490 = vcmp.lt.s32.totalorder %v654, 0
        %v1491 = vand.u32 %v654, 2139095040
        %v1492 = vshrl.u32 %v1491, 23
        %v1493 = vsub.s32 %v1492, 127
        %v1494 = vand.u32 2147483647, %v654
        %v1495 = vand.u32 %v1494, 8388607
        %v1496 = vor.u32 %v1495, 8388608
        %v1497 = vsub.s32 0, %v1496
        %v1498 = vadd.s32 %v1493, 1
        %vm1499 = vcmp.gt.s32.totalorder %v1498, 0
        %v1500 = vsel %vm1499, %v1498, 0
        %v1501 = vshrl.u32 %v1500, 5
        %v1502 = vand.u32 %v1500, 31
        %v1503 = vsub.s32 32, %v1502
        %v1504 = vshrl.u32 683565275, %v1503
        %v1505 = vshll.u32 683565275, %v1502
        %v1506 = vshrl.u32 2475754826, %v1503
        %v1507 = vor.u32 %v1505, %v1506
        %v1508 = vshll.u32 2475754826, %v1502
        %v1509 = vshrl.u32 2131351028, %v1503
        %v1510 = vor.u32 %v1508, %v1509
        %v1511 = vshll.u32 2131351028, %v1502
        %v1512 = vshrl.u32 2102212464, %v1503
        %v1513 = vor.u32 %v1511, %v1512
        %v1514 = vshll.u32 2102212464, %v1502
        %v1515 = vshrl.u32 920167782, %v1503
        %v1516 = vor.u32 %v1514, %v1515
        %v1517 = vshll.u32 920167782, %v1502
        %v1518 = vshrl.u32 1326507024, %v1503
        %v1519 = vor.u32 %v1517, %v1518
        %vm1520 = vcmp.lt.s32.totalorder %v1501, 1
        %vm1521 = vcmp.lt.s32.totalorder %v1501, 2
        %vm1522 = vcmp.lt.s32.totalorder %v1501, 3
        %vm1523 = vcmp.lt.s32.totalorder %v1501, 4
        %v1524 = vsel %vm1520, %v1504, %v1507
        %v1525 = vsel %vm1523, %v1513, 2102212464
        %v1526 = vsel %vm1522, %v1510, %v1525
        %v1527 = vsel %vm1521, %v1524, %v1526
        %v1528 = vsel %vm1520, %v1507, %v1510
        %v1529 = vsel %vm1523, %v1516, 920167782
        %v1530 = vsel %vm1522, %v1513, %v1529
        %v1531 = vsel %vm1521, %v1528, %v1530
        %v1532 = vsel %vm1520, %v1510, %v1513
        %v1533 = vsel %vm1523, %v1519, 1326507024
        %v1534 = vsel %vm1522, %v1516, %v1533
        %v1535 = vsel %vm1521, %v1532, %v1534
        %v1536 = vshll.u32 %v1496, 8
        %v1537 = vand.u32 %v1536, 65535
        %v1538 = vshrl.u32 %v1536, 16
        %v1539 = vand.u32 %v1535, 65535
        %v1540 = vshrl.u32 %v1535, 16
        %v1541 = vmul.u32 %v1537, %v1539
        %v1542 = vmul.u32 %v1537, %v1540
        %v1543 = vmul.u32 %v1538, %v1539
        %v1544 = vmul.u32 %v1538, %v1540
        %v1545 = vshll.u32 %v1542, 16
        %v1546 = vshrl.u32 %v1542, 16
        %v1547 = vshll.u32 %v1543, 16
        %v1548 = vshrl.u32 %v1543, 16
        %vm1549 = vc.u32 %v1541, %v1545
        %v1550 = vsel %vm1549, 1, 0
        %v1551 = vadd.s32 %v1541, %v1545
        %v1552 = vadd.s32 %v1544, %v1550
        %vm1553 = vc.u32 %v1551, %v1547
        %v1554 = vsel %vm1553, 1, 0
        %v1555 = vadd.s32 %v1551, %v1547
        %v1556 = vadd.s32 %v1552, %v1554
        %v1557 = vadd.s32 %v1556, %v1546
        %v1558 = vadd.s32 %v1557, %v1548
        %v1559 = vand.u32 %v1536, 65535
        %v1560 = vshrl.u32 %v1536, 16
        %v1561 = vand.u32 %v1531, 65535
        %v1562 = vshrl.u32 %v1531, 16
        %v1563 = vmul.u32 %v1559, %v1561
        %v1564 = vmul.u32 %v1559, %v1562
        %v1565 = vmul.u32 %v1560, %v1561
        %v1566 = vmul.u32 %v1560, %v1562
        %v1567 = vshll.u32 %v1564, 16
        %v1568 = vshrl.u32 %v1564, 16
        %v1569 = vshll.u32 %v1565, 16
        %v1570 = vshrl.u32 %v1565, 16
        %vm1571 = vc.u32 %v1563, %v1567
        %v1572 = vsel %vm1571, 1, 0
        %v1573 = vadd.s32 %v1563, %v1567
        %v1574 = vadd.s32 %v1566, %v1572
        %vm1575 = vc.u32 %v1573, %v1569
        %v1576 = vsel %vm1575, 1, 0
        %v1577 = vadd.s32 %v1573, %v1569
        %v1578 = vadd.s32 %v1574, %v1576
        %v1579 = vadd.s32 %v1578, %v1568
        %v1580 = vadd.s32 %v1579, %v1570
        %v1581 = vmul.u32 %v1536, %v1527
        %v1582 = vadd.s32 %v1558, %v1577
        %vm1583 = vc.u32 %v1558, %v1577
        %v1584 = vadd.s32 %v1580, 1
        %v1585 = vsel %vm1583, %v1584, %v1580
        %v1586 = vadd.s32 %v1581, %v1585
        %v1587 = vadd.s32 %v1586, 536870912
        %v1588 = vshrl.u32 %v1587, 30
        %v1589 = vshll.u32 %v1588, 30
        %v1590 = vsub.s32 %v1586, %v1589
        %vm1591 = vcmp.lt.s32.totalorder %v1590, 0
        %v1592 = vsub.s32 0, %v1590
        %v1593 = vsel %vm1591, %v1592, %v1590
        %v1594 = vclz %v1593
        %v1595 = vsub.s32 %v1594, 2
        %vm1596 = vcmp.gt.s32.totalorder 0, %v1595
        %v1597 = vsel %vm1596, 0, %v1595
        %v1598 = vsub.s32 32, %v1597
        %v1599 = vshll.u32 %v1590, %v1597
        %v1600 = vshrl.u32 %v1582, %v1598
        %v1601 = vor.u32 %v1599, %v1600
        %v1602 = vsub.s32 4294967266, %v1597
        %v1603 = vadd.s32 %v1602, 127
        %v1604 = vshll.u32 %v1603, 23
        %v1605 = vor.u32 4788187, %v1604
        %v1606 = vand.u32 2147483647, %v1605
        %v1608 = vcvt.s32.f32 %v1601
        %v1609 = vmul.f32 %v1608, %v1606
        %v1610 = vxor.u32 %v1609, 2147483648
        %v1611 = vsel %vm1490, %v1610, %v1609
        %v1612 = vsub.s32 4, %v1588
        %v1613 = vsel %vm1490, %v1612, %v1588
        %v1614 = vsel %vm1489, %v654, %v1611
        %v1615 = vsel %vm1489, 0, %v1613
        %v1616 = vmul.f32 %v1614, %v1614
        %v1617 = vmul.f32 %v1616, -0.001358992
        %v1618 = vadd.f32 %v1617, 0.041655596
        %v1619 = vmul.f32 %v1616, %v1618
        %v1620 = vadd.f32 %v1619, -0.4999988
        %v1621 = vmul.f32 %v1616, %v1620
        %v1622 = vadd.f32 1.0, %v1621
        %v1623 = vmul.f32 %v1614, %v1614
        %v1624 = vmul.f32 %v1623, -0.00019511016
        %v1625 = vadd.f32 %v1624, 0.008332121
        %v1626 = vmul.f32 %v1623, %v1625
        %v1627 = vadd.f32 %v1626, -0.16666654
        %v1628 = vmul.f32 %v1623, %v1627
        %v1629 = vadd.f32 %v1628, 1.0
        %v1630 = vmul.f32 %v1629, %v1614
        %vm1631 = vweird.f32 %v654
        %v1632 = vadd.s32 %v1615, 3
        %v1633 = vand.u32 %v1632, 3
        %vm1634 = vcmp.lt.s32.totalorder %v1633, 2
        %vm1635 = vcmp.eq.s32.totalorder %v1633, 0
        %v1636 = vxor.u32 %v1630, 2147483648
        %v1637 = vsel %vm1635, %v1622, %v1636
        %vm1638 = vcmp.eq.s32.totalorder %v1633, 2
        %v1639 = vxor.u32 %v1622, 2147483648
        %v1640 = vsel %vm1638, %v1639, %v1630
        %v1641 = vsel %vm1634, %v1637, %v1640
        %v1642 = vsel %vm1631, nan, %v1641
        %v1643 = vand.u32 2147483647, %v655
        %vm1644 = vcmp.le.f32.partialorder %v1643, 0.7853982
        %vm1645 = vcmp.lt.s32.totalorder %v655, 0
        %v1646 = vand.u32 %v655, 2139095040
        %v1647 = vshrl.u32 %v1646, 23
        %v1648 = vsub.s32 %v1647, 127
        %v1649 = vand.u32 2147483647, %v655
        %v1650 = vand.u32 %v1649, 8388607
        %v1651 = vor.u32 %v1650, 8388608
        %v1652 = vsub.s32 0, %v1651
        %v1653 = vadd.s32 %v1648, 1
        %vm1654 = vcmp.gt.s32.totalorder %v1653, 0
        %v1655 = vsel %vm1654, %v1653, 0
        %v1656 = vshrl.u32 %v1655, 5
        %v1657 = vand.u32 %v1655, 31
        %v1658 = vsub.s32 32, %v1657
        %v1659 = vshrl.u32 683565275, %v1658
        %v1660 = vshll.u32 683565275, %v1657
        %v1661 = vshrl.u32 2475754826, %v1658
        %v1662 = vor.u32 %v1660, %v1661
        %v1663 = vshll.u32 2475754826, %v1657
        %v1664 = vshrl.u32 2131351028, %v1658
        %v1665 = vor.u32 %v1663, %v1664
        %v1666 = vshll.u32 2131351028, %v1657
        %v1667 = vshrl.u32 2102212464, %v1658
        %v1668 = vor.u32 %v1666, %v1667
        %v1669 = vshll.u32 2102212464, %v1657
        %v1670 = vshrl.u32 920167782, %v1658
        %v1671 = vor.u32 %v1669, %v1670
        %v1672 = vshll.u32 920167782, %v1657
        %v1673 = vshrl.u32 1326507024, %v1658
        %v1674 = vor.u32 %v1672, %v1673
        %vm1675 = vcmp.lt.s32.totalorder %v1656, 1
        %vm1676 = vcmp.lt.s32.totalorder %v1656, 2
        %vm1677 = vcmp.lt.s32.totalorder %v1656, 3
        %vm1678 = vcmp.lt.s32.totalorder %v1656, 4
        %v1679 = vsel %vm1675, %v1659, %v1662
        %v1680 = vsel %vm1678, %v1668, 2102212464
        %v1681 = vsel %vm1677, %v1665, %v1680
        %v1682 = vsel %vm1676, %v1679, %v1681
        %v1683 = vsel %vm1675, %v1662, %v1665
        %v1684 = vsel %vm1678, %v1671, 920167782
        %v1685 = vsel %vm1677, %v1668, %v1684
        %v1686 = vsel %vm1676, %v1683, %v1685
        %v1687 = vsel %vm1675, %v1665, %v1668
        %v1688 = vsel %vm1678, %v1674, 1326507024
        %v1689 = vsel %vm1677, %v1671, %v1688
        %v1690 = vsel %vm1676, %v1687, %v1689
        %v1691 = vshll.u32 %v1651, 8
        %v1692 = vand.u32 %v1691, 65535
        %v1693 = vshrl.u32 %v1691, 16
        %v1694 = vand.u32 %v1690, 65535
        %v1695 = vshrl.u32 %v1690, 16
        %v1696 = vmul.u32 %v1692, %v1694
        %v1697 = vmul.u32 %v1692, %v1695
        %v1698 = vmul.u32 %v1693, %v1694
        %v1699 = vmul.u32 %v1693, %v1695
        %v1700 = vshll.u32 %v1697, 16
        %v1701 = vshrl.u32 %v1697, 16
        %v1702 = vshll.u32 %v1698, 16
        %v1703 = vshrl.u32 %v1698, 16
        %vm1704 = vc.u32 %v1696, %v1700
        %v1705 = vsel %vm1704, 1, 0
        %v1706 = vadd.s32 %v1696, %v1700
        %v1707 = vadd.s32 %v1699, %v1705
        %vm1708 = vc.u32 %v1706, %v1702
        %v1709 = vsel %vm1708, 1, 0
        %v1710 = vadd.s32 %v1706, %v1702
        %v1711 = vadd.s32 %v1707, %v1709
        %v1712 = vadd.s32 %v1711, %v1701
        %v1713 = vadd.s32 %v1712, %v1703
        %v1714 = vand.u32 %v1691, 65535
        %v1715 = vshrl.u32 %v1691, 16
        %v1716 = vand.u32 %v1686, 65535
        %v1717 = vshrl.u32 %v1686, 16
        %v1718 = vmul.u32 %v1714, %v1716
        %v1719 = vmul.u32 %v1714, %v1717
        %v1720 = vmul.u32 %v1715, %v1716
        %v1721 = vmul.u32 %v1715, %v1717
        %v1722 = vshll.u32 %v1719, 16
        %v1723 = vshrl.u32 %v1719, 16
        %v1724 = vshll.u32 %v1720, 16
        %v1725 = vshrl.u32 %v1720, 16
        %vm1726 = vc.u32 %v1718, %v1722
        %v1727 = vsel %vm1726, 1, 0
        %v1728 = vadd.s32 %v1718, %v1722
        %v1729 = vadd.s32 %v1721, %v1727
        %vm1730 = vc.u32 %v1728, %v1724
        %v1731 = vsel %vm1730, 1, 0
        %v1732 = vadd.s32 %v1728, %v1724
        %v1733 = vadd.s32 %v1729, %v1731
        %v1734 = vadd.s32 %v1733, %v1723
        %v1735 = vadd.s32 %v1734, %v1725
        %v1736 = vmul.u32 %v1691, %v1682
        %v1737 = vadd.s32 %v1713, %v1732
        %vm1738 = vc.u32 %v1713, %v1732
        %v1739 = vadd.s32 %v1735, 1
        %v1740 = vsel %vm1738, %v1739, %v1735
        %v1741 = vadd.s32 %v1736, %v1740
        %v1742 = vadd.s32 %v1741, 536870912
        %v1743 = vshrl.u32 %v1742, 30
        %v1744 = vshll.u32 %v1743, 30
        %v1745 = vsub.s32 %v1741, %v1744
        %vm1746 = vcmp.lt.s32.totalorder %v1745, 0
        %v1747 = vsub.s32 0, %v1745
        %v1748 = vsel %vm1746, %v1747, %v1745
        %v1749 = vclz %v1748
        %v1750 = vsub.s32 %v1749, 2
        %vm1751 = vcmp.gt.s32.totalorder 0, %v1750
        %v1752 = vsel %vm1751, 0, %v1750
        %v1753 = vsub.s32 32, %v1752
        %v1754 = vshll.u32 %v1745, %v1752
        %v1755 = vshrl.u32 %v1737, %v1753
        %v1756 = vor.u32 %v1754, %v1755
        %v1757 = vsub.s32 4294967266, %v1752
        %v1758 = vadd.s32 %v1757, 127
        %v1759 = vshll.u32 %v1758, 23
        %v1760 = vor.u32 4788187, %v1759
        %v1761 = vand.u32 2147483647, %v1760
        %v1763 = vcvt.s32.f32 %v1756
        %v1764 = vmul.f32 %v1763, %v1761
        %v1765 = vxor.u32 %v1764, 2147483648
        %v1766 = vsel %vm1645, %v1765, %v1764
        %v1767 = vsub.s32 4, %v1743
        %v1768 = vsel %vm1645, %v1767, %v1743
        %v1769 = vsel %vm1644, %v655, %v1766
        %v1770 = vsel %vm1644, 0, %v1768
        %v1771 = vmul.f32 %v1769, %v1769
        %v1772 = vmul.f32 %v1771, -0.001358992
        %v1773 = vadd.f32 %v1772, 0.041655596
        %v1774 = vmul.f32 %v1771, %v1773
        %v1775 = vadd.f32 %v1774, -0.4999988
        %v1776 = vmul.f32 %v1771, %v1775
        %v1777 = vadd.f32 1.0, %v1776
        %v1778 = vmul.f32 %v1769, %v1769
        %v1779 = vmul.f32 %v1778, -0.00019511016
        %v1780 = vadd.f32 %v1779, 0.008332121
        %v1781 = vmul.f32 %v1778, %v1780
        %v1782 = vadd.f32 %v1781, -0.16666654
        %v1783 = vmul.f32 %v1778, %v1782
        %v1784 = vadd.f32 %v1783, 1.0
        %v1785 = vmul.f32 %v1784, %v1769
        %vm1786 = vweird.f32 %v655
        %v1787 = vadd.s32 %v1770, 3
        %v1788 = vand.u32 %v1787, 3
        %vm1789 = vcmp.lt.s32.totalorder %v1788, 2
        %vm1790 = vcmp.eq.s32.totalorder %v1788, 0
        %v1791 = vxor.u32 %v1785, 2147483648
        %v1792 = vsel %vm1790, %v1777, %v1791
        %vm1793 = vcmp.eq.s32.totalorder %v1788, 2
        %v1794 = vxor.u32 %v1777, 2147483648
        %v1795 = vsel %vm1793, %v1794, %v1785
        %v1796 = vsel %vm1789, %v1792, %v1795
        %v1797 = vsel %vm1786, nan, %v1796
        %v1798 = vand.u32 2147483647, %v656
        %vm1799 = vcmp.le.f32.partialorder %v1798, 0.7853982
        %vm1800 = vcmp.lt.s32.totalorder %v656, 0
        %v1801 = vand.u32 %v656, 2139095040
        %v1802 = vshrl.u32 %v1801, 23
        %v1803 = vsub.s32 %v1802, 127
        %v1804 = vand.u32 2147483647, %v656
        %v1805 = vand.u32 %v1804, 8388607
        %v1806 = vor.u32 %v1805, 8388608
        %v1807 = vsub.s32 0, %v1806
        %v1808 = vadd.s32 %v1803, 1
        %vm1809 = vcmp.gt.s32.totalorder %v1808, 0
        %v1810 = vsel %vm1809, %v1808, 0
        %v1811 = vshrl.u32 %v1810, 5
        %v1812 = vand.u32 %v1810, 31
        %v1813 = vsub.s32 32, %v1812
        %v1814 = vshrl.u32 683565275, %v1813
        %v1815 = vshll.u32 683565275, %v1812
        %v1816 = vshrl.u32 2475754826, %v1813
        %v1817 = vor.u32 %v1815, %v1816
        %v1818 = vshll.u32 2475754826, %v1812
        %v1819 = vshrl.u32 2131351028, %v1813
        %v1820 = vor.u32 %v1818, %v1819
        %v1821 = vshll.u32 2131351028, %v1812
        %v1822 = vshrl.u32 2102212464, %v1813
        %v1823 = vor.u32 %v1821, %v1822
        %v1824 = vshll.u32 2102212464, %v1812
        %v1825 = vshrl.u32 920167782, %v1813
        %v1826 = vor.u32 %v1824, %v1825
        %v1827 = vshll.u32 920167782, %v1812
        %v1828 = vshrl.u32 1326507024, %v1813
        %v1829 = vor.u32 %v1827, %v1828
        %vm1830 = vcmp.lt.s32.totalorder %v1811, 1
        %vm1831 = vcmp.lt.s32.totalorder %v1811, 2
        %vm1832 = vcmp.lt.s32.totalorder %v1811, 3
        %vm1833 = vcmp.lt.s32.totalorder %v1811, 4
        %v1834 = vsel %vm1830, %v1814, %v1817
        %v1835 = vsel %vm1833, %v1823, 2102212464
        %v1836 = vsel %vm1832, %v1820, %v1835
        %v1837 = vsel %vm1831, %v1834, %v1836
        %v1838 = vsel %vm1830, %v1817, %v1820
        %v1839 = vsel %vm1833, %v1826, 920167782
        %v1840 = vsel %vm1832, %v1823, %v1839
        %v1841 = vsel %vm1831, %v1838, %v1840
        %v1842 = vsel %vm1830, %v1820, %v1823
        %v1843 = vsel %vm1833, %v1829, 1326507024
        %v1844 = vsel %vm1832, %v1826, %v1843
        %v1845 = vsel %vm1831, %v1842, %v1844
        %v1846 = vshll.u32 %v1806, 8
        %v1847 = vand.u32 %v1846, 65535
        %v1848 = vshrl.u32 %v1846, 16
        %v1849 = vand.u32 %v1845, 65535
        %v1850 = vshrl.u32 %v1845, 16
        %v1851 = vmul.u32 %v1847, %v1849
        %v1852 = vmul.u32 %v1847, %v1850
        %v1853 = vmul.u32 %v1848, %v1849
        %v1854 = vmul.u32 %v1848, %v1850
        %v1855 = vshll.u32 %v1852, 16
        %v1856 = vshrl.u32 %v1852, 16
        %v1857 = vshll.u32 %v1853, 16
        %v1858 = vshrl.u32 %v1853, 16
        %vm1859 = vc.u32 %v1851, %v1855
        %v1860 = vsel %vm1859, 1, 0
        %v1861 = vadd.s32 %v1851, %v1855
        %v1862 = vadd.s32 %v1854, %v1860
        %vm1863 = vc.u32 %v1861, %v1857
        %v1864 = vsel %vm1863, 1, 0
        %v1865 = vadd.s32 %v1861, %v1857
        %v1866 = vadd.s32 %v1862, %v1864
        %v1867 = vadd.s32 %v1866, %v1856
        %v1868 = vadd.s32 %v1867, %v1858
        %v1869 = vand.u32 %v1846, 65535
        %v1870 = vshrl.u32 %v1846, 16
        %v1871 = vand.u32 %v1841, 65535
        %v1872 = vshrl.u32 %v1841, 16
        %v1873 = vmul.u32 %v1869, %v1871
        %v1874 = vmul.u32 %v1869, %v1872
        %v1875 = vmul.u32 %v1870, %v1871
        %v1876 = vmul.u32 %v1870, %v1872
        %v1877 = vshll.u32 %v1874, 16
        %v1878 = vshrl.u32 %v1874, 16
        %v1879 = vshll.u32 %v1875, 16
        %v1880 = vshrl.u32 %v1875, 16
        %vm1881 = vc.u32 %v1873, %v1877
        %v1882 = vsel %vm1881, 1, 0
        %v1883 = vadd.s32 %v1873, %v1877
        %v1884 = vadd.s32 %v1876, %v1882
        %vm1885 = vc.u32 %v1883, %v1879
        %v1886 = vsel %vm1885, 1, 0
        %v1887 = vadd.s32 %v1883, %v1879
        %v1888 = vadd.s32 %v1884, %v1886
        %v1889 = vadd.s32 %v1888, %v1878
        %v1890 = vadd.s32 %v1889, %v1880
        %v1891 = vmul.u32 %v1846, %v1837
        %v1892 = vadd.s32 %v1868, %v1887
        %vm1893 = vc.u32 %v1868, %v1887
        %v1894 = vadd.s32 %v1890, 1
        %v1895 = vsel %vm1893, %v1894, %v1890
        %v1896 = vadd.s32 %v1891, %v1895
        %v1897 = vadd.s32 %v1896, 536870912
        %v1898 = vshrl.u32 %v1897, 30
        %v1899 = vshll.u32 %v1898, 30
        %v1900 = vsub.s32 %v1896, %v1899
        %vm1901 = vcmp.lt.s32.totalorder %v1900, 0
        %v1902 = vsub.s32 0, %v1900
        %v1903 = vsel %vm1901, %v1902, %v1900
        %v1904 = vclz %v1903
        %v1905 = vsub.s32 %v1904, 2
        %vm1906 = vcmp.gt.s32.totalorder 0, %v1905
        %v1907 = vsel %vm1906, 0, %v1905
        %v1908 = vsub.s32 32, %v1907
        %v1909 = vshll.u32 %v1900, %v1907
        %v1910 = vshrl.u32 %v1892, %v1908
        %v1911 = vor.u32 %v1909, %v1910
        %v1912 = vsub.s32 4294967266, %v1907
        %v1913 = vadd.s32 %v1912, 127
        %v1914 = vshll.u32 %v1913, 23
        %v1915 = vor.u32 4788187, %v1914
        %v1916 = vand.u32 2147483647, %v1915
        %v1918 = vcvt.s32.f32 %v1911
        %v1919 = vmul.f32 %v1918, %v1916
        %v1920 = vxor.u32 %v1919, 2147483648
        %v1921 = vsel %vm1800, %v1920, %v1919
        %v1922 = vsub.s32 4, %v1898
        %v1923 = vsel %vm1800, %v1922, %v1898
        %v1924 = vsel %vm1799, %v656, %v1921
        %v1925 = vsel %vm1799, 0, %v1923
        %v1926 = vmul.f32 %v1924, %v1924
        %v1927 = vmul.f32 %v1926, -0.001358992
        %v1928 = vadd.f32 %v1927, 0.041655596
        %v1929 = vmul.f32 %v1926, %v1928
        %v1930 = vadd.f32 %v1929, -0.4999988
        %v1931 = vmul.f32 %v1926, %v1930
        %v1932 = vadd.f32 1.0, %v1931
        %v1933 = vmul.f32 %v1924, %v1924
        %v1934 = vmul.f32 %v1933, -0.00019511016
        %v1935 = vadd.f32 %v1934, 0.008332121
        %v1936 = vmul.f32 %v1933, %v1935
        %v1937 = vadd.f32 %v1936, -0.16666654
        %v1938 = vmul.f32 %v1933, %v1937
        %v1939 = vadd.f32 %v1938, 1.0
        %v1940 = vmul.f32 %v1939, %v1924
        %vm1941 = vweird.f32 %v656
        %v1942 = vadd.s32 %v1925, 3
        %v1943 = vand.u32 %v1942, 3
        %vm1944 = vcmp.lt.s32.totalorder %v1943, 2
        %vm1945 = vcmp.eq.s32.totalorder %v1943, 0
        %v1946 = vxor.u32 %v1940, 2147483648
        %v1947 = vsel %vm1945, %v1932, %v1946
        %vm1948 = vcmp.eq.s32.totalorder %v1943, 2
        %v1949 = vxor.u32 %v1932, 2147483648
        %v1950 = vsel %vm1948, %v1949, %v1940
        %v1951 = vsel %vm1944, %v1947, %v1950
        %v1952 = vsel %vm1941, nan, %v1951
        %v1953 = vand.u32 2147483647, %v657
        %vm1954 = vcmp.le.f32.partialorder %v1953, 0.7853982
        %vm1955 = vcmp.lt.s32.totalorder %v657, 0
        %v1956 = vand.u32 %v657, 2139095040
        %v1957 = vshrl.u32 %v1956, 23
        %v1958 = vsub.s32 %v1957, 127
        %v1959 = vand.u32 2147483647, %v657
        %v1960 = vand.u32 %v1959, 8388607
        %v1961 = vor.u32 %v1960, 8388608
        %v1962 = vsub.s32 0, %v1961
        %v1963 = vadd.s32 %v1958, 1
        %vm1964 = vcmp.gt.s32.totalorder %v1963, 0
        %v1965 = vsel %vm1964, %v1963, 0
        %v1966 = vshrl.u32 %v1965, 5
        %v1967 = vand.u32 %v1965, 31
        %v1968 = vsub.s32 32, %v1967
        %v1969 = vshrl.u32 683565275, %v1968
        %v1970 = vshll.u32 683565275, %v1967
        %v1971 = vshrl.u32 2475754826, %v1968
        %v1972 = vor.u32 %v1970, %v1971
        %v1973 = vshll.u32 2475754826, %v1967
        %v1974 = vshrl.u32 2131351028, %v1968
        %v1975 = vor.u32 %v1973, %v1974
        %v1976 = vshll.u32 2131351028, %v1967
        %v1977 = vshrl.u32 2102212464, %v1968
        %v1978 = vor.u32 %v1976, %v1977
        %v1979 = vshll.u32 2102212464, %v1967
        %v1980 = vshrl.u32 920167782, %v1968
        %v1981 = vor.u32 %v1979, %v1980
        %v1982 = vshll.u32 920167782, %v1967
        %v1983 = vshrl.u32 1326507024, %v1968
        %v1984 = vor.u32 %v1982, %v1983
        %vm1985 = vcmp.lt.s32.totalorder %v1966, 1
        %vm1986 = vcmp.lt.s32.totalorder %v1966, 2
        %vm1987 = vcmp.lt.s32.totalorder %v1966, 3
        %vm1988 = vcmp.lt.s32.totalorder %v1966, 4
        %v1989 = vsel %vm1985, %v1969, %v1972
        %v1990 = vsel %vm1988, %v1978, 2102212464
        %v1991 = vsel %vm1987, %v1975, %v1990
        %v1992 = vsel %vm1986, %v1989, %v1991
        %v1993 = vsel %vm1985, %v1972, %v1975
        %v1994 = vsel %vm1988, %v1981, 920167782
        %v1995 = vsel %vm1987, %v1978, %v1994
        %v1996 = vsel %vm1986, %v1993, %v1995
        %v1997 = vsel %vm1985, %v1975, %v1978
        %v1998 = vsel %vm1988, %v1984, 1326507024
        %v1999 = vsel %vm1987, %v1981, %v1998
        %v2000 = vsel %vm1986, %v1997, %v1999
        %v2001 = vshll.u32 %v1961, 8
        %v2002 = vand.u32 %v2001, 65535
        %v2003 = vshrl.u32 %v2001, 16
        %v2004 = vand.u32 %v2000, 65535
        %v2005 = vshrl.u32 %v2000, 16
        %v2006 = vmul.u32 %v2002, %v2004
        %v2007 = vmul.u32 %v2002, %v2005
        %v2008 = vmul.u32 %v2003, %v2004
        %v2009 = vmul.u32 %v2003, %v2005
        %v2010 = vshll.u32 %v2007, 16
        %v2011 = vshrl.u32 %v2007, 16
        %v2012 = vshll.u32 %v2008, 16
        %v2013 = vshrl.u32 %v2008, 16
        %vm2014 = vc.u32 %v2006, %v2010
        %v2015 = vsel %vm2014, 1, 0
        %v2016 = vadd.s32 %v2006, %v2010
        %v2017 = vadd.s32 %v2009, %v2015
        %vm2018 = vc.u32 %v2016, %v2012
        %v2019 = vsel %vm2018, 1, 0
        %v2020 = vadd.s32 %v2016, %v2012
        %v2021 = vadd.s32 %v2017, %v2019
        %v2022 = vadd.s32 %v2021, %v2011
        %v2023 = vadd.s32 %v2022, %v2013
        %v2024 = vand.u32 %v2001, 65535
        %v2025 = vshrl.u32 %v2001, 16
        %v2026 = vand.u32 %v1996, 65535
        %v2027 = vshrl.u32 %v1996, 16
        %v2028 = vmul.u32 %v2024, %v2026
        %v2029 = vmul.u32 %v2024, %v2027
        %v2030 = vmul.u32 %v2025, %v2026
        %v2031 = vmul.u32 %v2025, %v2027
        %v2032 = vshll.u32 %v2029, 16
        %v2033 = vshrl.u32 %v2029, 16
        %v2034 = vshll.u32 %v2030, 16
        %v2035 = vshrl.u32 %v2030, 16
        %vm2036 = vc.u32 %v2028, %v2032
        %v2037 = vsel %vm2036, 1, 0
        %v2038 = vadd.s32 %v2028, %v2032
        %v2039 = vadd.s32 %v2031, %v2037
        %vm2040 = vc.u32 %v2038, %v2034
        %v2041 = vsel %vm2040, 1, 0
        %v2042 = vadd.s32 %v2038, %v2034
        %v2043 = vadd.s32 %v2039, %v2041
        %v2044 = vadd.s32 %v2043, %v2033
        %v2045 = vadd.s32 %v2044, %v2035
        %v2046 = vmul.u32 %v2001, %v1992
        %v2047 = vadd.s32 %v2023, %v2042
        %vm2048 = vc.u32 %v2023, %v2042
        %v2049 = vadd.s32 %v2045, 1
        %v2050 = vsel %vm2048, %v2049, %v2045
        %v2051 = vadd.s32 %v2046, %v2050
        %v2052 = vadd.s32 %v2051, 536870912
        %v2053 = vshrl.u32 %v2052, 30
        %v2054 = vshll.u32 %v2053, 30
        %v2055 = vsub.s32 %v2051, %v2054
        %vm2056 = vcmp.lt.s32.totalorder %v2055, 0
        %v2057 = vsub.s32 0, %v2055
        %v2058 = vsel %vm2056, %v2057, %v2055
        %v2059 = vclz %v2058
        %v2060 = vsub.s32 %v2059, 2
        %vm2061 = vcmp.gt.s32.totalorder 0, %v2060
        %v2062 = vsel %vm2061, 0, %v2060
        %v2063 = vsub.s32 32, %v2062
        %v2064 = vshll.u32 %v2055, %v2062
        %v2065 = vshrl.u32 %v2047, %v2063
        %v2066 = vor.u32 %v2064, %v2065
        %v2067 = vsub.s32 4294967266, %v2062
        %v2068 = vadd.s32 %v2067, 127
        %v2069 = vshll.u32 %v2068, 23
        %v2070 = vor.u32 4788187, %v2069
        %v2071 = vand.u32 2147483647, %v2070
        %v2073 = vcvt.s32.f32 %v2066
        %v2074 = vmul.f32 %v2073, %v2071
        %v2075 = vxor.u32 %v2074, 2147483648
        %v2076 = vsel %vm1955, %v2075, %v2074
        %v2077 = vsub.s32 4, %v2053
        %v2078 = vsel %vm1955, %v2077, %v2053
        %v2079 = vsel %vm1954, %v657, %v2076
        %v2080 = vsel %vm1954, 0, %v2078
        %v2081 = vmul.f32 %v2079, %v2079
        %v2082 = vmul.f32 %v2081, -0.001358992
        %v2083 = vadd.f32 %v2082, 0.041655596
        %v2084 = vmul.f32 %v2081, %v2083
        %v2085 = vadd.f32 %v2084, -0.4999988
        %v2086 = vmul.f32 %v2081, %v2085
        %v2087 = vadd.f32 1.0, %v2086
        %v2088 = vmul.f32 %v2079, %v2079
        %v2089 = vmul.f32 %v2088, -0.00019511016
        %v2090 = vadd.f32 %v2089, 0.008332121
        %v2091 = vmul.f32 %v2088, %v2090
        %v2092 = vadd.f32 %v2091, -0.16666654
        %v2093 = vmul.f32 %v2088, %v2092
        %v2094 = vadd.f32 %v2093, 1.0
        %v2095 = vmul.f32 %v2094, %v2079
        %vm2096 = vweird.f32 %v657
        %v2097 = vadd.s32 %v2080, 3
        %v2098 = vand.u32 %v2097, 3
        %vm2099 = vcmp.lt.s32.totalorder %v2098, 2
        %vm2100 = vcmp.eq.s32.totalorder %v2098, 0
        %v2101 = vxor.u32 %v2095, 2147483648
        %v2102 = vsel %vm2100, %v2087, %v2101
        %vm2103 = vcmp.eq.s32.totalorder %v2098, 2
        %v2104 = vxor.u32 %v2087, 2147483648
        %v2105 = vsel %vm2103, %v2104, %v2095
        %v2106 = vsel %vm2099, %v2102, %v2105
        %v2107 = vsel %vm2096, nan, %v2106
        %v2108 = vand.u32 2147483647, %v658
        %vm2109 = vcmp.le.f32.partialorder %v2108, 0.7853982
        %vm2110 = vcmp.lt.s32.totalorder %v658, 0
        %v2111 = vand.u32 %v658, 2139095040
        %v2112 = vshrl.u32 %v2111, 23
        %v2113 = vsub.s32 %v2112, 127
        %v2114 = vand.u32 2147483647, %v658
        %v2115 = vand.u32 %v2114, 8388607
        %v2116 = vor.u32 %v2115, 8388608
        %v2117 = vsub.s32 0, %v2116
        %v2118 = vadd.s32 %v2113, 1
        %vm2119 = vcmp.gt.s32.totalorder %v2118, 0
        %v2120 = vsel %vm2119, %v2118, 0
        %v2121 = vshrl.u32 %v2120, 5
        %v2122 = vand.u32 %v2120, 31
        %v2123 = vsub.s32 32, %v2122
        %v2124 = vshrl.u32 683565275, %v2123
        %v2125 = vshll.u32 683565275, %v2122
        %v2126 = vshrl.u32 2475754826, %v2123
        %v2127 = vor.u32 %v2125, %v2126
        %v2128 = vshll.u32 2475754826, %v2122
        %v2129 = vshrl.u32 2131351028, %v2123
        %v2130 = vor.u32 %v2128, %v2129
        %v2131 = vshll.u32 2131351028, %v2122
        %v2132 = vshrl.u32 2102212464, %v2123
        %v2133 = vor.u32 %v2131, %v2132
        %v2134 = vshll.u32 2102212464, %v2122
        %v2135 = vshrl.u32 920167782, %v2123
        %v2136 = vor.u32 %v2134, %v2135
        %v2137 = vshll.u32 920167782, %v2122
        %v2138 = vshrl.u32 1326507024, %v2123
        %v2139 = vor.u32 %v2137, %v2138
        %vm2140 = vcmp.lt.s32.totalorder %v2121, 1
        %vm2141 = vcmp.lt.s32.totalorder %v2121, 2
        %vm2142 = vcmp.lt.s32.totalorder %v2121, 3
        %vm2143 = vcmp.lt.s32.totalorder %v2121, 4
        %v2144 = vsel %vm2140, %v2124, %v2127
        %v2145 = vsel %vm2143, %v2133, 2102212464
        %v2146 = vsel %vm2142, %v2130, %v2145
        %v2147 = vsel %vm2141, %v2144, %v2146
        %v2148 = vsel %vm2140, %v2127, %v2130
        %v2149 = vsel %vm2143, %v2136, 920167782
        %v2150 = vsel %vm2142, %v2133, %v2149
        %v2151 = vsel %vm2141, %v2148, %v2150
        %v2152 = vsel %vm2140, %v2130, %v2133
        %v2153 = vsel %vm2143, %v2139, 1326507024
        %v2154 = vsel %vm2142, %v2136, %v2153
        %v2155 = vsel %vm2141, %v2152, %v2154
        %v2156 = vshll.u32 %v2116, 8
        %v2157 = vand.u32 %v2156, 65535
        %v2158 = vshrl.u32 %v2156, 16
        %v2159 = vand.u32 %v2155, 65535
        %v2160 = vshrl.u32 %v2155, 16
        %v2161 = vmul.u32 %v2157, %v2159
        %v2162 = vmul.u32 %v2157, %v2160
        %v2163 = vmul.u32 %v2158, %v2159
        %v2164 = vmul.u32 %v2158, %v2160
        %v2165 = vshll.u32 %v2162, 16
        %v2166 = vshrl.u32 %v2162, 16
        %v2167 = vshll.u32 %v2163, 16
        %v2168 = vshrl.u32 %v2163, 16
        %vm2169 = vc.u32 %v2161, %v2165
        %v2170 = vsel %vm2169, 1, 0
        %v2171 = vadd.s32 %v2161, %v2165
        %v2172 = vadd.s32 %v2164, %v2170
        %vm2173 = vc.u32 %v2171, %v2167
        %v2174 = vsel %vm2173, 1, 0
        %v2175 = vadd.s32 %v2171, %v2167
        %v2176 = vadd.s32 %v2172, %v2174
        %v2177 = vadd.s32 %v2176, %v2166
        %v2178 = vadd.s32 %v2177, %v2168
        %v2179 = vand.u32 %v2156, 65535
        %v2180 = vshrl.u32 %v2156, 16
        %v2181 = vand.u32 %v2151, 65535
        %v2182 = vshrl.u32 %v2151, 16
        %v2183 = vmul.u32 %v2179, %v2181
        %v2184 = vmul.u32 %v2179, %v2182
        %v2185 = vmul.u32 %v2180, %v2181
        %v2186 = vmul.u32 %v2180, %v2182
        %v2187 = vshll.u32 %v2184, 16
        %v2188 = vshrl.u32 %v2184, 16
        %v2189 = vshll.u32 %v2185, 16
        %v2190 = vshrl.u32 %v2185, 16
        %vm2191 = vc.u32 %v2183, %v2187
        %v2192 = vsel %vm2191, 1, 0
        %v2193 = vadd.s32 %v2183, %v2187
        %v2194 = vadd.s32 %v2186, %v2192
        %vm2195 = vc.u32 %v2193, %v2189
        %v2196 = vsel %vm2195, 1, 0
        %v2197 = vadd.s32 %v2193, %v2189
        %v2198 = vadd.s32 %v2194, %v2196
        %v2199 = vadd.s32 %v2198, %v2188
        %v2200 = vadd.s32 %v2199, %v2190
        %v2201 = vmul.u32 %v2156, %v2147
        %v2202 = vadd.s32 %v2178, %v2197
        %vm2203 = vc.u32 %v2178, %v2197
        %v2204 = vadd.s32 %v2200, 1
        %v2205 = vsel %vm2203, %v2204, %v2200
        %v2206 = vadd.s32 %v2201, %v2205
        %v2207 = vadd.s32 %v2206, 536870912
        %v2208 = vshrl.u32 %v2207, 30
        %v2209 = vshll.u32 %v2208, 30
        %v2210 = vsub.s32 %v2206, %v2209
        %vm2211 = vcmp.lt.s32.totalorder %v2210, 0
        %v2212 = vsub.s32 0, %v2210
        %v2213 = vsel %vm2211, %v2212, %v2210
        %v2214 = vclz %v2213
        %v2215 = vsub.s32 %v2214, 2
        %vm2216 = vcmp.gt.s32.totalorder 0, %v2215
        %v2217 = vsel %vm2216, 0, %v2215
        %v2218 = vsub.s32 32, %v2217
        %v2219 = vshll.u32 %v2210, %v2217
        %v2220 = vshrl.u32 %v2202, %v2218
        %v2221 = vor.u32 %v2219, %v2220
        %v2222 = vsub.s32 4294967266, %v2217
        %v2223 = vadd.s32 %v2222, 127
        %v2224 = vshll.u32 %v2223, 23
        %v2225 = vor.u32 4788187, %v2224
        %v2226 = vand.u32 2147483647, %v2225
        %v2228 = vcvt.s32.f32 %v2221
        %v2229 = vmul.f32 %v2228, %v2226
        %v2230 = vxor.u32 %v2229, 2147483648
        %v2231 = vsel %vm2110, %v2230, %v2229
        %v2232 = vsub.s32 4, %v2208
        %v2233 = vsel %vm2110, %v2232, %v2208
        %v2234 = vsel %vm2109, %v658, %v2231
        %v2235 = vsel %vm2109, 0, %v2233
        %v2236 = vmul.f32 %v2234, %v2234
        %v2237 = vmul.f32 %v2236, -0.001358992
        %v2238 = vadd.f32 %v2237, 0.041655596
        %v2239 = vmul.f32 %v2236, %v2238
        %v2240 = vadd.f32 %v2239, -0.4999988
        %v2241 = vmul.f32 %v2236, %v2240
        %v2242 = vadd.f32 1.0, %v2241
        %v2243 = vmul.f32 %v2234, %v2234
        %v2244 = vmul.f32 %v2243, -0.00019511016
        %v2245 = vadd.f32 %v2244, 0.008332121
        %v2246 = vmul.f32 %v2243, %v2245
        %v2247 = vadd.f32 %v2246, -0.16666654
        %v2248 = vmul.f32 %v2243, %v2247
        %v2249 = vadd.f32 %v2248, 1.0
        %v2250 = vmul.f32 %v2249, %v2234
        %vm2251 = vweird.f32 %v658
        %v2252 = vadd.s32 %v2235, 3
        %v2253 = vand.u32 %v2252, 3
        %vm2254 = vcmp.lt.s32.totalorder %v2253, 2
        %vm2255 = vcmp.eq.s32.totalorder %v2253, 0
        %v2256 = vxor.u32 %v2250, 2147483648
        %v2257 = vsel %vm2255, %v2242, %v2256
        %vm2258 = vcmp.eq.s32.totalorder %v2253, 2
        %v2259 = vxor.u32 %v2242, 2147483648
        %v2260 = vsel %vm2258, %v2259, %v2250
        %v2261 = vsel %vm2254, %v2257, %v2260
        %v2262 = vsel %vm2251, nan, %v2261
        %v2263 = vand.u32 2147483647, %v659
        %vm2264 = vcmp.le.f32.partialorder %v2263, 0.7853982
        %vm2265 = vcmp.lt.s32.totalorder %v659, 0
        %v2266 = vand.u32 %v659, 2139095040
        %v2267 = vshrl.u32 %v2266, 23
        %v2268 = vsub.s32 %v2267, 127
        %v2269 = vand.u32 2147483647, %v659
        %v2270 = vand.u32 %v2269, 8388607
        %v2271 = vor.u32 %v2270, 8388608
        %v2272 = vsub.s32 0, %v2271
        %v2273 = vadd.s32 %v2268, 1
        %vm2274 = vcmp.gt.s32.totalorder %v2273, 0
        %v2275 = vsel %vm2274, %v2273, 0
        %v2276 = vshrl.u32 %v2275, 5
        %v2277 = vand.u32 %v2275, 31
        %v2278 = vsub.s32 32, %v2277
        %v2279 = vshrl.u32 683565275, %v2278
        %v2280 = vshll.u32 683565275, %v2277
        %v2281 = vshrl.u32 2475754826, %v2278
        %v2282 = vor.u32 %v2280, %v2281
        %v2283 = vshll.u32 2475754826, %v2277
        %v2284 = vshrl.u32 2131351028, %v2278
        %v2285 = vor.u32 %v2283, %v2284
        %v2286 = vshll.u32 2131351028, %v2277
        %v2287 = vshrl.u32 2102212464, %v2278
        %v2288 = vor.u32 %v2286, %v2287
        %v2289 = vshll.u32 2102212464, %v2277
        %v2290 = vshrl.u32 920167782, %v2278
        %v2291 = vor.u32 %v2289, %v2290
        %v2292 = vshll.u32 920167782, %v2277
        %v2293 = vshrl.u32 1326507024, %v2278
        %v2294 = vor.u32 %v2292, %v2293
        %vm2295 = vcmp.lt.s32.totalorder %v2276, 1
        %vm2296 = vcmp.lt.s32.totalorder %v2276, 2
        %vm2297 = vcmp.lt.s32.totalorder %v2276, 3
        %vm2298 = vcmp.lt.s32.totalorder %v2276, 4
        %v2299 = vsel %vm2295, %v2279, %v2282
        %v2300 = vsel %vm2298, %v2288, 2102212464
        %v2301 = vsel %vm2297, %v2285, %v2300
        %v2302 = vsel %vm2296, %v2299, %v2301
        %v2303 = vsel %vm2295, %v2282, %v2285
        %v2304 = vsel %vm2298, %v2291, 920167782
        %v2305 = vsel %vm2297, %v2288, %v2304
        %v2306 = vsel %vm2296, %v2303, %v2305
        %v2307 = vsel %vm2295, %v2285, %v2288
        %v2308 = vsel %vm2298, %v2294, 1326507024
        %v2309 = vsel %vm2297, %v2291, %v2308
        %v2310 = vsel %vm2296, %v2307, %v2309
        %v2311 = vshll.u32 %v2271, 8
        %v2312 = vand.u32 %v2311, 65535
        %v2313 = vshrl.u32 %v2311, 16
        %v2314 = vand.u32 %v2310, 65535
        %v2315 = vshrl.u32 %v2310, 16
        %v2316 = vmul.u32 %v2312, %v2314
        %v2317 = vmul.u32 %v2312, %v2315
        %v2318 = vmul.u32 %v2313, %v2314
        %v2319 = vmul.u32 %v2313, %v2315
        %v2320 = vshll.u32 %v2317, 16
        %v2321 = vshrl.u32 %v2317, 16
        %v2322 = vshll.u32 %v2318, 16
        %v2323 = vshrl.u32 %v2318, 16
        %vm2324 = vc.u32 %v2316, %v2320
        %v2325 = vsel %vm2324, 1, 0
        %v2326 = vadd.s32 %v2316, %v2320
        %v2327 = vadd.s32 %v2319, %v2325
        %vm2328 = vc.u32 %v2326, %v2322
        %v2329 = vsel %vm2328, 1, 0
        %v2330 = vadd.s32 %v2326, %v2322
        %v2331 = vadd.s32 %v2327, %v2329
        %v2332 = vadd.s32 %v2331, %v2321
        %v2333 = vadd.s32 %v2332, %v2323
        %v2334 = vand.u32 %v2311, 65535
        %v2335 = vshrl.u32 %v2311, 16
        %v2336 = vand.u32 %v2306, 65535
        %v2337 = vshrl.u32 %v2306, 16
        %v2338 = vmul.u32 %v2334, %v2336
        %v2339 = vmul.u32 %v2334, %v2337
        %v2340 = vmul.u32 %v2335, %v2336
        %v2341 = vmul.u32 %v2335, %v2337
        %v2342 = vshll.u32 %v2339, 16
        %v2343 = vshrl.u32 %v2339, 16
        %v2344 = vshll.u32 %v2340, 16
        %v2345 = vshrl.u32 %v2340, 16
        %vm2346 = vc.u32 %v2338, %v2342
        %v2347 = vsel %vm2346, 1, 0
        %v2348 = vadd.s32 %v2338, %v2342
        %v2349 = vadd.s32 %v2341, %v2347
        %vm2350 = vc.u32 %v2348, %v2344
        %v2351 = vsel %vm2350, 1, 0
        %v2352 = vadd.s32 %v2348, %v2344
        %v2353 = vadd.s32 %v2349, %v2351
        %v2354 = vadd.s32 %v2353, %v2343
        %v2355 = vadd.s32 %v2354, %v2345
        %v2356 = vmul.u32 %v2311, %v2302
        %v2357 = vadd.s32 %v2333, %v2352
        %vm2358 = vc.u32 %v2333, %v2352
        %v2359 = vadd.s32 %v2355, 1
        %v2360 = vsel %vm2358, %v2359, %v2355
        %v2361 = vadd.s32 %v2356, %v2360
        %v2362 = vadd.s32 %v2361, 536870912
        %v2363 = vshrl.u32 %v2362, 30
        %v2364 = vshll.u32 %v2363, 30
        %v2365 = vsub.s32 %v2361, %v2364
        %vm2366 = vcmp.lt.s32.totalorder %v2365, 0
        %v2367 = vsub.s32 0, %v2365
        %v2368 = vsel %vm2366, %v2367, %v2365
        %v2369 = vclz %v2368
        %v2370 = vsub.s32 %v2369, 2
        %vm2371 = vcmp.gt.s32.totalorder 0, %v2370
        %v2372 = vsel %vm2371, 0, %v2370
        %v2373 = vsub.s32 32, %v2372
        %v2374 = vshll.u32 %v2365, %v2372
        %v2375 = vshrl.u32 %v2357, %v2373
        %v2376 = vor.u32 %v2374, %v2375
        %v2377 = vsub.s32 4294967266, %v2372
        %v2378 = vadd.s32 %v2377, 127
        %v2379 = vshll.u32 %v2378, 23
        %v2380 = vor.u32 4788187, %v2379
        %v2381 = vand.u32 2147483647, %v2380
        %v2383 = vcvt.s32.f32 %v2376
        %v2384 = vmul.f32 %v2383, %v2381
        %v2385 = vxor.u32 %v2384, 2147483648
        %v2386 = vsel %vm2265, %v2385, %v2384
        %v2387 = vsub.s32 4, %v2363
        %v2388 = vsel %vm2265, %v2387, %v2363
        %v2389 = vsel %vm2264, %v659, %v2386
        %v2390 = vsel %vm2264, 0, %v2388
        %v2391 = vmul.f32 %v2389, %v2389
        %v2392 = vmul.f32 %v2391, -0.001358992
        %v2393 = vadd.f32 %v2392, 0.041655596
        %v2394 = vmul.f32 %v2391, %v2393
        %v2395 = vadd.f32 %v2394, -0.4999988
        %v2396 = vmul.f32 %v2391, %v2395
        %v2397 = vadd.f32 1.0, %v2396
        %v2398 = vmul.f32 %v2389, %v2389
        %v2399 = vmul.f32 %v2398, -0.00019511016
        %v2400 = vadd.f32 %v2399, 0.008332121
        %v2401 = vmul.f32 %v2398, %v2400
        %v2402 = vadd.f32 %v2401, -0.16666654
        %v2403 = vmul.f32 %v2398, %v2402
        %v2404 = vadd.f32 %v2403, 1.0
        %v2405 = vmul.f32 %v2404, %v2389
        %vm2406 = vweird.f32 %v659
        %v2407 = vadd.s32 %v2390, 3
        %v2408 = vand.u32 %v2407, 3
        %vm2409 = vcmp.lt.s32.totalorder %v2408, 2
        %vm2410 = vcmp.eq.s32.totalorder %v2408, 0
        %v2411 = vxor.u32 %v2405, 2147483648
        %v2412 = vsel %vm2410, %v2397, %v2411
        %vm2413 = vcmp.eq.s32.totalorder %v2408, 2
        %v2414 = vxor.u32 %v2397, 2147483648
        %v2415 = vsel %vm2413, %v2414, %v2405
        %v2416 = vsel %vm2409, %v2412, %v2415
        %v2417 = vsel %vm2406, nan, %v2416
        %v2418 = vand.u32 2147483647, %v660
        %vm2419 = vcmp.le.f32.partialorder %v2418, 0.7853982
        %vm2420 = vcmp.lt.s32.totalorder %v660, 0
        %v2421 = vand.u32 %v660, 2139095040
        %v2422 = vshrl.u32 %v2421, 23
        %v2423 = vsub.s32 %v2422, 127
        %v2424 = vand.u32 2147483647, %v660
        %v2425 = vand.u32 %v2424, 8388607
        %v2426 = vor.u32 %v2425, 8388608
        %v2427 = vsub.s32 0, %v2426
        %v2428 = vadd.s32 %v2423, 1
        %vm2429 = vcmp.gt.s32.totalorder %v2428, 0
        %v2430 = vsel %vm2429, %v2428, 0
        %v2431 = vshrl.u32 %v2430, 5
        %v2432 = vand.u32 %v2430, 31
        %v2433 = vsub.s32 32, %v2432
        %v2434 = vshrl.u32 683565275, %v2433
        %v2435 = vshll.u32 683565275, %v2432
        %v2436 = vshrl.u32 2475754826, %v2433
        %v2437 = vor.u32 %v2435, %v2436
        %v2438 = vshll.u32 2475754826, %v2432
        %v2439 = vshrl.u32 2131351028, %v2433
        %v2440 = vor.u32 %v2438, %v2439
        %v2441 = vshll.u32 2131351028, %v2432
        %v2442 = vshrl.u32 2102212464, %v2433
        %v2443 = vor.u32 %v2441, %v2442
        %v2444 = vshll.u32 2102212464, %v2432
        %v2445 = vshrl.u32 920167782, %v2433
        %v2446 = vor.u32 %v2444, %v2445
        %v2447 = vshll.u32 920167782, %v2432
        %v2448 = vshrl.u32 1326507024, %v2433
        %v2449 = vor.u32 %v2447, %v2448
        %vm2450 = vcmp.lt.s32.totalorder %v2431, 1
        %vm2451 = vcmp.lt.s32.totalorder %v2431, 2
        %vm2452 = vcmp.lt.s32.totalorder %v2431, 3
        %vm2453 = vcmp.lt.s32.totalorder %v2431, 4
        %v2454 = vsel %vm2450, %v2434, %v2437
        %v2455 = vsel %vm2453, %v2443, 2102212464
        %v2456 = vsel %vm2452, %v2440, %v2455
        %v2457 = vsel %vm2451, %v2454, %v2456
        %v2458 = vsel %vm2450, %v2437, %v2440
        %v2459 = vsel %vm2453, %v2446, 920167782
        %v2460 = vsel %vm2452, %v2443, %v2459
        %v2461 = vsel %vm2451, %v2458, %v2460
        %v2462 = vsel %vm2450, %v2440, %v2443
        %v2463 = vsel %vm2453, %v2449, 1326507024
        %v2464 = vsel %vm2452, %v2446, %v2463
        %v2465 = vsel %vm2451, %v2462, %v2464
        %v2466 = vshll.u32 %v2426, 8
        %v2467 = vand.u32 %v2466, 65535
        %v2468 = vshrl.u32 %v2466, 16
        %v2469 = vand.u32 %v2465, 65535
        %v2470 = vshrl.u32 %v2465, 16
        %v2471 = vmul.u32 %v2467, %v2469
        %v2472 = vmul.u32 %v2467, %v2470
        %v2473 = vmul.u32 %v2468, %v2469
        %v2474 = vmul.u32 %v2468, %v2470
        %v2475 = vshll.u32 %v2472, 16
        %v2476 = vshrl.u32 %v2472, 16
        %v2477 = vshll.u32 %v2473, 16
        %v2478 = vshrl.u32 %v2473, 16
        %vm2479 = vc.u32 %v2471, %v2475
        %v2480 = vsel %vm2479, 1, 0
        %v2481 = vadd.s32 %v2471, %v2475
        %v2482 = vadd.s32 %v2474, %v2480
        %vm2483 = vc.u32 %v2481, %v2477
        %v2484 = vsel %vm2483, 1, 0
        %v2485 = vadd.s32 %v2481, %v2477
        %v2486 = vadd.s32 %v2482, %v2484
        %v2487 = vadd.s32 %v2486, %v2476
        %v2488 = vadd.s32 %v2487, %v2478
        %v2489 = vand.u32 %v2466, 65535
        %v2490 = vshrl.u32 %v2466, 16
        %v2491 = vand.u32 %v2461, 65535
        %v2492 = vshrl.u32 %v2461, 16
        %v2493 = vmul.u32 %v2489, %v2491
        %v2494 = vmul.u32 %v2489, %v2492
        %v2495 = vmul.u32 %v2490, %v2491
        %v2496 = vmul.u32 %v2490, %v2492
        %v2497 = vshll.u32 %v2494, 16
        %v2498 = vshrl.u32 %v2494, 16
        %v2499 = vshll.u32 %v2495, 16
        %v2500 = vshrl.u32 %v2495, 16
        %vm2501 = vc.u32 %v2493, %v2497
        %v2502 = vsel %vm2501, 1, 0
        %v2503 = vadd.s32 %v2493, %v2497
        %v2504 = vadd.s32 %v2496, %v2502
        %vm2505 = vc.u32 %v2503, %v2499
        %v2506 = vsel %vm2505, 1, 0
        %v2507 = vadd.s32 %v2503, %v2499
        %v2508 = vadd.s32 %v2504, %v2506
        %v2509 = vadd.s32 %v2508, %v2498
        %v2510 = vadd.s32 %v2509, %v2500
        %v2511 = vmul.u32 %v2466, %v2457
        %v2512 = vadd.s32 %v2488, %v2507
        %vm2513 = vc.u32 %v2488, %v2507
        %v2514 = vadd.s32 %v2510, 1
        %v2515 = vsel %vm2513, %v2514, %v2510
        %v2516 = vadd.s32 %v2511, %v2515
        %v2517 = vadd.s32 %v2516, 536870912
        %v2518 = vshrl.u32 %v2517, 30
        %v2519 = vshll.u32 %v2518, 30
        %v2520 = vsub.s32 %v2516, %v2519
        %vm2521 = vcmp.lt.s32.totalorder %v2520, 0
        %v2522 = vsub.s32 0, %v2520
        %v2523 = vsel %vm2521, %v2522, %v2520
        %v2524 = vclz %v2523
        %v2525 = vsub.s32 %v2524, 2
        %vm2526 = vcmp.gt.s32.totalorder 0, %v2525
        %v2527 = vsel %vm2526, 0, %v2525
        %v2528 = vsub.s32 32, %v2527
        %v2529 = vshll.u32 %v2520, %v2527
        %v2530 = vshrl.u32 %v2512, %v2528
        %v2531 = vor.u32 %v2529, %v2530
        %v2532 = vsub.s32 4294967266, %v2527
        %v2533 = vadd.s32 %v2532, 127
        %v2534 = vshll.u32 %v2533, 23
        %v2535 = vor.u32 4788187, %v2534
        %v2536 = vand.u32 2147483647, %v2535
        %v2538 = vcvt.s32.f32 %v2531
        %v2539 = vmul.f32 %v2538, %v2536
        %v2540 = vxor.u32 %v2539, 2147483648
        %v2541 = vsel %vm2420, %v2540, %v2539
        %v2542 = vsub.s32 4, %v2518
        %v2543 = vsel %vm2420, %v2542, %v2518
        %v2544 = vsel %vm2419, %v660, %v2541
        %v2545 = vsel %vm2419, 0, %v2543
        %v2546 = vmul.f32 %v2544, %v2544
        %v2547 = vmul.f32 %v2546, -0.001358992
        %v2548 = vadd.f32 %v2547, 0.041655596
        %v2549 = vmul.f32 %v2546, %v2548
        %v2550 = vadd.f32 %v2549, -0.4999988
        %v2551 = vmul.f32 %v2546, %v2550
        %v2552 = vadd.f32 1.0, %v2551
        %v2553 = vmul.f32 %v2544, %v2544
        %v2554 = vmul.f32 %v2553, -0.00019511016
        %v2555 = vadd.f32 %v2554, 0.008332121
        %v2556 = vmul.f32 %v2553, %v2555
        %v2557 = vadd.f32 %v2556, -0.16666654
        %v2558 = vmul.f32 %v2553, %v2557
        %v2559 = vadd.f32 %v2558, 1.0
        %v2560 = vmul.f32 %v2559, %v2544
        %vm2561 = vweird.f32 %v660
        %v2562 = vadd.s32 %v2545, 3
        %v2563 = vand.u32 %v2562, 3
        %vm2564 = vcmp.lt.s32.totalorder %v2563, 2
        %vm2565 = vcmp.eq.s32.totalorder %v2563, 0
        %v2566 = vxor.u32 %v2560, 2147483648
        %v2567 = vsel %vm2565, %v2552, %v2566
        %vm2568 = vcmp.eq.s32.totalorder %v2563, 2
        %v2569 = vxor.u32 %v2552, 2147483648
        %v2570 = vsel %vm2568, %v2569, %v2560
        %v2571 = vsel %vm2564, %v2567, %v2570
        %v2572 = vsel %vm2561, nan, %v2571
        %v2573 = vand.u32 2147483647, %v661
        %vm2574 = vcmp.le.f32.partialorder %v2573, 0.7853982
        %vm2575 = vcmp.lt.s32.totalorder %v661, 0
        %v2576 = vand.u32 %v661, 2139095040
        %v2577 = vshrl.u32 %v2576, 23
        %v2578 = vsub.s32 %v2577, 127
        %v2579 = vand.u32 2147483647, %v661
        %v2580 = vand.u32 %v2579, 8388607
        %v2581 = vor.u32 %v2580, 8388608
        %v2582 = vsub.s32 0, %v2581
        %v2583 = vadd.s32 %v2578, 1
        %vm2584 = vcmp.gt.s32.totalorder %v2583, 0
        %v2585 = vsel %vm2584, %v2583, 0
        %v2586 = vshrl.u32 %v2585, 5
        %v2587 = vand.u32 %v2585, 31
        %v2588 = vsub.s32 32, %v2587
        %v2589 = vshrl.u32 683565275, %v2588
        %v2590 = vshll.u32 683565275, %v2587
        %v2591 = vshrl.u32 2475754826, %v2588
        %v2592 = vor.u32 %v2590, %v2591
        %v2593 = vshll.u32 2475754826, %v2587
        %v2594 = vshrl.u32 2131351028, %v2588
        %v2595 = vor.u32 %v2593, %v2594
        %v2596 = vshll.u32 2131351028, %v2587
        %v2597 = vshrl.u32 2102212464, %v2588
        %v2598 = vor.u32 %v2596, %v2597
        %v2599 = vshll.u32 2102212464, %v2587
        %v2600 = vshrl.u32 920167782, %v2588
        %v2601 = vor.u32 %v2599, %v2600
        %v2602 = vshll.u32 920167782, %v2587
        %v2603 = vshrl.u32 1326507024, %v2588
        %v2604 = vor.u32 %v2602, %v2603
        %vm2605 = vcmp.lt.s32.totalorder %v2586, 1
        %vm2606 = vcmp.lt.s32.totalorder %v2586, 2
        %vm2607 = vcmp.lt.s32.totalorder %v2586, 3
        %vm2608 = vcmp.lt.s32.totalorder %v2586, 4
        %v2609 = vsel %vm2605, %v2589, %v2592
        %v2610 = vsel %vm2608, %v2598, 2102212464
        %v2611 = vsel %vm2607, %v2595, %v2610
        %v2612 = vsel %vm2606, %v2609, %v2611
        %v2613 = vsel %vm2605, %v2592, %v2595
        %v2614 = vsel %vm2608, %v2601, 920167782
        %v2615 = vsel %vm2607, %v2598, %v2614
        %v2616 = vsel %vm2606, %v2613, %v2615
        %v2617 = vsel %vm2605, %v2595, %v2598
        %v2618 = vsel %vm2608, %v2604, 1326507024
        %v2619 = vsel %vm2607, %v2601, %v2618
        %v2620 = vsel %vm2606, %v2617, %v2619
        %v2621 = vshll.u32 %v2581, 8
        %v2622 = vand.u32 %v2621, 65535
        %v2623 = vshrl.u32 %v2621, 16
        %v2624 = vand.u32 %v2620, 65535
        %v2625 = vshrl.u32 %v2620, 16
        %v2626 = vmul.u32 %v2622, %v2624
        %v2627 = vmul.u32 %v2622, %v2625
        %v2628 = vmul.u32 %v2623, %v2624
        %v2629 = vmul.u32 %v2623, %v2625
        %v2630 = vshll.u32 %v2627, 16
        %v2631 = vshrl.u32 %v2627, 16
        %v2632 = vshll.u32 %v2628, 16
        %v2633 = vshrl.u32 %v2628, 16
        %vm2634 = vc.u32 %v2626, %v2630
        %v2635 = vsel %vm2634, 1, 0
        %v2636 = vadd.s32 %v2626, %v2630
        %v2637 = vadd.s32 %v2629, %v2635
        %vm2638 = vc.u32 %v2636, %v2632
        %v2639 = vsel %vm2638, 1, 0
        %v2640 = vadd.s32 %v2636, %v2632
        %v2641 = vadd.s32 %v2637, %v2639
        %v2642 = vadd.s32 %v2641, %v2631
        %v2643 = vadd.s32 %v2642, %v2633
        %v2644 = vand.u32 %v2621, 65535
        %v2645 = vshrl.u32 %v2621, 16
        %v2646 = vand.u32 %v2616, 65535
        %v2647 = vshrl.u32 %v2616, 16
        %v2648 = vmul.u32 %v2644, %v2646
        %v2649 = vmul.u32 %v2644, %v2647
        %v2650 = vmul.u32 %v2645, %v2646
        %v2651 = vmul.u32 %v2645, %v2647
        %v2652 = vshll.u32 %v2649, 16
        %v2653 = vshrl.u32 %v2649, 16
        %v2654 = vshll.u32 %v2650, 16
        %v2655 = vshrl.u32 %v2650, 16
        %vm2656 = vc.u32 %v2648, %v2652
        %v2657 = vsel %vm2656, 1, 0
        %v2658 = vadd.s32 %v2648, %v2652
        %v2659 = vadd.s32 %v2651, %v2657
        %vm2660 = vc.u32 %v2658, %v2654
        %v2661 = vsel %vm2660, 1, 0
        %v2662 = vadd.s32 %v2658, %v2654
        %v2663 = vadd.s32 %v2659, %v2661
        %v2664 = vadd.s32 %v2663, %v2653
        %v2665 = vadd.s32 %v2664, %v2655
        %v2666 = vmul.u32 %v2621, %v2612
        %v2667 = vadd.s32 %v2643, %v2662
        %vm2668 = vc.u32 %v2643, %v2662
        %v2669 = vadd.s32 %v2665, 1
        %v2670 = vsel %vm2668, %v2669, %v2665
        %v2671 = vadd.s32 %v2666, %v2670
        %v2672 = vadd.s32 %v2671, 536870912
        %v2673 = vshrl.u32 %v2672, 30
        %v2674 = vshll.u32 %v2673, 30
        %v2675 = vsub.s32 %v2671, %v2674
        %vm2676 = vcmp.lt.s32.totalorder %v2675, 0
        %v2677 = vsub.s32 0, %v2675
        %v2678 = vsel %vm2676, %v2677, %v2675
        %v2679 = vclz %v2678
        %v2680 = vsub.s32 %v2679, 2
        %vm2681 = vcmp.gt.s32.totalorder 0, %v2680
        %v2682 = vsel %vm2681, 0, %v2680
        %v2683 = vsub.s32 32, %v2682
        %v2684 = vshll.u32 %v2675, %v2682
        %v2685 = vshrl.u32 %v2667, %v2683
        %v2686 = vor.u32 %v2684, %v2685
        %v2687 = vsub.s32 4294967266, %v2682
        %v2688 = vadd.s32 %v2687, 127
        %v2689 = vshll.u32 %v2688, 23
        %v2690 = vor.u32 4788187, %v2689
        %v2691 = vand.u32 2147483647, %v2690
        %v2693 = vcvt.s32.f32 %v2686
        %v2694 = vmul.f32 %v2693, %v2691
        %v2695 = vxor.u32 %v2694, 2147483648
        %v2696 = vsel %vm2575, %v2695, %v2694
        %v2697 = vsub.s32 4, %v2673
        %v2698 = vsel %vm2575, %v2697, %v2673
        %v2699 = vsel %vm2574, %v661, %v2696
        %v2700 = vsel %vm2574, 0, %v2698
        %v2701 = vmul.f32 %v2699, %v2699
        %v2702 = vmul.f32 %v2701, -0.001358992
        %v2703 = vadd.f32 %v2702, 0.041655596
        %v2704 = vmul.f32 %v2701, %v2703
        %v2705 = vadd.f32 %v2704, -0.4999988
        %v2706 = vmul.f32 %v2701, %v2705
        %v2707 = vadd.f32 1.0, %v2706
        %v2708 = vmul.f32 %v2699, %v2699
        %v2709 = vmul.f32 %v2708, -0.00019511016
        %v2710 = vadd.f32 %v2709, 0.008332121
        %v2711 = vmul.f32 %v2708, %v2710
        %v2712 = vadd.f32 %v2711, -0.16666654
        %v2713 = vmul.f32 %v2708, %v2712
        %v2714 = vadd.f32 %v2713, 1.0
        %v2715 = vmul.f32 %v2714, %v2699
        %vm2716 = vweird.f32 %v661
        %v2717 = vadd.s32 %v2700, 3
        %v2718 = vand.u32 %v2717, 3
        %vm2719 = vcmp.lt.s32.totalorder %v2718, 2
        %vm2720 = vcmp.eq.s32.totalorder %v2718, 0
        %v2721 = vxor.u32 %v2715, 2147483648
        %v2722 = vsel %vm2720, %v2707, %v2721
        %vm2723 = vcmp.eq.s32.totalorder %v2718, 2
        %v2724 = vxor.u32 %v2707, 2147483648
        %v2725 = vsel %vm2723, %v2724, %v2715
        %v2726 = vsel %vm2719, %v2722, %v2725
        %v2727 = vsel %vm2716, nan, %v2726
        %v2728 = vand.u32 2147483647, %v662
        %vm2729 = vcmp.le.f32.partialorder %v2728, 0.7853982
        %vm2730 = vcmp.lt.s32.totalorder %v662, 0
        %v2731 = vand.u32 %v662, 2139095040
        %v2732 = vshrl.u32 %v2731, 23
        %v2733 = vsub.s32 %v2732, 127
        %v2734 = vand.u32 2147483647, %v662
        %v2735 = vand.u32 %v2734, 8388607
        %v2736 = vor.u32 %v2735, 8388608
        %v2737 = vsub.s32 0, %v2736
        %v2738 = vadd.s32 %v2733, 1
        %vm2739 = vcmp.gt.s32.totalorder %v2738, 0
        %v2740 = vsel %vm2739, %v2738, 0
        %v2741 = vshrl.u32 %v2740, 5
        %v2742 = vand.u32 %v2740, 31
        %v2743 = vsub.s32 32, %v2742
        %v2744 = vshrl.u32 683565275, %v2743
        %v2745 = vshll.u32 683565275, %v2742
        %v2746 = vshrl.u32 2475754826, %v2743
        %v2747 = vor.u32 %v2745, %v2746
        %v2748 = vshll.u32 2475754826, %v2742
        %v2749 = vshrl.u32 2131351028, %v2743
        %v2750 = vor.u32 %v2748, %v2749
        %v2751 = vshll.u32 2131351028, %v2742
        %v2752 = vshrl.u32 2102212464, %v2743
        %v2753 = vor.u32 %v2751, %v2752
        %v2754 = vshll.u32 2102212464, %v2742
        %v2755 = vshrl.u32 920167782, %v2743
        %v2756 = vor.u32 %v2754, %v2755
        %v2757 = vshll.u32 920167782, %v2742
        %v2758 = vshrl.u32 1326507024, %v2743
        %v2759 = vor.u32 %v2757, %v2758
        %vm2760 = vcmp.lt.s32.totalorder %v2741, 1
        %vm2761 = vcmp.lt.s32.totalorder %v2741, 2
        %vm2762 = vcmp.lt.s32.totalorder %v2741, 3
        %vm2763 = vcmp.lt.s32.totalorder %v2741, 4
        %v2764 = vsel %vm2760, %v2744, %v2747
        %v2765 = vsel %vm2763, %v2753, 2102212464
        %v2766 = vsel %vm2762, %v2750, %v2765
        %v2767 = vsel %vm2761, %v2764, %v2766
        %v2768 = vsel %vm2760, %v2747, %v2750
        %v2769 = vsel %vm2763, %v2756, 920167782
        %v2770 = vsel %vm2762, %v2753, %v2769
        %v2771 = vsel %vm2761, %v2768, %v2770
        %v2772 = vsel %vm2760, %v2750, %v2753
        %v2773 = vsel %vm2763, %v2759, 1326507024
        %v2774 = vsel %vm2762, %v2756, %v2773
        %v2775 = vsel %vm2761, %v2772, %v2774
        %v2776 = vshll.u32 %v2736, 8
        %v2777 = vand.u32 %v2776, 65535
        %v2778 = vshrl.u32 %v2776, 16
        %v2779 = vand.u32 %v2775, 65535
        %v2780 = vshrl.u32 %v2775, 16
        %v2781 = vmul.u32 %v2777, %v2779
        %v2782 = vmul.u32 %v2777, %v2780
        %v2783 = vmul.u32 %v2778, %v2779
        %v2784 = vmul.u32 %v2778, %v2780
        %v2785 = vshll.u32 %v2782, 16
        %v2786 = vshrl.u32 %v2782, 16
        %v2787 = vshll.u32 %v2783, 16
        %v2788 = vshrl.u32 %v2783, 16
        %vm2789 = vc.u32 %v2781, %v2785
        %v2790 = vsel %vm2789, 1, 0
        %v2791 = vadd.s32 %v2781, %v2785
        %v2792 = vadd.s32 %v2784, %v2790
        %vm2793 = vc.u32 %v2791, %v2787
        %v2794 = vsel %vm2793, 1, 0
        %v2795 = vadd.s32 %v2791, %v2787
        %v2796 = vadd.s32 %v2792, %v2794
        %v2797 = vadd.s32 %v2796, %v2786
        %v2798 = vadd.s32 %v2797, %v2788
        %v2799 = vand.u32 %v2776, 65535
        %v2800 = vshrl.u32 %v2776, 16
        %v2801 = vand.u32 %v2771, 65535
        %v2802 = vshrl.u32 %v2771, 16
        %v2803 = vmul.u32 %v2799, %v2801
        %v2804 = vmul.u32 %v2799, %v2802
        %v2805 = vmul.u32 %v2800, %v2801
        %v2806 = vmul.u32 %v2800, %v2802
        %v2807 = vshll.u32 %v2804, 16
        %v2808 = vshrl.u32 %v2804, 16
        %v2809 = vshll.u32 %v2805, 16
        %v2810 = vshrl.u32 %v2805, 16
        %vm2811 = vc.u32 %v2803, %v2807
        %v2812 = vsel %vm2811, 1, 0
        %v2813 = vadd.s32 %v2803, %v2807
        %v2814 = vadd.s32 %v2806, %v2812
        %vm2815 = vc.u32 %v2813, %v2809
        %v2816 = vsel %vm2815, 1, 0
        %v2817 = vadd.s32 %v2813, %v2809
        %v2818 = vadd.s32 %v2814, %v2816
        %v2819 = vadd.s32 %v2818, %v2808
        %v2820 = vadd.s32 %v2819, %v2810
        %v2821 = vmul.u32 %v2776, %v2767
        %v2822 = vadd.s32 %v2798, %v2817
        %vm2823 = vc.u32 %v2798, %v2817
        %v2824 = vadd.s32 %v2820, 1
        %v2825 = vsel %vm2823, %v2824, %v2820
        %v2826 = vadd.s32 %v2821, %v2825
        %v2827 = vadd.s32 %v2826, 536870912
        %v2828 = vshrl.u32 %v2827, 30
        %v2829 = vshll.u32 %v2828, 30
        %v2830 = vsub.s32 %v2826, %v2829
        %vm2831 = vcmp.lt.s32.totalorder %v2830, 0
        %v2832 = vsub.s32 0, %v2830
        %v2833 = vsel %vm2831, %v2832, %v2830
        %v2834 = vclz %v2833
        %v2835 = vsub.s32 %v2834, 2
        %vm2836 = vcmp.gt.s32.totalorder 0, %v2835
        %v2837 = vsel %vm2836, 0, %v2835
        %v2838 = vsub.s32 32, %v2837
        %v2839 = vshll.u32 %v2830, %v2837
        %v2840 = vshrl.u32 %v2822, %v2838
        %v2841 = vor.u32 %v2839, %v2840
        %v2842 = vsub.s32 4294967266, %v2837
        %v2843 = vadd.s32 %v2842, 127
        %v2844 = vshll.u32 %v2843, 23
        %v2845 = vor.u32 4788187, %v2844
        %v2846 = vand.u32 2147483647, %v2845
        %v2848 = vcvt.s32.f32 %v2841
        %v2849 = vmul.f32 %v2848, %v2846
        %v2850 = vxor.u32 %v2849, 2147483648
        %v2851 = vsel %vm2730, %v2850, %v2849
        %v2852 = vsub.s32 4, %v2828
        %v2853 = vsel %vm2730, %v2852, %v2828
        %v2854 = vsel %vm2729, %v662, %v2851
        %v2855 = vsel %vm2729, 0, %v2853
        %v2856 = vmul.f32 %v2854, %v2854
        %v2857 = vmul.f32 %v2856, -0.001358992
        %v2858 = vadd.f32 %v2857, 0.041655596
        %v2859 = vmul.f32 %v2856, %v2858
        %v2860 = vadd.f32 %v2859, -0.4999988
        %v2861 = vmul.f32 %v2856, %v2860
        %v2862 = vadd.f32 1.0, %v2861
        %v2863 = vmul.f32 %v2854, %v2854
        %v2864 = vmul.f32 %v2863, -0.00019511016
        %v2865 = vadd.f32 %v2864, 0.008332121
        %v2866 = vmul.f32 %v2863, %v2865
        %v2867 = vadd.f32 %v2866, -0.16666654
        %v2868 = vmul.f32 %v2863, %v2867
        %v2869 = vadd.f32 %v2868, 1.0
        %v2870 = vmul.f32 %v2869, %v2854
        %vm2871 = vweird.f32 %v662
        %v2872 = vadd.s32 %v2855, 3
        %v2873 = vand.u32 %v2872, 3
        %vm2874 = vcmp.lt.s32.totalorder %v2873, 2
        %vm2875 = vcmp.eq.s32.totalorder %v2873, 0
        %v2876 = vxor.u32 %v2870, 2147483648
        %v2877 = vsel %vm2875, %v2862, %v2876
        %vm2878 = vcmp.eq.s32.totalorder %v2873, 2
        %v2879 = vxor.u32 %v2862, 2147483648
        %v2880 = vsel %vm2878, %v2879, %v2870
        %v2881 = vsel %vm2874, %v2877, %v2880
        %v2882 = vsel %vm2871, nan, %v2881
        %v2883 = vand.u32 2147483647, %v663
        %vm2884 = vcmp.le.f32.partialorder %v2883, 0.7853982
        %vm2885 = vcmp.lt.s32.totalorder %v663, 0
        %v2886 = vand.u32 %v663, 2139095040
        %v2887 = vshrl.u32 %v2886, 23
        %v2888 = vsub.s32 %v2887, 127
        %v2889 = vand.u32 2147483647, %v663
        %v2890 = vand.u32 %v2889, 8388607
        %v2891 = vor.u32 %v2890, 8388608
        %v2892 = vsub.s32 0, %v2891
        %v2893 = vadd.s32 %v2888, 1
        %vm2894 = vcmp.gt.s32.totalorder %v2893, 0
        %v2895 = vsel %vm2894, %v2893, 0
        %v2896 = vshrl.u32 %v2895, 5
        %v2897 = vand.u32 %v2895, 31
        %v2898 = vsub.s32 32, %v2897
        %v2899 = vshrl.u32 683565275, %v2898
        %v2900 = vshll.u32 683565275, %v2897
        %v2901 = vshrl.u32 2475754826, %v2898
        %v2902 = vor.u32 %v2900, %v2901
        %v2903 = vshll.u32 2475754826, %v2897
        %v2904 = vshrl.u32 2131351028, %v2898
        %v2905 = vor.u32 %v2903, %v2904
        %v2906 = vshll.u32 2131351028, %v2897
        %v2907 = vshrl.u32 2102212464, %v2898
        %v2908 = vor.u32 %v2906, %v2907
        %v2909 = vshll.u32 2102212464, %v2897
        %v2910 = vshrl.u32 920167782, %v2898
        %v2911 = vor.u32 %v2909, %v2910
        %v2912 = vshll.u32 920167782, %v2897
        %v2913 = vshrl.u32 1326507024, %v2898
        %v2914 = vor.u32 %v2912, %v2913
        %vm2915 = vcmp.lt.s32.totalorder %v2896, 1
        %vm2916 = vcmp.lt.s32.totalorder %v2896, 2
        %vm2917 = vcmp.lt.s32.totalorder %v2896, 3
        %vm2918 = vcmp.lt.s32.totalorder %v2896, 4
        %v2919 = vsel %vm2915, %v2899, %v2902
        %v2920 = vsel %vm2918, %v2908, 2102212464
        %v2921 = vsel %vm2917, %v2905, %v2920
        %v2922 = vsel %vm2916, %v2919, %v2921
        %v2923 = vsel %vm2915, %v2902, %v2905
        %v2924 = vsel %vm2918, %v2911, 920167782
        %v2925 = vsel %vm2917, %v2908, %v2924
        %v2926 = vsel %vm2916, %v2923, %v2925
        %v2927 = vsel %vm2915, %v2905, %v2908
        %v2928 = vsel %vm2918, %v2914, 1326507024
        %v2929 = vsel %vm2917, %v2911, %v2928
        %v2930 = vsel %vm2916, %v2927, %v2929
        %v2931 = vshll.u32 %v2891, 8
        %v2932 = vand.u32 %v2931, 65535
        %v2933 = vshrl.u32 %v2931, 16
        %v2934 = vand.u32 %v2930, 65535
        %v2935 = vshrl.u32 %v2930, 16
        %v2936 = vmul.u32 %v2932, %v2934
        %v2937 = vmul.u32 %v2932, %v2935
        %v2938 = vmul.u32 %v2933, %v2934
        %v2939 = vmul.u32 %v2933, %v2935
        %v2940 = vshll.u32 %v2937, 16
        %v2941 = vshrl.u32 %v2937, 16
        %v2942 = vshll.u32 %v2938, 16
        %v2943 = vshrl.u32 %v2938, 16
        %vm2944 = vc.u32 %v2936, %v2940
        %v2945 = vsel %vm2944, 1, 0
        %v2946 = vadd.s32 %v2936, %v2940
        %v2947 = vadd.s32 %v2939, %v2945
        %vm2948 = vc.u32 %v2946, %v2942
        %v2949 = vsel %vm2948, 1, 0
        %v2950 = vadd.s32 %v2946, %v2942
        %v2951 = vadd.s32 %v2947, %v2949
        %v2952 = vadd.s32 %v2951, %v2941
        %v2953 = vadd.s32 %v2952, %v2943
        %v2954 = vand.u32 %v2931, 65535
        %v2955 = vshrl.u32 %v2931, 16
        %v2956 = vand.u32 %v2926, 65535
        %v2957 = vshrl.u32 %v2926, 16
        %v2958 = vmul.u32 %v2954, %v2956
        %v2959 = vmul.u32 %v2954, %v2957
        %v2960 = vmul.u32 %v2955, %v2956
        %v2961 = vmul.u32 %v2955, %v2957
        %v2962 = vshll.u32 %v2959, 16
        %v2963 = vshrl.u32 %v2959, 16
        %v2964 = vshll.u32 %v2960, 16
        %v2965 = vshrl.u32 %v2960, 16
        %vm2966 = vc.u32 %v2958, %v2962
        %v2967 = vsel %vm2966, 1, 0
        %v2968 = vadd.s32 %v2958, %v2962
        %v2969 = vadd.s32 %v2961, %v2967
        %vm2970 = vc.u32 %v2968, %v2964
        %v2971 = vsel %vm2970, 1, 0
        %v2972 = vadd.s32 %v2968, %v2964
        %v2973 = vadd.s32 %v2969, %v2971
        %v2974 = vadd.s32 %v2973, %v2963
        %v2975 = vadd.s32 %v2974, %v2965
        %v2976 = vmul.u32 %v2931, %v2922
        %v2977 = vadd.s32 %v2953, %v2972
        %vm2978 = vc.u32 %v2953, %v2972
        %v2979 = vadd.s32 %v2975, 1
        %v2980 = vsel %vm2978, %v2979, %v2975
        %v2981 = vadd.s32 %v2976, %v2980
        %v2982 = vadd.s32 %v2981, 536870912
        %v2983 = vshrl.u32 %v2982, 30
        %v2984 = vshll.u32 %v2983, 30
        %v2985 = vsub.s32 %v2981, %v2984
        %vm2986 = vcmp.lt.s32.totalorder %v2985, 0
        %v2987 = vsub.s32 0, %v2985
        %v2988 = vsel %vm2986, %v2987, %v2985
        %v2989 = vclz %v2988
        %v2990 = vsub.s32 %v2989, 2
        %vm2991 = vcmp.gt.s32.totalorder 0, %v2990
        %v2992 = vsel %vm2991, 0, %v2990
        %v2993 = vsub.s32 32, %v2992
        %v2994 = vshll.u32 %v2985, %v2992
        %v2995 = vshrl.u32 %v2977, %v2993
        %v2996 = vor.u32 %v2994, %v2995
        %v2997 = vsub.s32 4294967266, %v2992
        %v2998 = vadd.s32 %v2997, 127
        %v2999 = vshll.u32 %v2998, 23
        %v3000 = vor.u32 4788187, %v2999
        %v3001 = vand.u32 2147483647, %v3000
        %v3003 = vcvt.s32.f32 %v2996
        %v3004 = vmul.f32 %v3003, %v3001
        %v3005 = vxor.u32 %v3004, 2147483648
        %v3006 = vsel %vm2885, %v3005, %v3004
        %v3007 = vsub.s32 4, %v2983
        %v3008 = vsel %vm2885, %v3007, %v2983
        %v3009 = vsel %vm2884, %v663, %v3006
        %v3010 = vsel %vm2884, 0, %v3008
        %v3011 = vmul.f32 %v3009, %v3009
        %v3012 = vmul.f32 %v3011, -0.001358992
        %v3013 = vadd.f32 %v3012, 0.041655596
        %v3014 = vmul.f32 %v3011, %v3013
        %v3015 = vadd.f32 %v3014, -0.4999988
        %v3016 = vmul.f32 %v3011, %v3015
        %v3017 = vadd.f32 1.0, %v3016
        %v3018 = vmul.f32 %v3009, %v3009
        %v3019 = vmul.f32 %v3018, -0.00019511016
        %v3020 = vadd.f32 %v3019, 0.008332121
        %v3021 = vmul.f32 %v3018, %v3020
        %v3022 = vadd.f32 %v3021, -0.16666654
        %v3023 = vmul.f32 %v3018, %v3022
        %v3024 = vadd.f32 %v3023, 1.0
        %v3025 = vmul.f32 %v3024, %v3009
        %vm3026 = vweird.f32 %v663
        %v3027 = vadd.s32 %v3010, 3
        %v3028 = vand.u32 %v3027, 3
        %vm3029 = vcmp.lt.s32.totalorder %v3028, 2
        %vm3030 = vcmp.eq.s32.totalorder %v3028, 0
        %v3031 = vxor.u32 %v3025, 2147483648
        %v3032 = vsel %vm3030, %v3017, %v3031
        %vm3033 = vcmp.eq.s32.totalorder %v3028, 2
        %v3034 = vxor.u32 %v3017, 2147483648
        %v3035 = vsel %vm3033, %v3034, %v3025
        %v3036 = vsel %vm3029, %v3032, %v3035
        %v3037 = vsel %vm3026, nan, %v3036
        %v3038 = vand.u32 2147483647, %v664
        %vm3039 = vcmp.le.f32.partialorder %v3038, 0.7853982
        %vm3040 = vcmp.lt.s32.totalorder %v664, 0
        %v3041 = vand.u32 %v664, 2139095040
        %v3042 = vshrl.u32 %v3041, 23
        %v3043 = vsub.s32 %v3042, 127
        %v3044 = vand.u32 2147483647, %v664
        %v3045 = vand.u32 %v3044, 8388607
        %v3046 = vor.u32 %v3045, 8388608
        %v3047 = vsub.s32 0, %v3046
        %v3048 = vadd.s32 %v3043, 1
        %vm3049 = vcmp.gt.s32.totalorder %v3048, 0
        %v3050 = vsel %vm3049, %v3048, 0
        %v3051 = vshrl.u32 %v3050, 5
        %v3052 = vand.u32 %v3050, 31
        %v3053 = vsub.s32 32, %v3052
        %v3054 = vshrl.u32 683565275, %v3053
        %v3055 = vshll.u32 683565275, %v3052
        %v3056 = vshrl.u32 2475754826, %v3053
        %v3057 = vor.u32 %v3055, %v3056
        %v3058 = vshll.u32 2475754826, %v3052
        %v3059 = vshrl.u32 2131351028, %v3053
        %v3060 = vor.u32 %v3058, %v3059
        %v3061 = vshll.u32 2131351028, %v3052
        %v3062 = vshrl.u32 2102212464, %v3053
        %v3063 = vor.u32 %v3061, %v3062
        %v3064 = vshll.u32 2102212464, %v3052
        %v3065 = vshrl.u32 920167782, %v3053
        %v3066 = vor.u32 %v3064, %v3065
        %v3067 = vshll.u32 920167782, %v3052
        %v3068 = vshrl.u32 1326507024, %v3053
        %v3069 = vor.u32 %v3067, %v3068
        %vm3070 = vcmp.lt.s32.totalorder %v3051, 1
        %vm3071 = vcmp.lt.s32.totalorder %v3051, 2
        %vm3072 = vcmp.lt.s32.totalorder %v3051, 3
        %vm3073 = vcmp.lt.s32.totalorder %v3051, 4
        %v3074 = vsel %vm3070, %v3054, %v3057
        %v3075 = vsel %vm3073, %v3063, 2102212464
        %v3076 = vsel %vm3072, %v3060, %v3075
        %v3077 = vsel %vm3071, %v3074, %v3076
        %v3078 = vsel %vm3070, %v3057, %v3060
        %v3079 = vsel %vm3073, %v3066, 920167782
        %v3080 = vsel %vm3072, %v3063, %v3079
        %v3081 = vsel %vm3071, %v3078, %v3080
        %v3082 = vsel %vm3070, %v3060, %v3063
        %v3083 = vsel %vm3073, %v3069, 1326507024
        %v3084 = vsel %vm3072, %v3066, %v3083
        %v3085 = vsel %vm3071, %v3082, %v3084
        %v3086 = vshll.u32 %v3046, 8
        %v3087 = vand.u32 %v3086, 65535
        %v3088 = vshrl.u32 %v3086, 16
        %v3089 = vand.u32 %v3085, 65535
        %v3090 = vshrl.u32 %v3085, 16
        %v3091 = vmul.u32 %v3087, %v3089
        %v3092 = vmul.u32 %v3087, %v3090
        %v3093 = vmul.u32 %v3088, %v3089
        %v3094 = vmul.u32 %v3088, %v3090
        %v3095 = vshll.u32 %v3092, 16
        %v3096 = vshrl.u32 %v3092, 16
        %v3097 = vshll.u32 %v3093, 16
        %v3098 = vshrl.u32 %v3093, 16
        %vm3099 = vc.u32 %v3091, %v3095
        %v3100 = vsel %vm3099, 1, 0
        %v3101 = vadd.s32 %v3091, %v3095
        %v3102 = vadd.s32 %v3094, %v3100
        %vm3103 = vc.u32 %v3101, %v3097
        %v3104 = vsel %vm3103, 1, 0
        %v3105 = vadd.s32 %v3101, %v3097
        %v3106 = vadd.s32 %v3102, %v3104
        %v3107 = vadd.s32 %v3106, %v3096
        %v3108 = vadd.s32 %v3107, %v3098
        %v3109 = vand.u32 %v3086, 65535
        %v3110 = vshrl.u32 %v3086, 16
        %v3111 = vand.u32 %v3081, 65535
        %v3112 = vshrl.u32 %v3081, 16
        %v3113 = vmul.u32 %v3109, %v3111
        %v3114 = vmul.u32 %v3109, %v3112
        %v3115 = vmul.u32 %v3110, %v3111
        %v3116 = vmul.u32 %v3110, %v3112
        %v3117 = vshll.u32 %v3114, 16
        %v3118 = vshrl.u32 %v3114, 16
        %v3119 = vshll.u32 %v3115, 16
        %v3120 = vshrl.u32 %v3115, 16
        %vm3121 = vc.u32 %v3113, %v3117
        %v3122 = vsel %vm3121, 1, 0
        %v3123 = vadd.s32 %v3113, %v3117
        %v3124 = vadd.s32 %v3116, %v3122
        %vm3125 = vc.u32 %v3123, %v3119
        %v3126 = vsel %vm3125, 1, 0
        %v3127 = vadd.s32 %v3123, %v3119
        %v3128 = vadd.s32 %v3124, %v3126
        %v3129 = vadd.s32 %v3128, %v3118
        %v3130 = vadd.s32 %v3129, %v3120
        %v3131 = vmul.u32 %v3086, %v3077
        %v3132 = vadd.s32 %v3108, %v3127
        %vm3133 = vc.u32 %v3108, %v3127
        %v3134 = vadd.s32 %v3130, 1
        %v3135 = vsel %vm3133, %v3134, %v3130
        %v3136 = vadd.s32 %v3131, %v3135
        %v3137 = vadd.s32 %v3136, 536870912
        %v3138 = vshrl.u32 %v3137, 30
        %v3139 = vshll.u32 %v3138, 30
        %v3140 = vsub.s32 %v3136, %v3139
        %vm3141 = vcmp.lt.s32.totalorder %v3140, 0
        %v3142 = vsub.s32 0, %v3140
        %v3143 = vsel %vm3141, %v3142, %v3140
        %v3144 = vclz %v3143
        %v3145 = vsub.s32 %v3144, 2
        %vm3146 = vcmp.gt.s32.totalorder 0, %v3145
        %v3147 = vsel %vm3146, 0, %v3145
        %v3148 = vsub.s32 32, %v3147
        %v3149 = vshll.u32 %v3140, %v3147
        %v3150 = vshrl.u32 %v3132, %v3148
        %v3151 = vor.u32 %v3149, %v3150
        %v3152 = vsub.s32 4294967266, %v3147
        %v3153 = vadd.s32 %v3152, 127
        %v3154 = vshll.u32 %v3153, 23
        %v3155 = vor.u32 4788187, %v3154
        %v3156 = vand.u32 2147483647, %v3155
        %v3158 = vcvt.s32.f32 %v3151
        %v3159 = vmul.f32 %v3158, %v3156
        %v3160 = vxor.u32 %v3159, 2147483648
        %v3161 = vsel %vm3040, %v3160, %v3159
        %v3162 = vsub.s32 4, %v3138
        %v3163 = vsel %vm3040, %v3162, %v3138
        %v3164 = vsel %vm3039, %v664, %v3161
        %v3165 = vsel %vm3039, 0, %v3163
        %v3166 = vmul.f32 %v3164, %v3164
        %v3167 = vmul.f32 %v3166, -0.001358992
        %v3168 = vadd.f32 %v3167, 0.041655596
        %v3169 = vmul.f32 %v3166, %v3168
        %v3170 = vadd.f32 %v3169, -0.4999988
        %v3171 = vmul.f32 %v3166, %v3170
        %v3172 = vadd.f32 1.0, %v3171
        %v3173 = vmul.f32 %v3164, %v3164
        %v3174 = vmul.f32 %v3173, -0.00019511016
        %v3175 = vadd.f32 %v3174, 0.008332121
        %v3176 = vmul.f32 %v3173, %v3175
        %v3177 = vadd.f32 %v3176, -0.16666654
        %v3178 = vmul.f32 %v3173, %v3177
        %v3179 = vadd.f32 %v3178, 1.0
        %v3180 = vmul.f32 %v3179, %v3164
        %vm3181 = vweird.f32 %v664
        %v3182 = vadd.s32 %v3165, 3
        %v3183 = vand.u32 %v3182, 3
        %vm3184 = vcmp.lt.s32.totalorder %v3183, 2
        %vm3185 = vcmp.eq.s32.totalorder %v3183, 0
        %v3186 = vxor.u32 %v3180, 2147483648
        %v3187 = vsel %vm3185, %v3172, %v3186
        %vm3188 = vcmp.eq.s32.totalorder %v3183, 2
        %v3189 = vxor.u32 %v3172, 2147483648
        %v3190 = vsel %vm3188, %v3189, %v3180
        %v3191 = vsel %vm3184, %v3187, %v3190
        %v3192 = vsel %vm3181, nan, %v3191
        %v3193 = vand.u32 2147483647, %v665
        %vm3194 = vcmp.le.f32.partialorder %v3193, 0.7853982
        %vm3195 = vcmp.lt.s32.totalorder %v665, 0
        %v3196 = vand.u32 %v665, 2139095040
        %v3197 = vshrl.u32 %v3196, 23
        %v3198 = vsub.s32 %v3197, 127
        %v3199 = vand.u32 2147483647, %v665
        %v3200 = vand.u32 %v3199, 8388607
        %v3201 = vor.u32 %v3200, 8388608
        %v3202 = vsub.s32 0, %v3201
        %v3203 = vadd.s32 %v3198, 1
        %vm3204 = vcmp.gt.s32.totalorder %v3203, 0
        %v3205 = vsel %vm3204, %v3203, 0
        %v3206 = vshrl.u32 %v3205, 5
        %v3207 = vand.u32 %v3205, 31
        %v3208 = vsub.s32 32, %v3207
        %v3209 = vshrl.u32 683565275, %v3208
        %v3210 = vshll.u32 683565275, %v3207
        %v3211 = vshrl.u32 2475754826, %v3208
        %v3212 = vor.u32 %v3210, %v3211
        %v3213 = vshll.u32 2475754826, %v3207
        %v3214 = vshrl.u32 2131351028, %v3208
        %v3215 = vor.u32 %v3213, %v3214
        %v3216 = vshll.u32 2131351028, %v3207
        %v3217 = vshrl.u32 2102212464, %v3208
        %v3218 = vor.u32 %v3216, %v3217
        %v3219 = vshll.u32 2102212464, %v3207
        %v3220 = vshrl.u32 920167782, %v3208
        %v3221 = vor.u32 %v3219, %v3220
        %v3222 = vshll.u32 920167782, %v3207
        %v3223 = vshrl.u32 1326507024, %v3208
        %v3224 = vor.u32 %v3222, %v3223
        %vm3225 = vcmp.lt.s32.totalorder %v3206, 1
        %vm3226 = vcmp.lt.s32.totalorder %v3206, 2
        %vm3227 = vcmp.lt.s32.totalorder %v3206, 3
        %vm3228 = vcmp.lt.s32.totalorder %v3206, 4
        %v3229 = vsel %vm3225, %v3209, %v3212
        %v3230 = vsel %vm3228, %v3218, 2102212464
        %v3231 = vsel %vm3227, %v3215, %v3230
        %v3232 = vsel %vm3226, %v3229, %v3231
        %v3233 = vsel %vm3225, %v3212, %v3215
        %v3234 = vsel %vm3228, %v3221, 920167782
        %v3235 = vsel %vm3227, %v3218, %v3234
        %v3236 = vsel %vm3226, %v3233, %v3235
        %v3237 = vsel %vm3225, %v3215, %v3218
        %v3238 = vsel %vm3228, %v3224, 1326507024
        %v3239 = vsel %vm3227, %v3221, %v3238
        %v3240 = vsel %vm3226, %v3237, %v3239
        %v3241 = vshll.u32 %v3201, 8
        %v3242 = vand.u32 %v3241, 65535
        %v3243 = vshrl.u32 %v3241, 16
        %v3244 = vand.u32 %v3240, 65535
        %v3245 = vshrl.u32 %v3240, 16
        %v3246 = vmul.u32 %v3242, %v3244
        %v3247 = vmul.u32 %v3242, %v3245
        %v3248 = vmul.u32 %v3243, %v3244
        %v3249 = vmul.u32 %v3243, %v3245
        %v3250 = vshll.u32 %v3247, 16
        %v3251 = vshrl.u32 %v3247, 16
        %v3252 = vshll.u32 %v3248, 16
        %v3253 = vshrl.u32 %v3248, 16
        %vm3254 = vc.u32 %v3246, %v3250
        %v3255 = vsel %vm3254, 1, 0
        %v3256 = vadd.s32 %v3246, %v3250
        %v3257 = vadd.s32 %v3249, %v3255
        %vm3258 = vc.u32 %v3256, %v3252
        %v3259 = vsel %vm3258, 1, 0
        %v3260 = vadd.s32 %v3256, %v3252
        %v3261 = vadd.s32 %v3257, %v3259
        %v3262 = vadd.s32 %v3261, %v3251
        %v3263 = vadd.s32 %v3262, %v3253
        %v3264 = vand.u32 %v3241, 65535
        %v3265 = vshrl.u32 %v3241, 16
        %v3266 = vand.u32 %v3236, 65535
        %v3267 = vshrl.u32 %v3236, 16
        %v3268 = vmul.u32 %v3264, %v3266
        %v3269 = vmul.u32 %v3264, %v3267
        %v3270 = vmul.u32 %v3265, %v3266
        %v3271 = vmul.u32 %v3265, %v3267
        %v3272 = vshll.u32 %v3269, 16
        %v3273 = vshrl.u32 %v3269, 16
        %v3274 = vshll.u32 %v3270, 16
        %v3275 = vshrl.u32 %v3270, 16
        %vm3276 = vc.u32 %v3268, %v3272
        %v3277 = vsel %vm3276, 1, 0
        %v3278 = vadd.s32 %v3268, %v3272
        %v3279 = vadd.s32 %v3271, %v3277
        %vm3280 = vc.u32 %v3278, %v3274
        %v3281 = vsel %vm3280, 1, 0
        %v3282 = vadd.s32 %v3278, %v3274
        %v3283 = vadd.s32 %v3279, %v3281
        %v3284 = vadd.s32 %v3283, %v3273
        %v3285 = vadd.s32 %v3284, %v3275
        %v3286 = vmul.u32 %v3241, %v3232
        %v3287 = vadd.s32 %v3263, %v3282
        %vm3288 = vc.u32 %v3263, %v3282
        %v3289 = vadd.s32 %v3285, 1
        %v3290 = vsel %vm3288, %v3289, %v3285
        %v3291 = vadd.s32 %v3286, %v3290
        %v3292 = vadd.s32 %v3291, 536870912
        %v3293 = vshrl.u32 %v3292, 30
        %v3294 = vshll.u32 %v3293, 30
        %v3295 = vsub.s32 %v3291, %v3294
        %vm3296 = vcmp.lt.s32.totalorder %v3295, 0
        %v3297 = vsub.s32 0, %v3295
        %v3298 = vsel %vm3296, %v3297, %v3295
        %v3299 = vclz %v3298
        %v3300 = vsub.s32 %v3299, 2
        %vm3301 = vcmp.gt.s32.totalorder 0, %v3300
        %v3302 = vsel %vm3301, 0, %v3300
        %v3303 = vsub.s32 32, %v3302
        %v3304 = vshll.u32 %v3295, %v3302
        %v3305 = vshrl.u32 %v3287, %v3303
        %v3306 = vor.u32 %v3304, %v3305
        %v3307 = vsub.s32 4294967266, %v3302
        %v3308 = vadd.s32 %v3307, 127
        %v3309 = vshll.u32 %v3308, 23
        %v3310 = vor.u32 4788187, %v3309
        %v3311 = vand.u32 2147483647, %v3310
        %v3313 = vcvt.s32.f32 %v3306
        %v3314 = vmul.f32 %v3313, %v3311
        %v3315 = vxor.u32 %v3314, 2147483648
        %v3316 = vsel %vm3195, %v3315, %v3314
        %v3317 = vsub.s32 4, %v3293
        %v3318 = vsel %vm3195, %v3317, %v3293
        %v3319 = vsel %vm3194, %v665, %v3316
        %v3320 = vsel %vm3194, 0, %v3318
        %v3321 = vmul.f32 %v3319, %v3319
        %v3322 = vmul.f32 %v3321, -0.001358992
        %v3323 = vadd.f32 %v3322, 0.041655596
        %v3324 = vmul.f32 %v3321, %v3323
        %v3325 = vadd.f32 %v3324, -0.4999988
        %v3326 = vmul.f32 %v3321, %v3325
        %v3327 = vadd.f32 1.0, %v3326
        %v3328 = vmul.f32 %v3319, %v3319
        %v3329 = vmul.f32 %v3328, -0.00019511016
        %v3330 = vadd.f32 %v3329, 0.008332121
        %v3331 = vmul.f32 %v3328, %v3330
        %v3332 = vadd.f32 %v3331, -0.16666654
        %v3333 = vmul.f32 %v3328, %v3332
        %v3334 = vadd.f32 %v3333, 1.0
        %v3335 = vmul.f32 %v3334, %v3319
        %vm3336 = vweird.f32 %v665
        %v3337 = vadd.s32 %v3320, 3
        %v3338 = vand.u32 %v3337, 3
        %vm3339 = vcmp.lt.s32.totalorder %v3338, 2
        %vm3340 = vcmp.eq.s32.totalorder %v3338, 0
        %v3341 = vxor.u32 %v3335, 2147483648
        %v3342 = vsel %vm3340, %v3327, %v3341
        %vm3343 = vcmp.eq.s32.totalorder %v3338, 2
        %v3344 = vxor.u32 %v3327, 2147483648
        %v3345 = vsel %vm3343, %v3344, %v3335
        %v3346 = vsel %vm3339, %v3342, %v3345
        %v3347 = vsel %vm3336, nan, %v3346
        %v3348 = vand.u32 2147483647, %v666
        %vm3349 = vcmp.le.f32.partialorder %v3348, 0.7853982
        %vm3350 = vcmp.lt.s32.totalorder %v666, 0
        %v3351 = vand.u32 %v666, 2139095040
        %v3352 = vshrl.u32 %v3351, 23
        %v3353 = vsub.s32 %v3352, 127
        %v3354 = vand.u32 2147483647, %v666
        %v3355 = vand.u32 %v3354, 8388607
        %v3356 = vor.u32 %v3355, 8388608
        %v3357 = vsub.s32 0, %v3356
        %v3358 = vadd.s32 %v3353, 1
        %vm3359 = vcmp.gt.s32.totalorder %v3358, 0
        %v3360 = vsel %vm3359, %v3358, 0
        %v3361 = vshrl.u32 %v3360, 5
        %v3362 = vand.u32 %v3360, 31
        %v3363 = vsub.s32 32, %v3362
        %v3364 = vshrl.u32 683565275, %v3363
        %v3365 = vshll.u32 683565275, %v3362
        %v3366 = vshrl.u32 2475754826, %v3363
        %v3367 = vor.u32 %v3365, %v3366
        %v3368 = vshll.u32 2475754826, %v3362
        %v3369 = vshrl.u32 2131351028, %v3363
        %v3370 = vor.u32 %v3368, %v3369
        %v3371 = vshll.u32 2131351028, %v3362
        %v3372 = vshrl.u32 2102212464, %v3363
        %v3373 = vor.u32 %v3371, %v3372
        %v3374 = vshll.u32 2102212464, %v3362
        %v3375 = vshrl.u32 920167782, %v3363
        %v3376 = vor.u32 %v3374, %v3375
        %v3377 = vshll.u32 920167782, %v3362
        %v3378 = vshrl.u32 1326507024, %v3363
        %v3379 = vor.u32 %v3377, %v3378
        %vm3380 = vcmp.lt.s32.totalorder %v3361, 1
        %vm3381 = vcmp.lt.s32.totalorder %v3361, 2
        %vm3382 = vcmp.lt.s32.totalorder %v3361, 3
        %vm3383 = vcmp.lt.s32.totalorder %v3361, 4
        %v3384 = vsel %vm3380, %v3364, %v3367
        %v3385 = vsel %vm3383, %v3373, 2102212464
        %v3386 = vsel %vm3382, %v3370, %v3385
        %v3387 = vsel %vm3381, %v3384, %v3386
        %v3388 = vsel %vm3380, %v3367, %v3370
        %v3389 = vsel %vm3383, %v3376, 920167782
        %v3390 = vsel %vm3382, %v3373, %v3389
        %v3391 = vsel %vm3381, %v3388, %v3390
        %v3392 = vsel %vm3380, %v3370, %v3373
        %v3393 = vsel %vm3383, %v3379, 1326507024
        %v3394 = vsel %vm3382, %v3376, %v3393
        %v3395 = vsel %vm3381, %v3392, %v3394
        %v3396 = vshll.u32 %v3356, 8
        %v3397 = vand.u32 %v3396, 65535
        %v3398 = vshrl.u32 %v3396, 16
        %v3399 = vand.u32 %v3395, 65535
        %v3400 = vshrl.u32 %v3395, 16
        %v3401 = vmul.u32 %v3397, %v3399
        %v3402 = vmul.u32 %v3397, %v3400
        %v3403 = vmul.u32 %v3398, %v3399
        %v3404 = vmul.u32 %v3398, %v3400
        %v3405 = vshll.u32 %v3402, 16
        %v3406 = vshrl.u32 %v3402, 16
        %v3407 = vshll.u32 %v3403, 16
        %v3408 = vshrl.u32 %v3403, 16
        %vm3409 = vc.u32 %v3401, %v3405
        %v3410 = vsel %vm3409, 1, 0
        %v3411 = vadd.s32 %v3401, %v3405
        %v3412 = vadd.s32 %v3404, %v3410
        %vm3413 = vc.u32 %v3411, %v3407
        %v3414 = vsel %vm3413, 1, 0
        %v3415 = vadd.s32 %v3411, %v3407
        %v3416 = vadd.s32 %v3412, %v3414
        %v3417 = vadd.s32 %v3416, %v3406
        %v3418 = vadd.s32 %v3417, %v3408
        %v3419 = vand.u32 %v3396, 65535
        %v3420 = vshrl.u32 %v3396, 16
        %v3421 = vand.u32 %v3391, 65535
        %v3422 = vshrl.u32 %v3391, 16
        %v3423 = vmul.u32 %v3419, %v3421
        %v3424 = vmul.u32 %v3419, %v3422
        %v3425 = vmul.u32 %v3420, %v3421
        %v3426 = vmul.u32 %v3420, %v3422
        %v3427 = vshll.u32 %v3424, 16
        %v3428 = vshrl.u32 %v3424, 16
        %v3429 = vshll.u32 %v3425, 16
        %v3430 = vshrl.u32 %v3425, 16
        %vm3431 = vc.u32 %v3423, %v3427
        %v3432 = vsel %vm3431, 1, 0
        %v3433 = vadd.s32 %v3423, %v3427
        %v3434 = vadd.s32 %v3426, %v3432
        %vm3435 = vc.u32 %v3433, %v3429
        %v3436 = vsel %vm3435, 1, 0
        %v3437 = vadd.s32 %v3433, %v3429
        %v3438 = vadd.s32 %v3434, %v3436
        %v3439 = vadd.s32 %v3438, %v3428
        %v3440 = vadd.s32 %v3439, %v3430
        %v3441 = vmul.u32 %v3396, %v3387
        %v3442 = vadd.s32 %v3418, %v3437
        %vm3443 = vc.u32 %v3418, %v3437
        %v3444 = vadd.s32 %v3440, 1
        %v3445 = vsel %vm3443, %v3444, %v3440
        %v3446 = vadd.s32 %v3441, %v3445
        %v3447 = vadd.s32 %v3446, 536870912
        %v3448 = vshrl.u32 %v3447, 30
        %v3449 = vshll.u32 %v3448, 30
        %v3450 = vsub.s32 %v3446, %v3449
        %vm3451 = vcmp.lt.s32.totalorder %v3450, 0
        %v3452 = vsub.s32 0, %v3450
        %v3453 = vsel %vm3451, %v3452, %v3450
        %v3454 = vclz %v3453
        %v3455 = vsub.s32 %v3454, 2
        %vm3456 = vcmp.gt.s32.totalorder 0, %v3455
        %v3457 = vsel %vm3456, 0, %v3455
        %v3458 = vsub.s32 32, %v3457
        %v3459 = vshll.u32 %v3450, %v3457
        %v3460 = vshrl.u32 %v3442, %v3458
        %v3461 = vor.u32 %v3459, %v3460
        %v3462 = vsub.s32 4294967266, %v3457
        %v3463 = vadd.s32 %v3462, 127
        %v3464 = vshll.u32 %v3463, 23
        %v3465 = vor.u32 4788187, %v3464
        %v3466 = vand.u32 2147483647, %v3465
        %v3468 = vcvt.s32.f32 %v3461
        %v3469 = vmul.f32 %v3468, %v3466
        %v3470 = vxor.u32 %v3469, 2147483648
        %v3471 = vsel %vm3350, %v3470, %v3469
        %v3472 = vsub.s32 4, %v3448
        %v3473 = vsel %vm3350, %v3472, %v3448
        %v3474 = vsel %vm3349, %v666, %v3471
        %v3475 = vsel %vm3349, 0, %v3473
        %v3476 = vmul.f32 %v3474, %v3474
        %v3477 = vmul.f32 %v3476, -0.001358992
        %v3478 = vadd.f32 %v3477, 0.041655596
        %v3479 = vmul.f32 %v3476, %v3478
        %v3480 = vadd.f32 %v3479, -0.4999988
        %v3481 = vmul.f32 %v3476, %v3480
        %v3482 = vadd.f32 1.0, %v3481
        %v3483 = vmul.f32 %v3474, %v3474
        %v3484 = vmul.f32 %v3483, -0.00019511016
        %v3485 = vadd.f32 %v3484, 0.008332121
        %v3486 = vmul.f32 %v3483, %v3485
        %v3487 = vadd.f32 %v3486, -0.16666654
        %v3488 = vmul.f32 %v3483, %v3487
        %v3489 = vadd.f32 %v3488, 1.0
        %v3490 = vmul.f32 %v3489, %v3474
        %vm3491 = vweird.f32 %v666
        %v3492 = vadd.s32 %v3475, 3
        %v3493 = vand.u32 %v3492, 3
        %vm3494 = vcmp.lt.s32.totalorder %v3493, 2
        %vm3495 = vcmp.eq.s32.totalorder %v3493, 0
        %v3496 = vxor.u32 %v3490, 2147483648
        %v3497 = vsel %vm3495, %v3482, %v3496
        %vm3498 = vcmp.eq.s32.totalorder %v3493, 2
        %v3499 = vxor.u32 %v3482, 2147483648
        %v3500 = vsel %vm3498, %v3499, %v3490
        %v3501 = vsel %vm3494, %v3497, %v3500
        %v3502 = vsel %vm3491, nan, %v3501
        %v3503 = vand.u32 2147483647, %v667
        %vm3504 = vcmp.le.f32.partialorder %v3503, 0.7853982
        %vm3505 = vcmp.lt.s32.totalorder %v667, 0
        %v3506 = vand.u32 %v667, 2139095040
        %v3507 = vshrl.u32 %v3506, 23
        %v3508 = vsub.s32 %v3507, 127
        %v3509 = vand.u32 2147483647, %v667
        %v3510 = vand.u32 %v3509, 8388607
        %v3511 = vor.u32 %v3510, 8388608
        %v3512 = vsub.s32 0, %v3511
        %v3513 = vadd.s32 %v3508, 1
        %vm3514 = vcmp.gt.s32.totalorder %v3513, 0
        %v3515 = vsel %vm3514, %v3513, 0
        %v3516 = vshrl.u32 %v3515, 5
        %v3517 = vand.u32 %v3515, 31
        %v3518 = vsub.s32 32, %v3517
        %v3519 = vshrl.u32 683565275, %v3518
        %v3520 = vshll.u32 683565275, %v3517
        %v3521 = vshrl.u32 2475754826, %v3518
        %v3522 = vor.u32 %v3520, %v3521
        %v3523 = vshll.u32 2475754826, %v3517
        %v3524 = vshrl.u32 2131351028, %v3518
        %v3525 = vor.u32 %v3523, %v3524
        %v3526 = vshll.u32 2131351028, %v3517
        %v3527 = vshrl.u32 2102212464, %v3518
        %v3528 = vor.u32 %v3526, %v3527
        %v3529 = vshll.u32 2102212464, %v3517
        %v3530 = vshrl.u32 920167782, %v3518
        %v3531 = vor.u32 %v3529, %v3530
        %v3532 = vshll.u32 920167782, %v3517
        %v3533 = vshrl.u32 1326507024, %v3518
        %v3534 = vor.u32 %v3532, %v3533
        %vm3535 = vcmp.lt.s32.totalorder %v3516, 1
        %vm3536 = vcmp.lt.s32.totalorder %v3516, 2
        %vm3537 = vcmp.lt.s32.totalorder %v3516, 3
        %vm3538 = vcmp.lt.s32.totalorder %v3516, 4
        %v3539 = vsel %vm3535, %v3519, %v3522
        %v3540 = vsel %vm3538, %v3528, 2102212464
        %v3541 = vsel %vm3537, %v3525, %v3540
        %v3542 = vsel %vm3536, %v3539, %v3541
        %v3543 = vsel %vm3535, %v3522, %v3525
        %v3544 = vsel %vm3538, %v3531, 920167782
        %v3545 = vsel %vm3537, %v3528, %v3544
        %v3546 = vsel %vm3536, %v3543, %v3545
        %v3547 = vsel %vm3535, %v3525, %v3528
        %v3548 = vsel %vm3538, %v3534, 1326507024
        %v3549 = vsel %vm3537, %v3531, %v3548
        %v3550 = vsel %vm3536, %v3547, %v3549
        %v3551 = vshll.u32 %v3511, 8
        %v3552 = vand.u32 %v3551, 65535
        %v3553 = vshrl.u32 %v3551, 16
        %v3554 = vand.u32 %v3550, 65535
        %v3555 = vshrl.u32 %v3550, 16
        %v3556 = vmul.u32 %v3552, %v3554
        %v3557 = vmul.u32 %v3552, %v3555
        %v3558 = vmul.u32 %v3553, %v3554
        %v3559 = vmul.u32 %v3553, %v3555
        %v3560 = vshll.u32 %v3557, 16
        %v3561 = vshrl.u32 %v3557, 16
        %v3562 = vshll.u32 %v3558, 16
        %v3563 = vshrl.u32 %v3558, 16
        %vm3564 = vc.u32 %v3556, %v3560
        %v3565 = vsel %vm3564, 1, 0
        %v3566 = vadd.s32 %v3556, %v3560
        %v3567 = vadd.s32 %v3559, %v3565
        %vm3568 = vc.u32 %v3566, %v3562
        %v3569 = vsel %vm3568, 1, 0
        %v3570 = vadd.s32 %v3566, %v3562
        %v3571 = vadd.s32 %v3567, %v3569
        %v3572 = vadd.s32 %v3571, %v3561
        %v3573 = vadd.s32 %v3572, %v3563
        %v3574 = vand.u32 %v3551, 65535
        %v3575 = vshrl.u32 %v3551, 16
        %v3576 = vand.u32 %v3546, 65535
        %v3577 = vshrl.u32 %v3546, 16
        %v3578 = vmul.u32 %v3574, %v3576
        %v3579 = vmul.u32 %v3574, %v3577
        %v3580 = vmul.u32 %v3575, %v3576
        %v3581 = vmul.u32 %v3575, %v3577
        %v3582 = vshll.u32 %v3579, 16
        %v3583 = vshrl.u32 %v3579, 16
        %v3584 = vshll.u32 %v3580, 16
        %v3585 = vshrl.u32 %v3580, 16
        %vm3586 = vc.u32 %v3578, %v3582
        %v3587 = vsel %vm3586, 1, 0
        %v3588 = vadd.s32 %v3578, %v3582
        %v3589 = vadd.s32 %v3581, %v3587
        %vm3590 = vc.u32 %v3588, %v3584
        %v3591 = vsel %vm3590, 1, 0
        %v3592 = vadd.s32 %v3588, %v3584
        %v3593 = vadd.s32 %v3589, %v3591
        %v3594 = vadd.s32 %v3593, %v3583
        %v3595 = vadd.s32 %v3594, %v3585
        %v3596 = vmul.u32 %v3551, %v3542
        %v3597 = vadd.s32 %v3573, %v3592
        %vm3598 = vc.u32 %v3573, %v3592
        %v3599 = vadd.s32 %v3595, 1
        %v3600 = vsel %vm3598, %v3599, %v3595
        %v3601 = vadd.s32 %v3596, %v3600
        %v3602 = vadd.s32 %v3601, 536870912
        %v3603 = vshrl.u32 %v3602, 30
        %v3604 = vshll.u32 %v3603, 30
        %v3605 = vsub.s32 %v3601, %v3604
        %vm3606 = vcmp.lt.s32.totalorder %v3605, 0
        %v3607 = vsub.s32 0, %v3605
        %v3608 = vsel %vm3606, %v3607, %v3605
        %v3609 = vclz %v3608
        %v3610 = vsub.s32 %v3609, 2
        %vm3611 = vcmp.gt.s32.totalorder 0, %v3610
        %v3612 = vsel %vm3611, 0, %v3610
        %v3613 = vsub.s32 32, %v3612
        %v3614 = vshll.u32 %v3605, %v3612
        %v3615 = vshrl.u32 %v3597, %v3613
        %v3616 = vor.u32 %v3614, %v3615
        %v3617 = vsub.s32 4294967266, %v3612
        %v3618 = vadd.s32 %v3617, 127
        %v3619 = vshll.u32 %v3618, 23
        %v3620 = vor.u32 4788187, %v3619
        %v3621 = vand.u32 2147483647, %v3620
        %v3623 = vcvt.s32.f32 %v3616
        %v3624 = vmul.f32 %v3623, %v3621
        %v3625 = vxor.u32 %v3624, 2147483648
        %v3626 = vsel %vm3505, %v3625, %v3624
        %v3627 = vsub.s32 4, %v3603
        %v3628 = vsel %vm3505, %v3627, %v3603
        %v3629 = vsel %vm3504, %v667, %v3626
        %v3630 = vsel %vm3504, 0, %v3628
        %v3631 = vmul.f32 %v3629, %v3629
        %v3632 = vmul.f32 %v3631, -0.001358992
        %v3633 = vadd.f32 %v3632, 0.041655596
        %v3634 = vmul.f32 %v3631, %v3633
        %v3635 = vadd.f32 %v3634, -0.4999988
        %v3636 = vmul.f32 %v3631, %v3635
        %v3637 = vadd.f32 1.0, %v3636
        %v3638 = vmul.f32 %v3629, %v3629
        %v3639 = vmul.f32 %v3638, -0.00019511016
        %v3640 = vadd.f32 %v3639, 0.008332121
        %v3641 = vmul.f32 %v3638, %v3640
        %v3642 = vadd.f32 %v3641, -0.16666654
        %v3643 = vmul.f32 %v3638, %v3642
        %v3644 = vadd.f32 %v3643, 1.0
        %v3645 = vmul.f32 %v3644, %v3629
        %vm3646 = vweird.f32 %v667
        %v3647 = vadd.s32 %v3630, 3
        %v3648 = vand.u32 %v3647, 3
        %vm3649 = vcmp.lt.s32.totalorder %v3648, 2
        %vm3650 = vcmp.eq.s32.totalorder %v3648, 0
        %v3651 = vxor.u32 %v3645, 2147483648
        %v3652 = vsel %vm3650, %v3637, %v3651
        %vm3653 = vcmp.eq.s32.totalorder %v3648, 2
        %v3654 = vxor.u32 %v3637, 2147483648
        %v3655 = vsel %vm3653, %v3654, %v3645
        %v3656 = vsel %vm3649, %v3652, %v3655
        %v3657 = vsel %vm3646, nan, %v3656
        %v3658 = vand.u32 2147483647, %v668
        %vm3659 = vcmp.le.f32.partialorder %v3658, 0.7853982
        %vm3660 = vcmp.lt.s32.totalorder %v668, 0
        %v3661 = vand.u32 %v668, 2139095040
        %v3662 = vshrl.u32 %v3661, 23
        %v3663 = vsub.s32 %v3662, 127
        %v3664 = vand.u32 2147483647, %v668
        %v3665 = vand.u32 %v3664, 8388607
        %v3666 = vor.u32 %v3665, 8388608
        %v3667 = vsub.s32 0, %v3666
        %v3668 = vadd.s32 %v3663, 1
        %vm3669 = vcmp.gt.s32.totalorder %v3668, 0
        %v3670 = vsel %vm3669, %v3668, 0
        %v3671 = vshrl.u32 %v3670, 5
        %v3672 = vand.u32 %v3670, 31
        %v3673 = vsub.s32 32, %v3672
        %v3674 = vshrl.u32 683565275, %v3673
        %v3675 = vshll.u32 683565275, %v3672
        %v3676 = vshrl.u32 2475754826, %v3673
        %v3677 = vor.u32 %v3675, %v3676
        %v3678 = vshll.u32 2475754826, %v3672
        %v3679 = vshrl.u32 2131351028, %v3673
        %v3680 = vor.u32 %v3678, %v3679
        %v3681 = vshll.u32 2131351028, %v3672
        %v3682 = vshrl.u32 2102212464, %v3673
        %v3683 = vor.u32 %v3681, %v3682
        %v3684 = vshll.u32 2102212464, %v3672
        %v3685 = vshrl.u32 920167782, %v3673
        %v3686 = vor.u32 %v3684, %v3685
        %v3687 = vshll.u32 920167782, %v3672
        %v3688 = vshrl.u32 1326507024, %v3673
        %v3689 = vor.u32 %v3687, %v3688
        %vm3690 = vcmp.lt.s32.totalorder %v3671, 1
        %vm3691 = vcmp.lt.s32.totalorder %v3671, 2
        %vm3692 = vcmp.lt.s32.totalorder %v3671, 3
        %vm3693 = vcmp.lt.s32.totalorder %v3671, 4
        %v3694 = vsel %vm3690, %v3674, %v3677
        %v3695 = vsel %vm3693, %v3683, 2102212464
        %v3696 = vsel %vm3692, %v3680, %v3695
        %v3697 = vsel %vm3691, %v3694, %v3696
        %v3698 = vsel %vm3690, %v3677, %v3680
        %v3699 = vsel %vm3693, %v3686, 920167782
        %v3700 = vsel %vm3692, %v3683, %v3699
        %v3701 = vsel %vm3691, %v3698, %v3700
        %v3702 = vsel %vm3690, %v3680, %v3683
        %v3703 = vsel %vm3693, %v3689, 1326507024
        %v3704 = vsel %vm3692, %v3686, %v3703
        %v3705 = vsel %vm3691, %v3702, %v3704
        %v3706 = vshll.u32 %v3666, 8
        %v3707 = vand.u32 %v3706, 65535
        %v3708 = vshrl.u32 %v3706, 16
        %v3709 = vand.u32 %v3705, 65535
        %v3710 = vshrl.u32 %v3705, 16
        %v3711 = vmul.u32 %v3707, %v3709
        %v3712 = vmul.u32 %v3707, %v3710
        %v3713 = vmul.u32 %v3708, %v3709
        %v3714 = vmul.u32 %v3708, %v3710
        %v3715 = vshll.u32 %v3712, 16
        %v3716 = vshrl.u32 %v3712, 16
        %v3717 = vshll.u32 %v3713, 16
        %v3718 = vshrl.u32 %v3713, 16
        %vm3719 = vc.u32 %v3711, %v3715
        %v3720 = vsel %vm3719, 1, 0
        %v3721 = vadd.s32 %v3711, %v3715
        %v3722 = vadd.s32 %v3714, %v3720
        %vm3723 = vc.u32 %v3721, %v3717
        %v3724 = vsel %vm3723, 1, 0
        %v3725 = vadd.s32 %v3721, %v3717
        %v3726 = vadd.s32 %v3722, %v3724
        %v3727 = vadd.s32 %v3726, %v3716
        %v3728 = vadd.s32 %v3727, %v3718
        %v3729 = vand.u32 %v3706, 65535
        %v3730 = vshrl.u32 %v3706, 16
        %v3731 = vand.u32 %v3701, 65535
        %v3732 = vshrl.u32 %v3701, 16
        %v3733 = vmul.u32 %v3729, %v3731
        %v3734 = vmul.u32 %v3729, %v3732
        %v3735 = vmul.u32 %v3730, %v3731
        %v3736 = vmul.u32 %v3730, %v3732
        %v3737 = vshll.u32 %v3734, 16
        %v3738 = vshrl.u32 %v3734, 16
        %v3739 = vshll.u32 %v3735, 16
        %v3740 = vshrl.u32 %v3735, 16
        %vm3741 = vc.u32 %v3733, %v3737
        %v3742 = vsel %vm3741, 1, 0
        %v3743 = vadd.s32 %v3733, %v3737
        %v3744 = vadd.s32 %v3736, %v3742
        %vm3745 = vc.u32 %v3743, %v3739
        %v3746 = vsel %vm3745, 1, 0
        %v3747 = vadd.s32 %v3743, %v3739
        %v3748 = vadd.s32 %v3744, %v3746
        %v3749 = vadd.s32 %v3748, %v3738
        %v3750 = vadd.s32 %v3749, %v3740
        %v3751 = vmul.u32 %v3706, %v3697
        %v3752 = vadd.s32 %v3728, %v3747
        %vm3753 = vc.u32 %v3728, %v3747
        %v3754 = vadd.s32 %v3750, 1
        %v3755 = vsel %vm3753, %v3754, %v3750
        %v3756 = vadd.s32 %v3751, %v3755
        %v3757 = vadd.s32 %v3756, 536870912
        %v3758 = vshrl.u32 %v3757, 30
        %v3759 = vshll.u32 %v3758, 30
        %v3760 = vsub.s32 %v3756, %v3759
        %vm3761 = vcmp.lt.s32.totalorder %v3760, 0
        %v3762 = vsub.s32 0, %v3760
        %v3763 = vsel %vm3761, %v3762, %v3760
        %v3764 = vclz %v3763
        %v3765 = vsub.s32 %v3764, 2
        %vm3766 = vcmp.gt.s32.totalorder 0, %v3765
        %v3767 = vsel %vm3766, 0, %v3765
        %v3768 = vsub.s32 32, %v3767
        %v3769 = vshll.u32 %v3760, %v3767
        %v3770 = vshrl.u32 %v3752, %v3768
        %v3771 = vor.u32 %v3769, %v3770
        %v3772 = vsub.s32 4294967266, %v3767
        %v3773 = vadd.s32 %v3772, 127
        %v3774 = vshll.u32 %v3773, 23
        %v3775 = vor.u32 4788187, %v3774
        %v3776 = vand.u32 2147483647, %v3775
        %v3778 = vcvt.s32.f32 %v3771
        %v3779 = vmul.f32 %v3778, %v3776
        %v3780 = vxor.u32 %v3779, 2147483648
        %v3781 = vsel %vm3660, %v3780, %v3779
        %v3782 = vsub.s32 4, %v3758
        %v3783 = vsel %vm3660, %v3782, %v3758
        %v3784 = vsel %vm3659, %v668, %v3781
        %v3785 = vsel %vm3659, 0, %v3783
        %v3786 = vmul.f32 %v3784, %v3784
        %v3787 = vmul.f32 %v3786, -0.001358992
        %v3788 = vadd.f32 %v3787, 0.041655596
        %v3789 = vmul.f32 %v3786, %v3788
        %v3790 = vadd.f32 %v3789, -0.4999988
        %v3791 = vmul.f32 %v3786, %v3790
        %v3792 = vadd.f32 1.0, %v3791
        %v3793 = vmul.f32 %v3784, %v3784
        %v3794 = vmul.f32 %v3793, -0.00019511016
        %v3795 = vadd.f32 %v3794, 0.008332121
        %v3796 = vmul.f32 %v3793, %v3795
        %v3797 = vadd.f32 %v3796, -0.16666654
        %v3798 = vmul.f32 %v3793, %v3797
        %v3799 = vadd.f32 %v3798, 1.0
        %v3800 = vmul.f32 %v3799, %v3784
        %vm3801 = vweird.f32 %v668
        %v3802 = vadd.s32 %v3785, 3
        %v3803 = vand.u32 %v3802, 3
        %vm3804 = vcmp.lt.s32.totalorder %v3803, 2
        %vm3805 = vcmp.eq.s32.totalorder %v3803, 0
        %v3806 = vxor.u32 %v3800, 2147483648
        %v3807 = vsel %vm3805, %v3792, %v3806
        %vm3808 = vcmp.eq.s32.totalorder %v3803, 2
        %v3809 = vxor.u32 %v3792, 2147483648
        %v3810 = vsel %vm3808, %v3809, %v3800
        %v3811 = vsel %vm3804, %v3807, %v3810
        %v3812 = vsel %vm3801, nan, %v3811
        %v3813 = vand.u32 2147483647, %v669
        %vm3814 = vcmp.le.f32.partialorder %v3813, 0.7853982
        %vm3815 = vcmp.lt.s32.totalorder %v669, 0
        %v3816 = vand.u32 %v669, 2139095040
        %v3817 = vshrl.u32 %v3816, 23
        %v3818 = vsub.s32 %v3817, 127
        %v3819 = vand.u32 2147483647, %v669
        %v3820 = vand.u32 %v3819, 8388607
        %v3821 = vor.u32 %v3820, 8388608
        %v3822 = vsub.s32 0, %v3821
        %v3823 = vadd.s32 %v3818, 1
        %vm3824 = vcmp.gt.s32.totalorder %v3823, 0
        %v3825 = vsel %vm3824, %v3823, 0
        %v3826 = vshrl.u32 %v3825, 5
        %v3827 = vand.u32 %v3825, 31
        %v3828 = vsub.s32 32, %v3827
        %v3829 = vshrl.u32 683565275, %v3828
        %v3830 = vshll.u32 683565275, %v3827
        %v3831 = vshrl.u32 2475754826, %v3828
        %v3832 = vor.u32 %v3830, %v3831
        %v3833 = vshll.u32 2475754826, %v3827
        %v3834 = vshrl.u32 2131351028, %v3828
        %v3835 = vor.u32 %v3833, %v3834
        %v3836 = vshll.u32 2131351028, %v3827
        %v3837 = vshrl.u32 2102212464, %v3828
        %v3838 = vor.u32 %v3836, %v3837
        %v3839 = vshll.u32 2102212464, %v3827
        %v3840 = vshrl.u32 920167782, %v3828
        %v3841 = vor.u32 %v3839, %v3840
        %v3842 = vshll.u32 920167782, %v3827
        %v3843 = vshrl.u32 1326507024, %v3828
        %v3844 = vor.u32 %v3842, %v3843
        %vm3845 = vcmp.lt.s32.totalorder %v3826, 1
        %vm3846 = vcmp.lt.s32.totalorder %v3826, 2
        %vm3847 = vcmp.lt.s32.totalorder %v3826, 3
        %vm3848 = vcmp.lt.s32.totalorder %v3826, 4
        %v3849 = vsel %vm3845, %v3829, %v3832
        %v3850 = vsel %vm3848, %v3838, 2102212464
        %v3851 = vsel %vm3847, %v3835, %v3850
        %v3852 = vsel %vm3846, %v3849, %v3851
        %v3853 = vsel %vm3845, %v3832, %v3835
        %v3854 = vsel %vm3848, %v3841, 920167782
        %v3855 = vsel %vm3847, %v3838, %v3854
        %v3856 = vsel %vm3846, %v3853, %v3855
        %v3857 = vsel %vm3845, %v3835, %v3838
        %v3858 = vsel %vm3848, %v3844, 1326507024
        %v3859 = vsel %vm3847, %v3841, %v3858
        %v3860 = vsel %vm3846, %v3857, %v3859
        %v3861 = vshll.u32 %v3821, 8
        %v3862 = vand.u32 %v3861, 65535
        %v3863 = vshrl.u32 %v3861, 16
        %v3864 = vand.u32 %v3860, 65535
        %v3865 = vshrl.u32 %v3860, 16
        %v3866 = vmul.u32 %v3862, %v3864
        %v3867 = vmul.u32 %v3862, %v3865
        %v3868 = vmul.u32 %v3863, %v3864
        %v3869 = vmul.u32 %v3863, %v3865
        %v3870 = vshll.u32 %v3867, 16
        %v3871 = vshrl.u32 %v3867, 16
        %v3872 = vshll.u32 %v3868, 16
        %v3873 = vshrl.u32 %v3868, 16
        %vm3874 = vc.u32 %v3866, %v3870
        %v3875 = vsel %vm3874, 1, 0
        %v3876 = vadd.s32 %v3866, %v3870
        %v3877 = vadd.s32 %v3869, %v3875
        %vm3878 = vc.u32 %v3876, %v3872
        %v3879 = vsel %vm3878, 1, 0
        %v3880 = vadd.s32 %v3876, %v3872
        %v3881 = vadd.s32 %v3877, %v3879
        %v3882 = vadd.s32 %v3881, %v3871
        %v3883 = vadd.s32 %v3882, %v3873
        %v3884 = vand.u32 %v3861, 65535
        %v3885 = vshrl.u32 %v3861, 16
        %v3886 = vand.u32 %v3856, 65535
        %v3887 = vshrl.u32 %v3856, 16
        %v3888 = vmul.u32 %v3884, %v3886
        %v3889 = vmul.u32 %v3884, %v3887
        %v3890 = vmul.u32 %v3885, %v3886
        %v3891 = vmul.u32 %v3885, %v3887
        %v3892 = vshll.u32 %v3889, 16
        %v3893 = vshrl.u32 %v3889, 16
        %v3894 = vshll.u32 %v3890, 16
        %v3895 = vshrl.u32 %v3890, 16
        %vm3896 = vc.u32 %v3888, %v3892
        %v3897 = vsel %vm3896, 1, 0
        %v3898 = vadd.s32 %v3888, %v3892
        %v3899 = vadd.s32 %v3891, %v3897
        %vm3900 = vc.u32 %v3898, %v3894
        %v3901 = vsel %vm3900, 1, 0
        %v3902 = vadd.s32 %v3898, %v3894
        %v3903 = vadd.s32 %v3899, %v3901
        %v3904 = vadd.s32 %v3903, %v3893
        %v3905 = vadd.s32 %v3904, %v3895
        %v3906 = vmul.u32 %v3861, %v3852
        %v3907 = vadd.s32 %v3883, %v3902
        %vm3908 = vc.u32 %v3883, %v3902
        %v3909 = vadd.s32 %v3905, 1
        %v3910 = vsel %vm3908, %v3909, %v3905
        %v3911 = vadd.s32 %v3906, %v3910
        %v3912 = vadd.s32 %v3911, 536870912
        %v3913 = vshrl.u32 %v3912, 30
        %v3914 = vshll.u32 %v3913, 30
        %v3915 = vsub.s32 %v3911, %v3914
        %vm3916 = vcmp.lt.s32.totalorder %v3915, 0
        %v3917 = vsub.s32 0, %v3915
        %v3918 = vsel %vm3916, %v3917, %v3915
        %v3919 = vclz %v3918
        %v3920 = vsub.s32 %v3919, 2
        %vm3921 = vcmp.gt.s32.totalorder 0, %v3920
        %v3922 = vsel %vm3921, 0, %v3920
        %v3923 = vsub.s32 32, %v3922
        %v3924 = vshll.u32 %v3915, %v3922
        %v3925 = vshrl.u32 %v3907, %v3923
        %v3926 = vor.u32 %v3924, %v3925
        %v3927 = vsub.s32 4294967266, %v3922
        %v3928 = vadd.s32 %v3927, 127
        %v3929 = vshll.u32 %v3928, 23
        %v3930 = vor.u32 4788187, %v3929
        %v3931 = vand.u32 2147483647, %v3930
        %v3933 = vcvt.s32.f32 %v3926
        %v3934 = vmul.f32 %v3933, %v3931
        %v3935 = vxor.u32 %v3934, 2147483648
        %v3936 = vsel %vm3815, %v3935, %v3934
        %v3937 = vsub.s32 4, %v3913
        %v3938 = vsel %vm3815, %v3937, %v3913
        %v3939 = vsel %vm3814, %v669, %v3936
        %v3940 = vsel %vm3814, 0, %v3938
        %v3941 = vmul.f32 %v3939, %v3939
        %v3942 = vmul.f32 %v3941, -0.001358992
        %v3943 = vadd.f32 %v3942, 0.041655596
        %v3944 = vmul.f32 %v3941, %v3943
        %v3945 = vadd.f32 %v3944, -0.4999988
        %v3946 = vmul.f32 %v3941, %v3945
        %v3947 = vadd.f32 1.0, %v3946
        %v3948 = vmul.f32 %v3939, %v3939
        %v3949 = vmul.f32 %v3948, -0.00019511016
        %v3950 = vadd.f32 %v3949, 0.008332121
        %v3951 = vmul.f32 %v3948, %v3950
        %v3952 = vadd.f32 %v3951, -0.16666654
        %v3953 = vmul.f32 %v3948, %v3952
        %v3954 = vadd.f32 %v3953, 1.0
        %v3955 = vmul.f32 %v3954, %v3939
        %vm3956 = vweird.f32 %v669
        %v3957 = vadd.s32 %v3940, 3
        %v3958 = vand.u32 %v3957, 3
        %vm3959 = vcmp.lt.s32.totalorder %v3958, 2
        %vm3960 = vcmp.eq.s32.totalorder %v3958, 0
        %v3961 = vxor.u32 %v3955, 2147483648
        %v3962 = vsel %vm3960, %v3947, %v3961
        %vm3963 = vcmp.eq.s32.totalorder %v3958, 2
        %v3964 = vxor.u32 %v3947, 2147483648
        %v3965 = vsel %vm3963, %v3964, %v3955
        %v3966 = vsel %vm3959, %v3962, %v3965
        %v3967 = vsel %vm3956, nan, %v3966
        %v3968 = vand.u32 2147483647, %v670
        %vm3969 = vcmp.le.f32.partialorder %v3968, 0.7853982
        %vm3970 = vcmp.lt.s32.totalorder %v670, 0
        %v3971 = vand.u32 %v670, 2139095040
        %v3972 = vshrl.u32 %v3971, 23
        %v3973 = vsub.s32 %v3972, 127
        %v3974 = vand.u32 2147483647, %v670
        %v3975 = vand.u32 %v3974, 8388607
        %v3976 = vor.u32 %v3975, 8388608
        %v3977 = vsub.s32 0, %v3976
        %v3978 = vadd.s32 %v3973, 1
        %vm3979 = vcmp.gt.s32.totalorder %v3978, 0
        %v3980 = vsel %vm3979, %v3978, 0
        %v3981 = vshrl.u32 %v3980, 5
        %v3982 = vand.u32 %v3980, 31
        %v3983 = vsub.s32 32, %v3982
        %v3984 = vshrl.u32 683565275, %v3983
        %v3985 = vshll.u32 683565275, %v3982
        %v3986 = vshrl.u32 2475754826, %v3983
        %v3987 = vor.u32 %v3985, %v3986
        %v3988 = vshll.u32 2475754826, %v3982
        %v3989 = vshrl.u32 2131351028, %v3983
        %v3990 = vor.u32 %v3988, %v3989
        %v3991 = vshll.u32 2131351028, %v3982
        %v3992 = vshrl.u32 2102212464, %v3983
        %v3993 = vor.u32 %v3991, %v3992
        %v3994 = vshll.u32 2102212464, %v3982
        %v3995 = vshrl.u32 920167782, %v3983
        %v3996 = vor.u32 %v3994, %v3995
        %v3997 = vshll.u32 920167782, %v3982
        %v3998 = vshrl.u32 1326507024, %v3983
        %v3999 = vor.u32 %v3997, %v3998
        %vm4000 = vcmp.lt.s32.totalorder %v3981, 1
        %vm4001 = vcmp.lt.s32.totalorder %v3981, 2
        %vm4002 = vcmp.lt.s32.totalorder %v3981, 3
        %vm4003 = vcmp.lt.s32.totalorder %v3981, 4
        %v4004 = vsel %vm4000, %v3984, %v3987
        %v4005 = vsel %vm4003, %v3993, 2102212464
        %v4006 = vsel %vm4002, %v3990, %v4005
        %v4007 = vsel %vm4001, %v4004, %v4006
        %v4008 = vsel %vm4000, %v3987, %v3990
        %v4009 = vsel %vm4003, %v3996, 920167782
        %v4010 = vsel %vm4002, %v3993, %v4009
        %v4011 = vsel %vm4001, %v4008, %v4010
        %v4012 = vsel %vm4000, %v3990, %v3993
        %v4013 = vsel %vm4003, %v3999, 1326507024
        %v4014 = vsel %vm4002, %v3996, %v4013
        %v4015 = vsel %vm4001, %v4012, %v4014
        %v4016 = vshll.u32 %v3976, 8
        %v4017 = vand.u32 %v4016, 65535
        %v4018 = vshrl.u32 %v4016, 16
        %v4019 = vand.u32 %v4015, 65535
        %v4020 = vshrl.u32 %v4015, 16
        %v4021 = vmul.u32 %v4017, %v4019
        %v4022 = vmul.u32 %v4017, %v4020
        %v4023 = vmul.u32 %v4018, %v4019
        %v4024 = vmul.u32 %v4018, %v4020
        %v4025 = vshll.u32 %v4022, 16
        %v4026 = vshrl.u32 %v4022, 16
        %v4027 = vshll.u32 %v4023, 16
        %v4028 = vshrl.u32 %v4023, 16
        %vm4029 = vc.u32 %v4021, %v4025
        %v4030 = vsel %vm4029, 1, 0
        %v4031 = vadd.s32 %v4021, %v4025
        %v4032 = vadd.s32 %v4024, %v4030
        %vm4033 = vc.u32 %v4031, %v4027
        %v4034 = vsel %vm4033, 1, 0
        %v4035 = vadd.s32 %v4031, %v4027
        %v4036 = vadd.s32 %v4032, %v4034
        %v4037 = vadd.s32 %v4036, %v4026
        %v4038 = vadd.s32 %v4037, %v4028
        %v4039 = vand.u32 %v4016, 65535
        %v4040 = vshrl.u32 %v4016, 16
        %v4041 = vand.u32 %v4011, 65535
        %v4042 = vshrl.u32 %v4011, 16
        %v4043 = vmul.u32 %v4039, %v4041
        %v4044 = vmul.u32 %v4039, %v4042
        %v4045 = vmul.u32 %v4040, %v4041
        %v4046 = vmul.u32 %v4040, %v4042
        %v4047 = vshll.u32 %v4044, 16
        %v4048 = vshrl.u32 %v4044, 16
        %v4049 = vshll.u32 %v4045, 16
        %v4050 = vshrl.u32 %v4045, 16
        %vm4051 = vc.u32 %v4043, %v4047
        %v4052 = vsel %vm4051, 1, 0
        %v4053 = vadd.s32 %v4043, %v4047
        %v4054 = vadd.s32 %v4046, %v4052
        %vm4055 = vc.u32 %v4053, %v4049
        %v4056 = vsel %vm4055, 1, 0
        %v4057 = vadd.s32 %v4053, %v4049
        %v4058 = vadd.s32 %v4054, %v4056
        %v4059 = vadd.s32 %v4058, %v4048
        %v4060 = vadd.s32 %v4059, %v4050
        %v4061 = vmul.u32 %v4016, %v4007
        %v4062 = vadd.s32 %v4038, %v4057
        %vm4063 = vc.u32 %v4038, %v4057
        %v4064 = vadd.s32 %v4060, 1
        %v4065 = vsel %vm4063, %v4064, %v4060
        %v4066 = vadd.s32 %v4061, %v4065
        %v4067 = vadd.s32 %v4066, 536870912
        %v4068 = vshrl.u32 %v4067, 30
        %v4069 = vshll.u32 %v4068, 30
        %v4070 = vsub.s32 %v4066, %v4069
        %vm4071 = vcmp.lt.s32.totalorder %v4070, 0
        %v4072 = vsub.s32 0, %v4070
        %v4073 = vsel %vm4071, %v4072, %v4070
        %v4074 = vclz %v4073
        %v4075 = vsub.s32 %v4074, 2
        %vm4076 = vcmp.gt.s32.totalorder 0, %v4075
        %v4077 = vsel %vm4076, 0, %v4075
        %v4078 = vsub.s32 32, %v4077
        %v4079 = vshll.u32 %v4070, %v4077
        %v4080 = vshrl.u32 %v4062, %v4078
        %v4081 = vor.u32 %v4079, %v4080
        %v4082 = vsub.s32 4294967266, %v4077
        %v4083 = vadd.s32 %v4082, 127
        %v4084 = vshll.u32 %v4083, 23
        %v4085 = vor.u32 4788187, %v4084
        %v4086 = vand.u32 2147483647, %v4085
        %v4088 = vcvt.s32.f32 %v4081
        %v4089 = vmul.f32 %v4088, %v4086
        %v4090 = vxor.u32 %v4089, 2147483648
        %v4091 = vsel %vm3970, %v4090, %v4089
        %v4092 = vsub.s32 4, %v4068
        %v4093 = vsel %vm3970, %v4092, %v4068
        %v4094 = vsel %vm3969, %v670, %v4091
        %v4095 = vsel %vm3969, 0, %v4093
        %v4096 = vmul.f32 %v4094, %v4094
        %v4097 = vmul.f32 %v4096, -0.001358992
        %v4098 = vadd.f32 %v4097, 0.041655596
        %v4099 = vmul.f32 %v4096, %v4098
        %v4100 = vadd.f32 %v4099, -0.4999988
        %v4101 = vmul.f32 %v4096, %v4100
        %v4102 = vadd.f32 1.0, %v4101
        %v4103 = vmul.f32 %v4094, %v4094
        %v4104 = vmul.f32 %v4103, -0.00019511016
        %v4105 = vadd.f32 %v4104, 0.008332121
        %v4106 = vmul.f32 %v4103, %v4105
        %v4107 = vadd.f32 %v4106, -0.16666654
        %v4108 = vmul.f32 %v4103, %v4107
        %v4109 = vadd.f32 %v4108, 1.0
        %v4110 = vmul.f32 %v4109, %v4094
        %vm4111 = vweird.f32 %v670
        %v4112 = vadd.s32 %v4095, 3
        %v4113 = vand.u32 %v4112, 3
        %vm4114 = vcmp.lt.s32.totalorder %v4113, 2
        %vm4115 = vcmp.eq.s32.totalorder %v4113, 0
        %v4116 = vxor.u32 %v4110, 2147483648
        %v4117 = vsel %vm4115, %v4102, %v4116
        %vm4118 = vcmp.eq.s32.totalorder %v4113, 2
        %v4119 = vxor.u32 %v4102, 2147483648
        %v4120 = vsel %vm4118, %v4119, %v4110
        %v4121 = vsel %vm4114, %v4117, %v4120
        %v4122 = vsel %vm4111, nan, %v4121
        %v4123 = vand.u32 2147483647, %v671
        %vm4124 = vcmp.le.f32.partialorder %v4123, 0.7853982
        %vm4125 = vcmp.lt.s32.totalorder %v671, 0
        %v4126 = vand.u32 %v671, 2139095040
        %v4127 = vshrl.u32 %v4126, 23
        %v4128 = vsub.s32 %v4127, 127
        %v4129 = vand.u32 2147483647, %v671
        %v4130 = vand.u32 %v4129, 8388607
        %v4131 = vor.u32 %v4130, 8388608
        %v4132 = vsub.s32 0, %v4131
        %v4133 = vadd.s32 %v4128, 1
        %vm4134 = vcmp.gt.s32.totalorder %v4133, 0
        %v4135 = vsel %vm4134, %v4133, 0
        %v4136 = vshrl.u32 %v4135, 5
        %v4137 = vand.u32 %v4135, 31
        %v4138 = vsub.s32 32, %v4137
        %v4139 = vshrl.u32 683565275, %v4138
        %v4140 = vshll.u32 683565275, %v4137
        %v4141 = vshrl.u32 2475754826, %v4138
        %v4142 = vor.u32 %v4140, %v4141
        %v4143 = vshll.u32 2475754826, %v4137
        %v4144 = vshrl.u32 2131351028, %v4138
        %v4145 = vor.u32 %v4143, %v4144
        %v4146 = vshll.u32 2131351028, %v4137
        %v4147 = vshrl.u32 2102212464, %v4138
        %v4148 = vor.u32 %v4146, %v4147
        %v4149 = vshll.u32 2102212464, %v4137
        %v4150 = vshrl.u32 920167782, %v4138
        %v4151 = vor.u32 %v4149, %v4150
        %v4152 = vshll.u32 920167782, %v4137
        %v4153 = vshrl.u32 1326507024, %v4138
        %v4154 = vor.u32 %v4152, %v4153
        %vm4155 = vcmp.lt.s32.totalorder %v4136, 1
        %vm4156 = vcmp.lt.s32.totalorder %v4136, 2
        %vm4157 = vcmp.lt.s32.totalorder %v4136, 3
        %vm4158 = vcmp.lt.s32.totalorder %v4136, 4
        %v4159 = vsel %vm4155, %v4139, %v4142
        %v4160 = vsel %vm4158, %v4148, 2102212464
        %v4161 = vsel %vm4157, %v4145, %v4160
        %v4162 = vsel %vm4156, %v4159, %v4161
        %v4163 = vsel %vm4155, %v4142, %v4145
        %v4164 = vsel %vm4158, %v4151, 920167782
        %v4165 = vsel %vm4157, %v4148, %v4164
        %v4166 = vsel %vm4156, %v4163, %v4165
        %v4167 = vsel %vm4155, %v4145, %v4148
        %v4168 = vsel %vm4158, %v4154, 1326507024
        %v4169 = vsel %vm4157, %v4151, %v4168
        %v4170 = vsel %vm4156, %v4167, %v4169
        %v4171 = vshll.u32 %v4131, 8
        %v4172 = vand.u32 %v4171, 65535
        %v4173 = vshrl.u32 %v4171, 16
        %v4174 = vand.u32 %v4170, 65535
        %v4175 = vshrl.u32 %v4170, 16
        %v4176 = vmul.u32 %v4172, %v4174
        %v4177 = vmul.u32 %v4172, %v4175
        %v4178 = vmul.u32 %v4173, %v4174
        %v4179 = vmul.u32 %v4173, %v4175
        %v4180 = vshll.u32 %v4177, 16
        %v4181 = vshrl.u32 %v4177, 16
        %v4182 = vshll.u32 %v4178, 16
        %v4183 = vshrl.u32 %v4178, 16
        %vm4184 = vc.u32 %v4176, %v4180
        %v4185 = vsel %vm4184, 1, 0
        %v4186 = vadd.s32 %v4176, %v4180
        %v4187 = vadd.s32 %v4179, %v4185
        %vm4188 = vc.u32 %v4186, %v4182
        %v4189 = vsel %vm4188, 1, 0
        %v4190 = vadd.s32 %v4186, %v4182
        %v4191 = vadd.s32 %v4187, %v4189
        %v4192 = vadd.s32 %v4191, %v4181
        %v4193 = vadd.s32 %v4192, %v4183
        %v4194 = vand.u32 %v4171, 65535
        %v4195 = vshrl.u32 %v4171, 16
        %v4196 = vand.u32 %v4166, 65535
        %v4197 = vshrl.u32 %v4166, 16
        %v4198 = vmul.u32 %v4194, %v4196
        %v4199 = vmul.u32 %v4194, %v4197
        %v4200 = vmul.u32 %v4195, %v4196
        %v4201 = vmul.u32 %v4195, %v4197
        %v4202 = vshll.u32 %v4199, 16
        %v4203 = vshrl.u32 %v4199, 16
        %v4204 = vshll.u32 %v4200, 16
        %v4205 = vshrl.u32 %v4200, 16
        %vm4206 = vc.u32 %v4198, %v4202
        %v4207 = vsel %vm4206, 1, 0
        %v4208 = vadd.s32 %v4198, %v4202
        %v4209 = vadd.s32 %v4201, %v4207
        %vm4210 = vc.u32 %v4208, %v4204
        %v4211 = vsel %vm4210, 1, 0
        %v4212 = vadd.s32 %v4208, %v4204
        %v4213 = vadd.s32 %v4209, %v4211
        %v4214 = vadd.s32 %v4213, %v4203
        %v4215 = vadd.s32 %v4214, %v4205
        %v4216 = vmul.u32 %v4171, %v4162
        %v4217 = vadd.s32 %v4193, %v4212
        %vm4218 = vc.u32 %v4193, %v4212
        %v4219 = vadd.s32 %v4215, 1
        %v4220 = vsel %vm4218, %v4219, %v4215
        %v4221 = vadd.s32 %v4216, %v4220
        %v4222 = vadd.s32 %v4221, 536870912
        %v4223 = vshrl.u32 %v4222, 30
        %v4224 = vshll.u32 %v4223, 30
        %v4225 = vsub.s32 %v4221, %v4224
        %vm4226 = vcmp.lt.s32.totalorder %v4225, 0
        %v4227 = vsub.s32 0, %v4225
        %v4228 = vsel %vm4226, %v4227, %v4225
        %v4229 = vclz %v4228
        %v4230 = vsub.s32 %v4229, 2
        %vm4231 = vcmp.gt.s32.totalorder 0, %v4230
        %v4232 = vsel %vm4231, 0, %v4230
        %v4233 = vsub.s32 32, %v4232
        %v4234 = vshll.u32 %v4225, %v4232
        %v4235 = vshrl.u32 %v4217, %v4233
        %v4236 = vor.u32 %v4234, %v4235
        %v4237 = vsub.s32 4294967266, %v4232
        %v4238 = vadd.s32 %v4237, 127
        %v4239 = vshll.u32 %v4238, 23
        %v4240 = vor.u32 4788187, %v4239
        %v4241 = vand.u32 2147483647, %v4240
        %v4243 = vcvt.s32.f32 %v4236
        %v4244 = vmul.f32 %v4243, %v4241
        %v4245 = vxor.u32 %v4244, 2147483648
        %v4246 = vsel %vm4125, %v4245, %v4244
        %v4247 = vsub.s32 4, %v4223
        %v4248 = vsel %vm4125, %v4247, %v4223
        %v4249 = vsel %vm4124, %v671, %v4246
        %v4250 = vsel %vm4124, 0, %v4248
        %v4251 = vmul.f32 %v4249, %v4249
        %v4252 = vmul.f32 %v4251, -0.001358992
        %v4253 = vadd.f32 %v4252, 0.041655596
        %v4254 = vmul.f32 %v4251, %v4253
        %v4255 = vadd.f32 %v4254, -0.4999988
        %v4256 = vmul.f32 %v4251, %v4255
        %v4257 = vadd.f32 1.0, %v4256
        %v4258 = vmul.f32 %v4249, %v4249
        %v4259 = vmul.f32 %v4258, -0.00019511016
        %v4260 = vadd.f32 %v4259, 0.008332121
        %v4261 = vmul.f32 %v4258, %v4260
        %v4262 = vadd.f32 %v4261, -0.16666654
        %v4263 = vmul.f32 %v4258, %v4262
        %v4264 = vadd.f32 %v4263, 1.0
        %v4265 = vmul.f32 %v4264, %v4249
        %vm4266 = vweird.f32 %v671
        %v4267 = vadd.s32 %v4250, 3
        %v4268 = vand.u32 %v4267, 3
        %vm4269 = vcmp.lt.s32.totalorder %v4268, 2
        %vm4270 = vcmp.eq.s32.totalorder %v4268, 0
        %v4271 = vxor.u32 %v4265, 2147483648
        %v4272 = vsel %vm4270, %v4257, %v4271
        %vm4273 = vcmp.eq.s32.totalorder %v4268, 2
        %v4274 = vxor.u32 %v4257, 2147483648
        %v4275 = vsel %vm4273, %v4274, %v4265
        %v4276 = vsel %vm4269, %v4272, %v4275
        %v4277 = vsel %vm4266, nan, %v4276
        %v4278 = vand.u32 2147483647, %v672
        %vm4279 = vcmp.le.f32.partialorder %v4278, 0.7853982
        %vm4280 = vcmp.lt.s32.totalorder %v672, 0
        %v4281 = vand.u32 %v672, 2139095040
        %v4282 = vshrl.u32 %v4281, 23
        %v4283 = vsub.s32 %v4282, 127
        %v4284 = vand.u32 2147483647, %v672
        %v4285 = vand.u32 %v4284, 8388607
        %v4286 = vor.u32 %v4285, 8388608
        %v4287 = vsub.s32 0, %v4286
        %v4288 = vadd.s32 %v4283, 1
        %vm4289 = vcmp.gt.s32.totalorder %v4288, 0
        %v4290 = vsel %vm4289, %v4288, 0
        %v4291 = vshrl.u32 %v4290, 5
        %v4292 = vand.u32 %v4290, 31
        %v4293 = vsub.s32 32, %v4292
        %v4294 = vshrl.u32 683565275, %v4293
        %v4295 = vshll.u32 683565275, %v4292
        %v4296 = vshrl.u32 2475754826, %v4293
        %v4297 = vor.u32 %v4295, %v4296
        %v4298 = vshll.u32 2475754826, %v4292
        %v4299 = vshrl.u32 2131351028, %v4293
        %v4300 = vor.u32 %v4298, %v4299
        %v4301 = vshll.u32 2131351028, %v4292
        %v4302 = vshrl.u32 2102212464, %v4293
        %v4303 = vor.u32 %v4301, %v4302
        %v4304 = vshll.u32 2102212464, %v4292
        %v4305 = vshrl.u32 920167782, %v4293
        %v4306 = vor.u32 %v4304, %v4305
        %v4307 = vshll.u32 920167782, %v4292
        %v4308 = vshrl.u32 1326507024, %v4293
        %v4309 = vor.u32 %v4307, %v4308
        %vm4310 = vcmp.lt.s32.totalorder %v4291, 1
        %vm4311 = vcmp.lt.s32.totalorder %v4291, 2
        %vm4312 = vcmp.lt.s32.totalorder %v4291, 3
        %vm4313 = vcmp.lt.s32.totalorder %v4291, 4
        %v4314 = vsel %vm4310, %v4294, %v4297
        %v4315 = vsel %vm4313, %v4303, 2102212464
        %v4316 = vsel %vm4312, %v4300, %v4315
        %v4317 = vsel %vm4311, %v4314, %v4316
        %v4318 = vsel %vm4310, %v4297, %v4300
        %v4319 = vsel %vm4313, %v4306, 920167782
        %v4320 = vsel %vm4312, %v4303, %v4319
        %v4321 = vsel %vm4311, %v4318, %v4320
        %v4322 = vsel %vm4310, %v4300, %v4303
        %v4323 = vsel %vm4313, %v4309, 1326507024
        %v4324 = vsel %vm4312, %v4306, %v4323
        %v4325 = vsel %vm4311, %v4322, %v4324
        %v4326 = vshll.u32 %v4286, 8
        %v4327 = vand.u32 %v4326, 65535
        %v4328 = vshrl.u32 %v4326, 16
        %v4329 = vand.u32 %v4325, 65535
        %v4330 = vshrl.u32 %v4325, 16
        %v4331 = vmul.u32 %v4327, %v4329
        %v4332 = vmul.u32 %v4327, %v4330
        %v4333 = vmul.u32 %v4328, %v4329
        %v4334 = vmul.u32 %v4328, %v4330
        %v4335 = vshll.u32 %v4332, 16
        %v4336 = vshrl.u32 %v4332, 16
        %v4337 = vshll.u32 %v4333, 16
        %v4338 = vshrl.u32 %v4333, 16
        %vm4339 = vc.u32 %v4331, %v4335
        %v4340 = vsel %vm4339, 1, 0
        %v4341 = vadd.s32 %v4331, %v4335
        %v4342 = vadd.s32 %v4334, %v4340
        %vm4343 = vc.u32 %v4341, %v4337
        %v4344 = vsel %vm4343, 1, 0
        %v4345 = vadd.s32 %v4341, %v4337
        %v4346 = vadd.s32 %v4342, %v4344
        %v4347 = vadd.s32 %v4346, %v4336
        %v4348 = vadd.s32 %v4347, %v4338
        %v4349 = vand.u32 %v4326, 65535
        %v4350 = vshrl.u32 %v4326, 16
        %v4351 = vand.u32 %v4321, 65535
        %v4352 = vshrl.u32 %v4321, 16
        %v4353 = vmul.u32 %v4349, %v4351
        %v4354 = vmul.u32 %v4349, %v4352
        %v4355 = vmul.u32 %v4350, %v4351
        %v4356 = vmul.u32 %v4350, %v4352
        %v4357 = vshll.u32 %v4354, 16
        %v4358 = vshrl.u32 %v4354, 16
        %v4359 = vshll.u32 %v4355, 16
        %v4360 = vshrl.u32 %v4355, 16
        %vm4361 = vc.u32 %v4353, %v4357
        %v4362 = vsel %vm4361, 1, 0
        %v4363 = vadd.s32 %v4353, %v4357
        %v4364 = vadd.s32 %v4356, %v4362
        %vm4365 = vc.u32 %v4363, %v4359
        %v4366 = vsel %vm4365, 1, 0
        %v4367 = vadd.s32 %v4363, %v4359
        %v4368 = vadd.s32 %v4364, %v4366
        %v4369 = vadd.s32 %v4368, %v4358
        %v4370 = vadd.s32 %v4369, %v4360
        %v4371 = vmul.u32 %v4326, %v4317
        %v4372 = vadd.s32 %v4348, %v4367
        %vm4373 = vc.u32 %v4348, %v4367
        %v4374 = vadd.s32 %v4370, 1
        %v4375 = vsel %vm4373, %v4374, %v4370
        %v4376 = vadd.s32 %v4371, %v4375
        %v4377 = vadd.s32 %v4376, 536870912
        %v4378 = vshrl.u32 %v4377, 30
        %v4379 = vshll.u32 %v4378, 30
        %v4380 = vsub.s32 %v4376, %v4379
        %vm4381 = vcmp.lt.s32.totalorder %v4380, 0
        %v4382 = vsub.s32 0, %v4380
        %v4383 = vsel %vm4381, %v4382, %v4380
        %v4384 = vclz %v4383
        %v4385 = vsub.s32 %v4384, 2
        %vm4386 = vcmp.gt.s32.totalorder 0, %v4385
        %v4387 = vsel %vm4386, 0, %v4385
        %v4388 = vsub.s32 32, %v4387
        %v4389 = vshll.u32 %v4380, %v4387
        %v4390 = vshrl.u32 %v4372, %v4388
        %v4391 = vor.u32 %v4389, %v4390
        %v4392 = vsub.s32 4294967266, %v4387
        %v4393 = vadd.s32 %v4392, 127
        %v4394 = vshll.u32 %v4393, 23
        %v4395 = vor.u32 4788187, %v4394
        %v4396 = vand.u32 2147483647, %v4395
        %v4398 = vcvt.s32.f32 %v4391
        %v4399 = vmul.f32 %v4398, %v4396
        %v4400 = vxor.u32 %v4399, 2147483648
        %v4401 = vsel %vm4280, %v4400, %v4399
        %v4402 = vsub.s32 4, %v4378
        %v4403 = vsel %vm4280, %v4402, %v4378
        %v4404 = vsel %vm4279, %v672, %v4401
        %v4405 = vsel %vm4279, 0, %v4403
        %v4406 = vmul.f32 %v4404, %v4404
        %v4407 = vmul.f32 %v4406, -0.001358992
        %v4408 = vadd.f32 %v4407, 0.041655596
        %v4409 = vmul.f32 %v4406, %v4408
        %v4410 = vadd.f32 %v4409, -0.4999988
        %v4411 = vmul.f32 %v4406, %v4410
        %v4412 = vadd.f32 1.0, %v4411
        %v4413 = vmul.f32 %v4404, %v4404
        %v4414 = vmul.f32 %v4413, -0.00019511016
        %v4415 = vadd.f32 %v4414, 0.008332121
        %v4416 = vmul.f32 %v4413, %v4415
        %v4417 = vadd.f32 %v4416, -0.16666654
        %v4418 = vmul.f32 %v4413, %v4417
        %v4419 = vadd.f32 %v4418, 1.0
        %v4420 = vmul.f32 %v4419, %v4404
        %vm4421 = vweird.f32 %v672
        %v4422 = vadd.s32 %v4405, 3
        %v4423 = vand.u32 %v4422, 3
        %vm4424 = vcmp.lt.s32.totalorder %v4423, 2
        %vm4425 = vcmp.eq.s32.totalorder %v4423, 0
        %v4426 = vxor.u32 %v4420, 2147483648
        %v4427 = vsel %vm4425, %v4412, %v4426
        %vm4428 = vcmp.eq.s32.totalorder %v4423, 2
        %v4429 = vxor.u32 %v4412, 2147483648
        %v4430 = vsel %vm4428, %v4429, %v4420
        %v4431 = vsel %vm4424, %v4427, %v4430
        %v4432 = vsel %vm4421, nan, %v4431
        %v4433 = vand.u32 2147483647, %v673
        %vm4434 = vcmp.le.f32.partialorder %v4433, 0.7853982
        %vm4435 = vcmp.lt.s32.totalorder %v673, 0
        %v4436 = vand.u32 %v673, 2139095040
        %v4437 = vshrl.u32 %v4436, 23
        %v4438 = vsub.s32 %v4437, 127
        %v4439 = vand.u32 2147483647, %v673
        %v4440 = vand.u32 %v4439, 8388607
        %v4441 = vor.u32 %v4440, 8388608
        %v4442 = vsub.s32 0, %v4441
        %v4443 = vadd.s32 %v4438, 1
        %vm4444 = vcmp.gt.s32.totalorder %v4443, 0
        %v4445 = vsel %vm4444, %v4443, 0
        %v4446 = vshrl.u32 %v4445, 5
        %v4447 = vand.u32 %v4445, 31
        %v4448 = vsub.s32 32, %v4447
        %v4449 = vshrl.u32 683565275, %v4448
        %v4450 = vshll.u32 683565275, %v4447
        %v4451 = vshrl.u32 2475754826, %v4448
        %v4452 = vor.u32 %v4450, %v4451
        %v4453 = vshll.u32 2475754826, %v4447
        %v4454 = vshrl.u32 2131351028, %v4448
        %v4455 = vor.u32 %v4453, %v4454
        %v4456 = vshll.u32 2131351028, %v4447
        %v4457 = vshrl.u32 2102212464, %v4448
        %v4458 = vor.u32 %v4456, %v4457
        %v4459 = vshll.u32 2102212464, %v4447
        %v4460 = vshrl.u32 920167782, %v4448
        %v4461 = vor.u32 %v4459, %v4460
        %v4462 = vshll.u32 920167782, %v4447
        %v4463 = vshrl.u32 1326507024, %v4448
        %v4464 = vor.u32 %v4462, %v4463
        %vm4465 = vcmp.lt.s32.totalorder %v4446, 1
        %vm4466 = vcmp.lt.s32.totalorder %v4446, 2
        %vm4467 = vcmp.lt.s32.totalorder %v4446, 3
        %vm4468 = vcmp.lt.s32.totalorder %v4446, 4
        %v4469 = vsel %vm4465, %v4449, %v4452
        %v4470 = vsel %vm4468, %v4458, 2102212464
        %v4471 = vsel %vm4467, %v4455, %v4470
        %v4472 = vsel %vm4466, %v4469, %v4471
        %v4473 = vsel %vm4465, %v4452, %v4455
        %v4474 = vsel %vm4468, %v4461, 920167782
        %v4475 = vsel %vm4467, %v4458, %v4474
        %v4476 = vsel %vm4466, %v4473, %v4475
        %v4477 = vsel %vm4465, %v4455, %v4458
        %v4478 = vsel %vm4468, %v4464, 1326507024
        %v4479 = vsel %vm4467, %v4461, %v4478
        %v4480 = vsel %vm4466, %v4477, %v4479
        %v4481 = vshll.u32 %v4441, 8
        %v4482 = vand.u32 %v4481, 65535
        %v4483 = vshrl.u32 %v4481, 16
        %v4484 = vand.u32 %v4480, 65535
        %v4485 = vshrl.u32 %v4480, 16
        %v4486 = vmul.u32 %v4482, %v4484
        %v4487 = vmul.u32 %v4482, %v4485
        %v4488 = vmul.u32 %v4483, %v4484
        %v4489 = vmul.u32 %v4483, %v4485
        %v4490 = vshll.u32 %v4487, 16
        %v4491 = vshrl.u32 %v4487, 16
        %v4492 = vshll.u32 %v4488, 16
        %v4493 = vshrl.u32 %v4488, 16
        %vm4494 = vc.u32 %v4486, %v4490
        %v4495 = vsel %vm4494, 1, 0
        %v4496 = vadd.s32 %v4486, %v4490
        %v4497 = vadd.s32 %v4489, %v4495
        %vm4498 = vc.u32 %v4496, %v4492
        %v4499 = vsel %vm4498, 1, 0
        %v4500 = vadd.s32 %v4496, %v4492
        %v4501 = vadd.s32 %v4497, %v4499
        %v4502 = vadd.s32 %v4501, %v4491
        %v4503 = vadd.s32 %v4502, %v4493
        %v4504 = vand.u32 %v4481, 65535
        %v4505 = vshrl.u32 %v4481, 16
        %v4506 = vand.u32 %v4476, 65535
        %v4507 = vshrl.u32 %v4476, 16
        %v4508 = vmul.u32 %v4504, %v4506
        %v4509 = vmul.u32 %v4504, %v4507
        %v4510 = vmul.u32 %v4505, %v4506
        %v4511 = vmul.u32 %v4505, %v4507
        %v4512 = vshll.u32 %v4509, 16
        %v4513 = vshrl.u32 %v4509, 16
        %v4514 = vshll.u32 %v4510, 16
        %v4515 = vshrl.u32 %v4510, 16
        %vm4516 = vc.u32 %v4508, %v4512
        %v4517 = vsel %vm4516, 1, 0
        %v4518 = vadd.s32 %v4508, %v4512
        %v4519 = vadd.s32 %v4511, %v4517
        %vm4520 = vc.u32 %v4518, %v4514
        %v4521 = vsel %vm4520, 1, 0
        %v4522 = vadd.s32 %v4518, %v4514
        %v4523 = vadd.s32 %v4519, %v4521
        %v4524 = vadd.s32 %v4523, %v4513
        %v4525 = vadd.s32 %v4524, %v4515
        %v4526 = vmul.u32 %v4481, %v4472
        %v4527 = vadd.s32 %v4503, %v4522
        %vm4528 = vc.u32 %v4503, %v4522
        %v4529 = vadd.s32 %v4525, 1
        %v4530 = vsel %vm4528, %v4529, %v4525
        %v4531 = vadd.s32 %v4526, %v4530
        %v4532 = vadd.s32 %v4531, 536870912
        %v4533 = vshrl.u32 %v4532, 30
        %v4534 = vshll.u32 %v4533, 30
        %v4535 = vsub.s32 %v4531, %v4534
        %vm4536 = vcmp.lt.s32.totalorder %v4535, 0
        %v4537 = vsub.s32 0, %v4535
        %v4538 = vsel %vm4536, %v4537, %v4535
        %v4539 = vclz %v4538
        %v4540 = vsub.s32 %v4539, 2
        %vm4541 = vcmp.gt.s32.totalorder 0, %v4540
        %v4542 = vsel %vm4541, 0, %v4540
        %v4543 = vsub.s32 32, %v4542
        %v4544 = vshll.u32 %v4535, %v4542
        %v4545 = vshrl.u32 %v4527, %v4543
        %v4546 = vor.u32 %v4544, %v4545
        %v4547 = vsub.s32 4294967266, %v4542
        %v4548 = vadd.s32 %v4547, 127
        %v4549 = vshll.u32 %v4548, 23
        %v4550 = vor.u32 4788187, %v4549
        %v4551 = vand.u32 2147483647, %v4550
        %v4553 = vcvt.s32.f32 %v4546
        %v4554 = vmul.f32 %v4553, %v4551
        %v4555 = vxor.u32 %v4554, 2147483648
        %v4556 = vsel %vm4435, %v4555, %v4554
        %v4557 = vsub.s32 4, %v4533
        %v4558 = vsel %vm4435, %v4557, %v4533
        %v4559 = vsel %vm4434, %v673, %v4556
        %v4560 = vsel %vm4434, 0, %v4558
        %v4561 = vmul.f32 %v4559, %v4559
        %v4562 = vmul.f32 %v4561, -0.001358992
        %v4563 = vadd.f32 %v4562, 0.041655596
        %v4564 = vmul.f32 %v4561, %v4563
        %v4565 = vadd.f32 %v4564, -0.4999988
        %v4566 = vmul.f32 %v4561, %v4565
        %v4567 = vadd.f32 1.0, %v4566
        %v4568 = vmul.f32 %v4559, %v4559
        %v4569 = vmul.f32 %v4568, -0.00019511016
        %v4570 = vadd.f32 %v4569, 0.008332121
        %v4571 = vmul.f32 %v4568, %v4570
        %v4572 = vadd.f32 %v4571, -0.16666654
        %v4573 = vmul.f32 %v4568, %v4572
        %v4574 = vadd.f32 %v4573, 1.0
        %v4575 = vmul.f32 %v4574, %v4559
        %vm4576 = vweird.f32 %v673
        %v4577 = vadd.s32 %v4560, 3
        %v4578 = vand.u32 %v4577, 3
        %vm4579 = vcmp.lt.s32.totalorder %v4578, 2
        %vm4580 = vcmp.eq.s32.totalorder %v4578, 0
        %v4581 = vxor.u32 %v4575, 2147483648
        %v4582 = vsel %vm4580, %v4567, %v4581
        %vm4583 = vcmp.eq.s32.totalorder %v4578, 2
        %v4584 = vxor.u32 %v4567, 2147483648
        %v4585 = vsel %vm4583, %v4584, %v4575
        %v4586 = vsel %vm4579, %v4582, %v4585
        %v4587 = vsel %vm4576, nan, %v4586
        %v4588 = vand.u32 2147483647, %v674
        %vm4589 = vcmp.le.f32.partialorder %v4588, 0.7853982
        %vm4590 = vcmp.lt.s32.totalorder %v674, 0
        %v4591 = vand.u32 %v674, 2139095040
        %v4592 = vshrl.u32 %v4591, 23
        %v4593 = vsub.s32 %v4592, 127
        %v4594 = vand.u32 2147483647, %v674
        %v4595 = vand.u32 %v4594, 8388607
        %v4596 = vor.u32 %v4595, 8388608
        %v4597 = vsub.s32 0, %v4596
        %v4598 = vadd.s32 %v4593, 1
        %vm4599 = vcmp.gt.s32.totalorder %v4598, 0
        %v4600 = vsel %vm4599, %v4598, 0
        %v4601 = vshrl.u32 %v4600, 5
        %v4602 = vand.u32 %v4600, 31
        %v4603 = vsub.s32 32, %v4602
        %v4604 = vshrl.u32 683565275, %v4603
        %v4605 = vshll.u32 683565275, %v4602
        %v4606 = vshrl.u32 2475754826, %v4603
        %v4607 = vor.u32 %v4605, %v4606
        %v4608 = vshll.u32 2475754826, %v4602
        %v4609 = vshrl.u32 2131351028, %v4603
        %v4610 = vor.u32 %v4608, %v4609
        %v4611 = vshll.u32 2131351028, %v4602
        %v4612 = vshrl.u32 2102212464, %v4603
        %v4613 = vor.u32 %v4611, %v4612
        %v4614 = vshll.u32 2102212464, %v4602
        %v4615 = vshrl.u32 920167782, %v4603
        %v4616 = vor.u32 %v4614, %v4615
        %v4617 = vshll.u32 920167782, %v4602
        %v4618 = vshrl.u32 1326507024, %v4603
        %v4619 = vor.u32 %v4617, %v4618
        %vm4620 = vcmp.lt.s32.totalorder %v4601, 1
        %vm4621 = vcmp.lt.s32.totalorder %v4601, 2
        %vm4622 = vcmp.lt.s32.totalorder %v4601, 3
        %vm4623 = vcmp.lt.s32.totalorder %v4601, 4
        %v4624 = vsel %vm4620, %v4604, %v4607
        %v4625 = vsel %vm4623, %v4613, 2102212464
        %v4626 = vsel %vm4622, %v4610, %v4625
        %v4627 = vsel %vm4621, %v4624, %v4626
        %v4628 = vsel %vm4620, %v4607, %v4610
        %v4629 = vsel %vm4623, %v4616, 920167782
        %v4630 = vsel %vm4622, %v4613, %v4629
        %v4631 = vsel %vm4621, %v4628, %v4630
        %v4632 = vsel %vm4620, %v4610, %v4613
        %v4633 = vsel %vm4623, %v4619, 1326507024
        %v4634 = vsel %vm4622, %v4616, %v4633
        %v4635 = vsel %vm4621, %v4632, %v4634
        %v4636 = vshll.u32 %v4596, 8
        %v4637 = vand.u32 %v4636, 65535
        %v4638 = vshrl.u32 %v4636, 16
        %v4639 = vand.u32 %v4635, 65535
        %v4640 = vshrl.u32 %v4635, 16
        %v4641 = vmul.u32 %v4637, %v4639
        %v4642 = vmul.u32 %v4637, %v4640
        %v4643 = vmul.u32 %v4638, %v4639
        %v4644 = vmul.u32 %v4638, %v4640
        %v4645 = vshll.u32 %v4642, 16
        %v4646 = vshrl.u32 %v4642, 16
        %v4647 = vshll.u32 %v4643, 16
        %v4648 = vshrl.u32 %v4643, 16
        %vm4649 = vc.u32 %v4641, %v4645
        %v4650 = vsel %vm4649, 1, 0
        %v4651 = vadd.s32 %v4641, %v4645
        %v4652 = vadd.s32 %v4644, %v4650
        %vm4653 = vc.u32 %v4651, %v4647
        %v4654 = vsel %vm4653, 1, 0
        %v4655 = vadd.s32 %v4651, %v4647
        %v4656 = vadd.s32 %v4652, %v4654
        %v4657 = vadd.s32 %v4656, %v4646
        %v4658 = vadd.s32 %v4657, %v4648
        %v4659 = vand.u32 %v4636, 65535
        %v4660 = vshrl.u32 %v4636, 16
        %v4661 = vand.u32 %v4631, 65535
        %v4662 = vshrl.u32 %v4631, 16
        %v4663 = vmul.u32 %v4659, %v4661
        %v4664 = vmul.u32 %v4659, %v4662
        %v4665 = vmul.u32 %v4660, %v4661
        %v4666 = vmul.u32 %v4660, %v4662
        %v4667 = vshll.u32 %v4664, 16
        %v4668 = vshrl.u32 %v4664, 16
        %v4669 = vshll.u32 %v4665, 16
        %v4670 = vshrl.u32 %v4665, 16
        %vm4671 = vc.u32 %v4663, %v4667
        %v4672 = vsel %vm4671, 1, 0
        %v4673 = vadd.s32 %v4663, %v4667
        %v4674 = vadd.s32 %v4666, %v4672
        %vm4675 = vc.u32 %v4673, %v4669
        %v4676 = vsel %vm4675, 1, 0
        %v4677 = vadd.s32 %v4673, %v4669
        %v4678 = vadd.s32 %v4674, %v4676
        %v4679 = vadd.s32 %v4678, %v4668
        %v4680 = vadd.s32 %v4679, %v4670
        %v4681 = vmul.u32 %v4636, %v4627
        %v4682 = vadd.s32 %v4658, %v4677
        %vm4683 = vc.u32 %v4658, %v4677
        %v4684 = vadd.s32 %v4680, 1
        %v4685 = vsel %vm4683, %v4684, %v4680
        %v4686 = vadd.s32 %v4681, %v4685
        %v4687 = vadd.s32 %v4686, 536870912
        %v4688 = vshrl.u32 %v4687, 30
        %v4689 = vshll.u32 %v4688, 30
        %v4690 = vsub.s32 %v4686, %v4689
        %vm4691 = vcmp.lt.s32.totalorder %v4690, 0
        %v4692 = vsub.s32 0, %v4690
        %v4693 = vsel %vm4691, %v4692, %v4690
        %v4694 = vclz %v4693
        %v4695 = vsub.s32 %v4694, 2
        %vm4696 = vcmp.gt.s32.totalorder 0, %v4695
        %v4697 = vsel %vm4696, 0, %v4695
        %v4698 = vsub.s32 32, %v4697
        %v4699 = vshll.u32 %v4690, %v4697
        %v4700 = vshrl.u32 %v4682, %v4698
        %v4701 = vor.u32 %v4699, %v4700
        %v4702 = vsub.s32 4294967266, %v4697
        %v4703 = vadd.s32 %v4702, 127
        %v4704 = vshll.u32 %v4703, 23
        %v4705 = vor.u32 4788187, %v4704
        %v4706 = vand.u32 2147483647, %v4705
        %v4708 = vcvt.s32.f32 %v4701
        %v4709 = vmul.f32 %v4708, %v4706
        %v4710 = vxor.u32 %v4709, 2147483648
        %v4711 = vsel %vm4590, %v4710, %v4709
        %v4712 = vsub.s32 4, %v4688
        %v4713 = vsel %vm4590, %v4712, %v4688
        %v4714 = vsel %vm4589, %v674, %v4711
        %v4715 = vsel %vm4589, 0, %v4713
        %v4716 = vmul.f32 %v4714, %v4714
        %v4717 = vmul.f32 %v4716, -0.001358992
        %v4718 = vadd.f32 %v4717, 0.041655596
        %v4719 = vmul.f32 %v4716, %v4718
        %v4720 = vadd.f32 %v4719, -0.4999988
        %v4721 = vmul.f32 %v4716, %v4720
        %v4722 = vadd.f32 1.0, %v4721
        %v4723 = vmul.f32 %v4714, %v4714
        %v4724 = vmul.f32 %v4723, -0.00019511016
        %v4725 = vadd.f32 %v4724, 0.008332121
        %v4726 = vmul.f32 %v4723, %v4725
        %v4727 = vadd.f32 %v4726, -0.16666654
        %v4728 = vmul.f32 %v4723, %v4727
        %v4729 = vadd.f32 %v4728, 1.0
        %v4730 = vmul.f32 %v4729, %v4714
        %vm4731 = vweird.f32 %v674
        %v4732 = vadd.s32 %v4715, 3
        %v4733 = vand.u32 %v4732, 3
        %vm4734 = vcmp.lt.s32.totalorder %v4733, 2
        %vm4735 = vcmp.eq.s32.totalorder %v4733, 0
        %v4736 = vxor.u32 %v4730, 2147483648
        %v4737 = vsel %vm4735, %v4722, %v4736
        %vm4738 = vcmp.eq.s32.totalorder %v4733, 2
        %v4739 = vxor.u32 %v4722, 2147483648
        %v4740 = vsel %vm4738, %v4739, %v4730
        %v4741 = vsel %vm4734, %v4737, %v4740
        %v4742 = vsel %vm4731, nan, %v4741
        %v4743 = vand.u32 2147483647, %v675
        %vm4744 = vcmp.le.f32.partialorder %v4743, 0.7853982
        %vm4745 = vcmp.lt.s32.totalorder %v675, 0
        %v4746 = vand.u32 %v675, 2139095040
        %v4747 = vshrl.u32 %v4746, 23
        %v4748 = vsub.s32 %v4747, 127
        %v4749 = vand.u32 2147483647, %v675
        %v4750 = vand.u32 %v4749, 8388607
        %v4751 = vor.u32 %v4750, 8388608
        %v4752 = vsub.s32 0, %v4751
        %v4753 = vadd.s32 %v4748, 1
        %vm4754 = vcmp.gt.s32.totalorder %v4753, 0
        %v4755 = vsel %vm4754, %v4753, 0
        %v4756 = vshrl.u32 %v4755, 5
        %v4757 = vand.u32 %v4755, 31
        %v4758 = vsub.s32 32, %v4757
        %v4759 = vshrl.u32 683565275, %v4758
        %v4760 = vshll.u32 683565275, %v4757
        %v4761 = vshrl.u32 2475754826, %v4758
        %v4762 = vor.u32 %v4760, %v4761
        %v4763 = vshll.u32 2475754826, %v4757
        %v4764 = vshrl.u32 2131351028, %v4758
        %v4765 = vor.u32 %v4763, %v4764
        %v4766 = vshll.u32 2131351028, %v4757
        %v4767 = vshrl.u32 2102212464, %v4758
        %v4768 = vor.u32 %v4766, %v4767
        %v4769 = vshll.u32 2102212464, %v4757
        %v4770 = vshrl.u32 920167782, %v4758
        %v4771 = vor.u32 %v4769, %v4770
        %v4772 = vshll.u32 920167782, %v4757
        %v4773 = vshrl.u32 1326507024, %v4758
        %v4774 = vor.u32 %v4772, %v4773
        %vm4775 = vcmp.lt.s32.totalorder %v4756, 1
        %vm4776 = vcmp.lt.s32.totalorder %v4756, 2
        %vm4777 = vcmp.lt.s32.totalorder %v4756, 3
        %vm4778 = vcmp.lt.s32.totalorder %v4756, 4
        %v4779 = vsel %vm4775, %v4759, %v4762
        %v4780 = vsel %vm4778, %v4768, 2102212464
        %v4781 = vsel %vm4777, %v4765, %v4780
        %v4782 = vsel %vm4776, %v4779, %v4781
        %v4783 = vsel %vm4775, %v4762, %v4765
        %v4784 = vsel %vm4778, %v4771, 920167782
        %v4785 = vsel %vm4777, %v4768, %v4784
        %v4786 = vsel %vm4776, %v4783, %v4785
        %v4787 = vsel %vm4775, %v4765, %v4768
        %v4788 = vsel %vm4778, %v4774, 1326507024
        %v4789 = vsel %vm4777, %v4771, %v4788
        %v4790 = vsel %vm4776, %v4787, %v4789
        %v4791 = vshll.u32 %v4751, 8
        %v4792 = vand.u32 %v4791, 65535
        %v4793 = vshrl.u32 %v4791, 16
        %v4794 = vand.u32 %v4790, 65535
        %v4795 = vshrl.u32 %v4790, 16
        %v4796 = vmul.u32 %v4792, %v4794
        %v4797 = vmul.u32 %v4792, %v4795
        %v4798 = vmul.u32 %v4793, %v4794
        %v4799 = vmul.u32 %v4793, %v4795
        %v4800 = vshll.u32 %v4797, 16
        %v4801 = vshrl.u32 %v4797, 16
        %v4802 = vshll.u32 %v4798, 16
        %v4803 = vshrl.u32 %v4798, 16
        %vm4804 = vc.u32 %v4796, %v4800
        %v4805 = vsel %vm4804, 1, 0
        %v4806 = vadd.s32 %v4796, %v4800
        %v4807 = vadd.s32 %v4799, %v4805
        %vm4808 = vc.u32 %v4806, %v4802
        %v4809 = vsel %vm4808, 1, 0
        %v4810 = vadd.s32 %v4806, %v4802
        %v4811 = vadd.s32 %v4807, %v4809
        %v4812 = vadd.s32 %v4811, %v4801
        %v4813 = vadd.s32 %v4812, %v4803
        %v4814 = vand.u32 %v4791, 65535
        %v4815 = vshrl.u32 %v4791, 16
        %v4816 = vand.u32 %v4786, 65535
        %v4817 = vshrl.u32 %v4786, 16
        %v4818 = vmul.u32 %v4814, %v4816
        %v4819 = vmul.u32 %v4814, %v4817
        %v4820 = vmul.u32 %v4815, %v4816
        %v4821 = vmul.u32 %v4815, %v4817
        %v4822 = vshll.u32 %v4819, 16
        %v4823 = vshrl.u32 %v4819, 16
        %v4824 = vshll.u32 %v4820, 16
        %v4825 = vshrl.u32 %v4820, 16
        %vm4826 = vc.u32 %v4818, %v4822
        %v4827 = vsel %vm4826, 1, 0
        %v4828 = vadd.s32 %v4818, %v4822
        %v4829 = vadd.s32 %v4821, %v4827
        %vm4830 = vc.u32 %v4828, %v4824
        %v4831 = vsel %vm4830, 1, 0
        %v4832 = vadd.s32 %v4828, %v4824
        %v4833 = vadd.s32 %v4829, %v4831
        %v4834 = vadd.s32 %v4833, %v4823
        %v4835 = vadd.s32 %v4834, %v4825
        %v4836 = vmul.u32 %v4791, %v4782
        %v4837 = vadd.s32 %v4813, %v4832
        %vm4838 = vc.u32 %v4813, %v4832
        %v4839 = vadd.s32 %v4835, 1
        %v4840 = vsel %vm4838, %v4839, %v4835
        %v4841 = vadd.s32 %v4836, %v4840
        %v4842 = vadd.s32 %v4841, 536870912
        %v4843 = vshrl.u32 %v4842, 30
        %v4844 = vshll.u32 %v4843, 30
        %v4845 = vsub.s32 %v4841, %v4844
        %vm4846 = vcmp.lt.s32.totalorder %v4845, 0
        %v4847 = vsub.s32 0, %v4845
        %v4848 = vsel %vm4846, %v4847, %v4845
        %v4849 = vclz %v4848
        %v4850 = vsub.s32 %v4849, 2
        %vm4851 = vcmp.gt.s32.totalorder 0, %v4850
        %v4852 = vsel %vm4851, 0, %v4850
        %v4853 = vsub.s32 32, %v4852
        %v4854 = vshll.u32 %v4845, %v4852
        %v4855 = vshrl.u32 %v4837, %v4853
        %v4856 = vor.u32 %v4854, %v4855
        %v4857 = vsub.s32 4294967266, %v4852
        %v4858 = vadd.s32 %v4857, 127
        %v4859 = vshll.u32 %v4858, 23
        %v4860 = vor.u32 4788187, %v4859
        %v4861 = vand.u32 2147483647, %v4860
        %v4863 = vcvt.s32.f32 %v4856
        %v4864 = vmul.f32 %v4863, %v4861
        %v4865 = vxor.u32 %v4864, 2147483648
        %v4866 = vsel %vm4745, %v4865, %v4864
        %v4867 = vsub.s32 4, %v4843
        %v4868 = vsel %vm4745, %v4867, %v4843
        %v4869 = vsel %vm4744, %v675, %v4866
        %v4870 = vsel %vm4744, 0, %v4868
        %v4871 = vmul.f32 %v4869, %v4869
        %v4872 = vmul.f32 %v4871, -0.001358992
        %v4873 = vadd.f32 %v4872, 0.041655596
        %v4874 = vmul.f32 %v4871, %v4873
        %v4875 = vadd.f32 %v4874, -0.4999988
        %v4876 = vmul.f32 %v4871, %v4875
        %v4877 = vadd.f32 1.0, %v4876
        %v4878 = vmul.f32 %v4869, %v4869
        %v4879 = vmul.f32 %v4878, -0.00019511016
        %v4880 = vadd.f32 %v4879, 0.008332121
        %v4881 = vmul.f32 %v4878, %v4880
        %v4882 = vadd.f32 %v4881, -0.16666654
        %v4883 = vmul.f32 %v4878, %v4882
        %v4884 = vadd.f32 %v4883, 1.0
        %v4885 = vmul.f32 %v4884, %v4869
        %vm4886 = vweird.f32 %v675
        %v4887 = vadd.s32 %v4870, 3
        %v4888 = vand.u32 %v4887, 3
        %vm4889 = vcmp.lt.s32.totalorder %v4888, 2
        %vm4890 = vcmp.eq.s32.totalorder %v4888, 0
        %v4891 = vxor.u32 %v4885, 2147483648
        %v4892 = vsel %vm4890, %v4877, %v4891
        %vm4893 = vcmp.eq.s32.totalorder %v4888, 2
        %v4894 = vxor.u32 %v4877, 2147483648
        %v4895 = vsel %vm4893, %v4894, %v4885
        %v4896 = vsel %vm4889, %v4892, %v4895
        %v4897 = vsel %vm4886, nan, %v4896
        %v4898 = vand.u32 2147483647, %v676
        %vm4899 = vcmp.le.f32.partialorder %v4898, 0.7853982
        %vm4900 = vcmp.lt.s32.totalorder %v676, 0
        %v4901 = vand.u32 %v676, 2139095040
        %v4902 = vshrl.u32 %v4901, 23
        %v4903 = vsub.s32 %v4902, 127
        %v4904 = vand.u32 2147483647, %v676
        %v4905 = vand.u32 %v4904, 8388607
        %v4906 = vor.u32 %v4905, 8388608
        %v4907 = vsub.s32 0, %v4906
        %v4908 = vadd.s32 %v4903, 1
        %vm4909 = vcmp.gt.s32.totalorder %v4908, 0
        %v4910 = vsel %vm4909, %v4908, 0
        %v4911 = vshrl.u32 %v4910, 5
        %v4912 = vand.u32 %v4910, 31
        %v4913 = vsub.s32 32, %v4912
        %v4914 = vshrl.u32 683565275, %v4913
        %v4915 = vshll.u32 683565275, %v4912
        %v4916 = vshrl.u32 2475754826, %v4913
        %v4917 = vor.u32 %v4915, %v4916
        %v4918 = vshll.u32 2475754826, %v4912
        %v4919 = vshrl.u32 2131351028, %v4913
        %v4920 = vor.u32 %v4918, %v4919
        %v4921 = vshll.u32 2131351028, %v4912
        %v4922 = vshrl.u32 2102212464, %v4913
        %v4923 = vor.u32 %v4921, %v4922
        %v4924 = vshll.u32 2102212464, %v4912
        %v4925 = vshrl.u32 920167782, %v4913
        %v4926 = vor.u32 %v4924, %v4925
        %v4927 = vshll.u32 920167782, %v4912
        %v4928 = vshrl.u32 1326507024, %v4913
        %v4929 = vor.u32 %v4927, %v4928
        %vm4930 = vcmp.lt.s32.totalorder %v4911, 1
        %vm4931 = vcmp.lt.s32.totalorder %v4911, 2
        %vm4932 = vcmp.lt.s32.totalorder %v4911, 3
        %vm4933 = vcmp.lt.s32.totalorder %v4911, 4
        %v4934 = vsel %vm4930, %v4914, %v4917
        %v4935 = vsel %vm4933, %v4923, 2102212464
        %v4936 = vsel %vm4932, %v4920, %v4935
        %v4937 = vsel %vm4931, %v4934, %v4936
        %v4938 = vsel %vm4930, %v4917, %v4920
        %v4939 = vsel %vm4933, %v4926, 920167782
        %v4940 = vsel %vm4932, %v4923, %v4939
        %v4941 = vsel %vm4931, %v4938, %v4940
        %v4942 = vsel %vm4930, %v4920, %v4923
        %v4943 = vsel %vm4933, %v4929, 1326507024
        %v4944 = vsel %vm4932, %v4926, %v4943
        %v4945 = vsel %vm4931, %v4942, %v4944
        %v4946 = vshll.u32 %v4906, 8
        %v4947 = vand.u32 %v4946, 65535
        %v4948 = vshrl.u32 %v4946, 16
        %v4949 = vand.u32 %v4945, 65535
        %v4950 = vshrl.u32 %v4945, 16
        %v4951 = vmul.u32 %v4947, %v4949
        %v4952 = vmul.u32 %v4947, %v4950
        %v4953 = vmul.u32 %v4948, %v4949
        %v4954 = vmul.u32 %v4948, %v4950
        %v4955 = vshll.u32 %v4952, 16
        %v4956 = vshrl.u32 %v4952, 16
        %v4957 = vshll.u32 %v4953, 16
        %v4958 = vshrl.u32 %v4953, 16
        %vm4959 = vc.u32 %v4951, %v4955
        %v4960 = vsel %vm4959, 1, 0
        %v4961 = vadd.s32 %v4951, %v4955
        %v4962 = vadd.s32 %v4954, %v4960
        %vm4963 = vc.u32 %v4961, %v4957
        %v4964 = vsel %vm4963, 1, 0
        %v4965 = vadd.s32 %v4961, %v4957
        %v4966 = vadd.s32 %v4962, %v4964
        %v4967 = vadd.s32 %v4966, %v4956
        %v4968 = vadd.s32 %v4967, %v4958
        %v4969 = vand.u32 %v4946, 65535
        %v4970 = vshrl.u32 %v4946, 16
        %v4971 = vand.u32 %v4941, 65535
        %v4972 = vshrl.u32 %v4941, 16
        %v4973 = vmul.u32 %v4969, %v4971
        %v4974 = vmul.u32 %v4969, %v4972
        %v4975 = vmul.u32 %v4970, %v4971
        %v4976 = vmul.u32 %v4970, %v4972
        %v4977 = vshll.u32 %v4974, 16
        %v4978 = vshrl.u32 %v4974, 16
        %v4979 = vshll.u32 %v4975, 16
        %v4980 = vshrl.u32 %v4975, 16
        %vm4981 = vc.u32 %v4973, %v4977
        %v4982 = vsel %vm4981, 1, 0
        %v4983 = vadd.s32 %v4973, %v4977
        %v4984 = vadd.s32 %v4976, %v4982
        %vm4985 = vc.u32 %v4983, %v4979
        %v4986 = vsel %vm4985, 1, 0
        %v4987 = vadd.s32 %v4983, %v4979
        %v4988 = vadd.s32 %v4984, %v4986
        %v4989 = vadd.s32 %v4988, %v4978
        %v4990 = vadd.s32 %v4989, %v4980
        %v4991 = vmul.u32 %v4946, %v4937
        %v4992 = vadd.s32 %v4968, %v4987
        %vm4993 = vc.u32 %v4968, %v4987
        %v4994 = vadd.s32 %v4990, 1
        %v4995 = vsel %vm4993, %v4994, %v4990
        %v4996 = vadd.s32 %v4991, %v4995
        %v4997 = vadd.s32 %v4996, 536870912
        %v4998 = vshrl.u32 %v4997, 30
        %v4999 = vshll.u32 %v4998, 30
        %v5000 = vsub.s32 %v4996, %v4999
        %vm5001 = vcmp.lt.s32.totalorder %v5000, 0
        %v5002 = vsub.s32 0, %v5000
        %v5003 = vsel %vm5001, %v5002, %v5000
        %v5004 = vclz %v5003
        %v5005 = vsub.s32 %v5004, 2
        %vm5006 = vcmp.gt.s32.totalorder 0, %v5005
        %v5007 = vsel %vm5006, 0, %v5005
        %v5008 = vsub.s32 32, %v5007
        %v5009 = vshll.u32 %v5000, %v5007
        %v5010 = vshrl.u32 %v4992, %v5008
        %v5011 = vor.u32 %v5009, %v5010
        %v5012 = vsub.s32 4294967266, %v5007
        %v5013 = vadd.s32 %v5012, 127
        %v5014 = vshll.u32 %v5013, 23
        %v5015 = vor.u32 4788187, %v5014
        %v5016 = vand.u32 2147483647, %v5015
        %v5018 = vcvt.s32.f32 %v5011
        %v5019 = vmul.f32 %v5018, %v5016
        %v5020 = vxor.u32 %v5019, 2147483648
        %v5021 = vsel %vm4900, %v5020, %v5019
        %v5022 = vsub.s32 4, %v4998
        %v5023 = vsel %vm4900, %v5022, %v4998
        %v5024 = vsel %vm4899, %v676, %v5021
        %v5025 = vsel %vm4899, 0, %v5023
        %v5026 = vmul.f32 %v5024, %v5024
        %v5027 = vmul.f32 %v5026, -0.001358992
        %v5028 = vadd.f32 %v5027, 0.041655596
        %v5029 = vmul.f32 %v5026, %v5028
        %v5030 = vadd.f32 %v5029, -0.4999988
        %v5031 = vmul.f32 %v5026, %v5030
        %v5032 = vadd.f32 1.0, %v5031
        %v5033 = vmul.f32 %v5024, %v5024
        %v5034 = vmul.f32 %v5033, -0.00019511016
        %v5035 = vadd.f32 %v5034, 0.008332121
        %v5036 = vmul.f32 %v5033, %v5035
        %v5037 = vadd.f32 %v5036, -0.16666654
        %v5038 = vmul.f32 %v5033, %v5037
        %v5039 = vadd.f32 %v5038, 1.0
        %v5040 = vmul.f32 %v5039, %v5024
        %vm5041 = vweird.f32 %v676
        %v5042 = vadd.s32 %v5025, 3
        %v5043 = vand.u32 %v5042, 3
        %vm5044 = vcmp.lt.s32.totalorder %v5043, 2
        %vm5045 = vcmp.eq.s32.totalorder %v5043, 0
        %v5046 = vxor.u32 %v5040, 2147483648
        %v5047 = vsel %vm5045, %v5032, %v5046
        %vm5048 = vcmp.eq.s32.totalorder %v5043, 2
        %v5049 = vxor.u32 %v5032, 2147483648
        %v5050 = vsel %vm5048, %v5049, %v5040
        %v5051 = vsel %vm5044, %v5047, %v5050
        %v5052 = vsel %vm5041, nan, %v5051
        %v5053 = vand.u32 2147483647, %v677
        %vm5054 = vcmp.le.f32.partialorder %v5053, 0.7853982
        %vm5055 = vcmp.lt.s32.totalorder %v677, 0
        %v5056 = vand.u32 %v677, 2139095040
        %v5057 = vshrl.u32 %v5056, 23
        %v5058 = vsub.s32 %v5057, 127
        %v5059 = vand.u32 2147483647, %v677
        %v5060 = vand.u32 %v5059, 8388607
        %v5061 = vor.u32 %v5060, 8388608
        %v5062 = vsub.s32 0, %v5061
        %v5063 = vadd.s32 %v5058, 1
        %vm5064 = vcmp.gt.s32.totalorder %v5063, 0
        %v5065 = vsel %vm5064, %v5063, 0
        %v5066 = vshrl.u32 %v5065, 5
        %v5067 = vand.u32 %v5065, 31
        %v5068 = vsub.s32 32, %v5067
        %v5069 = vshrl.u32 683565275, %v5068
        %v5070 = vshll.u32 683565275, %v5067
        %v5071 = vshrl.u32 2475754826, %v5068
        %v5072 = vor.u32 %v5070, %v5071
        %v5073 = vshll.u32 2475754826, %v5067
        %v5074 = vshrl.u32 2131351028, %v5068
        %v5075 = vor.u32 %v5073, %v5074
        %v5076 = vshll.u32 2131351028, %v5067
        %v5077 = vshrl.u32 2102212464, %v5068
        %v5078 = vor.u32 %v5076, %v5077
        %v5079 = vshll.u32 2102212464, %v5067
        %v5080 = vshrl.u32 920167782, %v5068
        %v5081 = vor.u32 %v5079, %v5080
        %v5082 = vshll.u32 920167782, %v5067
        %v5083 = vshrl.u32 1326507024, %v5068
        %v5084 = vor.u32 %v5082, %v5083
        %vm5085 = vcmp.lt.s32.totalorder %v5066, 1
        %vm5086 = vcmp.lt.s32.totalorder %v5066, 2
        %vm5087 = vcmp.lt.s32.totalorder %v5066, 3
        %vm5088 = vcmp.lt.s32.totalorder %v5066, 4
        %v5089 = vsel %vm5085, %v5069, %v5072
        %v5090 = vsel %vm5088, %v5078, 2102212464
        %v5091 = vsel %vm5087, %v5075, %v5090
        %v5092 = vsel %vm5086, %v5089, %v5091
        %v5093 = vsel %vm5085, %v5072, %v5075
        %v5094 = vsel %vm5088, %v5081, 920167782
        %v5095 = vsel %vm5087, %v5078, %v5094
        %v5096 = vsel %vm5086, %v5093, %v5095
        %v5097 = vsel %vm5085, %v5075, %v5078
        %v5098 = vsel %vm5088, %v5084, 1326507024
        %v5099 = vsel %vm5087, %v5081, %v5098
        %v5100 = vsel %vm5086, %v5097, %v5099
        %v5101 = vshll.u32 %v5061, 8
        %v5102 = vand.u32 %v5101, 65535
        %v5103 = vshrl.u32 %v5101, 16
        %v5104 = vand.u32 %v5100, 65535
        %v5105 = vshrl.u32 %v5100, 16
        %v5106 = vmul.u32 %v5102, %v5104
        %v5107 = vmul.u32 %v5102, %v5105
        %v5108 = vmul.u32 %v5103, %v5104
        %v5109 = vmul.u32 %v5103, %v5105
        %v5110 = vshll.u32 %v5107, 16
        %v5111 = vshrl.u32 %v5107, 16
        %v5112 = vshll.u32 %v5108, 16
        %v5113 = vshrl.u32 %v5108, 16
        %vm5114 = vc.u32 %v5106, %v5110
        %v5115 = vsel %vm5114, 1, 0
        %v5116 = vadd.s32 %v5106, %v5110
        %v5117 = vadd.s32 %v5109, %v5115
        %vm5118 = vc.u32 %v5116, %v5112
        %v5119 = vsel %vm5118, 1, 0
        %v5120 = vadd.s32 %v5116, %v5112
        %v5121 = vadd.s32 %v5117, %v5119
        %v5122 = vadd.s32 %v5121, %v5111
        %v5123 = vadd.s32 %v5122, %v5113
        %v5124 = vand.u32 %v5101, 65535
        %v5125 = vshrl.u32 %v5101, 16
        %v5126 = vand.u32 %v5096, 65535
        %v5127 = vshrl.u32 %v5096, 16
        %v5128 = vmul.u32 %v5124, %v5126
        %v5129 = vmul.u32 %v5124, %v5127
        %v5130 = vmul.u32 %v5125, %v5126
        %v5131 = vmul.u32 %v5125, %v5127
        %v5132 = vshll.u32 %v5129, 16
        %v5133 = vshrl.u32 %v5129, 16
        %v5134 = vshll.u32 %v5130, 16
        %v5135 = vshrl.u32 %v5130, 16
        %vm5136 = vc.u32 %v5128, %v5132
        %v5137 = vsel %vm5136, 1, 0
        %v5138 = vadd.s32 %v5128, %v5132
        %v5139 = vadd.s32 %v5131, %v5137
        %vm5140 = vc.u32 %v5138, %v5134
        %v5141 = vsel %vm5140, 1, 0
        %v5142 = vadd.s32 %v5138, %v5134
        %v5143 = vadd.s32 %v5139, %v5141
        %v5144 = vadd.s32 %v5143, %v5133
        %v5145 = vadd.s32 %v5144, %v5135
        %v5146 = vmul.u32 %v5101, %v5092
        %v5147 = vadd.s32 %v5123, %v5142
        %vm5148 = vc.u32 %v5123, %v5142
        %v5149 = vadd.s32 %v5145, 1
        %v5150 = vsel %vm5148, %v5149, %v5145
        %v5151 = vadd.s32 %v5146, %v5150
        %v5152 = vadd.s32 %v5151, 536870912
        %v5153 = vshrl.u32 %v5152, 30
        %v5154 = vshll.u32 %v5153, 30
        %v5155 = vsub.s32 %v5151, %v5154
        %vm5156 = vcmp.lt.s32.totalorder %v5155, 0
        %v5157 = vsub.s32 0, %v5155
        %v5158 = vsel %vm5156, %v5157, %v5155
        %v5159 = vclz %v5158
        %v5160 = vsub.s32 %v5159, 2
        %vm5161 = vcmp.gt.s32.totalorder 0, %v5160
        %v5162 = vsel %vm5161, 0, %v5160
        %v5163 = vsub.s32 32, %v5162
        %v5164 = vshll.u32 %v5155, %v5162
        %v5165 = vshrl.u32 %v5147, %v5163
        %v5166 = vor.u32 %v5164, %v5165
        %v5167 = vsub.s32 4294967266, %v5162
        %v5168 = vadd.s32 %v5167, 127
        %v5169 = vshll.u32 %v5168, 23
        %v5170 = vor.u32 4788187, %v5169
        %v5171 = vand.u32 2147483647, %v5170
        %v5173 = vcvt.s32.f32 %v5166
        %v5174 = vmul.f32 %v5173, %v5171
        %v5175 = vxor.u32 %v5174, 2147483648
        %v5176 = vsel %vm5055, %v5175, %v5174
        %v5177 = vsub.s32 4, %v5153
        %v5178 = vsel %vm5055, %v5177, %v5153
        %v5179 = vsel %vm5054, %v677, %v5176
        %v5180 = vsel %vm5054, 0, %v5178
        %v5181 = vmul.f32 %v5179, %v5179
        %v5182 = vmul.f32 %v5181, -0.001358992
        %v5183 = vadd.f32 %v5182, 0.041655596
        %v5184 = vmul.f32 %v5181, %v5183
        %v5185 = vadd.f32 %v5184, -0.4999988
        %v5186 = vmul.f32 %v5181, %v5185
        %v5187 = vadd.f32 1.0, %v5186
        %v5188 = vmul.f32 %v5179, %v5179
        %v5189 = vmul.f32 %v5188, -0.00019511016
        %v5190 = vadd.f32 %v5189, 0.008332121
        %v5191 = vmul.f32 %v5188, %v5190
        %v5192 = vadd.f32 %v5191, -0.16666654
        %v5193 = vmul.f32 %v5188, %v5192
        %v5194 = vadd.f32 %v5193, 1.0
        %v5195 = vmul.f32 %v5194, %v5179
        %vm5196 = vweird.f32 %v677
        %v5197 = vadd.s32 %v5180, 3
        %v5198 = vand.u32 %v5197, 3
        %vm5199 = vcmp.lt.s32.totalorder %v5198, 2
        %vm5200 = vcmp.eq.s32.totalorder %v5198, 0
        %v5201 = vxor.u32 %v5195, 2147483648
        %v5202 = vsel %vm5200, %v5187, %v5201
        %vm5203 = vcmp.eq.s32.totalorder %v5198, 2
        %v5204 = vxor.u32 %v5187, 2147483648
        %v5205 = vsel %vm5203, %v5204, %v5195
        %v5206 = vsel %vm5199, %v5202, %v5205
        %v5207 = vsel %vm5196, nan, %v5206
        %v5208 = vand.u32 2147483647, %v678
        %vm5209 = vcmp.le.f32.partialorder %v5208, 0.7853982
        %vm5210 = vcmp.lt.s32.totalorder %v678, 0
        %v5211 = vand.u32 %v678, 2139095040
        %v5212 = vshrl.u32 %v5211, 23
        %v5213 = vsub.s32 %v5212, 127
        %v5214 = vand.u32 2147483647, %v678
        %v5215 = vand.u32 %v5214, 8388607
        %v5216 = vor.u32 %v5215, 8388608
        %v5217 = vsub.s32 0, %v5216
        %v5218 = vadd.s32 %v5213, 1
        %vm5219 = vcmp.gt.s32.totalorder %v5218, 0
        %v5220 = vsel %vm5219, %v5218, 0
        %v5221 = vshrl.u32 %v5220, 5
        %v5222 = vand.u32 %v5220, 31
        %v5223 = vsub.s32 32, %v5222
        %v5224 = vshrl.u32 683565275, %v5223
        %v5225 = vshll.u32 683565275, %v5222
        %v5226 = vshrl.u32 2475754826, %v5223
        %v5227 = vor.u32 %v5225, %v5226
        %v5228 = vshll.u32 2475754826, %v5222
        %v5229 = vshrl.u32 2131351028, %v5223
        %v5230 = vor.u32 %v5228, %v5229
        %v5231 = vshll.u32 2131351028, %v5222
        %v5232 = vshrl.u32 2102212464, %v5223
        %v5233 = vor.u32 %v5231, %v5232
        %v5234 = vshll.u32 2102212464, %v5222
        %v5235 = vshrl.u32 920167782, %v5223
        %v5236 = vor.u32 %v5234, %v5235
        %v5237 = vshll.u32 920167782, %v5222
        %v5238 = vshrl.u32 1326507024, %v5223
        %v5239 = vor.u32 %v5237, %v5238
        %vm5240 = vcmp.lt.s32.totalorder %v5221, 1
        %vm5241 = vcmp.lt.s32.totalorder %v5221, 2
        %vm5242 = vcmp.lt.s32.totalorder %v5221, 3
        %vm5243 = vcmp.lt.s32.totalorder %v5221, 4
        %v5244 = vsel %vm5240, %v5224, %v5227
        %v5245 = vsel %vm5243, %v5233, 2102212464
        %v5246 = vsel %vm5242, %v5230, %v5245
        %v5247 = vsel %vm5241, %v5244, %v5246
        %v5248 = vsel %vm5240, %v5227, %v5230
        %v5249 = vsel %vm5243, %v5236, 920167782
        %v5250 = vsel %vm5242, %v5233, %v5249
        %v5251 = vsel %vm5241, %v5248, %v5250
        %v5252 = vsel %vm5240, %v5230, %v5233
        %v5253 = vsel %vm5243, %v5239, 1326507024
        %v5254 = vsel %vm5242, %v5236, %v5253
        %v5255 = vsel %vm5241, %v5252, %v5254
        %v5256 = vshll.u32 %v5216, 8
        %v5257 = vand.u32 %v5256, 65535
        %v5258 = vshrl.u32 %v5256, 16
        %v5259 = vand.u32 %v5255, 65535
        %v5260 = vshrl.u32 %v5255, 16
        %v5261 = vmul.u32 %v5257, %v5259
        %v5262 = vmul.u32 %v5257, %v5260
        %v5263 = vmul.u32 %v5258, %v5259
        %v5264 = vmul.u32 %v5258, %v5260
        %v5265 = vshll.u32 %v5262, 16
        %v5266 = vshrl.u32 %v5262, 16
        %v5267 = vshll.u32 %v5263, 16
        %v5268 = vshrl.u32 %v5263, 16
        %vm5269 = vc.u32 %v5261, %v5265
        %v5270 = vsel %vm5269, 1, 0
        %v5271 = vadd.s32 %v5261, %v5265
        %v5272 = vadd.s32 %v5264, %v5270
        %vm5273 = vc.u32 %v5271, %v5267
        %v5274 = vsel %vm5273, 1, 0
        %v5275 = vadd.s32 %v5271, %v5267
        %v5276 = vadd.s32 %v5272, %v5274
        %v5277 = vadd.s32 %v5276, %v5266
        %v5278 = vadd.s32 %v5277, %v5268
        %v5279 = vand.u32 %v5256, 65535
        %v5280 = vshrl.u32 %v5256, 16
        %v5281 = vand.u32 %v5251, 65535
        %v5282 = vshrl.u32 %v5251, 16
        %v5283 = vmul.u32 %v5279, %v5281
        %v5284 = vmul.u32 %v5279, %v5282
        %v5285 = vmul.u32 %v5280, %v5281
        %v5286 = vmul.u32 %v5280, %v5282
        %v5287 = vshll.u32 %v5284, 16
        %v5288 = vshrl.u32 %v5284, 16
        %v5289 = vshll.u32 %v5285, 16
        %v5290 = vshrl.u32 %v5285, 16
        %vm5291 = vc.u32 %v5283, %v5287
        %v5292 = vsel %vm5291, 1, 0
        %v5293 = vadd.s32 %v5283, %v5287
        %v5294 = vadd.s32 %v5286, %v5292
        %vm5295 = vc.u32 %v5293, %v5289
        %v5296 = vsel %vm5295, 1, 0
        %v5297 = vadd.s32 %v5293, %v5289
        %v5298 = vadd.s32 %v5294, %v5296
        %v5299 = vadd.s32 %v5298, %v5288
        %v5300 = vadd.s32 %v5299, %v5290
        %v5301 = vmul.u32 %v5256, %v5247
        %v5302 = vadd.s32 %v5278, %v5297
        %vm5303 = vc.u32 %v5278, %v5297
        %v5304 = vadd.s32 %v5300, 1
        %v5305 = vsel %vm5303, %v5304, %v5300
        %v5306 = vadd.s32 %v5301, %v5305
        %v5307 = vadd.s32 %v5306, 536870912
        %v5308 = vshrl.u32 %v5307, 30
        %v5309 = vshll.u32 %v5308, 30
        %v5310 = vsub.s32 %v5306, %v5309
        %vm5311 = vcmp.lt.s32.totalorder %v5310, 0
        %v5312 = vsub.s32 0, %v5310
        %v5313 = vsel %vm5311, %v5312, %v5310
        %v5314 = vclz %v5313
        %v5315 = vsub.s32 %v5314, 2
        %vm5316 = vcmp.gt.s32.totalorder 0, %v5315
        %v5317 = vsel %vm5316, 0, %v5315
        %v5318 = vsub.s32 32, %v5317
        %v5319 = vshll.u32 %v5310, %v5317
        %v5320 = vshrl.u32 %v5302, %v5318
        %v5321 = vor.u32 %v5319, %v5320
        %v5322 = vsub.s32 4294967266, %v5317
        %v5323 = vadd.s32 %v5322, 127
        %v5324 = vshll.u32 %v5323, 23
        %v5325 = vor.u32 4788187, %v5324
        %v5326 = vand.u32 2147483647, %v5325
        %v5328 = vcvt.s32.f32 %v5321
        %v5329 = vmul.f32 %v5328, %v5326
        %v5330 = vxor.u32 %v5329, 2147483648
        %v5331 = vsel %vm5210, %v5330, %v5329
        %v5332 = vsub.s32 4, %v5308
        %v5333 = vsel %vm5210, %v5332, %v5308
        %v5334 = vsel %vm5209, %v678, %v5331
        %v5335 = vsel %vm5209, 0, %v5333
        %v5336 = vmul.f32 %v5334, %v5334
        %v5337 = vmul.f32 %v5336, -0.001358992
        %v5338 = vadd.f32 %v5337, 0.041655596
        %v5339 = vmul.f32 %v5336, %v5338
        %v5340 = vadd.f32 %v5339, -0.4999988
        %v5341 = vmul.f32 %v5336, %v5340
        %v5342 = vadd.f32 1.0, %v5341
        %v5343 = vmul.f32 %v5334, %v5334
        %v5344 = vmul.f32 %v5343, -0.00019511016
        %v5345 = vadd.f32 %v5344, 0.008332121
        %v5346 = vmul.f32 %v5343, %v5345
        %v5347 = vadd.f32 %v5346, -0.16666654
        %v5348 = vmul.f32 %v5343, %v5347
        %v5349 = vadd.f32 %v5348, 1.0
        %v5350 = vmul.f32 %v5349, %v5334
        %vm5351 = vweird.f32 %v678
        %v5352 = vadd.s32 %v5335, 3
        %v5353 = vand.u32 %v5352, 3
        %vm5354 = vcmp.lt.s32.totalorder %v5353, 2
        %vm5355 = vcmp.eq.s32.totalorder %v5353, 0
        %v5356 = vxor.u32 %v5350, 2147483648
        %v5357 = vsel %vm5355, %v5342, %v5356
        %vm5358 = vcmp.eq.s32.totalorder %v5353, 2
        %v5359 = vxor.u32 %v5342, 2147483648
        %v5360 = vsel %vm5358, %v5359, %v5350
        %v5361 = vsel %vm5354, %v5357, %v5360
        %v5362 = vsel %vm5351, nan, %v5361
        %v5363 = vand.u32 2147483647, %v679
        %vm5364 = vcmp.le.f32.partialorder %v5363, 0.7853982
        %vm5365 = vcmp.lt.s32.totalorder %v679, 0
        %v5366 = vand.u32 %v679, 2139095040
        %v5367 = vshrl.u32 %v5366, 23
        %v5368 = vsub.s32 %v5367, 127
        %v5369 = vand.u32 2147483647, %v679
        %v5370 = vand.u32 %v5369, 8388607
        %v5371 = vor.u32 %v5370, 8388608
        %v5372 = vsub.s32 0, %v5371
        %v5373 = vadd.s32 %v5368, 1
        %vm5374 = vcmp.gt.s32.totalorder %v5373, 0
        %v5375 = vsel %vm5374, %v5373, 0
        %v5376 = vshrl.u32 %v5375, 5
        %v5377 = vand.u32 %v5375, 31
        %v5378 = vsub.s32 32, %v5377
        %v5379 = vshrl.u32 683565275, %v5378
        %v5380 = vshll.u32 683565275, %v5377
        %v5381 = vshrl.u32 2475754826, %v5378
        %v5382 = vor.u32 %v5380, %v5381
        %v5383 = vshll.u32 2475754826, %v5377
        %v5384 = vshrl.u32 2131351028, %v5378
        %v5385 = vor.u32 %v5383, %v5384
        %v5386 = vshll.u32 2131351028, %v5377
        %v5387 = vshrl.u32 2102212464, %v5378
        %v5388 = vor.u32 %v5386, %v5387
        %v5389 = vshll.u32 2102212464, %v5377
        %v5390 = vshrl.u32 920167782, %v5378
        %v5391 = vor.u32 %v5389, %v5390
        %v5392 = vshll.u32 920167782, %v5377
        %v5393 = vshrl.u32 1326507024, %v5378
        %v5394 = vor.u32 %v5392, %v5393
        %vm5395 = vcmp.lt.s32.totalorder %v5376, 1
        %vm5396 = vcmp.lt.s32.totalorder %v5376, 2
        %vm5397 = vcmp.lt.s32.totalorder %v5376, 3
        %vm5398 = vcmp.lt.s32.totalorder %v5376, 4
        %v5399 = vsel %vm5395, %v5379, %v5382
        %v5400 = vsel %vm5398, %v5388, 2102212464
        %v5401 = vsel %vm5397, %v5385, %v5400
        %v5402 = vsel %vm5396, %v5399, %v5401
        %v5403 = vsel %vm5395, %v5382, %v5385
        %v5404 = vsel %vm5398, %v5391, 920167782
        %v5405 = vsel %vm5397, %v5388, %v5404
        %v5406 = vsel %vm5396, %v5403, %v5405
        %v5407 = vsel %vm5395, %v5385, %v5388
        %v5408 = vsel %vm5398, %v5394, 1326507024
        %v5409 = vsel %vm5397, %v5391, %v5408
        %v5410 = vsel %vm5396, %v5407, %v5409
        %v5411 = vshll.u32 %v5371, 8
        %v5412 = vand.u32 %v5411, 65535
        %v5413 = vshrl.u32 %v5411, 16
        %v5414 = vand.u32 %v5410, 65535
        %v5415 = vshrl.u32 %v5410, 16
        %v5416 = vmul.u32 %v5412, %v5414
        %v5417 = vmul.u32 %v5412, %v5415
        %v5418 = vmul.u32 %v5413, %v5414
        %v5419 = vmul.u32 %v5413, %v5415
        %v5420 = vshll.u32 %v5417, 16
        %v5421 = vshrl.u32 %v5417, 16
        %v5422 = vshll.u32 %v5418, 16
        %v5423 = vshrl.u32 %v5418, 16
        %vm5424 = vc.u32 %v5416, %v5420
        %v5425 = vsel %vm5424, 1, 0
        %v5426 = vadd.s32 %v5416, %v5420
        %v5427 = vadd.s32 %v5419, %v5425
        %vm5428 = vc.u32 %v5426, %v5422
        %v5429 = vsel %vm5428, 1, 0
        %v5430 = vadd.s32 %v5426, %v5422
        %v5431 = vadd.s32 %v5427, %v5429
        %v5432 = vadd.s32 %v5431, %v5421
        %v5433 = vadd.s32 %v5432, %v5423
        %v5434 = vand.u32 %v5411, 65535
        %v5435 = vshrl.u32 %v5411, 16
        %v5436 = vand.u32 %v5406, 65535
        %v5437 = vshrl.u32 %v5406, 16
        %v5438 = vmul.u32 %v5434, %v5436
        %v5439 = vmul.u32 %v5434, %v5437
        %v5440 = vmul.u32 %v5435, %v5436
        %v5441 = vmul.u32 %v5435, %v5437
        %v5442 = vshll.u32 %v5439, 16
        %v5443 = vshrl.u32 %v5439, 16
        %v5444 = vshll.u32 %v5440, 16
        %v5445 = vshrl.u32 %v5440, 16
        %vm5446 = vc.u32 %v5438, %v5442
        %v5447 = vsel %vm5446, 1, 0
        %v5448 = vadd.s32 %v5438, %v5442
        %v5449 = vadd.s32 %v5441, %v5447
        %vm5450 = vc.u32 %v5448, %v5444
        %v5451 = vsel %vm5450, 1, 0
        %v5452 = vadd.s32 %v5448, %v5444
        %v5453 = vadd.s32 %v5449, %v5451
        %v5454 = vadd.s32 %v5453, %v5443
        %v5455 = vadd.s32 %v5454, %v5445
        %v5456 = vmul.u32 %v5411, %v5402
        %v5457 = vadd.s32 %v5433, %v5452
        %vm5458 = vc.u32 %v5433, %v5452
        %v5459 = vadd.s32 %v5455, 1
        %v5460 = vsel %vm5458, %v5459, %v5455
        %v5461 = vadd.s32 %v5456, %v5460
        %v5462 = vadd.s32 %v5461, 536870912
        %v5463 = vshrl.u32 %v5462, 30
        %v5464 = vshll.u32 %v5463, 30
        %v5465 = vsub.s32 %v5461, %v5464
        %vm5466 = vcmp.lt.s32.totalorder %v5465, 0
        %v5467 = vsub.s32 0, %v5465
        %v5468 = vsel %vm5466, %v5467, %v5465
        %v5469 = vclz %v5468
        %v5470 = vsub.s32 %v5469, 2
        %vm5471 = vcmp.gt.s32.totalorder 0, %v5470
        %v5472 = vsel %vm5471, 0, %v5470
        %v5473 = vsub.s32 32, %v5472
        %v5474 = vshll.u32 %v5465, %v5472
        %v5475 = vshrl.u32 %v5457, %v5473
        %v5476 = vor.u32 %v5474, %v5475
        %v5477 = vsub.s32 4294967266, %v5472
        %v5478 = vadd.s32 %v5477, 127
        %v5479 = vshll.u32 %v5478, 23
        %v5480 = vor.u32 4788187, %v5479
        %v5481 = vand.u32 2147483647, %v5480
        %v5483 = vcvt.s32.f32 %v5476
        %v5484 = vmul.f32 %v5483, %v5481
        %v5485 = vxor.u32 %v5484, 2147483648
        %v5486 = vsel %vm5365, %v5485, %v5484
        %v5487 = vsub.s32 4, %v5463
        %v5488 = vsel %vm5365, %v5487, %v5463
        %v5489 = vsel %vm5364, %v679, %v5486
        %v5490 = vsel %vm5364, 0, %v5488
        %v5491 = vmul.f32 %v5489, %v5489
        %v5492 = vmul.f32 %v5491, -0.001358992
        %v5493 = vadd.f32 %v5492, 0.041655596
        %v5494 = vmul.f32 %v5491, %v5493
        %v5495 = vadd.f32 %v5494, -0.4999988
        %v5496 = vmul.f32 %v5491, %v5495
        %v5497 = vadd.f32 1.0, %v5496
        %v5498 = vmul.f32 %v5489, %v5489
        %v5499 = vmul.f32 %v5498, -0.00019511016
        %v5500 = vadd.f32 %v5499, 0.008332121
        %v5501 = vmul.f32 %v5498, %v5500
        %v5502 = vadd.f32 %v5501, -0.16666654
        %v5503 = vmul.f32 %v5498, %v5502
        %v5504 = vadd.f32 %v5503, 1.0
        %v5505 = vmul.f32 %v5504, %v5489
        %vm5506 = vweird.f32 %v679
        %v5507 = vadd.s32 %v5490, 3
        %v5508 = vand.u32 %v5507, 3
        %vm5509 = vcmp.lt.s32.totalorder %v5508, 2
        %vm5510 = vcmp.eq.s32.totalorder %v5508, 0
        %v5511 = vxor.u32 %v5505, 2147483648
        %v5512 = vsel %vm5510, %v5497, %v5511
        %vm5513 = vcmp.eq.s32.totalorder %v5508, 2
        %v5514 = vxor.u32 %v5497, 2147483648
        %v5515 = vsel %vm5513, %v5514, %v5505
        %v5516 = vsel %vm5509, %v5512, %v5515
        %v5517 = vsel %vm5506, nan, %v5516
        %v5518 = vand.u32 2147483647, %v680
        %vm5519 = vcmp.le.f32.partialorder %v5518, 0.7853982
        %vm5520 = vcmp.lt.s32.totalorder %v680, 0
        %v5521 = vand.u32 %v680, 2139095040
        %v5522 = vshrl.u32 %v5521, 23
        %v5523 = vsub.s32 %v5522, 127
        %v5524 = vand.u32 2147483647, %v680
        %v5525 = vand.u32 %v5524, 8388607
        %v5526 = vor.u32 %v5525, 8388608
        %v5527 = vsub.s32 0, %v5526
        %v5528 = vadd.s32 %v5523, 1
        %vm5529 = vcmp.gt.s32.totalorder %v5528, 0
        %v5530 = vsel %vm5529, %v5528, 0
        %v5531 = vshrl.u32 %v5530, 5
        %v5532 = vand.u32 %v5530, 31
        %v5533 = vsub.s32 32, %v5532
        %v5534 = vshrl.u32 683565275, %v5533
        %v5535 = vshll.u32 683565275, %v5532
        %v5536 = vshrl.u32 2475754826, %v5533
        %v5537 = vor.u32 %v5535, %v5536
        %v5538 = vshll.u32 2475754826, %v5532
        %v5539 = vshrl.u32 2131351028, %v5533
        %v5540 = vor.u32 %v5538, %v5539
        %v5541 = vshll.u32 2131351028, %v5532
        %v5542 = vshrl.u32 2102212464, %v5533
        %v5543 = vor.u32 %v5541, %v5542
        %v5544 = vshll.u32 2102212464, %v5532
        %v5545 = vshrl.u32 920167782, %v5533
        %v5546 = vor.u32 %v5544, %v5545
        %v5547 = vshll.u32 920167782, %v5532
        %v5548 = vshrl.u32 1326507024, %v5533
        %v5549 = vor.u32 %v5547, %v5548
        %vm5550 = vcmp.lt.s32.totalorder %v5531, 1
        %vm5551 = vcmp.lt.s32.totalorder %v5531, 2
        %vm5552 = vcmp.lt.s32.totalorder %v5531, 3
        %vm5553 = vcmp.lt.s32.totalorder %v5531, 4
        %v5554 = vsel %vm5550, %v5534, %v5537
        %v5555 = vsel %vm5553, %v5543, 2102212464
        %v5556 = vsel %vm5552, %v5540, %v5555
        %v5557 = vsel %vm5551, %v5554, %v5556
        %v5558 = vsel %vm5550, %v5537, %v5540
        %v5559 = vsel %vm5553, %v5546, 920167782
        %v5560 = vsel %vm5552, %v5543, %v5559
        %v5561 = vsel %vm5551, %v5558, %v5560
        %v5562 = vsel %vm5550, %v5540, %v5543
        %v5563 = vsel %vm5553, %v5549, 1326507024
        %v5564 = vsel %vm5552, %v5546, %v5563
        %v5565 = vsel %vm5551, %v5562, %v5564
        %v5566 = vshll.u32 %v5526, 8
        %v5567 = vand.u32 %v5566, 65535
        %v5568 = vshrl.u32 %v5566, 16
        %v5569 = vand.u32 %v5565, 65535
        %v5570 = vshrl.u32 %v5565, 16
        %v5571 = vmul.u32 %v5567, %v5569
        %v5572 = vmul.u32 %v5567, %v5570
        %v5573 = vmul.u32 %v5568, %v5569
        %v5574 = vmul.u32 %v5568, %v5570
        %v5575 = vshll.u32 %v5572, 16
        %v5576 = vshrl.u32 %v5572, 16
        %v5577 = vshll.u32 %v5573, 16
        %v5578 = vshrl.u32 %v5573, 16
        %vm5579 = vc.u32 %v5571, %v5575
        %v5580 = vsel %vm5579, 1, 0
        %v5581 = vadd.s32 %v5571, %v5575
        %v5582 = vadd.s32 %v5574, %v5580
        %vm5583 = vc.u32 %v5581, %v5577
        %v5584 = vsel %vm5583, 1, 0
        %v5585 = vadd.s32 %v5581, %v5577
        %v5586 = vadd.s32 %v5582, %v5584
        %v5587 = vadd.s32 %v5586, %v5576
        %v5588 = vadd.s32 %v5587, %v5578
        %v5589 = vand.u32 %v5566, 65535
        %v5590 = vshrl.u32 %v5566, 16
        %v5591 = vand.u32 %v5561, 65535
        %v5592 = vshrl.u32 %v5561, 16
        %v5593 = vmul.u32 %v5589, %v5591
        %v5594 = vmul.u32 %v5589, %v5592
        %v5595 = vmul.u32 %v5590, %v5591
        %v5596 = vmul.u32 %v5590, %v5592
        %v5597 = vshll.u32 %v5594, 16
        %v5598 = vshrl.u32 %v5594, 16
        %v5599 = vshll.u32 %v5595, 16
        %v5600 = vshrl.u32 %v5595, 16
        %vm5601 = vc.u32 %v5593, %v5597
        %v5602 = vsel %vm5601, 1, 0
        %v5603 = vadd.s32 %v5593, %v5597
        %v5604 = vadd.s32 %v5596, %v5602
        %vm5605 = vc.u32 %v5603, %v5599
        %v5606 = vsel %vm5605, 1, 0
        %v5607 = vadd.s32 %v5603, %v5599
        %v5608 = vadd.s32 %v5604, %v5606
        %v5609 = vadd.s32 %v5608, %v5598
        %v5610 = vadd.s32 %v5609, %v5600
        %v5611 = vmul.u32 %v5566, %v5557
        %v5612 = vadd.s32 %v5588, %v5607
        %vm5613 = vc.u32 %v5588, %v5607
        %v5614 = vadd.s32 %v5610, 1
        %v5615 = vsel %vm5613, %v5614, %v5610
        %v5616 = vadd.s32 %v5611, %v5615
        %v5617 = vadd.s32 %v5616, 536870912
        %v5618 = vshrl.u32 %v5617, 30
        %v5619 = vshll.u32 %v5618, 30
        %v5620 = vsub.s32 %v5616, %v5619
        %vm5621 = vcmp.lt.s32.totalorder %v5620, 0
        %v5622 = vsub.s32 0, %v5620
        %v5623 = vsel %vm5621, %v5622, %v5620
        %v5624 = vclz %v5623
        %v5625 = vsub.s32 %v5624, 2
        %vm5626 = vcmp.gt.s32.totalorder 0, %v5625
        %v5627 = vsel %vm5626, 0, %v5625
        %v5628 = vsub.s32 32, %v5627
        %v5629 = vshll.u32 %v5620, %v5627
        %v5630 = vshrl.u32 %v5612, %v5628
        %v5631 = vor.u32 %v5629, %v5630
        %v5632 = vsub.s32 4294967266, %v5627
        %v5633 = vadd.s32 %v5632, 127
        %v5634 = vshll.u32 %v5633, 23
        %v5635 = vor.u32 4788187, %v5634
        %v5636 = vand.u32 2147483647, %v5635
        %v5638 = vcvt.s32.f32 %v5631
        %v5639 = vmul.f32 %v5638, %v5636
        %v5640 = vxor.u32 %v5639, 2147483648
        %v5641 = vsel %vm5520, %v5640, %v5639
        %v5642 = vsub.s32 4, %v5618
        %v5643 = vsel %vm5520, %v5642, %v5618
        %v5644 = vsel %vm5519, %v680, %v5641
        %v5645 = vsel %vm5519, 0, %v5643
        %v5646 = vmul.f32 %v5644, %v5644
        %v5647 = vmul.f32 %v5646, -0.001358992
        %v5648 = vadd.f32 %v5647, 0.041655596
        %v5649 = vmul.f32 %v5646, %v5648
        %v5650 = vadd.f32 %v5649, -0.4999988
        %v5651 = vmul.f32 %v5646, %v5650
        %v5652 = vadd.f32 1.0, %v5651
        %v5653 = vmul.f32 %v5644, %v5644
        %v5654 = vmul.f32 %v5653, -0.00019511016
        %v5655 = vadd.f32 %v5654, 0.008332121
        %v5656 = vmul.f32 %v5653, %v5655
        %v5657 = vadd.f32 %v5656, -0.16666654
        %v5658 = vmul.f32 %v5653, %v5657
        %v5659 = vadd.f32 %v5658, 1.0
        %v5660 = vmul.f32 %v5659, %v5644
        %vm5661 = vweird.f32 %v680
        %v5662 = vadd.s32 %v5645, 3
        %v5663 = vand.u32 %v5662, 3
        %vm5664 = vcmp.lt.s32.totalorder %v5663, 2
        %vm5665 = vcmp.eq.s32.totalorder %v5663, 0
        %v5666 = vxor.u32 %v5660, 2147483648
        %v5667 = vsel %vm5665, %v5652, %v5666
        %vm5668 = vcmp.eq.s32.totalorder %v5663, 2
        %v5669 = vxor.u32 %v5652, 2147483648
        %v5670 = vsel %vm5668, %v5669, %v5660
        %v5671 = vsel %vm5664, %v5667, %v5670
        %v5672 = vsel %vm5661, nan, %v5671
        %v5673 = vand.u32 2147483647, %v681
        %vm5674 = vcmp.le.f32.partialorder %v5673, 0.7853982
        %vm5675 = vcmp.lt.s32.totalorder %v681, 0
        %v5676 = vand.u32 %v681, 2139095040
        %v5677 = vshrl.u32 %v5676, 23
        %v5678 = vsub.s32 %v5677, 127
        %v5679 = vand.u32 2147483647, %v681
        %v5680 = vand.u32 %v5679, 8388607
        %v5681 = vor.u32 %v5680, 8388608
        %v5682 = vsub.s32 0, %v5681
        %v5683 = vadd.s32 %v5678, 1
        %vm5684 = vcmp.gt.s32.totalorder %v5683, 0
        %v5685 = vsel %vm5684, %v5683, 0
        %v5686 = vshrl.u32 %v5685, 5
        %v5687 = vand.u32 %v5685, 31
        %v5688 = vsub.s32 32, %v5687
        %v5689 = vshrl.u32 683565275, %v5688
        %v5690 = vshll.u32 683565275, %v5687
        %v5691 = vshrl.u32 2475754826, %v5688
        %v5692 = vor.u32 %v5690, %v5691
        %v5693 = vshll.u32 2475754826, %v5687
        %v5694 = vshrl.u32 2131351028, %v5688
        %v5695 = vor.u32 %v5693, %v5694
        %v5696 = vshll.u32 2131351028, %v5687
        %v5697 = vshrl.u32 2102212464, %v5688
        %v5698 = vor.u32 %v5696, %v5697
        %v5699 = vshll.u32 2102212464, %v5687
        %v5700 = vshrl.u32 920167782, %v5688
        %v5701 = vor.u32 %v5699, %v5700
        %v5702 = vshll.u32 920167782, %v5687
        %v5703 = vshrl.u32 1326507024, %v5688
        %v5704 = vor.u32 %v5702, %v5703
        %vm5705 = vcmp.lt.s32.totalorder %v5686, 1
        %vm5706 = vcmp.lt.s32.totalorder %v5686, 2
        %vm5707 = vcmp.lt.s32.totalorder %v5686, 3
        %vm5708 = vcmp.lt.s32.totalorder %v5686, 4
        %v5709 = vsel %vm5705, %v5689, %v5692
        %v5710 = vsel %vm5708, %v5698, 2102212464
        %v5711 = vsel %vm5707, %v5695, %v5710
        %v5712 = vsel %vm5706, %v5709, %v5711
        %v5713 = vsel %vm5705, %v5692, %v5695
        %v5714 = vsel %vm5708, %v5701, 920167782
        %v5715 = vsel %vm5707, %v5698, %v5714
        %v5716 = vsel %vm5706, %v5713, %v5715
        %v5717 = vsel %vm5705, %v5695, %v5698
        %v5718 = vsel %vm5708, %v5704, 1326507024
        %v5719 = vsel %vm5707, %v5701, %v5718
        %v5720 = vsel %vm5706, %v5717, %v5719
        %v5721 = vshll.u32 %v5681, 8
        %v5722 = vand.u32 %v5721, 65535
        %v5723 = vshrl.u32 %v5721, 16
        %v5724 = vand.u32 %v5720, 65535
        %v5725 = vshrl.u32 %v5720, 16
        %v5726 = vmul.u32 %v5722, %v5724
        %v5727 = vmul.u32 %v5722, %v5725
        %v5728 = vmul.u32 %v5723, %v5724
        %v5729 = vmul.u32 %v5723, %v5725
        %v5730 = vshll.u32 %v5727, 16
        %v5731 = vshrl.u32 %v5727, 16
        %v5732 = vshll.u32 %v5728, 16
        %v5733 = vshrl.u32 %v5728, 16
        %vm5734 = vc.u32 %v5726, %v5730
        %v5735 = vsel %vm5734, 1, 0
        %v5736 = vadd.s32 %v5726, %v5730
        %v5737 = vadd.s32 %v5729, %v5735
        %vm5738 = vc.u32 %v5736, %v5732
        %v5739 = vsel %vm5738, 1, 0
        %v5740 = vadd.s32 %v5736, %v5732
        %v5741 = vadd.s32 %v5737, %v5739
        %v5742 = vadd.s32 %v5741, %v5731
        %v5743 = vadd.s32 %v5742, %v5733
        %v5744 = vand.u32 %v5721, 65535
        %v5745 = vshrl.u32 %v5721, 16
        %v5746 = vand.u32 %v5716, 65535
        %v5747 = vshrl.u32 %v5716, 16
        %v5748 = vmul.u32 %v5744, %v5746
        %v5749 = vmul.u32 %v5744, %v5747
        %v5750 = vmul.u32 %v5745, %v5746
        %v5751 = vmul.u32 %v5745, %v5747
        %v5752 = vshll.u32 %v5749, 16
        %v5753 = vshrl.u32 %v5749, 16
        %v5754 = vshll.u32 %v5750, 16
        %v5755 = vshrl.u32 %v5750, 16
        %vm5756 = vc.u32 %v5748, %v5752
        %v5757 = vsel %vm5756, 1, 0
        %v5758 = vadd.s32 %v5748, %v5752
        %v5759 = vadd.s32 %v5751, %v5757
        %vm5760 = vc.u32 %v5758, %v5754
        %v5761 = vsel %vm5760, 1, 0
        %v5762 = vadd.s32 %v5758, %v5754
        %v5763 = vadd.s32 %v5759, %v5761
        %v5764 = vadd.s32 %v5763, %v5753
        %v5765 = vadd.s32 %v5764, %v5755
        %v5766 = vmul.u32 %v5721, %v5712
        %v5767 = vadd.s32 %v5743, %v5762
        %vm5768 = vc.u32 %v5743, %v5762
        %v5769 = vadd.s32 %v5765, 1
        %v5770 = vsel %vm5768, %v5769, %v5765
        %v5771 = vadd.s32 %v5766, %v5770
        %v5772 = vadd.s32 %v5771, 536870912
        %v5773 = vshrl.u32 %v5772, 30
        %v5774 = vshll.u32 %v5773, 30
        %v5775 = vsub.s32 %v5771, %v5774
        %vm5776 = vcmp.lt.s32.totalorder %v5775, 0
        %v5777 = vsub.s32 0, %v5775
        %v5778 = vsel %vm5776, %v5777, %v5775
        %v5779 = vclz %v5778
        %v5780 = vsub.s32 %v5779, 2
        %vm5781 = vcmp.gt.s32.totalorder 0, %v5780
        %v5782 = vsel %vm5781, 0, %v5780
        %v5783 = vsub.s32 32, %v5782
        %v5784 = vshll.u32 %v5775, %v5782
        %v5785 = vshrl.u32 %v5767, %v5783
        %v5786 = vor.u32 %v5784, %v5785
        %v5787 = vsub.s32 4294967266, %v5782
        %v5788 = vadd.s32 %v5787, 127
        %v5789 = vshll.u32 %v5788, 23
        %v5790 = vor.u32 4788187, %v5789
        %v5791 = vand.u32 2147483647, %v5790
        %v5793 = vcvt.s32.f32 %v5786
        %v5794 = vmul.f32 %v5793, %v5791
        %v5795 = vxor.u32 %v5794, 2147483648
        %v5796 = vsel %vm5675, %v5795, %v5794
        %v5797 = vsub.s32 4, %v5773
        %v5798 = vsel %vm5675, %v5797, %v5773
        %v5799 = vsel %vm5674, %v681, %v5796
        %v5800 = vsel %vm5674, 0, %v5798
        %v5801 = vmul.f32 %v5799, %v5799
        %v5802 = vmul.f32 %v5801, -0.001358992
        %v5803 = vadd.f32 %v5802, 0.041655596
        %v5804 = vmul.f32 %v5801, %v5803
        %v5805 = vadd.f32 %v5804, -0.4999988
        %v5806 = vmul.f32 %v5801, %v5805
        %v5807 = vadd.f32 1.0, %v5806
        %v5808 = vmul.f32 %v5799, %v5799
        %v5809 = vmul.f32 %v5808, -0.00019511016
        %v5810 = vadd.f32 %v5809, 0.008332121
        %v5811 = vmul.f32 %v5808, %v5810
        %v5812 = vadd.f32 %v5811, -0.16666654
        %v5813 = vmul.f32 %v5808, %v5812
        %v5814 = vadd.f32 %v5813, 1.0
        %v5815 = vmul.f32 %v5814, %v5799
        %vm5816 = vweird.f32 %v681
        %v5817 = vadd.s32 %v5800, 3
        %v5818 = vand.u32 %v5817, 3
        %vm5819 = vcmp.lt.s32.totalorder %v5818, 2
        %vm5820 = vcmp.eq.s32.totalorder %v5818, 0
        %v5821 = vxor.u32 %v5815, 2147483648
        %v5822 = vsel %vm5820, %v5807, %v5821
        %vm5823 = vcmp.eq.s32.totalorder %v5818, 2
        %v5824 = vxor.u32 %v5807, 2147483648
        %v5825 = vsel %vm5823, %v5824, %v5815
        %v5826 = vsel %vm5819, %v5822, %v5825
        %v5827 = vsel %vm5816, nan, %v5826
        %v5828 = vand.u32 2147483647, %v682
        %vm5829 = vcmp.le.f32.partialorder %v5828, 0.7853982
        %vm5830 = vcmp.lt.s32.totalorder %v682, 0
        %v5831 = vand.u32 %v682, 2139095040
        %v5832 = vshrl.u32 %v5831, 23
        %v5833 = vsub.s32 %v5832, 127
        %v5834 = vand.u32 2147483647, %v682
        %v5835 = vand.u32 %v5834, 8388607
        %v5836 = vor.u32 %v5835, 8388608
        %v5837 = vsub.s32 0, %v5836
        %v5838 = vadd.s32 %v5833, 1
        %vm5839 = vcmp.gt.s32.totalorder %v5838, 0
        %v5840 = vsel %vm5839, %v5838, 0
        %v5841 = vshrl.u32 %v5840, 5
        %v5842 = vand.u32 %v5840, 31
        %v5843 = vsub.s32 32, %v5842
        %v5844 = vshrl.u32 683565275, %v5843
        %v5845 = vshll.u32 683565275, %v5842
        %v5846 = vshrl.u32 2475754826, %v5843
        %v5847 = vor.u32 %v5845, %v5846
        %v5848 = vshll.u32 2475754826, %v5842
        %v5849 = vshrl.u32 2131351028, %v5843
        %v5850 = vor.u32 %v5848, %v5849
        %v5851 = vshll.u32 2131351028, %v5842
        %v5852 = vshrl.u32 2102212464, %v5843
        %v5853 = vor.u32 %v5851, %v5852
        %v5854 = vshll.u32 2102212464, %v5842
        %v5855 = vshrl.u32 920167782, %v5843
        %v5856 = vor.u32 %v5854, %v5855
        %v5857 = vshll.u32 920167782, %v5842
        %v5858 = vshrl.u32 1326507024, %v5843
        %v5859 = vor.u32 %v5857, %v5858
        %vm5860 = vcmp.lt.s32.totalorder %v5841, 1
        %vm5861 = vcmp.lt.s32.totalorder %v5841, 2
        %vm5862 = vcmp.lt.s32.totalorder %v5841, 3
        %vm5863 = vcmp.lt.s32.totalorder %v5841, 4
        %v5864 = vsel %vm5860, %v5844, %v5847
        %v5865 = vsel %vm5863, %v5853, 2102212464
        %v5866 = vsel %vm5862, %v5850, %v5865
        %v5867 = vsel %vm5861, %v5864, %v5866
        %v5868 = vsel %vm5860, %v5847, %v5850
        %v5869 = vsel %vm5863, %v5856, 920167782
        %v5870 = vsel %vm5862, %v5853, %v5869
        %v5871 = vsel %vm5861, %v5868, %v5870
        %v5872 = vsel %vm5860, %v5850, %v5853
        %v5873 = vsel %vm5863, %v5859, 1326507024
        %v5874 = vsel %vm5862, %v5856, %v5873
        %v5875 = vsel %vm5861, %v5872, %v5874
        %v5876 = vshll.u32 %v5836, 8
        %v5877 = vand.u32 %v5876, 65535
        %v5878 = vshrl.u32 %v5876, 16
        %v5879 = vand.u32 %v5875, 65535
        %v5880 = vshrl.u32 %v5875, 16
        %v5881 = vmul.u32 %v5877, %v5879
        %v5882 = vmul.u32 %v5877, %v5880
        %v5883 = vmul.u32 %v5878, %v5879
        %v5884 = vmul.u32 %v5878, %v5880
        %v5885 = vshll.u32 %v5882, 16
        %v5886 = vshrl.u32 %v5882, 16
        %v5887 = vshll.u32 %v5883, 16
        %v5888 = vshrl.u32 %v5883, 16
        %vm5889 = vc.u32 %v5881, %v5885
        %v5890 = vsel %vm5889, 1, 0
        %v5891 = vadd.s32 %v5881, %v5885
        %v5892 = vadd.s32 %v5884, %v5890
        %vm5893 = vc.u32 %v5891, %v5887
        %v5894 = vsel %vm5893, 1, 0
        %v5895 = vadd.s32 %v5891, %v5887
        %v5896 = vadd.s32 %v5892, %v5894
        %v5897 = vadd.s32 %v5896, %v5886
        %v5898 = vadd.s32 %v5897, %v5888
        %v5899 = vand.u32 %v5876, 65535
        %v5900 = vshrl.u32 %v5876, 16
        %v5901 = vand.u32 %v5871, 65535
        %v5902 = vshrl.u32 %v5871, 16
        %v5903 = vmul.u32 %v5899, %v5901
        %v5904 = vmul.u32 %v5899, %v5902
        %v5905 = vmul.u32 %v5900, %v5901
        %v5906 = vmul.u32 %v5900, %v5902
        %v5907 = vshll.u32 %v5904, 16
        %v5908 = vshrl.u32 %v5904, 16
        %v5909 = vshll.u32 %v5905, 16
        %v5910 = vshrl.u32 %v5905, 16
        %vm5911 = vc.u32 %v5903, %v5907
        %v5912 = vsel %vm5911, 1, 0
        %v5913 = vadd.s32 %v5903, %v5907
        %v5914 = vadd.s32 %v5906, %v5912
        %vm5915 = vc.u32 %v5913, %v5909
        %v5916 = vsel %vm5915, 1, 0
        %v5917 = vadd.s32 %v5913, %v5909
        %v5918 = vadd.s32 %v5914, %v5916
        %v5919 = vadd.s32 %v5918, %v5908
        %v5920 = vadd.s32 %v5919, %v5910
        %v5921 = vmul.u32 %v5876, %v5867
        %v5922 = vadd.s32 %v5898, %v5917
        %vm5923 = vc.u32 %v5898, %v5917
        %v5924 = vadd.s32 %v5920, 1
        %v5925 = vsel %vm5923, %v5924, %v5920
        %v5926 = vadd.s32 %v5921, %v5925
        %v5927 = vadd.s32 %v5926, 536870912
        %v5928 = vshrl.u32 %v5927, 30
        %v5929 = vshll.u32 %v5928, 30
        %v5930 = vsub.s32 %v5926, %v5929
        %vm5931 = vcmp.lt.s32.totalorder %v5930, 0
        %v5932 = vsub.s32 0, %v5930
        %v5933 = vsel %vm5931, %v5932, %v5930
        %v5934 = vclz %v5933
        %v5935 = vsub.s32 %v5934, 2
        %vm5936 = vcmp.gt.s32.totalorder 0, %v5935
        %v5937 = vsel %vm5936, 0, %v5935
        %v5938 = vsub.s32 32, %v5937
        %v5939 = vshll.u32 %v5930, %v5937
        %v5940 = vshrl.u32 %v5922, %v5938
        %v5941 = vor.u32 %v5939, %v5940
        %v5942 = vsub.s32 4294967266, %v5937
        %v5943 = vadd.s32 %v5942, 127
        %v5944 = vshll.u32 %v5943, 23
        %v5945 = vor.u32 4788187, %v5944
        %v5946 = vand.u32 2147483647, %v5945
        %v5948 = vcvt.s32.f32 %v5941
        %v5949 = vmul.f32 %v5948, %v5946
        %v5950 = vxor.u32 %v5949, 2147483648
        %v5951 = vsel %vm5830, %v5950, %v5949
        %v5952 = vsub.s32 4, %v5928
        %v5953 = vsel %vm5830, %v5952, %v5928
        %v5954 = vsel %vm5829, %v682, %v5951
        %v5955 = vsel %vm5829, 0, %v5953
        %v5956 = vmul.f32 %v5954, %v5954
        %v5957 = vmul.f32 %v5956, -0.001358992
        %v5958 = vadd.f32 %v5957, 0.041655596
        %v5959 = vmul.f32 %v5956, %v5958
        %v5960 = vadd.f32 %v5959, -0.4999988
        %v5961 = vmul.f32 %v5956, %v5960
        %v5962 = vadd.f32 1.0, %v5961
        %v5963 = vmul.f32 %v5954, %v5954
        %v5964 = vmul.f32 %v5963, -0.00019511016
        %v5965 = vadd.f32 %v5964, 0.008332121
        %v5966 = vmul.f32 %v5963, %v5965
        %v5967 = vadd.f32 %v5966, -0.16666654
        %v5968 = vmul.f32 %v5963, %v5967
        %v5969 = vadd.f32 %v5968, 1.0
        %v5970 = vmul.f32 %v5969, %v5954
        %vm5971 = vweird.f32 %v682
        %v5972 = vadd.s32 %v5955, 3
        %v5973 = vand.u32 %v5972, 3
        %vm5974 = vcmp.lt.s32.totalorder %v5973, 2
        %vm5975 = vcmp.eq.s32.totalorder %v5973, 0
        %v5976 = vxor.u32 %v5970, 2147483648
        %v5977 = vsel %vm5975, %v5962, %v5976
        %vm5978 = vcmp.eq.s32.totalorder %v5973, 2
        %v5979 = vxor.u32 %v5962, 2147483648
        %v5980 = vsel %vm5978, %v5979, %v5970
        %v5981 = vsel %vm5974, %v5977, %v5980
        %v5982 = vsel %vm5971, nan, %v5981
        %v5983 = vand.u32 2147483647, %v683
        %vm5984 = vcmp.le.f32.partialorder %v5983, 0.7853982
        %vm5985 = vcmp.lt.s32.totalorder %v683, 0
        %v5986 = vand.u32 %v683, 2139095040
        %v5987 = vshrl.u32 %v5986, 23
        %v5988 = vsub.s32 %v5987, 127
        %v5989 = vand.u32 2147483647, %v683
        %v5990 = vand.u32 %v5989, 8388607
        %v5991 = vor.u32 %v5990, 8388608
        %v5992 = vsub.s32 0, %v5991
        %v5993 = vadd.s32 %v5988, 1
        %vm5994 = vcmp.gt.s32.totalorder %v5993, 0
        %v5995 = vsel %vm5994, %v5993, 0
        %v5996 = vshrl.u32 %v5995, 5
        %v5997 = vand.u32 %v5995, 31
        %v5998 = vsub.s32 32, %v5997
        %v5999 = vshrl.u32 683565275, %v5998
        %v6000 = vshll.u32 683565275, %v5997
        %v6001 = vshrl.u32 2475754826, %v5998
        %v6002 = vor.u32 %v6000, %v6001
        %v6003 = vshll.u32 2475754826, %v5997
        %v6004 = vshrl.u32 2131351028, %v5998
        %v6005 = vor.u32 %v6003, %v6004
        %v6006 = vshll.u32 2131351028, %v5997
        %v6007 = vshrl.u32 2102212464, %v5998
        %v6008 = vor.u32 %v6006, %v6007
        %v6009 = vshll.u32 2102212464, %v5997
        %v6010 = vshrl.u32 920167782, %v5998
        %v6011 = vor.u32 %v6009, %v6010
        %v6012 = vshll.u32 920167782, %v5997
        %v6013 = vshrl.u32 1326507024, %v5998
        %v6014 = vor.u32 %v6012, %v6013
        %vm6015 = vcmp.lt.s32.totalorder %v5996, 1
        %vm6016 = vcmp.lt.s32.totalorder %v5996, 2
        %vm6017 = vcmp.lt.s32.totalorder %v5996, 3
        %vm6018 = vcmp.lt.s32.totalorder %v5996, 4
        %v6019 = vsel %vm6015, %v5999, %v6002
        %v6020 = vsel %vm6018, %v6008, 2102212464
        %v6021 = vsel %vm6017, %v6005, %v6020
        %v6022 = vsel %vm6016, %v6019, %v6021
        %v6023 = vsel %vm6015, %v6002, %v6005
        %v6024 = vsel %vm6018, %v6011, 920167782
        %v6025 = vsel %vm6017, %v6008, %v6024
        %v6026 = vsel %vm6016, %v6023, %v6025
        %v6027 = vsel %vm6015, %v6005, %v6008
        %v6028 = vsel %vm6018, %v6014, 1326507024
        %v6029 = vsel %vm6017, %v6011, %v6028
        %v6030 = vsel %vm6016, %v6027, %v6029
        %v6031 = vshll.u32 %v5991, 8
        %v6032 = vand.u32 %v6031, 65535
        %v6033 = vshrl.u32 %v6031, 16
        %v6034 = vand.u32 %v6030, 65535
        %v6035 = vshrl.u32 %v6030, 16
        %v6036 = vmul.u32 %v6032, %v6034
        %v6037 = vmul.u32 %v6032, %v6035
        %v6038 = vmul.u32 %v6033, %v6034
        %v6039 = vmul.u32 %v6033, %v6035
        %v6040 = vshll.u32 %v6037, 16
        %v6041 = vshrl.u32 %v6037, 16
        %v6042 = vshll.u32 %v6038, 16
        %v6043 = vshrl.u32 %v6038, 16
        %vm6044 = vc.u32 %v6036, %v6040
        %v6045 = vsel %vm6044, 1, 0
        %v6046 = vadd.s32 %v6036, %v6040
        %v6047 = vadd.s32 %v6039, %v6045
        %vm6048 = vc.u32 %v6046, %v6042
        %v6049 = vsel %vm6048, 1, 0
        %v6050 = vadd.s32 %v6046, %v6042
        %v6051 = vadd.s32 %v6047, %v6049
        %v6052 = vadd.s32 %v6051, %v6041
        %v6053 = vadd.s32 %v6052, %v6043
        %v6054 = vand.u32 %v6031, 65535
        %v6055 = vshrl.u32 %v6031, 16
        %v6056 = vand.u32 %v6026, 65535
        %v6057 = vshrl.u32 %v6026, 16
        %v6058 = vmul.u32 %v6054, %v6056
        %v6059 = vmul.u32 %v6054, %v6057
        %v6060 = vmul.u32 %v6055, %v6056
        %v6061 = vmul.u32 %v6055, %v6057
        %v6062 = vshll.u32 %v6059, 16
        %v6063 = vshrl.u32 %v6059, 16
        %v6064 = vshll.u32 %v6060, 16
        %v6065 = vshrl.u32 %v6060, 16
        %vm6066 = vc.u32 %v6058, %v6062
        %v6067 = vsel %vm6066, 1, 0
        %v6068 = vadd.s32 %v6058, %v6062
        %v6069 = vadd.s32 %v6061, %v6067
        %vm6070 = vc.u32 %v6068, %v6064
        %v6071 = vsel %vm6070, 1, 0
        %v6072 = vadd.s32 %v6068, %v6064
        %v6073 = vadd.s32 %v6069, %v6071
        %v6074 = vadd.s32 %v6073, %v6063
        %v6075 = vadd.s32 %v6074, %v6065
        %v6076 = vmul.u32 %v6031, %v6022
        %v6077 = vadd.s32 %v6053, %v6072
        %vm6078 = vc.u32 %v6053, %v6072
        %v6079 = vadd.s32 %v6075, 1
        %v6080 = vsel %vm6078, %v6079, %v6075
        %v6081 = vadd.s32 %v6076, %v6080
        %v6082 = vadd.s32 %v6081, 536870912
        %v6083 = vshrl.u32 %v6082, 30
        %v6084 = vshll.u32 %v6083, 30
        %v6085 = vsub.s32 %v6081, %v6084
        %vm6086 = vcmp.lt.s32.totalorder %v6085, 0
        %v6087 = vsub.s32 0, %v6085
        %v6088 = vsel %vm6086, %v6087, %v6085
        %v6089 = vclz %v6088
        %v6090 = vsub.s32 %v6089, 2
        %vm6091 = vcmp.gt.s32.totalorder 0, %v6090
        %v6092 = vsel %vm6091, 0, %v6090
        %v6093 = vsub.s32 32, %v6092
        %v6094 = vshll.u32 %v6085, %v6092
        %v6095 = vshrl.u32 %v6077, %v6093
        %v6096 = vor.u32 %v6094, %v6095
        %v6097 = vsub.s32 4294967266, %v6092
        %v6098 = vadd.s32 %v6097, 127
        %v6099 = vshll.u32 %v6098, 23
        %v6100 = vor.u32 4788187, %v6099
        %v6101 = vand.u32 2147483647, %v6100
        %v6103 = vcvt.s32.f32 %v6096
        %v6104 = vmul.f32 %v6103, %v6101
        %v6105 = vxor.u32 %v6104, 2147483648
        %v6106 = vsel %vm5985, %v6105, %v6104
        %v6107 = vsub.s32 4, %v6083
        %v6108 = vsel %vm5985, %v6107, %v6083
        %v6109 = vsel %vm5984, %v683, %v6106
        %v6110 = vsel %vm5984, 0, %v6108
        %v6111 = vmul.f32 %v6109, %v6109
        %v6112 = vmul.f32 %v6111, -0.001358992
        %v6113 = vadd.f32 %v6112, 0.041655596
        %v6114 = vmul.f32 %v6111, %v6113
        %v6115 = vadd.f32 %v6114, -0.4999988
        %v6116 = vmul.f32 %v6111, %v6115
        %v6117 = vadd.f32 1.0, %v6116
        %v6118 = vmul.f32 %v6109, %v6109
        %v6119 = vmul.f32 %v6118, -0.00019511016
        %v6120 = vadd.f32 %v6119, 0.008332121
        %v6121 = vmul.f32 %v6118, %v6120
        %v6122 = vadd.f32 %v6121, -0.16666654
        %v6123 = vmul.f32 %v6118, %v6122
        %v6124 = vadd.f32 %v6123, 1.0
        %v6125 = vmul.f32 %v6124, %v6109
        %vm6126 = vweird.f32 %v683
        %v6127 = vadd.s32 %v6110, 3
        %v6128 = vand.u32 %v6127, 3
        %vm6129 = vcmp.lt.s32.totalorder %v6128, 2
        %vm6130 = vcmp.eq.s32.totalorder %v6128, 0
        %v6131 = vxor.u32 %v6125, 2147483648
        %v6132 = vsel %vm6130, %v6117, %v6131
        %vm6133 = vcmp.eq.s32.totalorder %v6128, 2
        %v6134 = vxor.u32 %v6117, 2147483648
        %v6135 = vsel %vm6133, %v6134, %v6125
        %v6136 = vsel %vm6129, %v6132, %v6135
        %v6137 = vsel %vm6126, nan, %v6136
        %v6138 = vand.u32 2147483647, %v684
        %vm6139 = vcmp.le.f32.partialorder %v6138, 0.7853982
        %vm6140 = vcmp.lt.s32.totalorder %v684, 0
        %v6141 = vand.u32 %v684, 2139095040
        %v6142 = vshrl.u32 %v6141, 23
        %v6143 = vsub.s32 %v6142, 127
        %v6144 = vand.u32 2147483647, %v684
        %v6145 = vand.u32 %v6144, 8388607
        %v6146 = vor.u32 %v6145, 8388608
        %v6147 = vsub.s32 0, %v6146
        %v6148 = vadd.s32 %v6143, 1
        %vm6149 = vcmp.gt.s32.totalorder %v6148, 0
        %v6150 = vsel %vm6149, %v6148, 0
        %v6151 = vshrl.u32 %v6150, 5
        %v6152 = vand.u32 %v6150, 31
        %v6153 = vsub.s32 32, %v6152
        %v6154 = vshrl.u32 683565275, %v6153
        %v6155 = vshll.u32 683565275, %v6152
        %v6156 = vshrl.u32 2475754826, %v6153
        %v6157 = vor.u32 %v6155, %v6156
        %v6158 = vshll.u32 2475754826, %v6152
        %v6159 = vshrl.u32 2131351028, %v6153
        %v6160 = vor.u32 %v6158, %v6159
        %v6161 = vshll.u32 2131351028, %v6152
        %v6162 = vshrl.u32 2102212464, %v6153
        %v6163 = vor.u32 %v6161, %v6162
        %v6164 = vshll.u32 2102212464, %v6152
        %v6165 = vshrl.u32 920167782, %v6153
        %v6166 = vor.u32 %v6164, %v6165
        %v6167 = vshll.u32 920167782, %v6152
        %v6168 = vshrl.u32 1326507024, %v6153
        %v6169 = vor.u32 %v6167, %v6168
        %vm6170 = vcmp.lt.s32.totalorder %v6151, 1
        %vm6171 = vcmp.lt.s32.totalorder %v6151, 2
        %vm6172 = vcmp.lt.s32.totalorder %v6151, 3
        %vm6173 = vcmp.lt.s32.totalorder %v6151, 4
        %v6174 = vsel %vm6170, %v6154, %v6157
        %v6175 = vsel %vm6173, %v6163, 2102212464
        %v6176 = vsel %vm6172, %v6160, %v6175
        %v6177 = vsel %vm6171, %v6174, %v6176
        %v6178 = vsel %vm6170, %v6157, %v6160
        %v6179 = vsel %vm6173, %v6166, 920167782
        %v6180 = vsel %vm6172, %v6163, %v6179
        %v6181 = vsel %vm6171, %v6178, %v6180
        %v6182 = vsel %vm6170, %v6160, %v6163
        %v6183 = vsel %vm6173, %v6169, 1326507024
        %v6184 = vsel %vm6172, %v6166, %v6183
        %v6185 = vsel %vm6171, %v6182, %v6184
        %v6186 = vshll.u32 %v6146, 8
        %v6187 = vand.u32 %v6186, 65535
        %v6188 = vshrl.u32 %v6186, 16
        %v6189 = vand.u32 %v6185, 65535
        %v6190 = vshrl.u32 %v6185, 16
        %v6191 = vmul.u32 %v6187, %v6189
        %v6192 = vmul.u32 %v6187, %v6190
        %v6193 = vmul.u32 %v6188, %v6189
        %v6194 = vmul.u32 %v6188, %v6190
        %v6195 = vshll.u32 %v6192, 16
        %v6196 = vshrl.u32 %v6192, 16
        %v6197 = vshll.u32 %v6193, 16
        %v6198 = vshrl.u32 %v6193, 16
        %vm6199 = vc.u32 %v6191, %v6195
        %v6200 = vsel %vm6199, 1, 0
        %v6201 = vadd.s32 %v6191, %v6195
        %v6202 = vadd.s32 %v6194, %v6200
        %vm6203 = vc.u32 %v6201, %v6197
        %v6204 = vsel %vm6203, 1, 0
        %v6205 = vadd.s32 %v6201, %v6197
        %v6206 = vadd.s32 %v6202, %v6204
        %v6207 = vadd.s32 %v6206, %v6196
        %v6208 = vadd.s32 %v6207, %v6198
        %v6209 = vand.u32 %v6186, 65535
        %v6210 = vshrl.u32 %v6186, 16
        %v6211 = vand.u32 %v6181, 65535
        %v6212 = vshrl.u32 %v6181, 16
        %v6213 = vmul.u32 %v6209, %v6211
        %v6214 = vmul.u32 %v6209, %v6212
        %v6215 = vmul.u32 %v6210, %v6211
        %v6216 = vmul.u32 %v6210, %v6212
        %v6217 = vshll.u32 %v6214, 16
        %v6218 = vshrl.u32 %v6214, 16
        %v6219 = vshll.u32 %v6215, 16
        %v6220 = vshrl.u32 %v6215, 16
        %vm6221 = vc.u32 %v6213, %v6217
        %v6222 = vsel %vm6221, 1, 0
        %v6223 = vadd.s32 %v6213, %v6217
        %v6224 = vadd.s32 %v6216, %v6222
        %vm6225 = vc.u32 %v6223, %v6219
        %v6226 = vsel %vm6225, 1, 0
        %v6227 = vadd.s32 %v6223, %v6219
        %v6228 = vadd.s32 %v6224, %v6226
        %v6229 = vadd.s32 %v6228, %v6218
        %v6230 = vadd.s32 %v6229, %v6220
        %v6231 = vmul.u32 %v6186, %v6177
        %v6232 = vadd.s32 %v6208, %v6227
        %vm6233 = vc.u32 %v6208, %v6227
        %v6234 = vadd.s32 %v6230, 1
        %v6235 = vsel %vm6233, %v6234, %v6230
        %v6236 = vadd.s32 %v6231, %v6235
        %v6237 = vadd.s32 %v6236, 536870912
        %v6238 = vshrl.u32 %v6237, 30
        %v6239 = vshll.u32 %v6238, 30
        %v6240 = vsub.s32 %v6236, %v6239
        %vm6241 = vcmp.lt.s32.totalorder %v6240, 0
        %v6242 = vsub.s32 0, %v6240
        %v6243 = vsel %vm6241, %v6242, %v6240
        %v6244 = vclz %v6243
        %v6245 = vsub.s32 %v6244, 2
        %vm6246 = vcmp.gt.s32.totalorder 0, %v6245
        %v6247 = vsel %vm6246, 0, %v6245
        %v6248 = vsub.s32 32, %v6247
        %v6249 = vshll.u32 %v6240, %v6247
        %v6250 = vshrl.u32 %v6232, %v6248
        %v6251 = vor.u32 %v6249, %v6250
        %v6252 = vsub.s32 4294967266, %v6247
        %v6253 = vadd.s32 %v6252, 127
        %v6254 = vshll.u32 %v6253, 23
        %v6255 = vor.u32 4788187, %v6254
        %v6256 = vand.u32 2147483647, %v6255
        %v6258 = vcvt.s32.f32 %v6251
        %v6259 = vmul.f32 %v6258, %v6256
        %v6260 = vxor.u32 %v6259, 2147483648
        %v6261 = vsel %vm6140, %v6260, %v6259
        %v6262 = vsub.s32 4, %v6238
        %v6263 = vsel %vm6140, %v6262, %v6238
        %v6264 = vsel %vm6139, %v684, %v6261
        %v6265 = vsel %vm6139, 0, %v6263
        %v6266 = vmul.f32 %v6264, %v6264
        %v6267 = vmul.f32 %v6266, -0.001358992
        %v6268 = vadd.f32 %v6267, 0.041655596
        %v6269 = vmul.f32 %v6266, %v6268
        %v6270 = vadd.f32 %v6269, -0.4999988
        %v6271 = vmul.f32 %v6266, %v6270
        %v6272 = vadd.f32 1.0, %v6271
        %v6273 = vmul.f32 %v6264, %v6264
        %v6274 = vmul.f32 %v6273, -0.00019511016
        %v6275 = vadd.f32 %v6274, 0.008332121
        %v6276 = vmul.f32 %v6273, %v6275
        %v6277 = vadd.f32 %v6276, -0.16666654
        %v6278 = vmul.f32 %v6273, %v6277
        %v6279 = vadd.f32 %v6278, 1.0
        %v6280 = vmul.f32 %v6279, %v6264
        %vm6281 = vweird.f32 %v684
        %v6282 = vadd.s32 %v6265, 3
        %v6283 = vand.u32 %v6282, 3
        %vm6284 = vcmp.lt.s32.totalorder %v6283, 2
        %vm6285 = vcmp.eq.s32.totalorder %v6283, 0
        %v6286 = vxor.u32 %v6280, 2147483648
        %v6287 = vsel %vm6285, %v6272, %v6286
        %vm6288 = vcmp.eq.s32.totalorder %v6283, 2
        %v6289 = vxor.u32 %v6272, 2147483648
        %v6290 = vsel %vm6288, %v6289, %v6280
        %v6291 = vsel %vm6284, %v6287, %v6290
        %v6292 = vsel %vm6281, nan, %v6291
        %v6293 = vand.u32 2147483647, %v685
        %vm6294 = vcmp.le.f32.partialorder %v6293, 0.7853982
        %vm6295 = vcmp.lt.s32.totalorder %v685, 0
        %v6296 = vand.u32 %v685, 2139095040
        %v6297 = vshrl.u32 %v6296, 23
        %v6298 = vsub.s32 %v6297, 127
        %v6299 = vand.u32 2147483647, %v685
        %v6300 = vand.u32 %v6299, 8388607
        %v6301 = vor.u32 %v6300, 8388608
        %v6302 = vsub.s32 0, %v6301
        %v6303 = vadd.s32 %v6298, 1
        %vm6304 = vcmp.gt.s32.totalorder %v6303, 0
        %v6305 = vsel %vm6304, %v6303, 0
        %v6306 = vshrl.u32 %v6305, 5
        %v6307 = vand.u32 %v6305, 31
        %v6308 = vsub.s32 32, %v6307
        %v6309 = vshrl.u32 683565275, %v6308
        %v6310 = vshll.u32 683565275, %v6307
        %v6311 = vshrl.u32 2475754826, %v6308
        %v6312 = vor.u32 %v6310, %v6311
        %v6313 = vshll.u32 2475754826, %v6307
        %v6314 = vshrl.u32 2131351028, %v6308
        %v6315 = vor.u32 %v6313, %v6314
        %v6316 = vshll.u32 2131351028, %v6307
        %v6317 = vshrl.u32 2102212464, %v6308
        %v6318 = vor.u32 %v6316, %v6317
        %v6319 = vshll.u32 2102212464, %v6307
        %v6320 = vshrl.u32 920167782, %v6308
        %v6321 = vor.u32 %v6319, %v6320
        %v6322 = vshll.u32 920167782, %v6307
        %v6323 = vshrl.u32 1326507024, %v6308
        %v6324 = vor.u32 %v6322, %v6323
        %vm6325 = vcmp.lt.s32.totalorder %v6306, 1
        %vm6326 = vcmp.lt.s32.totalorder %v6306, 2
        %vm6327 = vcmp.lt.s32.totalorder %v6306, 3
        %vm6328 = vcmp.lt.s32.totalorder %v6306, 4
        %v6329 = vsel %vm6325, %v6309, %v6312
        %v6330 = vsel %vm6328, %v6318, 2102212464
        %v6331 = vsel %vm6327, %v6315, %v6330
        %v6332 = vsel %vm6326, %v6329, %v6331
        %v6333 = vsel %vm6325, %v6312, %v6315
        %v6334 = vsel %vm6328, %v6321, 920167782
        %v6335 = vsel %vm6327, %v6318, %v6334
        %v6336 = vsel %vm6326, %v6333, %v6335
        %v6337 = vsel %vm6325, %v6315, %v6318
        %v6338 = vsel %vm6328, %v6324, 1326507024
        %v6339 = vsel %vm6327, %v6321, %v6338
        %v6340 = vsel %vm6326, %v6337, %v6339
        %v6341 = vshll.u32 %v6301, 8
        %v6342 = vand.u32 %v6341, 65535
        %v6343 = vshrl.u32 %v6341, 16
        %v6344 = vand.u32 %v6340, 65535
        %v6345 = vshrl.u32 %v6340, 16
        %v6346 = vmul.u32 %v6342, %v6344
        %v6347 = vmul.u32 %v6342, %v6345
        %v6348 = vmul.u32 %v6343, %v6344
        %v6349 = vmul.u32 %v6343, %v6345
        %v6350 = vshll.u32 %v6347, 16
        %v6351 = vshrl.u32 %v6347, 16
        %v6352 = vshll.u32 %v6348, 16
        %v6353 = vshrl.u32 %v6348, 16
        %vm6354 = vc.u32 %v6346, %v6350
        %v6355 = vsel %vm6354, 1, 0
        %v6356 = vadd.s32 %v6346, %v6350
        %v6357 = vadd.s32 %v6349, %v6355
        %vm6358 = vc.u32 %v6356, %v6352
        %v6359 = vsel %vm6358, 1, 0
        %v6360 = vadd.s32 %v6356, %v6352
        %v6361 = vadd.s32 %v6357, %v6359
        %v6362 = vadd.s32 %v6361, %v6351
        %v6363 = vadd.s32 %v6362, %v6353
        %v6364 = vand.u32 %v6341, 65535
        %v6365 = vshrl.u32 %v6341, 16
        %v6366 = vand.u32 %v6336, 65535
        %v6367 = vshrl.u32 %v6336, 16
        %v6368 = vmul.u32 %v6364, %v6366
        %v6369 = vmul.u32 %v6364, %v6367
        %v6370 = vmul.u32 %v6365, %v6366
        %v6371 = vmul.u32 %v6365, %v6367
        %v6372 = vshll.u32 %v6369, 16
        %v6373 = vshrl.u32 %v6369, 16
        %v6374 = vshll.u32 %v6370, 16
        %v6375 = vshrl.u32 %v6370, 16
        %vm6376 = vc.u32 %v6368, %v6372
        %v6377 = vsel %vm6376, 1, 0
        %v6378 = vadd.s32 %v6368, %v6372
        %v6379 = vadd.s32 %v6371, %v6377
        %vm6380 = vc.u32 %v6378, %v6374
        %v6381 = vsel %vm6380, 1, 0
        %v6382 = vadd.s32 %v6378, %v6374
        %v6383 = vadd.s32 %v6379, %v6381
        %v6384 = vadd.s32 %v6383, %v6373
        %v6385 = vadd.s32 %v6384, %v6375
        %v6386 = vmul.u32 %v6341, %v6332
        %v6387 = vadd.s32 %v6363, %v6382
        %vm6388 = vc.u32 %v6363, %v6382
        %v6389 = vadd.s32 %v6385, 1
        %v6390 = vsel %vm6388, %v6389, %v6385
        %v6391 = vadd.s32 %v6386, %v6390
        %v6392 = vadd.s32 %v6391, 536870912
        %v6393 = vshrl.u32 %v6392, 30
        %v6394 = vshll.u32 %v6393, 30
        %v6395 = vsub.s32 %v6391, %v6394
        %vm6396 = vcmp.lt.s32.totalorder %v6395, 0
        %v6397 = vsub.s32 0, %v6395
        %v6398 = vsel %vm6396, %v6397, %v6395
        %v6399 = vclz %v6398
        %v6400 = vsub.s32 %v6399, 2
        %vm6401 = vcmp.gt.s32.totalorder 0, %v6400
        %v6402 = vsel %vm6401, 0, %v6400
        %v6403 = vsub.s32 32, %v6402
        %v6404 = vshll.u32 %v6395, %v6402
        %v6405 = vshrl.u32 %v6387, %v6403
        %v6406 = vor.u32 %v6404, %v6405
        %v6407 = vsub.s32 4294967266, %v6402
        %v6408 = vadd.s32 %v6407, 127
        %v6409 = vshll.u32 %v6408, 23
        %v6410 = vor.u32 4788187, %v6409
        %v6411 = vand.u32 2147483647, %v6410
        %v6413 = vcvt.s32.f32 %v6406
        %v6414 = vmul.f32 %v6413, %v6411
        %v6415 = vxor.u32 %v6414, 2147483648
        %v6416 = vsel %vm6295, %v6415, %v6414
        %v6417 = vsub.s32 4, %v6393
        %v6418 = vsel %vm6295, %v6417, %v6393
        %v6419 = vsel %vm6294, %v685, %v6416
        %v6420 = vsel %vm6294, 0, %v6418
        %v6421 = vmul.f32 %v6419, %v6419
        %v6422 = vmul.f32 %v6421, -0.001358992
        %v6423 = vadd.f32 %v6422, 0.041655596
        %v6424 = vmul.f32 %v6421, %v6423
        %v6425 = vadd.f32 %v6424, -0.4999988
        %v6426 = vmul.f32 %v6421, %v6425
        %v6427 = vadd.f32 1.0, %v6426
        %v6428 = vmul.f32 %v6419, %v6419
        %v6429 = vmul.f32 %v6428, -0.00019511016
        %v6430 = vadd.f32 %v6429, 0.008332121
        %v6431 = vmul.f32 %v6428, %v6430
        %v6432 = vadd.f32 %v6431, -0.16666654
        %v6433 = vmul.f32 %v6428, %v6432
        %v6434 = vadd.f32 %v6433, 1.0
        %v6435 = vmul.f32 %v6434, %v6419
        %vm6436 = vweird.f32 %v685
        %v6437 = vadd.s32 %v6420, 3
        %v6438 = vand.u32 %v6437, 3
        %vm6439 = vcmp.lt.s32.totalorder %v6438, 2
        %vm6440 = vcmp.eq.s32.totalorder %v6438, 0
        %v6441 = vxor.u32 %v6435, 2147483648
        %v6442 = vsel %vm6440, %v6427, %v6441
        %vm6443 = vcmp.eq.s32.totalorder %v6438, 2
        %v6444 = vxor.u32 %v6427, 2147483648
        %v6445 = vsel %vm6443, %v6444, %v6435
        %v6446 = vsel %vm6439, %v6442, %v6445
        %v6447 = vsel %vm6436, nan, %v6446
        %v6448 = vand.u32 2147483647, %v686
        %vm6449 = vcmp.le.f32.partialorder %v6448, 0.7853982
        %vm6450 = vcmp.lt.s32.totalorder %v686, 0
        %v6451 = vand.u32 %v686, 2139095040
        %v6452 = vshrl.u32 %v6451, 23
        %v6453 = vsub.s32 %v6452, 127
        %v6454 = vand.u32 2147483647, %v686
        %v6455 = vand.u32 %v6454, 8388607
        %v6456 = vor.u32 %v6455, 8388608
        %v6457 = vsub.s32 0, %v6456
        %v6458 = vadd.s32 %v6453, 1
        %vm6459 = vcmp.gt.s32.totalorder %v6458, 0
        %v6460 = vsel %vm6459, %v6458, 0
        %v6461 = vshrl.u32 %v6460, 5
        %v6462 = vand.u32 %v6460, 31
        %v6463 = vsub.s32 32, %v6462
        %v6464 = vshrl.u32 683565275, %v6463
        %v6465 = vshll.u32 683565275, %v6462
        %v6466 = vshrl.u32 2475754826, %v6463
        %v6467 = vor.u32 %v6465, %v6466
        %v6468 = vshll.u32 2475754826, %v6462
        %v6469 = vshrl.u32 2131351028, %v6463
        %v6470 = vor.u32 %v6468, %v6469
        %v6471 = vshll.u32 2131351028, %v6462
        %v6472 = vshrl.u32 2102212464, %v6463
        %v6473 = vor.u32 %v6471, %v6472
        %v6474 = vshll.u32 2102212464, %v6462
        %v6475 = vshrl.u32 920167782, %v6463
        %v6476 = vor.u32 %v6474, %v6475
        %v6477 = vshll.u32 920167782, %v6462
        %v6478 = vshrl.u32 1326507024, %v6463
        %v6479 = vor.u32 %v6477, %v6478
        %vm6480 = vcmp.lt.s32.totalorder %v6461, 1
        %vm6481 = vcmp.lt.s32.totalorder %v6461, 2
        %vm6482 = vcmp.lt.s32.totalorder %v6461, 3
        %vm6483 = vcmp.lt.s32.totalorder %v6461, 4
        %v6484 = vsel %vm6480, %v6464, %v6467
        %v6485 = vsel %vm6483, %v6473, 2102212464
        %v6486 = vsel %vm6482, %v6470, %v6485
        %v6487 = vsel %vm6481, %v6484, %v6486
        %v6488 = vsel %vm6480, %v6467, %v6470
        %v6489 = vsel %vm6483, %v6476, 920167782
        %v6490 = vsel %vm6482, %v6473, %v6489
        %v6491 = vsel %vm6481, %v6488, %v6490
        %v6492 = vsel %vm6480, %v6470, %v6473
        %v6493 = vsel %vm6483, %v6479, 1326507024
        %v6494 = vsel %vm6482, %v6476, %v6493
        %v6495 = vsel %vm6481, %v6492, %v6494
        %v6496 = vshll.u32 %v6456, 8
        %v6497 = vand.u32 %v6496, 65535
        %v6498 = vshrl.u32 %v6496, 16
        %v6499 = vand.u32 %v6495, 65535
        %v6500 = vshrl.u32 %v6495, 16
        %v6501 = vmul.u32 %v6497, %v6499
        %v6502 = vmul.u32 %v6497, %v6500
        %v6503 = vmul.u32 %v6498, %v6499
        %v6504 = vmul.u32 %v6498, %v6500
        %v6505 = vshll.u32 %v6502, 16
        %v6506 = vshrl.u32 %v6502, 16
        %v6507 = vshll.u32 %v6503, 16
        %v6508 = vshrl.u32 %v6503, 16
        %vm6509 = vc.u32 %v6501, %v6505
        %v6510 = vsel %vm6509, 1, 0
        %v6511 = vadd.s32 %v6501, %v6505
        %v6512 = vadd.s32 %v6504, %v6510
        %vm6513 = vc.u32 %v6511, %v6507
        %v6514 = vsel %vm6513, 1, 0
        %v6515 = vadd.s32 %v6511, %v6507
        %v6516 = vadd.s32 %v6512, %v6514
        %v6517 = vadd.s32 %v6516, %v6506
        %v6518 = vadd.s32 %v6517, %v6508
        %v6519 = vand.u32 %v6496, 65535
        %v6520 = vshrl.u32 %v6496, 16
        %v6521 = vand.u32 %v6491, 65535
        %v6522 = vshrl.u32 %v6491, 16
        %v6523 = vmul.u32 %v6519, %v6521
        %v6524 = vmul.u32 %v6519, %v6522
        %v6525 = vmul.u32 %v6520, %v6521
        %v6526 = vmul.u32 %v6520, %v6522
        %v6527 = vshll.u32 %v6524, 16
        %v6528 = vshrl.u32 %v6524, 16
        %v6529 = vshll.u32 %v6525, 16
        %v6530 = vshrl.u32 %v6525, 16
        %vm6531 = vc.u32 %v6523, %v6527
        %v6532 = vsel %vm6531, 1, 0
        %v6533 = vadd.s32 %v6523, %v6527
        %v6534 = vadd.s32 %v6526, %v6532
        %vm6535 = vc.u32 %v6533, %v6529
        %v6536 = vsel %vm6535, 1, 0
        %v6537 = vadd.s32 %v6533, %v6529
        %v6538 = vadd.s32 %v6534, %v6536
        %v6539 = vadd.s32 %v6538, %v6528
        %v6540 = vadd.s32 %v6539, %v6530
        %v6541 = vmul.u32 %v6496, %v6487
        %v6542 = vadd.s32 %v6518, %v6537
        %vm6543 = vc.u32 %v6518, %v6537
        %v6544 = vadd.s32 %v6540, 1
        %v6545 = vsel %vm6543, %v6544, %v6540
        %v6546 = vadd.s32 %v6541, %v6545
        %v6547 = vadd.s32 %v6546, 536870912
        %v6548 = vshrl.u32 %v6547, 30
        %v6549 = vshll.u32 %v6548, 30
        %v6550 = vsub.s32 %v6546, %v6549
        %vm6551 = vcmp.lt.s32.totalorder %v6550, 0
        %v6552 = vsub.s32 0, %v6550
        %v6553 = vsel %vm6551, %v6552, %v6550
        %v6554 = vclz %v6553
        %v6555 = vsub.s32 %v6554, 2
        %vm6556 = vcmp.gt.s32.totalorder 0, %v6555
        %v6557 = vsel %vm6556, 0, %v6555
        %v6558 = vsub.s32 32, %v6557
        %v6559 = vshll.u32 %v6550, %v6557
        %v6560 = vshrl.u32 %v6542, %v6558
        %v6561 = vor.u32 %v6559, %v6560
        %v6562 = vsub.s32 4294967266, %v6557
        %v6563 = vadd.s32 %v6562, 127
        %v6564 = vshll.u32 %v6563, 23
        %v6565 = vor.u32 4788187, %v6564
        %v6566 = vand.u32 2147483647, %v6565
        %v6568 = vcvt.s32.f32 %v6561
        %v6569 = vmul.f32 %v6568, %v6566
        %v6570 = vxor.u32 %v6569, 2147483648
        %v6571 = vsel %vm6450, %v6570, %v6569
        %v6572 = vsub.s32 4, %v6548
        %v6573 = vsel %vm6450, %v6572, %v6548
        %v6574 = vsel %vm6449, %v686, %v6571
        %v6575 = vsel %vm6449, 0, %v6573
        %v6576 = vmul.f32 %v6574, %v6574
        %v6577 = vmul.f32 %v6576, -0.001358992
        %v6578 = vadd.f32 %v6577, 0.041655596
        %v6579 = vmul.f32 %v6576, %v6578
        %v6580 = vadd.f32 %v6579, -0.4999988
        %v6581 = vmul.f32 %v6576, %v6580
        %v6582 = vadd.f32 1.0, %v6581
        %v6583 = vmul.f32 %v6574, %v6574
        %v6584 = vmul.f32 %v6583, -0.00019511016
        %v6585 = vadd.f32 %v6584, 0.008332121
        %v6586 = vmul.f32 %v6583, %v6585
        %v6587 = vadd.f32 %v6586, -0.16666654
        %v6588 = vmul.f32 %v6583, %v6587
        %v6589 = vadd.f32 %v6588, 1.0
        %v6590 = vmul.f32 %v6589, %v6574
        %vm6591 = vweird.f32 %v686
        %v6592 = vadd.s32 %v6575, 3
        %v6593 = vand.u32 %v6592, 3
        %vm6594 = vcmp.lt.s32.totalorder %v6593, 2
        %vm6595 = vcmp.eq.s32.totalorder %v6593, 0
        %v6596 = vxor.u32 %v6590, 2147483648
        %v6597 = vsel %vm6595, %v6582, %v6596
        %vm6598 = vcmp.eq.s32.totalorder %v6593, 2
        %v6599 = vxor.u32 %v6582, 2147483648
        %v6600 = vsel %vm6598, %v6599, %v6590
        %v6601 = vsel %vm6594, %v6597, %v6600
        %v6602 = vsel %vm6591, nan, %v6601
        %v6603 = vand.u32 2147483647, %v687
        %vm6604 = vcmp.le.f32.partialorder %v6603, 0.7853982
        %vm6605 = vcmp.lt.s32.totalorder %v687, 0
        %v6606 = vand.u32 %v687, 2139095040
        %v6607 = vshrl.u32 %v6606, 23
        %v6608 = vsub.s32 %v6607, 127
        %v6609 = vand.u32 2147483647, %v687
        %v6610 = vand.u32 %v6609, 8388607
        %v6611 = vor.u32 %v6610, 8388608
        %v6612 = vsub.s32 0, %v6611
        %v6613 = vadd.s32 %v6608, 1
        %vm6614 = vcmp.gt.s32.totalorder %v6613, 0
        %v6615 = vsel %vm6614, %v6613, 0
        %v6616 = vshrl.u32 %v6615, 5
        %v6617 = vand.u32 %v6615, 31
        %v6618 = vsub.s32 32, %v6617
        %v6619 = vshrl.u32 683565275, %v6618
        %v6620 = vshll.u32 683565275, %v6617
        %v6621 = vshrl.u32 2475754826, %v6618
        %v6622 = vor.u32 %v6620, %v6621
        %v6623 = vshll.u32 2475754826, %v6617
        %v6624 = vshrl.u32 2131351028, %v6618
        %v6625 = vor.u32 %v6623, %v6624
        %v6626 = vshll.u32 2131351028, %v6617
        %v6627 = vshrl.u32 2102212464, %v6618
        %v6628 = vor.u32 %v6626, %v6627
        %v6629 = vshll.u32 2102212464, %v6617
        %v6630 = vshrl.u32 920167782, %v6618
        %v6631 = vor.u32 %v6629, %v6630
        %v6632 = vshll.u32 920167782, %v6617
        %v6633 = vshrl.u32 1326507024, %v6618
        %v6634 = vor.u32 %v6632, %v6633
        %vm6635 = vcmp.lt.s32.totalorder %v6616, 1
        %vm6636 = vcmp.lt.s32.totalorder %v6616, 2
        %vm6637 = vcmp.lt.s32.totalorder %v6616, 3
        %vm6638 = vcmp.lt.s32.totalorder %v6616, 4
        %v6639 = vsel %vm6635, %v6619, %v6622
        %v6640 = vsel %vm6638, %v6628, 2102212464
        %v6641 = vsel %vm6637, %v6625, %v6640
        %v6642 = vsel %vm6636, %v6639, %v6641
        %v6643 = vsel %vm6635, %v6622, %v6625
        %v6644 = vsel %vm6638, %v6631, 920167782
        %v6645 = vsel %vm6637, %v6628, %v6644
        %v6646 = vsel %vm6636, %v6643, %v6645
        %v6647 = vsel %vm6635, %v6625, %v6628
        %v6648 = vsel %vm6638, %v6634, 1326507024
        %v6649 = vsel %vm6637, %v6631, %v6648
        %v6650 = vsel %vm6636, %v6647, %v6649
        %v6651 = vshll.u32 %v6611, 8
        %v6652 = vand.u32 %v6651, 65535
        %v6653 = vshrl.u32 %v6651, 16
        %v6654 = vand.u32 %v6650, 65535
        %v6655 = vshrl.u32 %v6650, 16
        %v6656 = vmul.u32 %v6652, %v6654
        %v6657 = vmul.u32 %v6652, %v6655
        %v6658 = vmul.u32 %v6653, %v6654
        %v6659 = vmul.u32 %v6653, %v6655
        %v6660 = vshll.u32 %v6657, 16
        %v6661 = vshrl.u32 %v6657, 16
        %v6662 = vshll.u32 %v6658, 16
        %v6663 = vshrl.u32 %v6658, 16
        %vm6664 = vc.u32 %v6656, %v6660
        %v6665 = vsel %vm6664, 1, 0
        %v6666 = vadd.s32 %v6656, %v6660
        %v6667 = vadd.s32 %v6659, %v6665
        %vm6668 = vc.u32 %v6666, %v6662
        %v6669 = vsel %vm6668, 1, 0
        %v6670 = vadd.s32 %v6666, %v6662
        %v6671 = vadd.s32 %v6667, %v6669
        %v6672 = vadd.s32 %v6671, %v6661
        %v6673 = vadd.s32 %v6672, %v6663
        %v6674 = vand.u32 %v6651, 65535
        %v6675 = vshrl.u32 %v6651, 16
        %v6676 = vand.u32 %v6646, 65535
        %v6677 = vshrl.u32 %v6646, 16
        %v6678 = vmul.u32 %v6674, %v6676
        %v6679 = vmul.u32 %v6674, %v6677
        %v6680 = vmul.u32 %v6675, %v6676
        %v6681 = vmul.u32 %v6675, %v6677
        %v6682 = vshll.u32 %v6679, 16
        %v6683 = vshrl.u32 %v6679, 16
        %v6684 = vshll.u32 %v6680, 16
        %v6685 = vshrl.u32 %v6680, 16
        %vm6686 = vc.u32 %v6678, %v6682
        %v6687 = vsel %vm6686, 1, 0
        %v6688 = vadd.s32 %v6678, %v6682
        %v6689 = vadd.s32 %v6681, %v6687
        %vm6690 = vc.u32 %v6688, %v6684
        %v6691 = vsel %vm6690, 1, 0
        %v6692 = vadd.s32 %v6688, %v6684
        %v6693 = vadd.s32 %v6689, %v6691
        %v6694 = vadd.s32 %v6693, %v6683
        %v6695 = vadd.s32 %v6694, %v6685
        %v6696 = vmul.u32 %v6651, %v6642
        %v6697 = vadd.s32 %v6673, %v6692
        %vm6698 = vc.u32 %v6673, %v6692
        %v6699 = vadd.s32 %v6695, 1
        %v6700 = vsel %vm6698, %v6699, %v6695
        %v6701 = vadd.s32 %v6696, %v6700
        %v6702 = vadd.s32 %v6701, 536870912
        %v6703 = vshrl.u32 %v6702, 30
        %v6704 = vshll.u32 %v6703, 30
        %v6705 = vsub.s32 %v6701, %v6704
        %vm6706 = vcmp.lt.s32.totalorder %v6705, 0
        %v6707 = vsub.s32 0, %v6705
        %v6708 = vsel %vm6706, %v6707, %v6705
        %v6709 = vclz %v6708
        %v6710 = vsub.s32 %v6709, 2
        %vm6711 = vcmp.gt.s32.totalorder 0, %v6710
        %v6712 = vsel %vm6711, 0, %v6710
        %v6713 = vsub.s32 32, %v6712
        %v6714 = vshll.u32 %v6705, %v6712
        %v6715 = vshrl.u32 %v6697, %v6713
        %v6716 = vor.u32 %v6714, %v6715
        %v6717 = vsub.s32 4294967266, %v6712
        %v6718 = vadd.s32 %v6717, 127
        %v6719 = vshll.u32 %v6718, 23
        %v6720 = vor.u32 4788187, %v6719
        %v6721 = vand.u32 2147483647, %v6720
        %v6723 = vcvt.s32.f32 %v6716
        %v6724 = vmul.f32 %v6723, %v6721
        %v6725 = vxor.u32 %v6724, 2147483648
        %v6726 = vsel %vm6605, %v6725, %v6724
        %v6727 = vsub.s32 4, %v6703
        %v6728 = vsel %vm6605, %v6727, %v6703
        %v6729 = vsel %vm6604, %v687, %v6726
        %v6730 = vsel %vm6604, 0, %v6728
        %v6731 = vmul.f32 %v6729, %v6729
        %v6732 = vmul.f32 %v6731, -0.001358992
        %v6733 = vadd.f32 %v6732, 0.041655596
        %v6734 = vmul.f32 %v6731, %v6733
        %v6735 = vadd.f32 %v6734, -0.4999988
        %v6736 = vmul.f32 %v6731, %v6735
        %v6737 = vadd.f32 1.0, %v6736
        %v6738 = vmul.f32 %v6729, %v6729
        %v6739 = vmul.f32 %v6738, -0.00019511016
        %v6740 = vadd.f32 %v6739, 0.008332121
        %v6741 = vmul.f32 %v6738, %v6740
        %v6742 = vadd.f32 %v6741, -0.16666654
        %v6743 = vmul.f32 %v6738, %v6742
        %v6744 = vadd.f32 %v6743, 1.0
        %v6745 = vmul.f32 %v6744, %v6729
        %vm6746 = vweird.f32 %v687
        %v6747 = vadd.s32 %v6730, 3
        %v6748 = vand.u32 %v6747, 3
        %vm6749 = vcmp.lt.s32.totalorder %v6748, 2
        %vm6750 = vcmp.eq.s32.totalorder %v6748, 0
        %v6751 = vxor.u32 %v6745, 2147483648
        %v6752 = vsel %vm6750, %v6737, %v6751
        %vm6753 = vcmp.eq.s32.totalorder %v6748, 2
        %v6754 = vxor.u32 %v6737, 2147483648
        %v6755 = vsel %vm6753, %v6754, %v6745
        %v6756 = vsel %vm6749, %v6752, %v6755
        %v6757 = vsel %vm6746, nan, %v6756
        %v6758 = vand.u32 2147483647, %v688
        %vm6759 = vcmp.le.f32.partialorder %v6758, 0.7853982
        %vm6760 = vcmp.lt.s32.totalorder %v688, 0
        %v6761 = vand.u32 %v688, 2139095040
        %v6762 = vshrl.u32 %v6761, 23
        %v6763 = vsub.s32 %v6762, 127
        %v6764 = vand.u32 2147483647, %v688
        %v6765 = vand.u32 %v6764, 8388607
        %v6766 = vor.u32 %v6765, 8388608
        %v6767 = vsub.s32 0, %v6766
        %v6768 = vadd.s32 %v6763, 1
        %vm6769 = vcmp.gt.s32.totalorder %v6768, 0
        %v6770 = vsel %vm6769, %v6768, 0
        %v6771 = vshrl.u32 %v6770, 5
        %v6772 = vand.u32 %v6770, 31
        %v6773 = vsub.s32 32, %v6772
        %v6774 = vshrl.u32 683565275, %v6773
        %v6775 = vshll.u32 683565275, %v6772
        %v6776 = vshrl.u32 2475754826, %v6773
        %v6777 = vor.u32 %v6775, %v6776
        %v6778 = vshll.u32 2475754826, %v6772
        %v6779 = vshrl.u32 2131351028, %v6773
        %v6780 = vor.u32 %v6778, %v6779
        %v6781 = vshll.u32 2131351028, %v6772
        %v6782 = vshrl.u32 2102212464, %v6773
        %v6783 = vor.u32 %v6781, %v6782
        %v6784 = vshll.u32 2102212464, %v6772
        %v6785 = vshrl.u32 920167782, %v6773
        %v6786 = vor.u32 %v6784, %v6785
        %v6787 = vshll.u32 920167782, %v6772
        %v6788 = vshrl.u32 1326507024, %v6773
        %v6789 = vor.u32 %v6787, %v6788
        %vm6790 = vcmp.lt.s32.totalorder %v6771, 1
        %vm6791 = vcmp.lt.s32.totalorder %v6771, 2
        %vm6792 = vcmp.lt.s32.totalorder %v6771, 3
        %vm6793 = vcmp.lt.s32.totalorder %v6771, 4
        %v6794 = vsel %vm6790, %v6774, %v6777
        %v6795 = vsel %vm6793, %v6783, 2102212464
        %v6796 = vsel %vm6792, %v6780, %v6795
        %v6797 = vsel %vm6791, %v6794, %v6796
        %v6798 = vsel %vm6790, %v6777, %v6780
        %v6799 = vsel %vm6793, %v6786, 920167782
        %v6800 = vsel %vm6792, %v6783, %v6799
        %v6801 = vsel %vm6791, %v6798, %v6800
        %v6802 = vsel %vm6790, %v6780, %v6783
        %v6803 = vsel %vm6793, %v6789, 1326507024
        %v6804 = vsel %vm6792, %v6786, %v6803
        %v6805 = vsel %vm6791, %v6802, %v6804
        %v6806 = vshll.u32 %v6766, 8
        %v6807 = vand.u32 %v6806, 65535
        %v6808 = vshrl.u32 %v6806, 16
        %v6809 = vand.u32 %v6805, 65535
        %v6810 = vshrl.u32 %v6805, 16
        %v6811 = vmul.u32 %v6807, %v6809
        %v6812 = vmul.u32 %v6807, %v6810
        %v6813 = vmul.u32 %v6808, %v6809
        %v6814 = vmul.u32 %v6808, %v6810
        %v6815 = vshll.u32 %v6812, 16
        %v6816 = vshrl.u32 %v6812, 16
        %v6817 = vshll.u32 %v6813, 16
        %v6818 = vshrl.u32 %v6813, 16
        %vm6819 = vc.u32 %v6811, %v6815
        %v6820 = vsel %vm6819, 1, 0
        %v6821 = vadd.s32 %v6811, %v6815
        %v6822 = vadd.s32 %v6814, %v6820
        %vm6823 = vc.u32 %v6821, %v6817
        %v6824 = vsel %vm6823, 1, 0
        %v6825 = vadd.s32 %v6821, %v6817
        %v6826 = vadd.s32 %v6822, %v6824
        %v6827 = vadd.s32 %v6826, %v6816
        %v6828 = vadd.s32 %v6827, %v6818
        %v6829 = vand.u32 %v6806, 65535
        %v6830 = vshrl.u32 %v6806, 16
        %v6831 = vand.u32 %v6801, 65535
        %v6832 = vshrl.u32 %v6801, 16
        %v6833 = vmul.u32 %v6829, %v6831
        %v6834 = vmul.u32 %v6829, %v6832
        %v6835 = vmul.u32 %v6830, %v6831
        %v6836 = vmul.u32 %v6830, %v6832
        %v6837 = vshll.u32 %v6834, 16
        %v6838 = vshrl.u32 %v6834, 16
        %v6839 = vshll.u32 %v6835, 16
        %v6840 = vshrl.u32 %v6835, 16
        %vm6841 = vc.u32 %v6833, %v6837
        %v6842 = vsel %vm6841, 1, 0
        %v6843 = vadd.s32 %v6833, %v6837
        %v6844 = vadd.s32 %v6836, %v6842
        %vm6845 = vc.u32 %v6843, %v6839
        %v6846 = vsel %vm6845, 1, 0
        %v6847 = vadd.s32 %v6843, %v6839
        %v6848 = vadd.s32 %v6844, %v6846
        %v6849 = vadd.s32 %v6848, %v6838
        %v6850 = vadd.s32 %v6849, %v6840
        %v6851 = vmul.u32 %v6806, %v6797
        %v6852 = vadd.s32 %v6828, %v6847
        %vm6853 = vc.u32 %v6828, %v6847
        %v6854 = vadd.s32 %v6850, 1
        %v6855 = vsel %vm6853, %v6854, %v6850
        %v6856 = vadd.s32 %v6851, %v6855
        %v6857 = vadd.s32 %v6856, 536870912
        %v6858 = vshrl.u32 %v6857, 30
        %v6859 = vshll.u32 %v6858, 30
        %v6860 = vsub.s32 %v6856, %v6859
        %vm6861 = vcmp.lt.s32.totalorder %v6860, 0
        %v6862 = vsub.s32 0, %v6860
        %v6863 = vsel %vm6861, %v6862, %v6860
        %v6864 = vclz %v6863
        %v6865 = vsub.s32 %v6864, 2
        %vm6866 = vcmp.gt.s32.totalorder 0, %v6865
        %v6867 = vsel %vm6866, 0, %v6865
        %v6868 = vsub.s32 32, %v6867
        %v6869 = vshll.u32 %v6860, %v6867
        %v6870 = vshrl.u32 %v6852, %v6868
        %v6871 = vor.u32 %v6869, %v6870
        %v6872 = vsub.s32 4294967266, %v6867
        %v6873 = vadd.s32 %v6872, 127
        %v6874 = vshll.u32 %v6873, 23
        %v6875 = vor.u32 4788187, %v6874
        %v6876 = vand.u32 2147483647, %v6875
        %v6878 = vcvt.s32.f32 %v6871
        %v6879 = vmul.f32 %v6878, %v6876
        %v6880 = vxor.u32 %v6879, 2147483648
        %v6881 = vsel %vm6760, %v6880, %v6879
        %v6882 = vsub.s32 4, %v6858
        %v6883 = vsel %vm6760, %v6882, %v6858
        %v6884 = vsel %vm6759, %v688, %v6881
        %v6885 = vsel %vm6759, 0, %v6883
        %v6886 = vmul.f32 %v6884, %v6884
        %v6887 = vmul.f32 %v6886, -0.001358992
        %v6888 = vadd.f32 %v6887, 0.041655596
        %v6889 = vmul.f32 %v6886, %v6888
        %v6890 = vadd.f32 %v6889, -0.4999988
        %v6891 = vmul.f32 %v6886, %v6890
        %v6892 = vadd.f32 1.0, %v6891
        %v6893 = vmul.f32 %v6884, %v6884
        %v6894 = vmul.f32 %v6893, -0.00019511016
        %v6895 = vadd.f32 %v6894, 0.008332121
        %v6896 = vmul.f32 %v6893, %v6895
        %v6897 = vadd.f32 %v6896, -0.16666654
        %v6898 = vmul.f32 %v6893, %v6897
        %v6899 = vadd.f32 %v6898, 1.0
        %v6900 = vmul.f32 %v6899, %v6884
        %vm6901 = vweird.f32 %v688
        %v6902 = vadd.s32 %v6885, 3
        %v6903 = vand.u32 %v6902, 3
        %vm6904 = vcmp.lt.s32.totalorder %v6903, 2
        %vm6905 = vcmp.eq.s32.totalorder %v6903, 0
        %v6906 = vxor.u32 %v6900, 2147483648
        %v6907 = vsel %vm6905, %v6892, %v6906
        %vm6908 = vcmp.eq.s32.totalorder %v6903, 2
        %v6909 = vxor.u32 %v6892, 2147483648
        %v6910 = vsel %vm6908, %v6909, %v6900
        %v6911 = vsel %vm6904, %v6907, %v6910
        %v6912 = vsel %vm6901, nan, %v6911
        %v6913 = vand.u32 2147483647, %v689
        %vm6914 = vcmp.le.f32.partialorder %v6913, 0.7853982
        %vm6915 = vcmp.lt.s32.totalorder %v689, 0
        %v6916 = vand.u32 %v689, 2139095040
        %v6917 = vshrl.u32 %v6916, 23
        %v6918 = vsub.s32 %v6917, 127
        %v6919 = vand.u32 2147483647, %v689
        %v6920 = vand.u32 %v6919, 8388607
        %v6921 = vor.u32 %v6920, 8388608
        %v6922 = vsub.s32 0, %v6921
        %v6923 = vadd.s32 %v6918, 1
        %vm6924 = vcmp.gt.s32.totalorder %v6923, 0
        %v6925 = vsel %vm6924, %v6923, 0
        %v6926 = vshrl.u32 %v6925, 5
        %v6927 = vand.u32 %v6925, 31
        %v6928 = vsub.s32 32, %v6927
        %v6929 = vshrl.u32 683565275, %v6928
        %v6930 = vshll.u32 683565275, %v6927
        %v6931 = vshrl.u32 2475754826, %v6928
        %v6932 = vor.u32 %v6930, %v6931
        %v6933 = vshll.u32 2475754826, %v6927
        %v6934 = vshrl.u32 2131351028, %v6928
        %v6935 = vor.u32 %v6933, %v6934
        %v6936 = vshll.u32 2131351028, %v6927
        %v6937 = vshrl.u32 2102212464, %v6928
        %v6938 = vor.u32 %v6936, %v6937
        %v6939 = vshll.u32 2102212464, %v6927
        %v6940 = vshrl.u32 920167782, %v6928
        %v6941 = vor.u32 %v6939, %v6940
        %v6942 = vshll.u32 920167782, %v6927
        %v6943 = vshrl.u32 1326507024, %v6928
        %v6944 = vor.u32 %v6942, %v6943
        %vm6945 = vcmp.lt.s32.totalorder %v6926, 1
        %vm6946 = vcmp.lt.s32.totalorder %v6926, 2
        %vm6947 = vcmp.lt.s32.totalorder %v6926, 3
        %vm6948 = vcmp.lt.s32.totalorder %v6926, 4
        %v6949 = vsel %vm6945, %v6929, %v6932
        %v6950 = vsel %vm6948, %v6938, 2102212464
        %v6951 = vsel %vm6947, %v6935, %v6950
        %v6952 = vsel %vm6946, %v6949, %v6951
        %v6953 = vsel %vm6945, %v6932, %v6935
        %v6954 = vsel %vm6948, %v6941, 920167782
        %v6955 = vsel %vm6947, %v6938, %v6954
        %v6956 = vsel %vm6946, %v6953, %v6955
        %v6957 = vsel %vm6945, %v6935, %v6938
        %v6958 = vsel %vm6948, %v6944, 1326507024
        %v6959 = vsel %vm6947, %v6941, %v6958
        %v6960 = vsel %vm6946, %v6957, %v6959
        %v6961 = vshll.u32 %v6921, 8
        %v6962 = vand.u32 %v6961, 65535
        %v6963 = vshrl.u32 %v6961, 16
        %v6964 = vand.u32 %v6960, 65535
        %v6965 = vshrl.u32 %v6960, 16
        %v6966 = vmul.u32 %v6962, %v6964
        %v6967 = vmul.u32 %v6962, %v6965
        %v6968 = vmul.u32 %v6963, %v6964
        %v6969 = vmul.u32 %v6963, %v6965
        %v6970 = vshll.u32 %v6967, 16
        %v6971 = vshrl.u32 %v6967, 16
        %v6972 = vshll.u32 %v6968, 16
        %v6973 = vshrl.u32 %v6968, 16
        %vm6974 = vc.u32 %v6966, %v6970
        %v6975 = vsel %vm6974, 1, 0
        %v6976 = vadd.s32 %v6966, %v6970
        %v6977 = vadd.s32 %v6969, %v6975
        %vm6978 = vc.u32 %v6976, %v6972
        %v6979 = vsel %vm6978, 1, 0
        %v6980 = vadd.s32 %v6976, %v6972
        %v6981 = vadd.s32 %v6977, %v6979
        %v6982 = vadd.s32 %v6981, %v6971
        %v6983 = vadd.s32 %v6982, %v6973
        %v6984 = vand.u32 %v6961, 65535
        %v6985 = vshrl.u32 %v6961, 16
        %v6986 = vand.u32 %v6956, 65535
        %v6987 = vshrl.u32 %v6956, 16
        %v6988 = vmul.u32 %v6984, %v6986
        %v6989 = vmul.u32 %v6984, %v6987
        %v6990 = vmul.u32 %v6985, %v6986
        %v6991 = vmul.u32 %v6985, %v6987
        %v6992 = vshll.u32 %v6989, 16
        %v6993 = vshrl.u32 %v6989, 16
        %v6994 = vshll.u32 %v6990, 16
        %v6995 = vshrl.u32 %v6990, 16
        %vm6996 = vc.u32 %v6988, %v6992
        %v6997 = vsel %vm6996, 1, 0
        %v6998 = vadd.s32 %v6988, %v6992
        %v6999 = vadd.s32 %v6991, %v6997
        %vm7000 = vc.u32 %v6998, %v6994
        %v7001 = vsel %vm7000, 1, 0
        %v7002 = vadd.s32 %v6998, %v6994
        %v7003 = vadd.s32 %v6999, %v7001
        %v7004 = vadd.s32 %v7003, %v6993
        %v7005 = vadd.s32 %v7004, %v6995
        %v7006 = vmul.u32 %v6961, %v6952
        %v7007 = vadd.s32 %v6983, %v7002
        %vm7008 = vc.u32 %v6983, %v7002
        %v7009 = vadd.s32 %v7005, 1
        %v7010 = vsel %vm7008, %v7009, %v7005
        %v7011 = vadd.s32 %v7006, %v7010
        %v7012 = vadd.s32 %v7011, 536870912
        %v7013 = vshrl.u32 %v7012, 30
        %v7014 = vshll.u32 %v7013, 30
        %v7015 = vsub.s32 %v7011, %v7014
        %vm7016 = vcmp.lt.s32.totalorder %v7015, 0
        %v7017 = vsub.s32 0, %v7015
        %v7018 = vsel %vm7016, %v7017, %v7015
        %v7019 = vclz %v7018
        %v7020 = vsub.s32 %v7019, 2
        %vm7021 = vcmp.gt.s32.totalorder 0, %v7020
        %v7022 = vsel %vm7021, 0, %v7020
        %v7023 = vsub.s32 32, %v7022
        %v7024 = vshll.u32 %v7015, %v7022
        %v7025 = vshrl.u32 %v7007, %v7023
        %v7026 = vor.u32 %v7024, %v7025
        %v7027 = vsub.s32 4294967266, %v7022
        %v7028 = vadd.s32 %v7027, 127
        %v7029 = vshll.u32 %v7028, 23
        %v7030 = vor.u32 4788187, %v7029
        %v7031 = vand.u32 2147483647, %v7030
        %v7033 = vcvt.s32.f32 %v7026
        %v7034 = vmul.f32 %v7033, %v7031
        %v7035 = vxor.u32 %v7034, 2147483648
        %v7036 = vsel %vm6915, %v7035, %v7034
        %v7037 = vsub.s32 4, %v7013
        %v7038 = vsel %vm6915, %v7037, %v7013
        %v7039 = vsel %vm6914, %v689, %v7036
        %v7040 = vsel %vm6914, 0, %v7038
        %v7041 = vmul.f32 %v7039, %v7039
        %v7042 = vmul.f32 %v7041, -0.001358992
        %v7043 = vadd.f32 %v7042, 0.041655596
        %v7044 = vmul.f32 %v7041, %v7043
        %v7045 = vadd.f32 %v7044, -0.4999988
        %v7046 = vmul.f32 %v7041, %v7045
        %v7047 = vadd.f32 1.0, %v7046
        %v7048 = vmul.f32 %v7039, %v7039
        %v7049 = vmul.f32 %v7048, -0.00019511016
        %v7050 = vadd.f32 %v7049, 0.008332121
        %v7051 = vmul.f32 %v7048, %v7050
        %v7052 = vadd.f32 %v7051, -0.16666654
        %v7053 = vmul.f32 %v7048, %v7052
        %v7054 = vadd.f32 %v7053, 1.0
        %v7055 = vmul.f32 %v7054, %v7039
        %vm7056 = vweird.f32 %v689
        %v7057 = vadd.s32 %v7040, 3
        %v7058 = vand.u32 %v7057, 3
        %vm7059 = vcmp.lt.s32.totalorder %v7058, 2
        %vm7060 = vcmp.eq.s32.totalorder %v7058, 0
        %v7061 = vxor.u32 %v7055, 2147483648
        %v7062 = vsel %vm7060, %v7047, %v7061
        %vm7063 = vcmp.eq.s32.totalorder %v7058, 2
        %v7064 = vxor.u32 %v7047, 2147483648
        %v7065 = vsel %vm7063, %v7064, %v7055
        %v7066 = vsel %vm7059, %v7062, %v7065
        %v7067 = vsel %vm7056, nan, %v7066
        %v7068 = vand.u32 2147483647, %v690
        %vm7069 = vcmp.le.f32.partialorder %v7068, 0.7853982
        %vm7070 = vcmp.lt.s32.totalorder %v690, 0
        %v7071 = vand.u32 %v690, 2139095040
        %v7072 = vshrl.u32 %v7071, 23
        %v7073 = vsub.s32 %v7072, 127
        %v7074 = vand.u32 2147483647, %v690
        %v7075 = vand.u32 %v7074, 8388607
        %v7076 = vor.u32 %v7075, 8388608
        %v7077 = vsub.s32 0, %v7076
        %v7078 = vadd.s32 %v7073, 1
        %vm7079 = vcmp.gt.s32.totalorder %v7078, 0
        %v7080 = vsel %vm7079, %v7078, 0
        %v7081 = vshrl.u32 %v7080, 5
        %v7082 = vand.u32 %v7080, 31
        %v7083 = vsub.s32 32, %v7082
        %v7084 = vshrl.u32 683565275, %v7083
        %v7085 = vshll.u32 683565275, %v7082
        %v7086 = vshrl.u32 2475754826, %v7083
        %v7087 = vor.u32 %v7085, %v7086
        %v7088 = vshll.u32 2475754826, %v7082
        %v7089 = vshrl.u32 2131351028, %v7083
        %v7090 = vor.u32 %v7088, %v7089
        %v7091 = vshll.u32 2131351028, %v7082
        %v7092 = vshrl.u32 2102212464, %v7083
        %v7093 = vor.u32 %v7091, %v7092
        %v7094 = vshll.u32 2102212464, %v7082
        %v7095 = vshrl.u32 920167782, %v7083
        %v7096 = vor.u32 %v7094, %v7095
        %v7097 = vshll.u32 920167782, %v7082
        %v7098 = vshrl.u32 1326507024, %v7083
        %v7099 = vor.u32 %v7097, %v7098
        %vm7100 = vcmp.lt.s32.totalorder %v7081, 1
        %vm7101 = vcmp.lt.s32.totalorder %v7081, 2
        %vm7102 = vcmp.lt.s32.totalorder %v7081, 3
        %vm7103 = vcmp.lt.s32.totalorder %v7081, 4
        %v7104 = vsel %vm7100, %v7084, %v7087
        %v7105 = vsel %vm7103, %v7093, 2102212464
        %v7106 = vsel %vm7102, %v7090, %v7105
        %v7107 = vsel %vm7101, %v7104, %v7106
        %v7108 = vsel %vm7100, %v7087, %v7090
        %v7109 = vsel %vm7103, %v7096, 920167782
        %v7110 = vsel %vm7102, %v7093, %v7109
        %v7111 = vsel %vm7101, %v7108, %v7110
        %v7112 = vsel %vm7100, %v7090, %v7093
        %v7113 = vsel %vm7103, %v7099, 1326507024
        %v7114 = vsel %vm7102, %v7096, %v7113
        %v7115 = vsel %vm7101, %v7112, %v7114
        %v7116 = vshll.u32 %v7076, 8
        %v7117 = vand.u32 %v7116, 65535
        %v7118 = vshrl.u32 %v7116, 16
        %v7119 = vand.u32 %v7115, 65535
        %v7120 = vshrl.u32 %v7115, 16
        %v7121 = vmul.u32 %v7117, %v7119
        %v7122 = vmul.u32 %v7117, %v7120
        %v7123 = vmul.u32 %v7118, %v7119
        %v7124 = vmul.u32 %v7118, %v7120
        %v7125 = vshll.u32 %v7122, 16
        %v7126 = vshrl.u32 %v7122, 16
        %v7127 = vshll.u32 %v7123, 16
        %v7128 = vshrl.u32 %v7123, 16
        %vm7129 = vc.u32 %v7121, %v7125
        %v7130 = vsel %vm7129, 1, 0
        %v7131 = vadd.s32 %v7121, %v7125
        %v7132 = vadd.s32 %v7124, %v7130
        %vm7133 = vc.u32 %v7131, %v7127
        %v7134 = vsel %vm7133, 1, 0
        %v7135 = vadd.s32 %v7131, %v7127
        %v7136 = vadd.s32 %v7132, %v7134
        %v7137 = vadd.s32 %v7136, %v7126
        %v7138 = vadd.s32 %v7137, %v7128
        %v7139 = vand.u32 %v7116, 65535
        %v7140 = vshrl.u32 %v7116, 16
        %v7141 = vand.u32 %v7111, 65535
        %v7142 = vshrl.u32 %v7111, 16
        %v7143 = vmul.u32 %v7139, %v7141
        %v7144 = vmul.u32 %v7139, %v7142
        %v7145 = vmul.u32 %v7140, %v7141
        %v7146 = vmul.u32 %v7140, %v7142
        %v7147 = vshll.u32 %v7144, 16
        %v7148 = vshrl.u32 %v7144, 16
        %v7149 = vshll.u32 %v7145, 16
        %v7150 = vshrl.u32 %v7145, 16
        %vm7151 = vc.u32 %v7143, %v7147
        %v7152 = vsel %vm7151, 1, 0
        %v7153 = vadd.s32 %v7143, %v7147
        %v7154 = vadd.s32 %v7146, %v7152
        %vm7155 = vc.u32 %v7153, %v7149
        %v7156 = vsel %vm7155, 1, 0
        %v7157 = vadd.s32 %v7153, %v7149
        %v7158 = vadd.s32 %v7154, %v7156
        %v7159 = vadd.s32 %v7158, %v7148
        %v7160 = vadd.s32 %v7159, %v7150
        %v7161 = vmul.u32 %v7116, %v7107
        %v7162 = vadd.s32 %v7138, %v7157
        %vm7163 = vc.u32 %v7138, %v7157
        %v7164 = vadd.s32 %v7160, 1
        %v7165 = vsel %vm7163, %v7164, %v7160
        %v7166 = vadd.s32 %v7161, %v7165
        %v7167 = vadd.s32 %v7166, 536870912
        %v7168 = vshrl.u32 %v7167, 30
        %v7169 = vshll.u32 %v7168, 30
        %v7170 = vsub.s32 %v7166, %v7169
        %vm7171 = vcmp.lt.s32.totalorder %v7170, 0
        %v7172 = vsub.s32 0, %v7170
        %v7173 = vsel %vm7171, %v7172, %v7170
        %v7174 = vclz %v7173
        %v7175 = vsub.s32 %v7174, 2
        %vm7176 = vcmp.gt.s32.totalorder 0, %v7175
        %v7177 = vsel %vm7176, 0, %v7175
        %v7178 = vsub.s32 32, %v7177
        %v7179 = vshll.u32 %v7170, %v7177
        %v7180 = vshrl.u32 %v7162, %v7178
        %v7181 = vor.u32 %v7179, %v7180
        %v7182 = vsub.s32 4294967266, %v7177
        %v7183 = vadd.s32 %v7182, 127
        %v7184 = vshll.u32 %v7183, 23
        %v7185 = vor.u32 4788187, %v7184
        %v7186 = vand.u32 2147483647, %v7185
        %v7188 = vcvt.s32.f32 %v7181
        %v7189 = vmul.f32 %v7188, %v7186
        %v7190 = vxor.u32 %v7189, 2147483648
        %v7191 = vsel %vm7070, %v7190, %v7189
        %v7192 = vsub.s32 4, %v7168
        %v7193 = vsel %vm7070, %v7192, %v7168
        %v7194 = vsel %vm7069, %v690, %v7191
        %v7195 = vsel %vm7069, 0, %v7193
        %v7196 = vmul.f32 %v7194, %v7194
        %v7197 = vmul.f32 %v7196, -0.001358992
        %v7198 = vadd.f32 %v7197, 0.041655596
        %v7199 = vmul.f32 %v7196, %v7198
        %v7200 = vadd.f32 %v7199, -0.4999988
        %v7201 = vmul.f32 %v7196, %v7200
        %v7202 = vadd.f32 1.0, %v7201
        %v7203 = vmul.f32 %v7194, %v7194
        %v7204 = vmul.f32 %v7203, -0.00019511016
        %v7205 = vadd.f32 %v7204, 0.008332121
        %v7206 = vmul.f32 %v7203, %v7205
        %v7207 = vadd.f32 %v7206, -0.16666654
        %v7208 = vmul.f32 %v7203, %v7207
        %v7209 = vadd.f32 %v7208, 1.0
        %v7210 = vmul.f32 %v7209, %v7194
        %vm7211 = vweird.f32 %v690
        %v7212 = vadd.s32 %v7195, 3
        %v7213 = vand.u32 %v7212, 3
        %vm7214 = vcmp.lt.s32.totalorder %v7213, 2
        %vm7215 = vcmp.eq.s32.totalorder %v7213, 0
        %v7216 = vxor.u32 %v7210, 2147483648
        %v7217 = vsel %vm7215, %v7202, %v7216
        %vm7218 = vcmp.eq.s32.totalorder %v7213, 2
        %v7219 = vxor.u32 %v7202, 2147483648
        %v7220 = vsel %vm7218, %v7219, %v7210
        %v7221 = vsel %vm7214, %v7217, %v7220
        %v7222 = vsel %vm7211, nan, %v7221
        %v7223 = vand.u32 2147483647, %v691
        %vm7224 = vcmp.le.f32.partialorder %v7223, 0.7853982
        %vm7225 = vcmp.lt.s32.totalorder %v691, 0
        %v7226 = vand.u32 %v691, 2139095040
        %v7227 = vshrl.u32 %v7226, 23
        %v7228 = vsub.s32 %v7227, 127
        %v7229 = vand.u32 2147483647, %v691
        %v7230 = vand.u32 %v7229, 8388607
        %v7231 = vor.u32 %v7230, 8388608
        %v7232 = vsub.s32 0, %v7231
        %v7233 = vadd.s32 %v7228, 1
        %vm7234 = vcmp.gt.s32.totalorder %v7233, 0
        %v7235 = vsel %vm7234, %v7233, 0
        %v7236 = vshrl.u32 %v7235, 5
        %v7237 = vand.u32 %v7235, 31
        %v7238 = vsub.s32 32, %v7237
        %v7239 = vshrl.u32 683565275, %v7238
        %v7240 = vshll.u32 683565275, %v7237
        %v7241 = vshrl.u32 2475754826, %v7238
        %v7242 = vor.u32 %v7240, %v7241
        %v7243 = vshll.u32 2475754826, %v7237
        %v7244 = vshrl.u32 2131351028, %v7238
        %v7245 = vor.u32 %v7243, %v7244
        %v7246 = vshll.u32 2131351028, %v7237
        %v7247 = vshrl.u32 2102212464, %v7238
        %v7248 = vor.u32 %v7246, %v7247
        %v7249 = vshll.u32 2102212464, %v7237
        %v7250 = vshrl.u32 920167782, %v7238
        %v7251 = vor.u32 %v7249, %v7250
        %v7252 = vshll.u32 920167782, %v7237
        %v7253 = vshrl.u32 1326507024, %v7238
        %v7254 = vor.u32 %v7252, %v7253
        %vm7255 = vcmp.lt.s32.totalorder %v7236, 1
        %vm7256 = vcmp.lt.s32.totalorder %v7236, 2
        %vm7257 = vcmp.lt.s32.totalorder %v7236, 3
        %vm7258 = vcmp.lt.s32.totalorder %v7236, 4
        %v7259 = vsel %vm7255, %v7239, %v7242
        %v7260 = vsel %vm7258, %v7248, 2102212464
        %v7261 = vsel %vm7257, %v7245, %v7260
        %v7262 = vsel %vm7256, %v7259, %v7261
        %v7263 = vsel %vm7255, %v7242, %v7245
        %v7264 = vsel %vm7258, %v7251, 920167782
        %v7265 = vsel %vm7257, %v7248, %v7264
        %v7266 = vsel %vm7256, %v7263, %v7265
        %v7267 = vsel %vm7255, %v7245, %v7248
        %v7268 = vsel %vm7258, %v7254, 1326507024
        %v7269 = vsel %vm7257, %v7251, %v7268
        %v7270 = vsel %vm7256, %v7267, %v7269
        %v7271 = vshll.u32 %v7231, 8
        %v7272 = vand.u32 %v7271, 65535
        %v7273 = vshrl.u32 %v7271, 16
        %v7274 = vand.u32 %v7270, 65535
        %v7275 = vshrl.u32 %v7270, 16
        %v7276 = vmul.u32 %v7272, %v7274
        %v7277 = vmul.u32 %v7272, %v7275
        %v7278 = vmul.u32 %v7273, %v7274
        %v7279 = vmul.u32 %v7273, %v7275
        %v7280 = vshll.u32 %v7277, 16
        %v7281 = vshrl.u32 %v7277, 16
        %v7282 = vshll.u32 %v7278, 16
        %v7283 = vshrl.u32 %v7278, 16
        %vm7284 = vc.u32 %v7276, %v7280
        %v7285 = vsel %vm7284, 1, 0
        %v7286 = vadd.s32 %v7276, %v7280
        %v7287 = vadd.s32 %v7279, %v7285
        %vm7288 = vc.u32 %v7286, %v7282
        %v7289 = vsel %vm7288, 1, 0
        %v7290 = vadd.s32 %v7286, %v7282
        %v7291 = vadd.s32 %v7287, %v7289
        %v7292 = vadd.s32 %v7291, %v7281
        %v7293 = vadd.s32 %v7292, %v7283
        %v7294 = vand.u32 %v7271, 65535
        %v7295 = vshrl.u32 %v7271, 16
        %v7296 = vand.u32 %v7266, 65535
        %v7297 = vshrl.u32 %v7266, 16
        %v7298 = vmul.u32 %v7294, %v7296
        %v7299 = vmul.u32 %v7294, %v7297
        %v7300 = vmul.u32 %v7295, %v7296
        %v7301 = vmul.u32 %v7295, %v7297
        %v7302 = vshll.u32 %v7299, 16
        %v7303 = vshrl.u32 %v7299, 16
        %v7304 = vshll.u32 %v7300, 16
        %v7305 = vshrl.u32 %v7300, 16
        %vm7306 = vc.u32 %v7298, %v7302
        %v7307 = vsel %vm7306, 1, 0
        %v7308 = vadd.s32 %v7298, %v7302
        %v7309 = vadd.s32 %v7301, %v7307
        %vm7310 = vc.u32 %v7308, %v7304
        %v7311 = vsel %vm7310, 1, 0
        %v7312 = vadd.s32 %v7308, %v7304
        %v7313 = vadd.s32 %v7309, %v7311
        %v7314 = vadd.s32 %v7313, %v7303
        %v7315 = vadd.s32 %v7314, %v7305
        %v7316 = vmul.u32 %v7271, %v7262
        %v7317 = vadd.s32 %v7293, %v7312
        %vm7318 = vc.u32 %v7293, %v7312
        %v7319 = vadd.s32 %v7315, 1
        %v7320 = vsel %vm7318, %v7319, %v7315
        %v7321 = vadd.s32 %v7316, %v7320
        %v7322 = vadd.s32 %v7321, 536870912
        %v7323 = vshrl.u32 %v7322, 30
        %v7324 = vshll.u32 %v7323, 30
        %v7325 = vsub.s32 %v7321, %v7324
        %vm7326 = vcmp.lt.s32.totalorder %v7325, 0
        %v7327 = vsub.s32 0, %v7325
        %v7328 = vsel %vm7326, %v7327, %v7325
        %v7329 = vclz %v7328
        %v7330 = vsub.s32 %v7329, 2
        %vm7331 = vcmp.gt.s32.totalorder 0, %v7330
        %v7332 = vsel %vm7331, 0, %v7330
        %v7333 = vsub.s32 32, %v7332
        %v7334 = vshll.u32 %v7325, %v7332
        %v7335 = vshrl.u32 %v7317, %v7333
        %v7336 = vor.u32 %v7334, %v7335
        %v7337 = vsub.s32 4294967266, %v7332
        %v7338 = vadd.s32 %v7337, 127
        %v7339 = vshll.u32 %v7338, 23
        %v7340 = vor.u32 4788187, %v7339
        %v7341 = vand.u32 2147483647, %v7340
        %v7343 = vcvt.s32.f32 %v7336
        %v7344 = vmul.f32 %v7343, %v7341
        %v7345 = vxor.u32 %v7344, 2147483648
        %v7346 = vsel %vm7225, %v7345, %v7344
        %v7347 = vsub.s32 4, %v7323
        %v7348 = vsel %vm7225, %v7347, %v7323
        %v7349 = vsel %vm7224, %v691, %v7346
        %v7350 = vsel %vm7224, 0, %v7348
        %v7351 = vmul.f32 %v7349, %v7349
        %v7352 = vmul.f32 %v7351, -0.001358992
        %v7353 = vadd.f32 %v7352, 0.041655596
        %v7354 = vmul.f32 %v7351, %v7353
        %v7355 = vadd.f32 %v7354, -0.4999988
        %v7356 = vmul.f32 %v7351, %v7355
        %v7357 = vadd.f32 1.0, %v7356
        %v7358 = vmul.f32 %v7349, %v7349
        %v7359 = vmul.f32 %v7358, -0.00019511016
        %v7360 = vadd.f32 %v7359, 0.008332121
        %v7361 = vmul.f32 %v7358, %v7360
        %v7362 = vadd.f32 %v7361, -0.16666654
        %v7363 = vmul.f32 %v7358, %v7362
        %v7364 = vadd.f32 %v7363, 1.0
        %v7365 = vmul.f32 %v7364, %v7349
        %vm7366 = vweird.f32 %v691
        %v7367 = vadd.s32 %v7350, 3
        %v7368 = vand.u32 %v7367, 3
        %vm7369 = vcmp.lt.s32.totalorder %v7368, 2
        %vm7370 = vcmp.eq.s32.totalorder %v7368, 0
        %v7371 = vxor.u32 %v7365, 2147483648
        %v7372 = vsel %vm7370, %v7357, %v7371
        %vm7373 = vcmp.eq.s32.totalorder %v7368, 2
        %v7374 = vxor.u32 %v7357, 2147483648
        %v7375 = vsel %vm7373, %v7374, %v7365
        %v7376 = vsel %vm7369, %v7372, %v7375
        %v7377 = vsel %vm7366, nan, %v7376
        %v7378 = vand.u32 2147483647, %v692
        %vm7379 = vcmp.le.f32.partialorder %v7378, 0.7853982
        %vm7380 = vcmp.lt.s32.totalorder %v692, 0
        %v7381 = vand.u32 %v692, 2139095040
        %v7382 = vshrl.u32 %v7381, 23
        %v7383 = vsub.s32 %v7382, 127
        %v7384 = vand.u32 2147483647, %v692
        %v7385 = vand.u32 %v7384, 8388607
        %v7386 = vor.u32 %v7385, 8388608
        %v7387 = vsub.s32 0, %v7386
        %v7388 = vadd.s32 %v7383, 1
        %vm7389 = vcmp.gt.s32.totalorder %v7388, 0
        %v7390 = vsel %vm7389, %v7388, 0
        %v7391 = vshrl.u32 %v7390, 5
        %v7392 = vand.u32 %v7390, 31
        %v7393 = vsub.s32 32, %v7392
        %v7394 = vshrl.u32 683565275, %v7393
        %v7395 = vshll.u32 683565275, %v7392
        %v7396 = vshrl.u32 2475754826, %v7393
        %v7397 = vor.u32 %v7395, %v7396
        %v7398 = vshll.u32 2475754826, %v7392
        %v7399 = vshrl.u32 2131351028, %v7393
        %v7400 = vor.u32 %v7398, %v7399
        %v7401 = vshll.u32 2131351028, %v7392
        %v7402 = vshrl.u32 2102212464, %v7393
        %v7403 = vor.u32 %v7401, %v7402
        %v7404 = vshll.u32 2102212464, %v7392
        %v7405 = vshrl.u32 920167782, %v7393
        %v7406 = vor.u32 %v7404, %v7405
        %v7407 = vshll.u32 920167782, %v7392
        %v7408 = vshrl.u32 1326507024, %v7393
        %v7409 = vor.u32 %v7407, %v7408
        %vm7410 = vcmp.lt.s32.totalorder %v7391, 1
        %vm7411 = vcmp.lt.s32.totalorder %v7391, 2
        %vm7412 = vcmp.lt.s32.totalorder %v7391, 3
        %vm7413 = vcmp.lt.s32.totalorder %v7391, 4
        %v7414 = vsel %vm7410, %v7394, %v7397
        %v7415 = vsel %vm7413, %v7403, 2102212464
        %v7416 = vsel %vm7412, %v7400, %v7415
        %v7417 = vsel %vm7411, %v7414, %v7416
        %v7418 = vsel %vm7410, %v7397, %v7400
        %v7419 = vsel %vm7413, %v7406, 920167782
        %v7420 = vsel %vm7412, %v7403, %v7419
        %v7421 = vsel %vm7411, %v7418, %v7420
        %v7422 = vsel %vm7410, %v7400, %v7403
        %v7423 = vsel %vm7413, %v7409, 1326507024
        %v7424 = vsel %vm7412, %v7406, %v7423
        %v7425 = vsel %vm7411, %v7422, %v7424
        %v7426 = vshll.u32 %v7386, 8
        %v7427 = vand.u32 %v7426, 65535
        %v7428 = vshrl.u32 %v7426, 16
        %v7429 = vand.u32 %v7425, 65535
        %v7430 = vshrl.u32 %v7425, 16
        %v7431 = vmul.u32 %v7427, %v7429
        %v7432 = vmul.u32 %v7427, %v7430
        %v7433 = vmul.u32 %v7428, %v7429
        %v7434 = vmul.u32 %v7428, %v7430
        %v7435 = vshll.u32 %v7432, 16
        %v7436 = vshrl.u32 %v7432, 16
        %v7437 = vshll.u32 %v7433, 16
        %v7438 = vshrl.u32 %v7433, 16
        %vm7439 = vc.u32 %v7431, %v7435
        %v7440 = vsel %vm7439, 1, 0
        %v7441 = vadd.s32 %v7431, %v7435
        %v7442 = vadd.s32 %v7434, %v7440
        %vm7443 = vc.u32 %v7441, %v7437
        %v7444 = vsel %vm7443, 1, 0
        %v7445 = vadd.s32 %v7441, %v7437
        %v7446 = vadd.s32 %v7442, %v7444
        %v7447 = vadd.s32 %v7446, %v7436
        %v7448 = vadd.s32 %v7447, %v7438
        %v7449 = vand.u32 %v7426, 65535
        %v7450 = vshrl.u32 %v7426, 16
        %v7451 = vand.u32 %v7421, 65535
        %v7452 = vshrl.u32 %v7421, 16
        %v7453 = vmul.u32 %v7449, %v7451
        %v7454 = vmul.u32 %v7449, %v7452
        %v7455 = vmul.u32 %v7450, %v7451
        %v7456 = vmul.u32 %v7450, %v7452
        %v7457 = vshll.u32 %v7454, 16
        %v7458 = vshrl.u32 %v7454, 16
        %v7459 = vshll.u32 %v7455, 16
        %v7460 = vshrl.u32 %v7455, 16
        %vm7461 = vc.u32 %v7453, %v7457
        %v7462 = vsel %vm7461, 1, 0
        %v7463 = vadd.s32 %v7453, %v7457
        %v7464 = vadd.s32 %v7456, %v7462
        %vm7465 = vc.u32 %v7463, %v7459
        %v7466 = vsel %vm7465, 1, 0
        %v7467 = vadd.s32 %v7463, %v7459
        %v7468 = vadd.s32 %v7464, %v7466
        %v7469 = vadd.s32 %v7468, %v7458
        %v7470 = vadd.s32 %v7469, %v7460
        %v7471 = vmul.u32 %v7426, %v7417
        %v7472 = vadd.s32 %v7448, %v7467
        %vm7473 = vc.u32 %v7448, %v7467
        %v7474 = vadd.s32 %v7470, 1
        %v7475 = vsel %vm7473, %v7474, %v7470
        %v7476 = vadd.s32 %v7471, %v7475
        %v7477 = vadd.s32 %v7476, 536870912
        %v7478 = vshrl.u32 %v7477, 30
        %v7479 = vshll.u32 %v7478, 30
        %v7480 = vsub.s32 %v7476, %v7479
        %vm7481 = vcmp.lt.s32.totalorder %v7480, 0
        %v7482 = vsub.s32 0, %v7480
        %v7483 = vsel %vm7481, %v7482, %v7480
        %v7484 = vclz %v7483
        %v7485 = vsub.s32 %v7484, 2
        %vm7486 = vcmp.gt.s32.totalorder 0, %v7485
        %v7487 = vsel %vm7486, 0, %v7485
        %v7488 = vsub.s32 32, %v7487
        %v7489 = vshll.u32 %v7480, %v7487
        %v7490 = vshrl.u32 %v7472, %v7488
        %v7491 = vor.u32 %v7489, %v7490
        %v7492 = vsub.s32 4294967266, %v7487
        %v7493 = vadd.s32 %v7492, 127
        %v7494 = vshll.u32 %v7493, 23
        %v7495 = vor.u32 4788187, %v7494
        %v7496 = vand.u32 2147483647, %v7495
        %v7498 = vcvt.s32.f32 %v7491
        %v7499 = vmul.f32 %v7498, %v7496
        %v7500 = vxor.u32 %v7499, 2147483648
        %v7501 = vsel %vm7380, %v7500, %v7499
        %v7502 = vsub.s32 4, %v7478
        %v7503 = vsel %vm7380, %v7502, %v7478
        %v7504 = vsel %vm7379, %v692, %v7501
        %v7505 = vsel %vm7379, 0, %v7503
        %v7506 = vmul.f32 %v7504, %v7504
        %v7507 = vmul.f32 %v7506, -0.001358992
        %v7508 = vadd.f32 %v7507, 0.041655596
        %v7509 = vmul.f32 %v7506, %v7508
        %v7510 = vadd.f32 %v7509, -0.4999988
        %v7511 = vmul.f32 %v7506, %v7510
        %v7512 = vadd.f32 1.0, %v7511
        %v7513 = vmul.f32 %v7504, %v7504
        %v7514 = vmul.f32 %v7513, -0.00019511016
        %v7515 = vadd.f32 %v7514, 0.008332121
        %v7516 = vmul.f32 %v7513, %v7515
        %v7517 = vadd.f32 %v7516, -0.16666654
        %v7518 = vmul.f32 %v7513, %v7517
        %v7519 = vadd.f32 %v7518, 1.0
        %v7520 = vmul.f32 %v7519, %v7504
        %vm7521 = vweird.f32 %v692
        %v7522 = vadd.s32 %v7505, 3
        %v7523 = vand.u32 %v7522, 3
        %vm7524 = vcmp.lt.s32.totalorder %v7523, 2
        %vm7525 = vcmp.eq.s32.totalorder %v7523, 0
        %v7526 = vxor.u32 %v7520, 2147483648
        %v7527 = vsel %vm7525, %v7512, %v7526
        %vm7528 = vcmp.eq.s32.totalorder %v7523, 2
        %v7529 = vxor.u32 %v7512, 2147483648
        %v7530 = vsel %vm7528, %v7529, %v7520
        %v7531 = vsel %vm7524, %v7527, %v7530
        %v7532 = vsel %vm7521, nan, %v7531
        %v7533 = vand.u32 2147483647, %v693
        %vm7534 = vcmp.le.f32.partialorder %v7533, 0.7853982
        %vm7535 = vcmp.lt.s32.totalorder %v693, 0
        %v7536 = vand.u32 %v693, 2139095040
        %v7537 = vshrl.u32 %v7536, 23
        %v7538 = vsub.s32 %v7537, 127
        %v7539 = vand.u32 2147483647, %v693
        %v7540 = vand.u32 %v7539, 8388607
        %v7541 = vor.u32 %v7540, 8388608
        %v7542 = vsub.s32 0, %v7541
        %v7543 = vadd.s32 %v7538, 1
        %vm7544 = vcmp.gt.s32.totalorder %v7543, 0
        %v7545 = vsel %vm7544, %v7543, 0
        %v7546 = vshrl.u32 %v7545, 5
        %v7547 = vand.u32 %v7545, 31
        %v7548 = vsub.s32 32, %v7547
        %v7549 = vshrl.u32 683565275, %v7548
        %v7550 = vshll.u32 683565275, %v7547
        %v7551 = vshrl.u32 2475754826, %v7548
        %v7552 = vor.u32 %v7550, %v7551
        %v7553 = vshll.u32 2475754826, %v7547
        %v7554 = vshrl.u32 2131351028, %v7548
        %v7555 = vor.u32 %v7553, %v7554
        %v7556 = vshll.u32 2131351028, %v7547
        %v7557 = vshrl.u32 2102212464, %v7548
        %v7558 = vor.u32 %v7556, %v7557
        %v7559 = vshll.u32 2102212464, %v7547
        %v7560 = vshrl.u32 920167782, %v7548
        %v7561 = vor.u32 %v7559, %v7560
        %v7562 = vshll.u32 920167782, %v7547
        %v7563 = vshrl.u32 1326507024, %v7548
        %v7564 = vor.u32 %v7562, %v7563
        %vm7565 = vcmp.lt.s32.totalorder %v7546, 1
        %vm7566 = vcmp.lt.s32.totalorder %v7546, 2
        %vm7567 = vcmp.lt.s32.totalorder %v7546, 3
        %vm7568 = vcmp.lt.s32.totalorder %v7546, 4
        %v7569 = vsel %vm7565, %v7549, %v7552
        %v7570 = vsel %vm7568, %v7558, 2102212464
        %v7571 = vsel %vm7567, %v7555, %v7570
        %v7572 = vsel %vm7566, %v7569, %v7571
        %v7573 = vsel %vm7565, %v7552, %v7555
        %v7574 = vsel %vm7568, %v7561, 920167782
        %v7575 = vsel %vm7567, %v7558, %v7574
        %v7576 = vsel %vm7566, %v7573, %v7575
        %v7577 = vsel %vm7565, %v7555, %v7558
        %v7578 = vsel %vm7568, %v7564, 1326507024
        %v7579 = vsel %vm7567, %v7561, %v7578
        %v7580 = vsel %vm7566, %v7577, %v7579
        %v7581 = vshll.u32 %v7541, 8
        %v7582 = vand.u32 %v7581, 65535
        %v7583 = vshrl.u32 %v7581, 16
        %v7584 = vand.u32 %v7580, 65535
        %v7585 = vshrl.u32 %v7580, 16
        %v7586 = vmul.u32 %v7582, %v7584
        %v7587 = vmul.u32 %v7582, %v7585
        %v7588 = vmul.u32 %v7583, %v7584
        %v7589 = vmul.u32 %v7583, %v7585
        %v7590 = vshll.u32 %v7587, 16
        %v7591 = vshrl.u32 %v7587, 16
        %v7592 = vshll.u32 %v7588, 16
        %v7593 = vshrl.u32 %v7588, 16
        %vm7594 = vc.u32 %v7586, %v7590
        %v7595 = vsel %vm7594, 1, 0
        %v7596 = vadd.s32 %v7586, %v7590
        %v7597 = vadd.s32 %v7589, %v7595
        %vm7598 = vc.u32 %v7596, %v7592
        %v7599 = vsel %vm7598, 1, 0
        %v7600 = vadd.s32 %v7596, %v7592
        %v7601 = vadd.s32 %v7597, %v7599
        %v7602 = vadd.s32 %v7601, %v7591
        %v7603 = vadd.s32 %v7602, %v7593
        %v7604 = vand.u32 %v7581, 65535
        %v7605 = vshrl.u32 %v7581, 16
        %v7606 = vand.u32 %v7576, 65535
        %v7607 = vshrl.u32 %v7576, 16
        %v7608 = vmul.u32 %v7604, %v7606
        %v7609 = vmul.u32 %v7604, %v7607
        %v7610 = vmul.u32 %v7605, %v7606
        %v7611 = vmul.u32 %v7605, %v7607
        %v7612 = vshll.u32 %v7609, 16
        %v7613 = vshrl.u32 %v7609, 16
        %v7614 = vshll.u32 %v7610, 16
        %v7615 = vshrl.u32 %v7610, 16
        %vm7616 = vc.u32 %v7608, %v7612
        %v7617 = vsel %vm7616, 1, 0
        %v7618 = vadd.s32 %v7608, %v7612
        %v7619 = vadd.s32 %v7611, %v7617
        %vm7620 = vc.u32 %v7618, %v7614
        %v7621 = vsel %vm7620, 1, 0
        %v7622 = vadd.s32 %v7618, %v7614
        %v7623 = vadd.s32 %v7619, %v7621
        %v7624 = vadd.s32 %v7623, %v7613
        %v7625 = vadd.s32 %v7624, %v7615
        %v7626 = vmul.u32 %v7581, %v7572
        %v7627 = vadd.s32 %v7603, %v7622
        %vm7628 = vc.u32 %v7603, %v7622
        %v7629 = vadd.s32 %v7625, 1
        %v7630 = vsel %vm7628, %v7629, %v7625
        %v7631 = vadd.s32 %v7626, %v7630
        %v7632 = vadd.s32 %v7631, 536870912
        %v7633 = vshrl.u32 %v7632, 30
        %v7634 = vshll.u32 %v7633, 30
        %v7635 = vsub.s32 %v7631, %v7634
        %vm7636 = vcmp.lt.s32.totalorder %v7635, 0
        %v7637 = vsub.s32 0, %v7635
        %v7638 = vsel %vm7636, %v7637, %v7635
        %v7639 = vclz %v7638
        %v7640 = vsub.s32 %v7639, 2
        %vm7641 = vcmp.gt.s32.totalorder 0, %v7640
        %v7642 = vsel %vm7641, 0, %v7640
        %v7643 = vsub.s32 32, %v7642
        %v7644 = vshll.u32 %v7635, %v7642
        %v7645 = vshrl.u32 %v7627, %v7643
        %v7646 = vor.u32 %v7644, %v7645
        %v7647 = vsub.s32 4294967266, %v7642
        %v7648 = vadd.s32 %v7647, 127
        %v7649 = vshll.u32 %v7648, 23
        %v7650 = vor.u32 4788187, %v7649
        %v7651 = vand.u32 2147483647, %v7650
        %v7653 = vcvt.s32.f32 %v7646
        %v7654 = vmul.f32 %v7653, %v7651
        %v7655 = vxor.u32 %v7654, 2147483648
        %v7656 = vsel %vm7535, %v7655, %v7654
        %v7657 = vsub.s32 4, %v7633
        %v7658 = vsel %vm7535, %v7657, %v7633
        %v7659 = vsel %vm7534, %v693, %v7656
        %v7660 = vsel %vm7534, 0, %v7658
        %v7661 = vmul.f32 %v7659, %v7659
        %v7662 = vmul.f32 %v7661, -0.001358992
        %v7663 = vadd.f32 %v7662, 0.041655596
        %v7664 = vmul.f32 %v7661, %v7663
        %v7665 = vadd.f32 %v7664, -0.4999988
        %v7666 = vmul.f32 %v7661, %v7665
        %v7667 = vadd.f32 1.0, %v7666
        %v7668 = vmul.f32 %v7659, %v7659
        %v7669 = vmul.f32 %v7668, -0.00019511016
        %v7670 = vadd.f32 %v7669, 0.008332121
        %v7671 = vmul.f32 %v7668, %v7670
        %v7672 = vadd.f32 %v7671, -0.16666654
        %v7673 = vmul.f32 %v7668, %v7672
        %v7674 = vadd.f32 %v7673, 1.0
        %v7675 = vmul.f32 %v7674, %v7659
        %vm7676 = vweird.f32 %v693
        %v7677 = vadd.s32 %v7660, 3
        %v7678 = vand.u32 %v7677, 3
        %vm7679 = vcmp.lt.s32.totalorder %v7678, 2
        %vm7680 = vcmp.eq.s32.totalorder %v7678, 0
        %v7681 = vxor.u32 %v7675, 2147483648
        %v7682 = vsel %vm7680, %v7667, %v7681
        %vm7683 = vcmp.eq.s32.totalorder %v7678, 2
        %v7684 = vxor.u32 %v7667, 2147483648
        %v7685 = vsel %vm7683, %v7684, %v7675
        %v7686 = vsel %vm7679, %v7682, %v7685
        %v7687 = vsel %vm7676, nan, %v7686
        %v7688 = vand.u32 2147483647, %v694
        %vm7689 = vcmp.le.f32.partialorder %v7688, 0.7853982
        %vm7690 = vcmp.lt.s32.totalorder %v694, 0
        %v7691 = vand.u32 %v694, 2139095040
        %v7692 = vshrl.u32 %v7691, 23
        %v7693 = vsub.s32 %v7692, 127
        %v7694 = vand.u32 2147483647, %v694
        %v7695 = vand.u32 %v7694, 8388607
        %v7696 = vor.u32 %v7695, 8388608
        %v7697 = vsub.s32 0, %v7696
        %v7698 = vadd.s32 %v7693, 1
        %vm7699 = vcmp.gt.s32.totalorder %v7698, 0
        %v7700 = vsel %vm7699, %v7698, 0
        %v7701 = vshrl.u32 %v7700, 5
        %v7702 = vand.u32 %v7700, 31
        %v7703 = vsub.s32 32, %v7702
        %v7704 = vshrl.u32 683565275, %v7703
        %v7705 = vshll.u32 683565275, %v7702
        %v7706 = vshrl.u32 2475754826, %v7703
        %v7707 = vor.u32 %v7705, %v7706
        %v7708 = vshll.u32 2475754826, %v7702
        %v7709 = vshrl.u32 2131351028, %v7703
        %v7710 = vor.u32 %v7708, %v7709
        %v7711 = vshll.u32 2131351028, %v7702
        %v7712 = vshrl.u32 2102212464, %v7703
        %v7713 = vor.u32 %v7711, %v7712
        %v7714 = vshll.u32 2102212464, %v7702
        %v7715 = vshrl.u32 920167782, %v7703
        %v7716 = vor.u32 %v7714, %v7715
        %v7717 = vshll.u32 920167782, %v7702
        %v7718 = vshrl.u32 1326507024, %v7703
        %v7719 = vor.u32 %v7717, %v7718
        %vm7720 = vcmp.lt.s32.totalorder %v7701, 1
        %vm7721 = vcmp.lt.s32.totalorder %v7701, 2
        %vm7722 = vcmp.lt.s32.totalorder %v7701, 3
        %vm7723 = vcmp.lt.s32.totalorder %v7701, 4
        %v7724 = vsel %vm7720, %v7704, %v7707
        %v7725 = vsel %vm7723, %v7713, 2102212464
        %v7726 = vsel %vm7722, %v7710, %v7725
        %v7727 = vsel %vm7721, %v7724, %v7726
        %v7728 = vsel %vm7720, %v7707, %v7710
        %v7729 = vsel %vm7723, %v7716, 920167782
        %v7730 = vsel %vm7722, %v7713, %v7729
        %v7731 = vsel %vm7721, %v7728, %v7730
        %v7732 = vsel %vm7720, %v7710, %v7713
        %v7733 = vsel %vm7723, %v7719, 1326507024
        %v7734 = vsel %vm7722, %v7716, %v7733
        %v7735 = vsel %vm7721, %v7732, %v7734
        %v7736 = vshll.u32 %v7696, 8
        %v7737 = vand.u32 %v7736, 65535
        %v7738 = vshrl.u32 %v7736, 16
        %v7739 = vand.u32 %v7735, 65535
        %v7740 = vshrl.u32 %v7735, 16
        %v7741 = vmul.u32 %v7737, %v7739
        %v7742 = vmul.u32 %v7737, %v7740
        %v7743 = vmul.u32 %v7738, %v7739
        %v7744 = vmul.u32 %v7738, %v7740
        %v7745 = vshll.u32 %v7742, 16
        %v7746 = vshrl.u32 %v7742, 16
        %v7747 = vshll.u32 %v7743, 16
        %v7748 = vshrl.u32 %v7743, 16
        %vm7749 = vc.u32 %v7741, %v7745
        %v7750 = vsel %vm7749, 1, 0
        %v7751 = vadd.s32 %v7741, %v7745
        %v7752 = vadd.s32 %v7744, %v7750
        %vm7753 = vc.u32 %v7751, %v7747
        %v7754 = vsel %vm7753, 1, 0
        %v7755 = vadd.s32 %v7751, %v7747
        %v7756 = vadd.s32 %v7752, %v7754
        %v7757 = vadd.s32 %v7756, %v7746
        %v7758 = vadd.s32 %v7757, %v7748
        %v7759 = vand.u32 %v7736, 65535
        %v7760 = vshrl.u32 %v7736, 16
        %v7761 = vand.u32 %v7731, 65535
        %v7762 = vshrl.u32 %v7731, 16
        %v7763 = vmul.u32 %v7759, %v7761
        %v7764 = vmul.u32 %v7759, %v7762
        %v7765 = vmul.u32 %v7760, %v7761
        %v7766 = vmul.u32 %v7760, %v7762
        %v7767 = vshll.u32 %v7764, 16
        %v7768 = vshrl.u32 %v7764, 16
        %v7769 = vshll.u32 %v7765, 16
        %v7770 = vshrl.u32 %v7765, 16
        %vm7771 = vc.u32 %v7763, %v7767
        %v7772 = vsel %vm7771, 1, 0
        %v7773 = vadd.s32 %v7763, %v7767
        %v7774 = vadd.s32 %v7766, %v7772
        %vm7775 = vc.u32 %v7773, %v7769
        %v7776 = vsel %vm7775, 1, 0
        %v7777 = vadd.s32 %v7773, %v7769
        %v7778 = vadd.s32 %v7774, %v7776
        %v7779 = vadd.s32 %v7778, %v7768
        %v7780 = vadd.s32 %v7779, %v7770
        %v7781 = vmul.u32 %v7736, %v7727
        %v7782 = vadd.s32 %v7758, %v7777
        %vm7783 = vc.u32 %v7758, %v7777
        %v7784 = vadd.s32 %v7780, 1
        %v7785 = vsel %vm7783, %v7784, %v7780
        %v7786 = vadd.s32 %v7781, %v7785
        %v7787 = vadd.s32 %v7786, 536870912
        %v7788 = vshrl.u32 %v7787, 30
        %v7789 = vshll.u32 %v7788, 30
        %v7790 = vsub.s32 %v7786, %v7789
        %vm7791 = vcmp.lt.s32.totalorder %v7790, 0
        %v7792 = vsub.s32 0, %v7790
        %v7793 = vsel %vm7791, %v7792, %v7790
        %v7794 = vclz %v7793
        %v7795 = vsub.s32 %v7794, 2
        %vm7796 = vcmp.gt.s32.totalorder 0, %v7795
        %v7797 = vsel %vm7796, 0, %v7795
        %v7798 = vsub.s32 32, %v7797
        %v7799 = vshll.u32 %v7790, %v7797
        %v7800 = vshrl.u32 %v7782, %v7798
        %v7801 = vor.u32 %v7799, %v7800
        %v7802 = vsub.s32 4294967266, %v7797
        %v7803 = vadd.s32 %v7802, 127
        %v7804 = vshll.u32 %v7803, 23
        %v7805 = vor.u32 4788187, %v7804
        %v7806 = vand.u32 2147483647, %v7805
        %v7808 = vcvt.s32.f32 %v7801
        %v7809 = vmul.f32 %v7808, %v7806
        %v7810 = vxor.u32 %v7809, 2147483648
        %v7811 = vsel %vm7690, %v7810, %v7809
        %v7812 = vsub.s32 4, %v7788
        %v7813 = vsel %vm7690, %v7812, %v7788
        %v7814 = vsel %vm7689, %v694, %v7811
        %v7815 = vsel %vm7689, 0, %v7813
        %v7816 = vmul.f32 %v7814, %v7814
        %v7817 = vmul.f32 %v7816, -0.001358992
        %v7818 = vadd.f32 %v7817, 0.041655596
        %v7819 = vmul.f32 %v7816, %v7818
        %v7820 = vadd.f32 %v7819, -0.4999988
        %v7821 = vmul.f32 %v7816, %v7820
        %v7822 = vadd.f32 1.0, %v7821
        %v7823 = vmul.f32 %v7814, %v7814
        %v7824 = vmul.f32 %v7823, -0.00019511016
        %v7825 = vadd.f32 %v7824, 0.008332121
        %v7826 = vmul.f32 %v7823, %v7825
        %v7827 = vadd.f32 %v7826, -0.16666654
        %v7828 = vmul.f32 %v7823, %v7827
        %v7829 = vadd.f32 %v7828, 1.0
        %v7830 = vmul.f32 %v7829, %v7814
        %vm7831 = vweird.f32 %v694
        %v7832 = vadd.s32 %v7815, 3
        %v7833 = vand.u32 %v7832, 3
        %vm7834 = vcmp.lt.s32.totalorder %v7833, 2
        %vm7835 = vcmp.eq.s32.totalorder %v7833, 0
        %v7836 = vxor.u32 %v7830, 2147483648
        %v7837 = vsel %vm7835, %v7822, %v7836
        %vm7838 = vcmp.eq.s32.totalorder %v7833, 2
        %v7839 = vxor.u32 %v7822, 2147483648
        %v7840 = vsel %vm7838, %v7839, %v7830
        %v7841 = vsel %vm7834, %v7837, %v7840
        %v7842 = vsel %vm7831, nan, %v7841
        %v7843 = vand.u32 2147483647, %v695
        %vm7844 = vcmp.le.f32.partialorder %v7843, 0.7853982
        %vm7845 = vcmp.lt.s32.totalorder %v695, 0
        %v7846 = vand.u32 %v695, 2139095040
        %v7847 = vshrl.u32 %v7846, 23
        %v7848 = vsub.s32 %v7847, 127
        %v7849 = vand.u32 2147483647, %v695
        %v7850 = vand.u32 %v7849, 8388607
        %v7851 = vor.u32 %v7850, 8388608
        %v7852 = vsub.s32 0, %v7851
        %v7853 = vadd.s32 %v7848, 1
        %vm7854 = vcmp.gt.s32.totalorder %v7853, 0
        %v7855 = vsel %vm7854, %v7853, 0
        %v7856 = vshrl.u32 %v7855, 5
        %v7857 = vand.u32 %v7855, 31
        %v7858 = vsub.s32 32, %v7857
        %v7859 = vshrl.u32 683565275, %v7858
        %v7860 = vshll.u32 683565275, %v7857
        %v7861 = vshrl.u32 2475754826, %v7858
        %v7862 = vor.u32 %v7860, %v7861
        %v7863 = vshll.u32 2475754826, %v7857
        %v7864 = vshrl.u32 2131351028, %v7858
        %v7865 = vor.u32 %v7863, %v7864
        %v7866 = vshll.u32 2131351028, %v7857
        %v7867 = vshrl.u32 2102212464, %v7858
        %v7868 = vor.u32 %v7866, %v7867
        %v7869 = vshll.u32 2102212464, %v7857
        %v7870 = vshrl.u32 920167782, %v7858
        %v7871 = vor.u32 %v7869, %v7870
        %v7872 = vshll.u32 920167782, %v7857
        %v7873 = vshrl.u32 1326507024, %v7858
        %v7874 = vor.u32 %v7872, %v7873
        %vm7875 = vcmp.lt.s32.totalorder %v7856, 1
        %vm7876 = vcmp.lt.s32.totalorder %v7856, 2
        %vm7877 = vcmp.lt.s32.totalorder %v7856, 3
        %vm7878 = vcmp.lt.s32.totalorder %v7856, 4
        %v7879 = vsel %vm7875, %v7859, %v7862
        %v7880 = vsel %vm7878, %v7868, 2102212464
        %v7881 = vsel %vm7877, %v7865, %v7880
        %v7882 = vsel %vm7876, %v7879, %v7881
        %v7883 = vsel %vm7875, %v7862, %v7865
        %v7884 = vsel %vm7878, %v7871, 920167782
        %v7885 = vsel %vm7877, %v7868, %v7884
        %v7886 = vsel %vm7876, %v7883, %v7885
        %v7887 = vsel %vm7875, %v7865, %v7868
        %v7888 = vsel %vm7878, %v7874, 1326507024
        %v7889 = vsel %vm7877, %v7871, %v7888
        %v7890 = vsel %vm7876, %v7887, %v7889
        %v7891 = vshll.u32 %v7851, 8
        %v7892 = vand.u32 %v7891, 65535
        %v7893 = vshrl.u32 %v7891, 16
        %v7894 = vand.u32 %v7890, 65535
        %v7895 = vshrl.u32 %v7890, 16
        %v7896 = vmul.u32 %v7892, %v7894
        %v7897 = vmul.u32 %v7892, %v7895
        %v7898 = vmul.u32 %v7893, %v7894
        %v7899 = vmul.u32 %v7893, %v7895
        %v7900 = vshll.u32 %v7897, 16
        %v7901 = vshrl.u32 %v7897, 16
        %v7902 = vshll.u32 %v7898, 16
        %v7903 = vshrl.u32 %v7898, 16
        %vm7904 = vc.u32 %v7896, %v7900
        %v7905 = vsel %vm7904, 1, 0
        %v7906 = vadd.s32 %v7896, %v7900
        %v7907 = vadd.s32 %v7899, %v7905
        %vm7908 = vc.u32 %v7906, %v7902
        %v7909 = vsel %vm7908, 1, 0
        %v7910 = vadd.s32 %v7906, %v7902
        %v7911 = vadd.s32 %v7907, %v7909
        %v7912 = vadd.s32 %v7911, %v7901
        %v7913 = vadd.s32 %v7912, %v7903
        %v7914 = vand.u32 %v7891, 65535
        %v7915 = vshrl.u32 %v7891, 16
        %v7916 = vand.u32 %v7886, 65535
        %v7917 = vshrl.u32 %v7886, 16
        %v7918 = vmul.u32 %v7914, %v7916
        %v7919 = vmul.u32 %v7914, %v7917
        %v7920 = vmul.u32 %v7915, %v7916
        %v7921 = vmul.u32 %v7915, %v7917
        %v7922 = vshll.u32 %v7919, 16
        %v7923 = vshrl.u32 %v7919, 16
        %v7924 = vshll.u32 %v7920, 16
        %v7925 = vshrl.u32 %v7920, 16
        %vm7926 = vc.u32 %v7918, %v7922
        %v7927 = vsel %vm7926, 1, 0
        %v7928 = vadd.s32 %v7918, %v7922
        %v7929 = vadd.s32 %v7921, %v7927
        %vm7930 = vc.u32 %v7928, %v7924
        %v7931 = vsel %vm7930, 1, 0
        %v7932 = vadd.s32 %v7928, %v7924
        %v7933 = vadd.s32 %v7929, %v7931
        %v7934 = vadd.s32 %v7933, %v7923
        %v7935 = vadd.s32 %v7934, %v7925
        %v7936 = vmul.u32 %v7891, %v7882
        %v7937 = vadd.s32 %v7913, %v7932
        %vm7938 = vc.u32 %v7913, %v7932
        %v7939 = vadd.s32 %v7935, 1
        %v7940 = vsel %vm7938, %v7939, %v7935
        %v7941 = vadd.s32 %v7936, %v7940
        %v7942 = vadd.s32 %v7941, 536870912
        %v7943 = vshrl.u32 %v7942, 30
        %v7944 = vshll.u32 %v7943, 30
        %v7945 = vsub.s32 %v7941, %v7944
        %vm7946 = vcmp.lt.s32.totalorder %v7945, 0
        %v7947 = vsub.s32 0, %v7945
        %v7948 = vsel %vm7946, %v7947, %v7945
        %v7949 = vclz %v7948
        %v7950 = vsub.s32 %v7949, 2
        %vm7951 = vcmp.gt.s32.totalorder 0, %v7950
        %v7952 = vsel %vm7951, 0, %v7950
        %v7953 = vsub.s32 32, %v7952
        %v7954 = vshll.u32 %v7945, %v7952
        %v7955 = vshrl.u32 %v7937, %v7953
        %v7956 = vor.u32 %v7954, %v7955
        %v7957 = vsub.s32 4294967266, %v7952
        %v7958 = vadd.s32 %v7957, 127
        %v7959 = vshll.u32 %v7958, 23
        %v7960 = vor.u32 4788187, %v7959
        %v7961 = vand.u32 2147483647, %v7960
        %v7963 = vcvt.s32.f32 %v7956
        %v7964 = vmul.f32 %v7963, %v7961
        %v7965 = vxor.u32 %v7964, 2147483648
        %v7966 = vsel %vm7845, %v7965, %v7964
        %v7967 = vsub.s32 4, %v7943
        %v7968 = vsel %vm7845, %v7967, %v7943
        %v7969 = vsel %vm7844, %v695, %v7966
        %v7970 = vsel %vm7844, 0, %v7968
        %v7971 = vmul.f32 %v7969, %v7969
        %v7972 = vmul.f32 %v7971, -0.001358992
        %v7973 = vadd.f32 %v7972, 0.041655596
        %v7974 = vmul.f32 %v7971, %v7973
        %v7975 = vadd.f32 %v7974, -0.4999988
        %v7976 = vmul.f32 %v7971, %v7975
        %v7977 = vadd.f32 1.0, %v7976
        %v7978 = vmul.f32 %v7969, %v7969
        %v7979 = vmul.f32 %v7978, -0.00019511016
        %v7980 = vadd.f32 %v7979, 0.008332121
        %v7981 = vmul.f32 %v7978, %v7980
        %v7982 = vadd.f32 %v7981, -0.16666654
        %v7983 = vmul.f32 %v7978, %v7982
        %v7984 = vadd.f32 %v7983, 1.0
        %v7985 = vmul.f32 %v7984, %v7969
        %vm7986 = vweird.f32 %v695
        %v7987 = vadd.s32 %v7970, 3
        %v7988 = vand.u32 %v7987, 3
        %vm7989 = vcmp.lt.s32.totalorder %v7988, 2
        %vm7990 = vcmp.eq.s32.totalorder %v7988, 0
        %v7991 = vxor.u32 %v7985, 2147483648
        %v7992 = vsel %vm7990, %v7977, %v7991
        %vm7993 = vcmp.eq.s32.totalorder %v7988, 2
        %v7994 = vxor.u32 %v7977, 2147483648
        %v7995 = vsel %vm7993, %v7994, %v7985
        %v7996 = vsel %vm7989, %v7992, %v7995
        %v7997 = vsel %vm7986, nan, %v7996
        %v7998 = vand.u32 2147483647, %v696
        %vm7999 = vcmp.le.f32.partialorder %v7998, 0.7853982
        %vm8000 = vcmp.lt.s32.totalorder %v696, 0
        %v8001 = vand.u32 %v696, 2139095040
        %v8002 = vshrl.u32 %v8001, 23
        %v8003 = vsub.s32 %v8002, 127
        %v8004 = vand.u32 2147483647, %v696
        %v8005 = vand.u32 %v8004, 8388607
        %v8006 = vor.u32 %v8005, 8388608
        %v8007 = vsub.s32 0, %v8006
        %v8008 = vadd.s32 %v8003, 1
        %vm8009 = vcmp.gt.s32.totalorder %v8008, 0
        %v8010 = vsel %vm8009, %v8008, 0
        %v8011 = vshrl.u32 %v8010, 5
        %v8012 = vand.u32 %v8010, 31
        %v8013 = vsub.s32 32, %v8012
        %v8014 = vshrl.u32 683565275, %v8013
        %v8015 = vshll.u32 683565275, %v8012
        %v8016 = vshrl.u32 2475754826, %v8013
        %v8017 = vor.u32 %v8015, %v8016
        %v8018 = vshll.u32 2475754826, %v8012
        %v8019 = vshrl.u32 2131351028, %v8013
        %v8020 = vor.u32 %v8018, %v8019
        %v8021 = vshll.u32 2131351028, %v8012
        %v8022 = vshrl.u32 2102212464, %v8013
        %v8023 = vor.u32 %v8021, %v8022
        %v8024 = vshll.u32 2102212464, %v8012
        %v8025 = vshrl.u32 920167782, %v8013
        %v8026 = vor.u32 %v8024, %v8025
        %v8027 = vshll.u32 920167782, %v8012
        %v8028 = vshrl.u32 1326507024, %v8013
        %v8029 = vor.u32 %v8027, %v8028
        %vm8030 = vcmp.lt.s32.totalorder %v8011, 1
        %vm8031 = vcmp.lt.s32.totalorder %v8011, 2
        %vm8032 = vcmp.lt.s32.totalorder %v8011, 3
        %vm8033 = vcmp.lt.s32.totalorder %v8011, 4
        %v8034 = vsel %vm8030, %v8014, %v8017
        %v8035 = vsel %vm8033, %v8023, 2102212464
        %v8036 = vsel %vm8032, %v8020, %v8035
        %v8037 = vsel %vm8031, %v8034, %v8036
        %v8038 = vsel %vm8030, %v8017, %v8020
        %v8039 = vsel %vm8033, %v8026, 920167782
        %v8040 = vsel %vm8032, %v8023, %v8039
        %v8041 = vsel %vm8031, %v8038, %v8040
        %v8042 = vsel %vm8030, %v8020, %v8023
        %v8043 = vsel %vm8033, %v8029, 1326507024
        %v8044 = vsel %vm8032, %v8026, %v8043
        %v8045 = vsel %vm8031, %v8042, %v8044
        %v8046 = vshll.u32 %v8006, 8
        %v8047 = vand.u32 %v8046, 65535
        %v8048 = vshrl.u32 %v8046, 16
        %v8049 = vand.u32 %v8045, 65535
        %v8050 = vshrl.u32 %v8045, 16
        %v8051 = vmul.u32 %v8047, %v8049
        %v8052 = vmul.u32 %v8047, %v8050
        %v8053 = vmul.u32 %v8048, %v8049
        %v8054 = vmul.u32 %v8048, %v8050
        %v8055 = vshll.u32 %v8052, 16
        %v8056 = vshrl.u32 %v8052, 16
        %v8057 = vshll.u32 %v8053, 16
        %v8058 = vshrl.u32 %v8053, 16
        %vm8059 = vc.u32 %v8051, %v8055
        %v8060 = vsel %vm8059, 1, 0
        %v8061 = vadd.s32 %v8051, %v8055
        %v8062 = vadd.s32 %v8054, %v8060
        %vm8063 = vc.u32 %v8061, %v8057
        %v8064 = vsel %vm8063, 1, 0
        %v8065 = vadd.s32 %v8061, %v8057
        %v8066 = vadd.s32 %v8062, %v8064
        %v8067 = vadd.s32 %v8066, %v8056
        %v8068 = vadd.s32 %v8067, %v8058
        %v8069 = vand.u32 %v8046, 65535
        %v8070 = vshrl.u32 %v8046, 16
        %v8071 = vand.u32 %v8041, 65535
        %v8072 = vshrl.u32 %v8041, 16
        %v8073 = vmul.u32 %v8069, %v8071
        %v8074 = vmul.u32 %v8069, %v8072
        %v8075 = vmul.u32 %v8070, %v8071
        %v8076 = vmul.u32 %v8070, %v8072
        %v8077 = vshll.u32 %v8074, 16
        %v8078 = vshrl.u32 %v8074, 16
        %v8079 = vshll.u32 %v8075, 16
        %v8080 = vshrl.u32 %v8075, 16
        %vm8081 = vc.u32 %v8073, %v8077
        %v8082 = vsel %vm8081, 1, 0
        %v8083 = vadd.s32 %v8073, %v8077
        %v8084 = vadd.s32 %v8076, %v8082
        %vm8085 = vc.u32 %v8083, %v8079
        %v8086 = vsel %vm8085, 1, 0
        %v8087 = vadd.s32 %v8083, %v8079
        %v8088 = vadd.s32 %v8084, %v8086
        %v8089 = vadd.s32 %v8088, %v8078
        %v8090 = vadd.s32 %v8089, %v8080
        %v8091 = vmul.u32 %v8046, %v8037
        %v8092 = vadd.s32 %v8068, %v8087
        %vm8093 = vc.u32 %v8068, %v8087
        %v8094 = vadd.s32 %v8090, 1
        %v8095 = vsel %vm8093, %v8094, %v8090
        %v8096 = vadd.s32 %v8091, %v8095
        %v8097 = vadd.s32 %v8096, 536870912
        %v8098 = vshrl.u32 %v8097, 30
        %v8099 = vshll.u32 %v8098, 30
        %v8100 = vsub.s32 %v8096, %v8099
        %vm8101 = vcmp.lt.s32.totalorder %v8100, 0
        %v8102 = vsub.s32 0, %v8100
        %v8103 = vsel %vm8101, %v8102, %v8100
        %v8104 = vclz %v8103
        %v8105 = vsub.s32 %v8104, 2
        %vm8106 = vcmp.gt.s32.totalorder 0, %v8105
        %v8107 = vsel %vm8106, 0, %v8105
        %v8108 = vsub.s32 32, %v8107
        %v8109 = vshll.u32 %v8100, %v8107
        %v8110 = vshrl.u32 %v8092, %v8108
        %v8111 = vor.u32 %v8109, %v8110
        %v8112 = vsub.s32 4294967266, %v8107
        %v8113 = vadd.s32 %v8112, 127
        %v8114 = vshll.u32 %v8113, 23
        %v8115 = vor.u32 4788187, %v8114
        %v8116 = vand.u32 2147483647, %v8115
        %v8118 = vcvt.s32.f32 %v8111
        %v8119 = vmul.f32 %v8118, %v8116
        %v8120 = vxor.u32 %v8119, 2147483648
        %v8121 = vsel %vm8000, %v8120, %v8119
        %v8122 = vsub.s32 4, %v8098
        %v8123 = vsel %vm8000, %v8122, %v8098
        %v8124 = vsel %vm7999, %v696, %v8121
        %v8125 = vsel %vm7999, 0, %v8123
        %v8126 = vmul.f32 %v8124, %v8124
        %v8127 = vmul.f32 %v8126, -0.001358992
        %v8128 = vadd.f32 %v8127, 0.041655596
        %v8129 = vmul.f32 %v8126, %v8128
        %v8130 = vadd.f32 %v8129, -0.4999988
        %v8131 = vmul.f32 %v8126, %v8130
        %v8132 = vadd.f32 1.0, %v8131
        %v8133 = vmul.f32 %v8124, %v8124
        %v8134 = vmul.f32 %v8133, -0.00019511016
        %v8135 = vadd.f32 %v8134, 0.008332121
        %v8136 = vmul.f32 %v8133, %v8135
        %v8137 = vadd.f32 %v8136, -0.16666654
        %v8138 = vmul.f32 %v8133, %v8137
        %v8139 = vadd.f32 %v8138, 1.0
        %v8140 = vmul.f32 %v8139, %v8124
        %vm8141 = vweird.f32 %v696
        %v8142 = vadd.s32 %v8125, 3
        %v8143 = vand.u32 %v8142, 3
        %vm8144 = vcmp.lt.s32.totalorder %v8143, 2
        %vm8145 = vcmp.eq.s32.totalorder %v8143, 0
        %v8146 = vxor.u32 %v8140, 2147483648
        %v8147 = vsel %vm8145, %v8132, %v8146
        %vm8148 = vcmp.eq.s32.totalorder %v8143, 2
        %v8149 = vxor.u32 %v8132, 2147483648
        %v8150 = vsel %vm8148, %v8149, %v8140
        %v8151 = vsel %vm8144, %v8147, %v8150
        %v8152 = vsel %vm8141, nan, %v8151
        %v8153 = vand.u32 2147483647, %v697
        %vm8154 = vcmp.le.f32.partialorder %v8153, 0.7853982
        %vm8155 = vcmp.lt.s32.totalorder %v697, 0
        %v8156 = vand.u32 %v697, 2139095040
        %v8157 = vshrl.u32 %v8156, 23
        %v8158 = vsub.s32 %v8157, 127
        %v8159 = vand.u32 2147483647, %v697
        %v8160 = vand.u32 %v8159, 8388607
        %v8161 = vor.u32 %v8160, 8388608
        %v8162 = vsub.s32 0, %v8161
        %v8163 = vadd.s32 %v8158, 1
        %vm8164 = vcmp.gt.s32.totalorder %v8163, 0
        %v8165 = vsel %vm8164, %v8163, 0
        %v8166 = vshrl.u32 %v8165, 5
        %v8167 = vand.u32 %v8165, 31
        %v8168 = vsub.s32 32, %v8167
        %v8169 = vshrl.u32 683565275, %v8168
        %v8170 = vshll.u32 683565275, %v8167
        %v8171 = vshrl.u32 2475754826, %v8168
        %v8172 = vor.u32 %v8170, %v8171
        %v8173 = vshll.u32 2475754826, %v8167
        %v8174 = vshrl.u32 2131351028, %v8168
        %v8175 = vor.u32 %v8173, %v8174
        %v8176 = vshll.u32 2131351028, %v8167
        %v8177 = vshrl.u32 2102212464, %v8168
        %v8178 = vor.u32 %v8176, %v8177
        %v8179 = vshll.u32 2102212464, %v8167
        %v8180 = vshrl.u32 920167782, %v8168
        %v8181 = vor.u32 %v8179, %v8180
        %v8182 = vshll.u32 920167782, %v8167
        %v8183 = vshrl.u32 1326507024, %v8168
        %v8184 = vor.u32 %v8182, %v8183
        %vm8185 = vcmp.lt.s32.totalorder %v8166, 1
        %vm8186 = vcmp.lt.s32.totalorder %v8166, 2
        %vm8187 = vcmp.lt.s32.totalorder %v8166, 3
        %vm8188 = vcmp.lt.s32.totalorder %v8166, 4
        %v8189 = vsel %vm8185, %v8169, %v8172
        %v8190 = vsel %vm8188, %v8178, 2102212464
        %v8191 = vsel %vm8187, %v8175, %v8190
        %v8192 = vsel %vm8186, %v8189, %v8191
        %v8193 = vsel %vm8185, %v8172, %v8175
        %v8194 = vsel %vm8188, %v8181, 920167782
        %v8195 = vsel %vm8187, %v8178, %v8194
        %v8196 = vsel %vm8186, %v8193, %v8195
        %v8197 = vsel %vm8185, %v8175, %v8178
        %v8198 = vsel %vm8188, %v8184, 1326507024
        %v8199 = vsel %vm8187, %v8181, %v8198
        %v8200 = vsel %vm8186, %v8197, %v8199
        %v8201 = vshll.u32 %v8161, 8
        %v8202 = vand.u32 %v8201, 65535
        %v8203 = vshrl.u32 %v8201, 16
        %v8204 = vand.u32 %v8200, 65535
        %v8205 = vshrl.u32 %v8200, 16
        %v8206 = vmul.u32 %v8202, %v8204
        %v8207 = vmul.u32 %v8202, %v8205
        %v8208 = vmul.u32 %v8203, %v8204
        %v8209 = vmul.u32 %v8203, %v8205
        %v8210 = vshll.u32 %v8207, 16
        %v8211 = vshrl.u32 %v8207, 16
        %v8212 = vshll.u32 %v8208, 16
        %v8213 = vshrl.u32 %v8208, 16
        %vm8214 = vc.u32 %v8206, %v8210
        %v8215 = vsel %vm8214, 1, 0
        %v8216 = vadd.s32 %v8206, %v8210
        %v8217 = vadd.s32 %v8209, %v8215
        %vm8218 = vc.u32 %v8216, %v8212
        %v8219 = vsel %vm8218, 1, 0
        %v8220 = vadd.s32 %v8216, %v8212
        %v8221 = vadd.s32 %v8217, %v8219
        %v8222 = vadd.s32 %v8221, %v8211
        %v8223 = vadd.s32 %v8222, %v8213
        %v8224 = vand.u32 %v8201, 65535
        %v8225 = vshrl.u32 %v8201, 16
        %v8226 = vand.u32 %v8196, 65535
        %v8227 = vshrl.u32 %v8196, 16
        %v8228 = vmul.u32 %v8224, %v8226
        %v8229 = vmul.u32 %v8224, %v8227
        %v8230 = vmul.u32 %v8225, %v8226
        %v8231 = vmul.u32 %v8225, %v8227
        %v8232 = vshll.u32 %v8229, 16
        %v8233 = vshrl.u32 %v8229, 16
        %v8234 = vshll.u32 %v8230, 16
        %v8235 = vshrl.u32 %v8230, 16
        %vm8236 = vc.u32 %v8228, %v8232
        %v8237 = vsel %vm8236, 1, 0
        %v8238 = vadd.s32 %v8228, %v8232
        %v8239 = vadd.s32 %v8231, %v8237
        %vm8240 = vc.u32 %v8238, %v8234
        %v8241 = vsel %vm8240, 1, 0
        %v8242 = vadd.s32 %v8238, %v8234
        %v8243 = vadd.s32 %v8239, %v8241
        %v8244 = vadd.s32 %v8243, %v8233
        %v8245 = vadd.s32 %v8244, %v8235
        %v8246 = vmul.u32 %v8201, %v8192
        %v8247 = vadd.s32 %v8223, %v8242
        %vm8248 = vc.u32 %v8223, %v8242
        %v8249 = vadd.s32 %v8245, 1
        %v8250 = vsel %vm8248, %v8249, %v8245
        %v8251 = vadd.s32 %v8246, %v8250
        %v8252 = vadd.s32 %v8251, 536870912
        %v8253 = vshrl.u32 %v8252, 30
        %v8254 = vshll.u32 %v8253, 30
        %v8255 = vsub.s32 %v8251, %v8254
        %vm8256 = vcmp.lt.s32.totalorder %v8255, 0
        %v8257 = vsub.s32 0, %v8255
        %v8258 = vsel %vm8256, %v8257, %v8255
        %v8259 = vclz %v8258
        %v8260 = vsub.s32 %v8259, 2
        %vm8261 = vcmp.gt.s32.totalorder 0, %v8260
        %v8262 = vsel %vm8261, 0, %v8260
        %v8263 = vsub.s32 32, %v8262
        %v8264 = vshll.u32 %v8255, %v8262
        %v8265 = vshrl.u32 %v8247, %v8263
        %v8266 = vor.u32 %v8264, %v8265
        %v8267 = vsub.s32 4294967266, %v8262
        %v8268 = vadd.s32 %v8267, 127
        %v8269 = vshll.u32 %v8268, 23
        %v8270 = vor.u32 4788187, %v8269
        %v8271 = vand.u32 2147483647, %v8270
        %v8273 = vcvt.s32.f32 %v8266
        %v8274 = vmul.f32 %v8273, %v8271
        %v8275 = vxor.u32 %v8274, 2147483648
        %v8276 = vsel %vm8155, %v8275, %v8274
        %v8277 = vsub.s32 4, %v8253
        %v8278 = vsel %vm8155, %v8277, %v8253
        %v8279 = vsel %vm8154, %v697, %v8276
        %v8280 = vsel %vm8154, 0, %v8278
        %v8281 = vmul.f32 %v8279, %v8279
        %v8282 = vmul.f32 %v8281, -0.001358992
        %v8283 = vadd.f32 %v8282, 0.041655596
        %v8284 = vmul.f32 %v8281, %v8283
        %v8285 = vadd.f32 %v8284, -0.4999988
        %v8286 = vmul.f32 %v8281, %v8285
        %v8287 = vadd.f32 1.0, %v8286
        %v8288 = vmul.f32 %v8279, %v8279
        %v8289 = vmul.f32 %v8288, -0.00019511016
        %v8290 = vadd.f32 %v8289, 0.008332121
        %v8291 = vmul.f32 %v8288, %v8290
        %v8292 = vadd.f32 %v8291, -0.16666654
        %v8293 = vmul.f32 %v8288, %v8292
        %v8294 = vadd.f32 %v8293, 1.0
        %v8295 = vmul.f32 %v8294, %v8279
        %vm8296 = vweird.f32 %v697
        %v8297 = vadd.s32 %v8280, 3
        %v8298 = vand.u32 %v8297, 3
        %vm8299 = vcmp.lt.s32.totalorder %v8298, 2
        %vm8300 = vcmp.eq.s32.totalorder %v8298, 0
        %v8301 = vxor.u32 %v8295, 2147483648
        %v8302 = vsel %vm8300, %v8287, %v8301
        %vm8303 = vcmp.eq.s32.totalorder %v8298, 2
        %v8304 = vxor.u32 %v8287, 2147483648
        %v8305 = vsel %vm8303, %v8304, %v8295
        %v8306 = vsel %vm8299, %v8302, %v8305
        %v8307 = vsel %vm8296, nan, %v8306
        %v8308 = vand.u32 2147483647, %v698
        %vm8309 = vcmp.le.f32.partialorder %v8308, 0.7853982
        %vm8310 = vcmp.lt.s32.totalorder %v698, 0
        %v8311 = vand.u32 %v698, 2139095040
        %v8312 = vshrl.u32 %v8311, 23
        %v8313 = vsub.s32 %v8312, 127
        %v8314 = vand.u32 2147483647, %v698
        %v8315 = vand.u32 %v8314, 8388607
        %v8316 = vor.u32 %v8315, 8388608
        %v8317 = vsub.s32 0, %v8316
        %v8318 = vadd.s32 %v8313, 1
        %vm8319 = vcmp.gt.s32.totalorder %v8318, 0
        %v8320 = vsel %vm8319, %v8318, 0
        %v8321 = vshrl.u32 %v8320, 5
        %v8322 = vand.u32 %v8320, 31
        %v8323 = vsub.s32 32, %v8322
        %v8324 = vshrl.u32 683565275, %v8323
        %v8325 = vshll.u32 683565275, %v8322
        %v8326 = vshrl.u32 2475754826, %v8323
        %v8327 = vor.u32 %v8325, %v8326
        %v8328 = vshll.u32 2475754826, %v8322
        %v8329 = vshrl.u32 2131351028, %v8323
        %v8330 = vor.u32 %v8328, %v8329
        %v8331 = vshll.u32 2131351028, %v8322
        %v8332 = vshrl.u32 2102212464, %v8323
        %v8333 = vor.u32 %v8331, %v8332
        %v8334 = vshll.u32 2102212464, %v8322
        %v8335 = vshrl.u32 920167782, %v8323
        %v8336 = vor.u32 %v8334, %v8335
        %v8337 = vshll.u32 920167782, %v8322
        %v8338 = vshrl.u32 1326507024, %v8323
        %v8339 = vor.u32 %v8337, %v8338
        %vm8340 = vcmp.lt.s32.totalorder %v8321, 1
        %vm8341 = vcmp.lt.s32.totalorder %v8321, 2
        %vm8342 = vcmp.lt.s32.totalorder %v8321, 3
        %vm8343 = vcmp.lt.s32.totalorder %v8321, 4
        %v8344 = vsel %vm8340, %v8324, %v8327
        %v8345 = vsel %vm8343, %v8333, 2102212464
        %v8346 = vsel %vm8342, %v8330, %v8345
        %v8347 = vsel %vm8341, %v8344, %v8346
        %v8348 = vsel %vm8340, %v8327, %v8330
        %v8349 = vsel %vm8343, %v8336, 920167782
        %v8350 = vsel %vm8342, %v8333, %v8349
        %v8351 = vsel %vm8341, %v8348, %v8350
        %v8352 = vsel %vm8340, %v8330, %v8333
        %v8353 = vsel %vm8343, %v8339, 1326507024
        %v8354 = vsel %vm8342, %v8336, %v8353
        %v8355 = vsel %vm8341, %v8352, %v8354
        %v8356 = vshll.u32 %v8316, 8
        %v8357 = vand.u32 %v8356, 65535
        %v8358 = vshrl.u32 %v8356, 16
        %v8359 = vand.u32 %v8355, 65535
        %v8360 = vshrl.u32 %v8355, 16
        %v8361 = vmul.u32 %v8357, %v8359
        %v8362 = vmul.u32 %v8357, %v8360
        %v8363 = vmul.u32 %v8358, %v8359
        %v8364 = vmul.u32 %v8358, %v8360
        %v8365 = vshll.u32 %v8362, 16
        %v8366 = vshrl.u32 %v8362, 16
        %v8367 = vshll.u32 %v8363, 16
        %v8368 = vshrl.u32 %v8363, 16
        %vm8369 = vc.u32 %v8361, %v8365
        %v8370 = vsel %vm8369, 1, 0
        %v8371 = vadd.s32 %v8361, %v8365
        %v8372 = vadd.s32 %v8364, %v8370
        %vm8373 = vc.u32 %v8371, %v8367
        %v8374 = vsel %vm8373, 1, 0
        %v8375 = vadd.s32 %v8371, %v8367
        %v8376 = vadd.s32 %v8372, %v8374
        %v8377 = vadd.s32 %v8376, %v8366
        %v8378 = vadd.s32 %v8377, %v8368
        %v8379 = vand.u32 %v8356, 65535
        %v8380 = vshrl.u32 %v8356, 16
        %v8381 = vand.u32 %v8351, 65535
        %v8382 = vshrl.u32 %v8351, 16
        %v8383 = vmul.u32 %v8379, %v8381
        %v8384 = vmul.u32 %v8379, %v8382
        %v8385 = vmul.u32 %v8380, %v8381
        %v8386 = vmul.u32 %v8380, %v8382
        %v8387 = vshll.u32 %v8384, 16
        %v8388 = vshrl.u32 %v8384, 16
        %v8389 = vshll.u32 %v8385, 16
        %v8390 = vshrl.u32 %v8385, 16
        %vm8391 = vc.u32 %v8383, %v8387
        %v8392 = vsel %vm8391, 1, 0
        %v8393 = vadd.s32 %v8383, %v8387
        %v8394 = vadd.s32 %v8386, %v8392
        %vm8395 = vc.u32 %v8393, %v8389
        %v8396 = vsel %vm8395, 1, 0
        %v8397 = vadd.s32 %v8393, %v8389
        %v8398 = vadd.s32 %v8394, %v8396
        %v8399 = vadd.s32 %v8398, %v8388
        %v8400 = vadd.s32 %v8399, %v8390
        %v8401 = vmul.u32 %v8356, %v8347
        %v8402 = vadd.s32 %v8378, %v8397
        %vm8403 = vc.u32 %v8378, %v8397
        %v8404 = vadd.s32 %v8400, 1
        %v8405 = vsel %vm8403, %v8404, %v8400
        %v8406 = vadd.s32 %v8401, %v8405
        %v8407 = vadd.s32 %v8406, 536870912
        %v8408 = vshrl.u32 %v8407, 30
        %v8409 = vshll.u32 %v8408, 30
        %v8410 = vsub.s32 %v8406, %v8409
        %vm8411 = vcmp.lt.s32.totalorder %v8410, 0
        %v8412 = vsub.s32 0, %v8410
        %v8413 = vsel %vm8411, %v8412, %v8410
        %v8414 = vclz %v8413
        %v8415 = vsub.s32 %v8414, 2
        %vm8416 = vcmp.gt.s32.totalorder 0, %v8415
        %v8417 = vsel %vm8416, 0, %v8415
        %v8418 = vsub.s32 32, %v8417
        %v8419 = vshll.u32 %v8410, %v8417
        %v8420 = vshrl.u32 %v8402, %v8418
        %v8421 = vor.u32 %v8419, %v8420
        %v8422 = vsub.s32 4294967266, %v8417
        %v8423 = vadd.s32 %v8422, 127
        %v8424 = vshll.u32 %v8423, 23
        %v8425 = vor.u32 4788187, %v8424
        %v8426 = vand.u32 2147483647, %v8425
        %v8428 = vcvt.s32.f32 %v8421
        %v8429 = vmul.f32 %v8428, %v8426
        %v8430 = vxor.u32 %v8429, 2147483648
        %v8431 = vsel %vm8310, %v8430, %v8429
        %v8432 = vsub.s32 4, %v8408
        %v8433 = vsel %vm8310, %v8432, %v8408
        %v8434 = vsel %vm8309, %v698, %v8431
        %v8435 = vsel %vm8309, 0, %v8433
        %v8436 = vmul.f32 %v8434, %v8434
        %v8437 = vmul.f32 %v8436, -0.001358992
        %v8438 = vadd.f32 %v8437, 0.041655596
        %v8439 = vmul.f32 %v8436, %v8438
        %v8440 = vadd.f32 %v8439, -0.4999988
        %v8441 = vmul.f32 %v8436, %v8440
        %v8442 = vadd.f32 1.0, %v8441
        %v8443 = vmul.f32 %v8434, %v8434
        %v8444 = vmul.f32 %v8443, -0.00019511016
        %v8445 = vadd.f32 %v8444, 0.008332121
        %v8446 = vmul.f32 %v8443, %v8445
        %v8447 = vadd.f32 %v8446, -0.16666654
        %v8448 = vmul.f32 %v8443, %v8447
        %v8449 = vadd.f32 %v8448, 1.0
        %v8450 = vmul.f32 %v8449, %v8434
        %vm8451 = vweird.f32 %v698
        %v8452 = vadd.s32 %v8435, 3
        %v8453 = vand.u32 %v8452, 3
        %vm8454 = vcmp.lt.s32.totalorder %v8453, 2
        %vm8455 = vcmp.eq.s32.totalorder %v8453, 0
        %v8456 = vxor.u32 %v8450, 2147483648
        %v8457 = vsel %vm8455, %v8442, %v8456
        %vm8458 = vcmp.eq.s32.totalorder %v8453, 2
        %v8459 = vxor.u32 %v8442, 2147483648
        %v8460 = vsel %vm8458, %v8459, %v8450
        %v8461 = vsel %vm8454, %v8457, %v8460
        %v8462 = vsel %vm8451, nan, %v8461
        %v8463 = vand.u32 2147483647, %v699
        %vm8464 = vcmp.le.f32.partialorder %v8463, 0.7853982
        %vm8465 = vcmp.lt.s32.totalorder %v699, 0
        %v8466 = vand.u32 %v699, 2139095040
        %v8467 = vshrl.u32 %v8466, 23
        %v8468 = vsub.s32 %v8467, 127
        %v8469 = vand.u32 2147483647, %v699
        %v8470 = vand.u32 %v8469, 8388607
        %v8471 = vor.u32 %v8470, 8388608
        %v8472 = vsub.s32 0, %v8471
        %v8473 = vadd.s32 %v8468, 1
        %vm8474 = vcmp.gt.s32.totalorder %v8473, 0
        %v8475 = vsel %vm8474, %v8473, 0
        %v8476 = vshrl.u32 %v8475, 5
        %v8477 = vand.u32 %v8475, 31
        %v8478 = vsub.s32 32, %v8477
        %v8479 = vshrl.u32 683565275, %v8478
        %v8480 = vshll.u32 683565275, %v8477
        %v8481 = vshrl.u32 2475754826, %v8478
        %v8482 = vor.u32 %v8480, %v8481
        %v8483 = vshll.u32 2475754826, %v8477
        %v8484 = vshrl.u32 2131351028, %v8478
        %v8485 = vor.u32 %v8483, %v8484
        %v8486 = vshll.u32 2131351028, %v8477
        %v8487 = vshrl.u32 2102212464, %v8478
        %v8488 = vor.u32 %v8486, %v8487
        %v8489 = vshll.u32 2102212464, %v8477
        %v8490 = vshrl.u32 920167782, %v8478
        %v8491 = vor.u32 %v8489, %v8490
        %v8492 = vshll.u32 920167782, %v8477
        %v8493 = vshrl.u32 1326507024, %v8478
        %v8494 = vor.u32 %v8492, %v8493
        %vm8495 = vcmp.lt.s32.totalorder %v8476, 1
        %vm8496 = vcmp.lt.s32.totalorder %v8476, 2
        %vm8497 = vcmp.lt.s32.totalorder %v8476, 3
        %vm8498 = vcmp.lt.s32.totalorder %v8476, 4
        %v8499 = vsel %vm8495, %v8479, %v8482
        %v8500 = vsel %vm8498, %v8488, 2102212464
        %v8501 = vsel %vm8497, %v8485, %v8500
        %v8502 = vsel %vm8496, %v8499, %v8501
        %v8503 = vsel %vm8495, %v8482, %v8485
        %v8504 = vsel %vm8498, %v8491, 920167782
        %v8505 = vsel %vm8497, %v8488, %v8504
        %v8506 = vsel %vm8496, %v8503, %v8505
        %v8507 = vsel %vm8495, %v8485, %v8488
        %v8508 = vsel %vm8498, %v8494, 1326507024
        %v8509 = vsel %vm8497, %v8491, %v8508
        %v8510 = vsel %vm8496, %v8507, %v8509
        %v8511 = vshll.u32 %v8471, 8
        %v8512 = vand.u32 %v8511, 65535
        %v8513 = vshrl.u32 %v8511, 16
        %v8514 = vand.u32 %v8510, 65535
        %v8515 = vshrl.u32 %v8510, 16
        %v8516 = vmul.u32 %v8512, %v8514
        %v8517 = vmul.u32 %v8512, %v8515
        %v8518 = vmul.u32 %v8513, %v8514
        %v8519 = vmul.u32 %v8513, %v8515
        %v8520 = vshll.u32 %v8517, 16
        %v8521 = vshrl.u32 %v8517, 16
        %v8522 = vshll.u32 %v8518, 16
        %v8523 = vshrl.u32 %v8518, 16
        %vm8524 = vc.u32 %v8516, %v8520
        %v8525 = vsel %vm8524, 1, 0
        %v8526 = vadd.s32 %v8516, %v8520
        %v8527 = vadd.s32 %v8519, %v8525
        %vm8528 = vc.u32 %v8526, %v8522
        %v8529 = vsel %vm8528, 1, 0
        %v8530 = vadd.s32 %v8526, %v8522
        %v8531 = vadd.s32 %v8527, %v8529
        %v8532 = vadd.s32 %v8531, %v8521
        %v8533 = vadd.s32 %v8532, %v8523
        %v8534 = vand.u32 %v8511, 65535
        %v8535 = vshrl.u32 %v8511, 16
        %v8536 = vand.u32 %v8506, 65535
        %v8537 = vshrl.u32 %v8506, 16
        %v8538 = vmul.u32 %v8534, %v8536
        %v8539 = vmul.u32 %v8534, %v8537
        %v8540 = vmul.u32 %v8535, %v8536
        %v8541 = vmul.u32 %v8535, %v8537
        %v8542 = vshll.u32 %v8539, 16
        %v8543 = vshrl.u32 %v8539, 16
        %v8544 = vshll.u32 %v8540, 16
        %v8545 = vshrl.u32 %v8540, 16
        %vm8546 = vc.u32 %v8538, %v8542
        %v8547 = vsel %vm8546, 1, 0
        %v8548 = vadd.s32 %v8538, %v8542
        %v8549 = vadd.s32 %v8541, %v8547
        %vm8550 = vc.u32 %v8548, %v8544
        %v8551 = vsel %vm8550, 1, 0
        %v8552 = vadd.s32 %v8548, %v8544
        %v8553 = vadd.s32 %v8549, %v8551
        %v8554 = vadd.s32 %v8553, %v8543
        %v8555 = vadd.s32 %v8554, %v8545
        %v8556 = vmul.u32 %v8511, %v8502
        %v8557 = vadd.s32 %v8533, %v8552
        %vm8558 = vc.u32 %v8533, %v8552
        %v8559 = vadd.s32 %v8555, 1
        %v8560 = vsel %vm8558, %v8559, %v8555
        %v8561 = vadd.s32 %v8556, %v8560
        %v8562 = vadd.s32 %v8561, 536870912
        %v8563 = vshrl.u32 %v8562, 30
        %v8564 = vshll.u32 %v8563, 30
        %v8565 = vsub.s32 %v8561, %v8564
        %vm8566 = vcmp.lt.s32.totalorder %v8565, 0
        %v8567 = vsub.s32 0, %v8565
        %v8568 = vsel %vm8566, %v8567, %v8565
        %v8569 = vclz %v8568
        %v8570 = vsub.s32 %v8569, 2
        %vm8571 = vcmp.gt.s32.totalorder 0, %v8570
        %v8572 = vsel %vm8571, 0, %v8570
        %v8573 = vsub.s32 32, %v8572
        %v8574 = vshll.u32 %v8565, %v8572
        %v8575 = vshrl.u32 %v8557, %v8573
        %v8576 = vor.u32 %v8574, %v8575
        %v8577 = vsub.s32 4294967266, %v8572
        %v8578 = vadd.s32 %v8577, 127
        %v8579 = vshll.u32 %v8578, 23
        %v8580 = vor.u32 4788187, %v8579
        %v8581 = vand.u32 2147483647, %v8580
        %v8583 = vcvt.s32.f32 %v8576
        %v8584 = vmul.f32 %v8583, %v8581
        %v8585 = vxor.u32 %v8584, 2147483648
        %v8586 = vsel %vm8465, %v8585, %v8584
        %v8587 = vsub.s32 4, %v8563
        %v8588 = vsel %vm8465, %v8587, %v8563
        %v8589 = vsel %vm8464, %v699, %v8586
        %v8590 = vsel %vm8464, 0, %v8588
        %v8591 = vmul.f32 %v8589, %v8589
        %v8592 = vmul.f32 %v8591, -0.001358992
        %v8593 = vadd.f32 %v8592, 0.041655596
        %v8594 = vmul.f32 %v8591, %v8593
        %v8595 = vadd.f32 %v8594, -0.4999988
        %v8596 = vmul.f32 %v8591, %v8595
        %v8597 = vadd.f32 1.0, %v8596
        %v8598 = vmul.f32 %v8589, %v8589
        %v8599 = vmul.f32 %v8598, -0.00019511016
        %v8600 = vadd.f32 %v8599, 0.008332121
        %v8601 = vmul.f32 %v8598, %v8600
        %v8602 = vadd.f32 %v8601, -0.16666654
        %v8603 = vmul.f32 %v8598, %v8602
        %v8604 = vadd.f32 %v8603, 1.0
        %v8605 = vmul.f32 %v8604, %v8589
        %vm8606 = vweird.f32 %v699
        %v8607 = vadd.s32 %v8590, 3
        %v8608 = vand.u32 %v8607, 3
        %vm8609 = vcmp.lt.s32.totalorder %v8608, 2
        %vm8610 = vcmp.eq.s32.totalorder %v8608, 0
        %v8611 = vxor.u32 %v8605, 2147483648
        %v8612 = vsel %vm8610, %v8597, %v8611
        %vm8613 = vcmp.eq.s32.totalorder %v8608, 2
        %v8614 = vxor.u32 %v8597, 2147483648
        %v8615 = vsel %vm8613, %v8614, %v8605
        %v8616 = vsel %vm8609, %v8612, %v8615
        %v8617 = vsel %vm8606, nan, %v8616
        %v8618 = vand.u32 2147483647, %v700
        %vm8619 = vcmp.le.f32.partialorder %v8618, 0.7853982
        %vm8620 = vcmp.lt.s32.totalorder %v700, 0
        %v8621 = vand.u32 %v700, 2139095040
        %v8622 = vshrl.u32 %v8621, 23
        %v8623 = vsub.s32 %v8622, 127
        %v8624 = vand.u32 2147483647, %v700
        %v8625 = vand.u32 %v8624, 8388607
        %v8626 = vor.u32 %v8625, 8388608
        %v8627 = vsub.s32 0, %v8626
        %v8628 = vadd.s32 %v8623, 1
        %vm8629 = vcmp.gt.s32.totalorder %v8628, 0
        %v8630 = vsel %vm8629, %v8628, 0
        %v8631 = vshrl.u32 %v8630, 5
        %v8632 = vand.u32 %v8630, 31
        %v8633 = vsub.s32 32, %v8632
        %v8634 = vshrl.u32 683565275, %v8633
        %v8635 = vshll.u32 683565275, %v8632
        %v8636 = vshrl.u32 2475754826, %v8633
        %v8637 = vor.u32 %v8635, %v8636
        %v8638 = vshll.u32 2475754826, %v8632
        %v8639 = vshrl.u32 2131351028, %v8633
        %v8640 = vor.u32 %v8638, %v8639
        %v8641 = vshll.u32 2131351028, %v8632
        %v8642 = vshrl.u32 2102212464, %v8633
        %v8643 = vor.u32 %v8641, %v8642
        %v8644 = vshll.u32 2102212464, %v8632
        %v8645 = vshrl.u32 920167782, %v8633
        %v8646 = vor.u32 %v8644, %v8645
        %v8647 = vshll.u32 920167782, %v8632
        %v8648 = vshrl.u32 1326507024, %v8633
        %v8649 = vor.u32 %v8647, %v8648
        %vm8650 = vcmp.lt.s32.totalorder %v8631, 1
        %vm8651 = vcmp.lt.s32.totalorder %v8631, 2
        %vm8652 = vcmp.lt.s32.totalorder %v8631, 3
        %vm8653 = vcmp.lt.s32.totalorder %v8631, 4
        %v8654 = vsel %vm8650, %v8634, %v8637
        %v8655 = vsel %vm8653, %v8643, 2102212464
        %v8656 = vsel %vm8652, %v8640, %v8655
        %v8657 = vsel %vm8651, %v8654, %v8656
        %v8658 = vsel %vm8650, %v8637, %v8640
        %v8659 = vsel %vm8653, %v8646, 920167782
        %v8660 = vsel %vm8652, %v8643, %v8659
        %v8661 = vsel %vm8651, %v8658, %v8660
        %v8662 = vsel %vm8650, %v8640, %v8643
        %v8663 = vsel %vm8653, %v8649, 1326507024
        %v8664 = vsel %vm8652, %v8646, %v8663
        %v8665 = vsel %vm8651, %v8662, %v8664
        %v8666 = vshll.u32 %v8626, 8
        %v8667 = vand.u32 %v8666, 65535
        %v8668 = vshrl.u32 %v8666, 16
        %v8669 = vand.u32 %v8665, 65535
        %v8670 = vshrl.u32 %v8665, 16
        %v8671 = vmul.u32 %v8667, %v8669
        %v8672 = vmul.u32 %v8667, %v8670
        %v8673 = vmul.u32 %v8668, %v8669
        %v8674 = vmul.u32 %v8668, %v8670
        %v8675 = vshll.u32 %v8672, 16
        %v8676 = vshrl.u32 %v8672, 16
        %v8677 = vshll.u32 %v8673, 16
        %v8678 = vshrl.u32 %v8673, 16
        %vm8679 = vc.u32 %v8671, %v8675
        %v8680 = vsel %vm8679, 1, 0
        %v8681 = vadd.s32 %v8671, %v8675
        %v8682 = vadd.s32 %v8674, %v8680
        %vm8683 = vc.u32 %v8681, %v8677
        %v8684 = vsel %vm8683, 1, 0
        %v8685 = vadd.s32 %v8681, %v8677
        %v8686 = vadd.s32 %v8682, %v8684
        %v8687 = vadd.s32 %v8686, %v8676
        %v8688 = vadd.s32 %v8687, %v8678
        %v8689 = vand.u32 %v8666, 65535
        %v8690 = vshrl.u32 %v8666, 16
        %v8691 = vand.u32 %v8661, 65535
        %v8692 = vshrl.u32 %v8661, 16
        %v8693 = vmul.u32 %v8689, %v8691
        %v8694 = vmul.u32 %v8689, %v8692
        %v8695 = vmul.u32 %v8690, %v8691
        %v8696 = vmul.u32 %v8690, %v8692
        %v8697 = vshll.u32 %v8694, 16
        %v8698 = vshrl.u32 %v8694, 16
        %v8699 = vshll.u32 %v8695, 16
        %v8700 = vshrl.u32 %v8695, 16
        %vm8701 = vc.u32 %v8693, %v8697
        %v8702 = vsel %vm8701, 1, 0
        %v8703 = vadd.s32 %v8693, %v8697
        %v8704 = vadd.s32 %v8696, %v8702
        %vm8705 = vc.u32 %v8703, %v8699
        %v8706 = vsel %vm8705, 1, 0
        %v8707 = vadd.s32 %v8703, %v8699
        %v8708 = vadd.s32 %v8704, %v8706
        %v8709 = vadd.s32 %v8708, %v8698
        %v8710 = vadd.s32 %v8709, %v8700
        %v8711 = vmul.u32 %v8666, %v8657
        %v8712 = vadd.s32 %v8688, %v8707
        %vm8713 = vc.u32 %v8688, %v8707
        %v8714 = vadd.s32 %v8710, 1
        %v8715 = vsel %vm8713, %v8714, %v8710
        %v8716 = vadd.s32 %v8711, %v8715
        %v8717 = vadd.s32 %v8716, 536870912
        %v8718 = vshrl.u32 %v8717, 30
        %v8719 = vshll.u32 %v8718, 30
        %v8720 = vsub.s32 %v8716, %v8719
        %vm8721 = vcmp.lt.s32.totalorder %v8720, 0
        %v8722 = vsub.s32 0, %v8720
        %v8723 = vsel %vm8721, %v8722, %v8720
        %v8724 = vclz %v8723
        %v8725 = vsub.s32 %v8724, 2
        %vm8726 = vcmp.gt.s32.totalorder 0, %v8725
        %v8727 = vsel %vm8726, 0, %v8725
        %v8728 = vsub.s32 32, %v8727
        %v8729 = vshll.u32 %v8720, %v8727
        %v8730 = vshrl.u32 %v8712, %v8728
        %v8731 = vor.u32 %v8729, %v8730
        %v8732 = vsub.s32 4294967266, %v8727
        %v8733 = vadd.s32 %v8732, 127
        %v8734 = vshll.u32 %v8733, 23
        %v8735 = vor.u32 4788187, %v8734
        %v8736 = vand.u32 2147483647, %v8735
        %v8738 = vcvt.s32.f32 %v8731
        %v8739 = vmul.f32 %v8738, %v8736
        %v8740 = vxor.u32 %v8739, 2147483648
        %v8741 = vsel %vm8620, %v8740, %v8739
        %v8742 = vsub.s32 4, %v8718
        %v8743 = vsel %vm8620, %v8742, %v8718
        %v8744 = vsel %vm8619, %v700, %v8741
        %v8745 = vsel %vm8619, 0, %v8743
        %v8746 = vmul.f32 %v8744, %v8744
        %v8747 = vmul.f32 %v8746, -0.001358992
        %v8748 = vadd.f32 %v8747, 0.041655596
        %v8749 = vmul.f32 %v8746, %v8748
        %v8750 = vadd.f32 %v8749, -0.4999988
        %v8751 = vmul.f32 %v8746, %v8750
        %v8752 = vadd.f32 1.0, %v8751
        %v8753 = vmul.f32 %v8744, %v8744
        %v8754 = vmul.f32 %v8753, -0.00019511016
        %v8755 = vadd.f32 %v8754, 0.008332121
        %v8756 = vmul.f32 %v8753, %v8755
        %v8757 = vadd.f32 %v8756, -0.16666654
        %v8758 = vmul.f32 %v8753, %v8757
        %v8759 = vadd.f32 %v8758, 1.0
        %v8760 = vmul.f32 %v8759, %v8744
        %vm8761 = vweird.f32 %v700
        %v8762 = vadd.s32 %v8745, 3
        %v8763 = vand.u32 %v8762, 3
        %vm8764 = vcmp.lt.s32.totalorder %v8763, 2
        %vm8765 = vcmp.eq.s32.totalorder %v8763, 0
        %v8766 = vxor.u32 %v8760, 2147483648
        %v8767 = vsel %vm8765, %v8752, %v8766
        %vm8768 = vcmp.eq.s32.totalorder %v8763, 2
        %v8769 = vxor.u32 %v8752, 2147483648
        %v8770 = vsel %vm8768, %v8769, %v8760
        %v8771 = vsel %vm8764, %v8767, %v8770
        %v8772 = vsel %vm8761, nan, %v8771
        %v8773 = vand.u32 2147483647, %v701
        %vm8774 = vcmp.le.f32.partialorder %v8773, 0.7853982
        %vm8775 = vcmp.lt.s32.totalorder %v701, 0
        %v8776 = vand.u32 %v701, 2139095040
        %v8777 = vshrl.u32 %v8776, 23
        %v8778 = vsub.s32 %v8777, 127
        %v8779 = vand.u32 2147483647, %v701
        %v8780 = vand.u32 %v8779, 8388607
        %v8781 = vor.u32 %v8780, 8388608
        %v8782 = vsub.s32 0, %v8781
        %v8783 = vadd.s32 %v8778, 1
        %vm8784 = vcmp.gt.s32.totalorder %v8783, 0
        %v8785 = vsel %vm8784, %v8783, 0
        %v8786 = vshrl.u32 %v8785, 5
        %v8787 = vand.u32 %v8785, 31
        %v8788 = vsub.s32 32, %v8787
        %v8789 = vshrl.u32 683565275, %v8788
        %v8790 = vshll.u32 683565275, %v8787
        %v8791 = vshrl.u32 2475754826, %v8788
        %v8792 = vor.u32 %v8790, %v8791
        %v8793 = vshll.u32 2475754826, %v8787
        %v8794 = vshrl.u32 2131351028, %v8788
        %v8795 = vor.u32 %v8793, %v8794
        %v8796 = vshll.u32 2131351028, %v8787
        %v8797 = vshrl.u32 2102212464, %v8788
        %v8798 = vor.u32 %v8796, %v8797
        %v8799 = vshll.u32 2102212464, %v8787
        %v8800 = vshrl.u32 920167782, %v8788
        %v8801 = vor.u32 %v8799, %v8800
        %v8802 = vshll.u32 920167782, %v8787
        %v8803 = vshrl.u32 1326507024, %v8788
        %v8804 = vor.u32 %v8802, %v8803
        %vm8805 = vcmp.lt.s32.totalorder %v8786, 1
        %vm8806 = vcmp.lt.s32.totalorder %v8786, 2
        %vm8807 = vcmp.lt.s32.totalorder %v8786, 3
        %vm8808 = vcmp.lt.s32.totalorder %v8786, 4
        %v8809 = vsel %vm8805, %v8789, %v8792
        %v8810 = vsel %vm8808, %v8798, 2102212464
        %v8811 = vsel %vm8807, %v8795, %v8810
        %v8812 = vsel %vm8806, %v8809, %v8811
        %v8813 = vsel %vm8805, %v8792, %v8795
        %v8814 = vsel %vm8808, %v8801, 920167782
        %v8815 = vsel %vm8807, %v8798, %v8814
        %v8816 = vsel %vm8806, %v8813, %v8815
        %v8817 = vsel %vm8805, %v8795, %v8798
        %v8818 = vsel %vm8808, %v8804, 1326507024
        %v8819 = vsel %vm8807, %v8801, %v8818
        %v8820 = vsel %vm8806, %v8817, %v8819
        %v8821 = vshll.u32 %v8781, 8
        %v8822 = vand.u32 %v8821, 65535
        %v8823 = vshrl.u32 %v8821, 16
        %v8824 = vand.u32 %v8820, 65535
        %v8825 = vshrl.u32 %v8820, 16
        %v8826 = vmul.u32 %v8822, %v8824
        %v8827 = vmul.u32 %v8822, %v8825
        %v8828 = vmul.u32 %v8823, %v8824
        %v8829 = vmul.u32 %v8823, %v8825
        %v8830 = vshll.u32 %v8827, 16
        %v8831 = vshrl.u32 %v8827, 16
        %v8832 = vshll.u32 %v8828, 16
        %v8833 = vshrl.u32 %v8828, 16
        %vm8834 = vc.u32 %v8826, %v8830
        %v8835 = vsel %vm8834, 1, 0
        %v8836 = vadd.s32 %v8826, %v8830
        %v8837 = vadd.s32 %v8829, %v8835
        %vm8838 = vc.u32 %v8836, %v8832
        %v8839 = vsel %vm8838, 1, 0
        %v8840 = vadd.s32 %v8836, %v8832
        %v8841 = vadd.s32 %v8837, %v8839
        %v8842 = vadd.s32 %v8841, %v8831
        %v8843 = vadd.s32 %v8842, %v8833
        %v8844 = vand.u32 %v8821, 65535
        %v8845 = vshrl.u32 %v8821, 16
        %v8846 = vand.u32 %v8816, 65535
        %v8847 = vshrl.u32 %v8816, 16
        %v8848 = vmul.u32 %v8844, %v8846
        %v8849 = vmul.u32 %v8844, %v8847
        %v8850 = vmul.u32 %v8845, %v8846
        %v8851 = vmul.u32 %v8845, %v8847
        %v8852 = vshll.u32 %v8849, 16
        %v8853 = vshrl.u32 %v8849, 16
        %v8854 = vshll.u32 %v8850, 16
        %v8855 = vshrl.u32 %v8850, 16
        %vm8856 = vc.u32 %v8848, %v8852
        %v8857 = vsel %vm8856, 1, 0
        %v8858 = vadd.s32 %v8848, %v8852
        %v8859 = vadd.s32 %v8851, %v8857
        %vm8860 = vc.u32 %v8858, %v8854
        %v8861 = vsel %vm8860, 1, 0
        %v8862 = vadd.s32 %v8858, %v8854
        %v8863 = vadd.s32 %v8859, %v8861
        %v8864 = vadd.s32 %v8863, %v8853
        %v8865 = vadd.s32 %v8864, %v8855
        %v8866 = vmul.u32 %v8821, %v8812
        %v8867 = vadd.s32 %v8843, %v8862
        %vm8868 = vc.u32 %v8843, %v8862
        %v8869 = vadd.s32 %v8865, 1
        %v8870 = vsel %vm8868, %v8869, %v8865
        %v8871 = vadd.s32 %v8866, %v8870
        %v8872 = vadd.s32 %v8871, 536870912
        %v8873 = vshrl.u32 %v8872, 30
        %v8874 = vshll.u32 %v8873, 30
        %v8875 = vsub.s32 %v8871, %v8874
        %vm8876 = vcmp.lt.s32.totalorder %v8875, 0
        %v8877 = vsub.s32 0, %v8875
        %v8878 = vsel %vm8876, %v8877, %v8875
        %v8879 = vclz %v8878
        %v8880 = vsub.s32 %v8879, 2
        %vm8881 = vcmp.gt.s32.totalorder 0, %v8880
        %v8882 = vsel %vm8881, 0, %v8880
        %v8883 = vsub.s32 32, %v8882
        %v8884 = vshll.u32 %v8875, %v8882
        %v8885 = vshrl.u32 %v8867, %v8883
        %v8886 = vor.u32 %v8884, %v8885
        %v8887 = vsub.s32 4294967266, %v8882
        %v8888 = vadd.s32 %v8887, 127
        %v8889 = vshll.u32 %v8888, 23
        %v8890 = vor.u32 4788187, %v8889
        %v8891 = vand.u32 2147483647, %v8890
        %v8893 = vcvt.s32.f32 %v8886
        %v8894 = vmul.f32 %v8893, %v8891
        %v8895 = vxor.u32 %v8894, 2147483648
        %v8896 = vsel %vm8775, %v8895, %v8894
        %v8897 = vsub.s32 4, %v8873
        %v8898 = vsel %vm8775, %v8897, %v8873
        %v8899 = vsel %vm8774, %v701, %v8896
        %v8900 = vsel %vm8774, 0, %v8898
        %v8901 = vmul.f32 %v8899, %v8899
        %v8902 = vmul.f32 %v8901, -0.001358992
        %v8903 = vadd.f32 %v8902, 0.041655596
        %v8904 = vmul.f32 %v8901, %v8903
        %v8905 = vadd.f32 %v8904, -0.4999988
        %v8906 = vmul.f32 %v8901, %v8905
        %v8907 = vadd.f32 1.0, %v8906
        %v8908 = vmul.f32 %v8899, %v8899
        %v8909 = vmul.f32 %v8908, -0.00019511016
        %v8910 = vadd.f32 %v8909, 0.008332121
        %v8911 = vmul.f32 %v8908, %v8910
        %v8912 = vadd.f32 %v8911, -0.16666654
        %v8913 = vmul.f32 %v8908, %v8912
        %v8914 = vadd.f32 %v8913, 1.0
        %v8915 = vmul.f32 %v8914, %v8899
        %vm8916 = vweird.f32 %v701
        %v8917 = vadd.s32 %v8900, 3
        %v8918 = vand.u32 %v8917, 3
        %vm8919 = vcmp.lt.s32.totalorder %v8918, 2
        %vm8920 = vcmp.eq.s32.totalorder %v8918, 0
        %v8921 = vxor.u32 %v8915, 2147483648
        %v8922 = vsel %vm8920, %v8907, %v8921
        %vm8923 = vcmp.eq.s32.totalorder %v8918, 2
        %v8924 = vxor.u32 %v8907, 2147483648
        %v8925 = vsel %vm8923, %v8924, %v8915
        %v8926 = vsel %vm8919, %v8922, %v8925
        %v8927 = vsel %vm8916, nan, %v8926
        %v8928 = vand.u32 2147483647, %v702
        %vm8929 = vcmp.le.f32.partialorder %v8928, 0.7853982
        %vm8930 = vcmp.lt.s32.totalorder %v702, 0
        %v8931 = vand.u32 %v702, 2139095040
        %v8932 = vshrl.u32 %v8931, 23
        %v8933 = vsub.s32 %v8932, 127
        %v8934 = vand.u32 2147483647, %v702
        %v8935 = vand.u32 %v8934, 8388607
        %v8936 = vor.u32 %v8935, 8388608
        %v8937 = vsub.s32 0, %v8936
        %v8938 = vadd.s32 %v8933, 1
        %vm8939 = vcmp.gt.s32.totalorder %v8938, 0
        %v8940 = vsel %vm8939, %v8938, 0
        %v8941 = vshrl.u32 %v8940, 5
        %v8942 = vand.u32 %v8940, 31
        %v8943 = vsub.s32 32, %v8942
        %v8944 = vshrl.u32 683565275, %v8943
        %v8945 = vshll.u32 683565275, %v8942
        %v8946 = vshrl.u32 2475754826, %v8943
        %v8947 = vor.u32 %v8945, %v8946
        %v8948 = vshll.u32 2475754826, %v8942
        %v8949 = vshrl.u32 2131351028, %v8943
        %v8950 = vor.u32 %v8948, %v8949
        %v8951 = vshll.u32 2131351028, %v8942
        %v8952 = vshrl.u32 2102212464, %v8943
        %v8953 = vor.u32 %v8951, %v8952
        %v8954 = vshll.u32 2102212464, %v8942
        %v8955 = vshrl.u32 920167782, %v8943
        %v8956 = vor.u32 %v8954, %v8955
        %v8957 = vshll.u32 920167782, %v8942
        %v8958 = vshrl.u32 1326507024, %v8943
        %v8959 = vor.u32 %v8957, %v8958
        %vm8960 = vcmp.lt.s32.totalorder %v8941, 1
        %vm8961 = vcmp.lt.s32.totalorder %v8941, 2
        %vm8962 = vcmp.lt.s32.totalorder %v8941, 3
        %vm8963 = vcmp.lt.s32.totalorder %v8941, 4
        %v8964 = vsel %vm8960, %v8944, %v8947
        %v8965 = vsel %vm8963, %v8953, 2102212464
        %v8966 = vsel %vm8962, %v8950, %v8965
        %v8967 = vsel %vm8961, %v8964, %v8966
        %v8968 = vsel %vm8960, %v8947, %v8950
        %v8969 = vsel %vm8963, %v8956, 920167782
        %v8970 = vsel %vm8962, %v8953, %v8969
        %v8971 = vsel %vm8961, %v8968, %v8970
        %v8972 = vsel %vm8960, %v8950, %v8953
        %v8973 = vsel %vm8963, %v8959, 1326507024
        %v8974 = vsel %vm8962, %v8956, %v8973
        %v8975 = vsel %vm8961, %v8972, %v8974
        %v8976 = vshll.u32 %v8936, 8
        %v8977 = vand.u32 %v8976, 65535
        %v8978 = vshrl.u32 %v8976, 16
        %v8979 = vand.u32 %v8975, 65535
        %v8980 = vshrl.u32 %v8975, 16
        %v8981 = vmul.u32 %v8977, %v8979
        %v8982 = vmul.u32 %v8977, %v8980
        %v8983 = vmul.u32 %v8978, %v8979
        %v8984 = vmul.u32 %v8978, %v8980
        %v8985 = vshll.u32 %v8982, 16
        %v8986 = vshrl.u32 %v8982, 16
        %v8987 = vshll.u32 %v8983, 16
        %v8988 = vshrl.u32 %v8983, 16
        %vm8989 = vc.u32 %v8981, %v8985
        %v8990 = vsel %vm8989, 1, 0
        %v8991 = vadd.s32 %v8981, %v8985
        %v8992 = vadd.s32 %v8984, %v8990
        %vm8993 = vc.u32 %v8991, %v8987
        %v8994 = vsel %vm8993, 1, 0
        %v8995 = vadd.s32 %v8991, %v8987
        %v8996 = vadd.s32 %v8992, %v8994
        %v8997 = vadd.s32 %v8996, %v8986
        %v8998 = vadd.s32 %v8997, %v8988
        %v8999 = vand.u32 %v8976, 65535
        %v9000 = vshrl.u32 %v8976, 16
        %v9001 = vand.u32 %v8971, 65535
        %v9002 = vshrl.u32 %v8971, 16
        %v9003 = vmul.u32 %v8999, %v9001
        %v9004 = vmul.u32 %v8999, %v9002
        %v9005 = vmul.u32 %v9000, %v9001
        %v9006 = vmul.u32 %v9000, %v9002
        %v9007 = vshll.u32 %v9004, 16
        %v9008 = vshrl.u32 %v9004, 16
        %v9009 = vshll.u32 %v9005, 16
        %v9010 = vshrl.u32 %v9005, 16
        %vm9011 = vc.u32 %v9003, %v9007
        %v9012 = vsel %vm9011, 1, 0
        %v9013 = vadd.s32 %v9003, %v9007
        %v9014 = vadd.s32 %v9006, %v9012
        %vm9015 = vc.u32 %v9013, %v9009
        %v9016 = vsel %vm9015, 1, 0
        %v9017 = vadd.s32 %v9013, %v9009
        %v9018 = vadd.s32 %v9014, %v9016
        %v9019 = vadd.s32 %v9018, %v9008
        %v9020 = vadd.s32 %v9019, %v9010
        %v9021 = vmul.u32 %v8976, %v8967
        %v9022 = vadd.s32 %v8998, %v9017
        %vm9023 = vc.u32 %v8998, %v9017
        %v9024 = vadd.s32 %v9020, 1
        %v9025 = vsel %vm9023, %v9024, %v9020
        %v9026 = vadd.s32 %v9021, %v9025
        %v9027 = vadd.s32 %v9026, 536870912
        %v9028 = vshrl.u32 %v9027, 30
        %v9029 = vshll.u32 %v9028, 30
        %v9030 = vsub.s32 %v9026, %v9029
        %vm9031 = vcmp.lt.s32.totalorder %v9030, 0
        %v9032 = vsub.s32 0, %v9030
        %v9033 = vsel %vm9031, %v9032, %v9030
        %v9034 = vclz %v9033
        %v9035 = vsub.s32 %v9034, 2
        %vm9036 = vcmp.gt.s32.totalorder 0, %v9035
        %v9037 = vsel %vm9036, 0, %v9035
        %v9038 = vsub.s32 32, %v9037
        %v9039 = vshll.u32 %v9030, %v9037
        %v9040 = vshrl.u32 %v9022, %v9038
        %v9041 = vor.u32 %v9039, %v9040
        %v9042 = vsub.s32 4294967266, %v9037
        %v9043 = vadd.s32 %v9042, 127
        %v9044 = vshll.u32 %v9043, 23
        %v9045 = vor.u32 4788187, %v9044
        %v9046 = vand.u32 2147483647, %v9045
        %v9048 = vcvt.s32.f32 %v9041
        %v9049 = vmul.f32 %v9048, %v9046
        %v9050 = vxor.u32 %v9049, 2147483648
        %v9051 = vsel %vm8930, %v9050, %v9049
        %v9052 = vsub.s32 4, %v9028
        %v9053 = vsel %vm8930, %v9052, %v9028
        %v9054 = vsel %vm8929, %v702, %v9051
        %v9055 = vsel %vm8929, 0, %v9053
        %v9056 = vmul.f32 %v9054, %v9054
        %v9057 = vmul.f32 %v9056, -0.001358992
        %v9058 = vadd.f32 %v9057, 0.041655596
        %v9059 = vmul.f32 %v9056, %v9058
        %v9060 = vadd.f32 %v9059, -0.4999988
        %v9061 = vmul.f32 %v9056, %v9060
        %v9062 = vadd.f32 1.0, %v9061
        %v9063 = vmul.f32 %v9054, %v9054
        %v9064 = vmul.f32 %v9063, -0.00019511016
        %v9065 = vadd.f32 %v9064, 0.008332121
        %v9066 = vmul.f32 %v9063, %v9065
        %v9067 = vadd.f32 %v9066, -0.16666654
        %v9068 = vmul.f32 %v9063, %v9067
        %v9069 = vadd.f32 %v9068, 1.0
        %v9070 = vmul.f32 %v9069, %v9054
        %vm9071 = vweird.f32 %v702
        %v9072 = vadd.s32 %v9055, 3
        %v9073 = vand.u32 %v9072, 3
        %vm9074 = vcmp.lt.s32.totalorder %v9073, 2
        %vm9075 = vcmp.eq.s32.totalorder %v9073, 0
        %v9076 = vxor.u32 %v9070, 2147483648
        %v9077 = vsel %vm9075, %v9062, %v9076
        %vm9078 = vcmp.eq.s32.totalorder %v9073, 2
        %v9079 = vxor.u32 %v9062, 2147483648
        %v9080 = vsel %vm9078, %v9079, %v9070
        %v9081 = vsel %vm9074, %v9077, %v9080
        %v9082 = vsel %vm9071, nan, %v9081
        %v9083 = vand.u32 2147483647, %v703
        %vm9084 = vcmp.le.f32.partialorder %v9083, 0.7853982
        %vm9085 = vcmp.lt.s32.totalorder %v703, 0
        %v9086 = vand.u32 %v703, 2139095040
        %v9087 = vshrl.u32 %v9086, 23
        %v9088 = vsub.s32 %v9087, 127
        %v9089 = vand.u32 2147483647, %v703
        %v9090 = vand.u32 %v9089, 8388607
        %v9091 = vor.u32 %v9090, 8388608
        %v9092 = vsub.s32 0, %v9091
        %v9093 = vadd.s32 %v9088, 1
        %vm9094 = vcmp.gt.s32.totalorder %v9093, 0
        %v9095 = vsel %vm9094, %v9093, 0
        %v9096 = vshrl.u32 %v9095, 5
        %v9097 = vand.u32 %v9095, 31
        %v9098 = vsub.s32 32, %v9097
        %v9099 = vshrl.u32 683565275, %v9098
        %v9100 = vshll.u32 683565275, %v9097
        %v9101 = vshrl.u32 2475754826, %v9098
        %v9102 = vor.u32 %v9100, %v9101
        %v9103 = vshll.u32 2475754826, %v9097
        %v9104 = vshrl.u32 2131351028, %v9098
        %v9105 = vor.u32 %v9103, %v9104
        %v9106 = vshll.u32 2131351028, %v9097
        %v9107 = vshrl.u32 2102212464, %v9098
        %v9108 = vor.u32 %v9106, %v9107
        %v9109 = vshll.u32 2102212464, %v9097
        %v9110 = vshrl.u32 920167782, %v9098
        %v9111 = vor.u32 %v9109, %v9110
        %v9112 = vshll.u32 920167782, %v9097
        %v9113 = vshrl.u32 1326507024, %v9098
        %v9114 = vor.u32 %v9112, %v9113
        %vm9115 = vcmp.lt.s32.totalorder %v9096, 1
        %vm9116 = vcmp.lt.s32.totalorder %v9096, 2
        %vm9117 = vcmp.lt.s32.totalorder %v9096, 3
        %vm9118 = vcmp.lt.s32.totalorder %v9096, 4
        %v9119 = vsel %vm9115, %v9099, %v9102
        %v9120 = vsel %vm9118, %v9108, 2102212464
        %v9121 = vsel %vm9117, %v9105, %v9120
        %v9122 = vsel %vm9116, %v9119, %v9121
        %v9123 = vsel %vm9115, %v9102, %v9105
        %v9124 = vsel %vm9118, %v9111, 920167782
        %v9125 = vsel %vm9117, %v9108, %v9124
        %v9126 = vsel %vm9116, %v9123, %v9125
        %v9127 = vsel %vm9115, %v9105, %v9108
        %v9128 = vsel %vm9118, %v9114, 1326507024
        %v9129 = vsel %vm9117, %v9111, %v9128
        %v9130 = vsel %vm9116, %v9127, %v9129
        %v9131 = vshll.u32 %v9091, 8
        %v9132 = vand.u32 %v9131, 65535
        %v9133 = vshrl.u32 %v9131, 16
        %v9134 = vand.u32 %v9130, 65535
        %v9135 = vshrl.u32 %v9130, 16
        %v9136 = vmul.u32 %v9132, %v9134
        %v9137 = vmul.u32 %v9132, %v9135
        %v9138 = vmul.u32 %v9133, %v9134
        %v9139 = vmul.u32 %v9133, %v9135
        %v9140 = vshll.u32 %v9137, 16
        %v9141 = vshrl.u32 %v9137, 16
        %v9142 = vshll.u32 %v9138, 16
        %v9143 = vshrl.u32 %v9138, 16
        %vm9144 = vc.u32 %v9136, %v9140
        %v9145 = vsel %vm9144, 1, 0
        %v9146 = vadd.s32 %v9136, %v9140
        %v9147 = vadd.s32 %v9139, %v9145
        %vm9148 = vc.u32 %v9146, %v9142
        %v9149 = vsel %vm9148, 1, 0
        %v9150 = vadd.s32 %v9146, %v9142
        %v9151 = vadd.s32 %v9147, %v9149
        %v9152 = vadd.s32 %v9151, %v9141
        %v9153 = vadd.s32 %v9152, %v9143
        %v9154 = vand.u32 %v9131, 65535
        %v9155 = vshrl.u32 %v9131, 16
        %v9156 = vand.u32 %v9126, 65535
        %v9157 = vshrl.u32 %v9126, 16
        %v9158 = vmul.u32 %v9154, %v9156
        %v9159 = vmul.u32 %v9154, %v9157
        %v9160 = vmul.u32 %v9155, %v9156
        %v9161 = vmul.u32 %v9155, %v9157
        %v9162 = vshll.u32 %v9159, 16
        %v9163 = vshrl.u32 %v9159, 16
        %v9164 = vshll.u32 %v9160, 16
        %v9165 = vshrl.u32 %v9160, 16
        %vm9166 = vc.u32 %v9158, %v9162
        %v9167 = vsel %vm9166, 1, 0
        %v9168 = vadd.s32 %v9158, %v9162
        %v9169 = vadd.s32 %v9161, %v9167
        %vm9170 = vc.u32 %v9168, %v9164
        %v9171 = vsel %vm9170, 1, 0
        %v9172 = vadd.s32 %v9168, %v9164
        %v9173 = vadd.s32 %v9169, %v9171
        %v9174 = vadd.s32 %v9173, %v9163
        %v9175 = vadd.s32 %v9174, %v9165
        %v9176 = vmul.u32 %v9131, %v9122
        %v9177 = vadd.s32 %v9153, %v9172
        %vm9178 = vc.u32 %v9153, %v9172
        %v9179 = vadd.s32 %v9175, 1
        %v9180 = vsel %vm9178, %v9179, %v9175
        %v9181 = vadd.s32 %v9176, %v9180
        %v9182 = vadd.s32 %v9181, 536870912
        %v9183 = vshrl.u32 %v9182, 30
        %v9184 = vshll.u32 %v9183, 30
        %v9185 = vsub.s32 %v9181, %v9184
        %vm9186 = vcmp.lt.s32.totalorder %v9185, 0
        %v9187 = vsub.s32 0, %v9185
        %v9188 = vsel %vm9186, %v9187, %v9185
        %v9189 = vclz %v9188
        %v9190 = vsub.s32 %v9189, 2
        %vm9191 = vcmp.gt.s32.totalorder 0, %v9190
        %v9192 = vsel %vm9191, 0, %v9190
        %v9193 = vsub.s32 32, %v9192
        %v9194 = vshll.u32 %v9185, %v9192
        %v9195 = vshrl.u32 %v9177, %v9193
        %v9196 = vor.u32 %v9194, %v9195
        %v9197 = vsub.s32 4294967266, %v9192
        %v9198 = vadd.s32 %v9197, 127
        %v9199 = vshll.u32 %v9198, 23
        %v9200 = vor.u32 4788187, %v9199
        %v9201 = vand.u32 2147483647, %v9200
        %v9203 = vcvt.s32.f32 %v9196
        %v9204 = vmul.f32 %v9203, %v9201
        %v9205 = vxor.u32 %v9204, 2147483648
        %v9206 = vsel %vm9085, %v9205, %v9204
        %v9207 = vsub.s32 4, %v9183
        %v9208 = vsel %vm9085, %v9207, %v9183
        %v9209 = vsel %vm9084, %v703, %v9206
        %v9210 = vsel %vm9084, 0, %v9208
        %v9211 = vmul.f32 %v9209, %v9209
        %v9212 = vmul.f32 %v9211, -0.001358992
        %v9213 = vadd.f32 %v9212, 0.041655596
        %v9214 = vmul.f32 %v9211, %v9213
        %v9215 = vadd.f32 %v9214, -0.4999988
        %v9216 = vmul.f32 %v9211, %v9215
        %v9217 = vadd.f32 1.0, %v9216
        %v9218 = vmul.f32 %v9209, %v9209
        %v9219 = vmul.f32 %v9218, -0.00019511016
        %v9220 = vadd.f32 %v9219, 0.008332121
        %v9221 = vmul.f32 %v9218, %v9220
        %v9222 = vadd.f32 %v9221, -0.16666654
        %v9223 = vmul.f32 %v9218, %v9222
        %v9224 = vadd.f32 %v9223, 1.0
        %v9225 = vmul.f32 %v9224, %v9209
        %vm9226 = vweird.f32 %v703
        %v9227 = vadd.s32 %v9210, 3
        %v9228 = vand.u32 %v9227, 3
        %vm9229 = vcmp.lt.s32.totalorder %v9228, 2
        %vm9230 = vcmp.eq.s32.totalorder %v9228, 0
        %v9231 = vxor.u32 %v9225, 2147483648
        %v9232 = vsel %vm9230, %v9217, %v9231
        %vm9233 = vcmp.eq.s32.totalorder %v9228, 2
        %v9234 = vxor.u32 %v9217, 2147483648
        %v9235 = vsel %vm9233, %v9234, %v9225
        %v9236 = vsel %vm9229, %v9232, %v9235
        %v9237 = vsel %vm9226, nan, %v9236
        %v9238 = vand.u32 2147483647, %v704
        %vm9239 = vcmp.le.f32.partialorder %v9238, 0.7853982
        %vm9240 = vcmp.lt.s32.totalorder %v704, 0
        %v9241 = vand.u32 %v704, 2139095040
        %v9242 = vshrl.u32 %v9241, 23
        %v9243 = vsub.s32 %v9242, 127
        %v9244 = vand.u32 2147483647, %v704
        %v9245 = vand.u32 %v9244, 8388607
        %v9246 = vor.u32 %v9245, 8388608
        %v9247 = vsub.s32 0, %v9246
        %v9248 = vadd.s32 %v9243, 1
        %vm9249 = vcmp.gt.s32.totalorder %v9248, 0
        %v9250 = vsel %vm9249, %v9248, 0
        %v9251 = vshrl.u32 %v9250, 5
        %v9252 = vand.u32 %v9250, 31
        %v9253 = vsub.s32 32, %v9252
        %v9254 = vshrl.u32 683565275, %v9253
        %v9255 = vshll.u32 683565275, %v9252
        %v9256 = vshrl.u32 2475754826, %v9253
        %v9257 = vor.u32 %v9255, %v9256
        %v9258 = vshll.u32 2475754826, %v9252
        %v9259 = vshrl.u32 2131351028, %v9253
        %v9260 = vor.u32 %v9258, %v9259
        %v9261 = vshll.u32 2131351028, %v9252
        %v9262 = vshrl.u32 2102212464, %v9253
        %v9263 = vor.u32 %v9261, %v9262
        %v9264 = vshll.u32 2102212464, %v9252
        %v9265 = vshrl.u32 920167782, %v9253
        %v9266 = vor.u32 %v9264, %v9265
        %v9267 = vshll.u32 920167782, %v9252
        %v9268 = vshrl.u32 1326507024, %v9253
        %v9269 = vor.u32 %v9267, %v9268
        %vm9270 = vcmp.lt.s32.totalorder %v9251, 1
        %vm9271 = vcmp.lt.s32.totalorder %v9251, 2
        %vm9272 = vcmp.lt.s32.totalorder %v9251, 3
        %vm9273 = vcmp.lt.s32.totalorder %v9251, 4
        %v9274 = vsel %vm9270, %v9254, %v9257
        %v9275 = vsel %vm9273, %v9263, 2102212464
        %v9276 = vsel %vm9272, %v9260, %v9275
        %v9277 = vsel %vm9271, %v9274, %v9276
        %v9278 = vsel %vm9270, %v9257, %v9260
        %v9279 = vsel %vm9273, %v9266, 920167782
        %v9280 = vsel %vm9272, %v9263, %v9279
        %v9281 = vsel %vm9271, %v9278, %v9280
        %v9282 = vsel %vm9270, %v9260, %v9263
        %v9283 = vsel %vm9273, %v9269, 1326507024
        %v9284 = vsel %vm9272, %v9266, %v9283
        %v9285 = vsel %vm9271, %v9282, %v9284
        %v9286 = vshll.u32 %v9246, 8
        %v9287 = vand.u32 %v9286, 65535
        %v9288 = vshrl.u32 %v9286, 16
        %v9289 = vand.u32 %v9285, 65535
        %v9290 = vshrl.u32 %v9285, 16
        %v9291 = vmul.u32 %v9287, %v9289
        %v9292 = vmul.u32 %v9287, %v9290
        %v9293 = vmul.u32 %v9288, %v9289
        %v9294 = vmul.u32 %v9288, %v9290
        %v9295 = vshll.u32 %v9292, 16
        %v9296 = vshrl.u32 %v9292, 16
        %v9297 = vshll.u32 %v9293, 16
        %v9298 = vshrl.u32 %v9293, 16
        %vm9299 = vc.u32 %v9291, %v9295
        %v9300 = vsel %vm9299, 1, 0
        %v9301 = vadd.s32 %v9291, %v9295
        %v9302 = vadd.s32 %v9294, %v9300
        %vm9303 = vc.u32 %v9301, %v9297
        %v9304 = vsel %vm9303, 1, 0
        %v9305 = vadd.s32 %v9301, %v9297
        %v9306 = vadd.s32 %v9302, %v9304
        %v9307 = vadd.s32 %v9306, %v9296
        %v9308 = vadd.s32 %v9307, %v9298
        %v9309 = vand.u32 %v9286, 65535
        %v9310 = vshrl.u32 %v9286, 16
        %v9311 = vand.u32 %v9281, 65535
        %v9312 = vshrl.u32 %v9281, 16
        %v9313 = vmul.u32 %v9309, %v9311
        %v9314 = vmul.u32 %v9309, %v9312
        %v9315 = vmul.u32 %v9310, %v9311
        %v9316 = vmul.u32 %v9310, %v9312
        %v9317 = vshll.u32 %v9314, 16
        %v9318 = vshrl.u32 %v9314, 16
        %v9319 = vshll.u32 %v9315, 16
        %v9320 = vshrl.u32 %v9315, 16
        %vm9321 = vc.u32 %v9313, %v9317
        %v9322 = vsel %vm9321, 1, 0
        %v9323 = vadd.s32 %v9313, %v9317
        %v9324 = vadd.s32 %v9316, %v9322
        %vm9325 = vc.u32 %v9323, %v9319
        %v9326 = vsel %vm9325, 1, 0
        %v9327 = vadd.s32 %v9323, %v9319
        %v9328 = vadd.s32 %v9324, %v9326
        %v9329 = vadd.s32 %v9328, %v9318
        %v9330 = vadd.s32 %v9329, %v9320
        %v9331 = vmul.u32 %v9286, %v9277
        %v9332 = vadd.s32 %v9308, %v9327
        %vm9333 = vc.u32 %v9308, %v9327
        %v9334 = vadd.s32 %v9330, 1
        %v9335 = vsel %vm9333, %v9334, %v9330
        %v9336 = vadd.s32 %v9331, %v9335
        %v9337 = vadd.s32 %v9336, 536870912
        %v9338 = vshrl.u32 %v9337, 30
        %v9339 = vshll.u32 %v9338, 30
        %v9340 = vsub.s32 %v9336, %v9339
        %vm9341 = vcmp.lt.s32.totalorder %v9340, 0
        %v9342 = vsub.s32 0, %v9340
        %v9343 = vsel %vm9341, %v9342, %v9340
        %v9344 = vclz %v9343
        %v9345 = vsub.s32 %v9344, 2
        %vm9346 = vcmp.gt.s32.totalorder 0, %v9345
        %v9347 = vsel %vm9346, 0, %v9345
        %v9348 = vsub.s32 32, %v9347
        %v9349 = vshll.u32 %v9340, %v9347
        %v9350 = vshrl.u32 %v9332, %v9348
        %v9351 = vor.u32 %v9349, %v9350
        %v9352 = vsub.s32 4294967266, %v9347
        %v9353 = vadd.s32 %v9352, 127
        %v9354 = vshll.u32 %v9353, 23
        %v9355 = vor.u32 4788187, %v9354
        %v9356 = vand.u32 2147483647, %v9355
        %v9358 = vcvt.s32.f32 %v9351
        %v9359 = vmul.f32 %v9358, %v9356
        %v9360 = vxor.u32 %v9359, 2147483648
        %v9361 = vsel %vm9240, %v9360, %v9359
        %v9362 = vsub.s32 4, %v9338
        %v9363 = vsel %vm9240, %v9362, %v9338
        %v9364 = vsel %vm9239, %v704, %v9361
        %v9365 = vsel %vm9239, 0, %v9363
        %v9366 = vmul.f32 %v9364, %v9364
        %v9367 = vmul.f32 %v9366, -0.001358992
        %v9368 = vadd.f32 %v9367, 0.041655596
        %v9369 = vmul.f32 %v9366, %v9368
        %v9370 = vadd.f32 %v9369, -0.4999988
        %v9371 = vmul.f32 %v9366, %v9370
        %v9372 = vadd.f32 1.0, %v9371
        %v9373 = vmul.f32 %v9364, %v9364
        %v9374 = vmul.f32 %v9373, -0.00019511016
        %v9375 = vadd.f32 %v9374, 0.008332121
        %v9376 = vmul.f32 %v9373, %v9375
        %v9377 = vadd.f32 %v9376, -0.16666654
        %v9378 = vmul.f32 %v9373, %v9377
        %v9379 = vadd.f32 %v9378, 1.0
        %v9380 = vmul.f32 %v9379, %v9364
        %vm9381 = vweird.f32 %v704
        %v9382 = vadd.s32 %v9365, 3
        %v9383 = vand.u32 %v9382, 3
        %vm9384 = vcmp.lt.s32.totalorder %v9383, 2
        %vm9385 = vcmp.eq.s32.totalorder %v9383, 0
        %v9386 = vxor.u32 %v9380, 2147483648
        %v9387 = vsel %vm9385, %v9372, %v9386
        %vm9388 = vcmp.eq.s32.totalorder %v9383, 2
        %v9389 = vxor.u32 %v9372, 2147483648
        %v9390 = vsel %vm9388, %v9389, %v9380
        %v9391 = vsel %vm9384, %v9387, %v9390
        %v9392 = vsel %vm9381, nan, %v9391
        %v9393 = vand.u32 2147483647, %v705
        %vm9394 = vcmp.le.f32.partialorder %v9393, 0.7853982
        %vm9395 = vcmp.lt.s32.totalorder %v705, 0
        %v9396 = vand.u32 %v705, 2139095040
        %v9397 = vshrl.u32 %v9396, 23
        %v9398 = vsub.s32 %v9397, 127
        %v9399 = vand.u32 2147483647, %v705
        %v9400 = vand.u32 %v9399, 8388607
        %v9401 = vor.u32 %v9400, 8388608
        %v9402 = vsub.s32 0, %v9401
        %v9403 = vadd.s32 %v9398, 1
        %vm9404 = vcmp.gt.s32.totalorder %v9403, 0
        %v9405 = vsel %vm9404, %v9403, 0
        %v9406 = vshrl.u32 %v9405, 5
        %v9407 = vand.u32 %v9405, 31
        %v9408 = vsub.s32 32, %v9407
        %v9409 = vshrl.u32 683565275, %v9408
        %v9410 = vshll.u32 683565275, %v9407
        %v9411 = vshrl.u32 2475754826, %v9408
        %v9412 = vor.u32 %v9410, %v9411
        %v9413 = vshll.u32 2475754826, %v9407
        %v9414 = vshrl.u32 2131351028, %v9408
        %v9415 = vor.u32 %v9413, %v9414
        %v9416 = vshll.u32 2131351028, %v9407
        %v9417 = vshrl.u32 2102212464, %v9408
        %v9418 = vor.u32 %v9416, %v9417
        %v9419 = vshll.u32 2102212464, %v9407
        %v9420 = vshrl.u32 920167782, %v9408
        %v9421 = vor.u32 %v9419, %v9420
        %v9422 = vshll.u32 920167782, %v9407
        %v9423 = vshrl.u32 1326507024, %v9408
        %v9424 = vor.u32 %v9422, %v9423
        %vm9425 = vcmp.lt.s32.totalorder %v9406, 1
        %vm9426 = vcmp.lt.s32.totalorder %v9406, 2
        %vm9427 = vcmp.lt.s32.totalorder %v9406, 3
        %vm9428 = vcmp.lt.s32.totalorder %v9406, 4
        %v9429 = vsel %vm9425, %v9409, %v9412
        %v9430 = vsel %vm9428, %v9418, 2102212464
        %v9431 = vsel %vm9427, %v9415, %v9430
        %v9432 = vsel %vm9426, %v9429, %v9431
        %v9433 = vsel %vm9425, %v9412, %v9415
        %v9434 = vsel %vm9428, %v9421, 920167782
        %v9435 = vsel %vm9427, %v9418, %v9434
        %v9436 = vsel %vm9426, %v9433, %v9435
        %v9437 = vsel %vm9425, %v9415, %v9418
        %v9438 = vsel %vm9428, %v9424, 1326507024
        %v9439 = vsel %vm9427, %v9421, %v9438
        %v9440 = vsel %vm9426, %v9437, %v9439
        %v9441 = vshll.u32 %v9401, 8
        %v9442 = vand.u32 %v9441, 65535
        %v9443 = vshrl.u32 %v9441, 16
        %v9444 = vand.u32 %v9440, 65535
        %v9445 = vshrl.u32 %v9440, 16
        %v9446 = vmul.u32 %v9442, %v9444
        %v9447 = vmul.u32 %v9442, %v9445
        %v9448 = vmul.u32 %v9443, %v9444
        %v9449 = vmul.u32 %v9443, %v9445
        %v9450 = vshll.u32 %v9447, 16
        %v9451 = vshrl.u32 %v9447, 16
        %v9452 = vshll.u32 %v9448, 16
        %v9453 = vshrl.u32 %v9448, 16
        %vm9454 = vc.u32 %v9446, %v9450
        %v9455 = vsel %vm9454, 1, 0
        %v9456 = vadd.s32 %v9446, %v9450
        %v9457 = vadd.s32 %v9449, %v9455
        %vm9458 = vc.u32 %v9456, %v9452
        %v9459 = vsel %vm9458, 1, 0
        %v9460 = vadd.s32 %v9456, %v9452
        %v9461 = vadd.s32 %v9457, %v9459
        %v9462 = vadd.s32 %v9461, %v9451
        %v9463 = vadd.s32 %v9462, %v9453
        %v9464 = vand.u32 %v9441, 65535
        %v9465 = vshrl.u32 %v9441, 16
        %v9466 = vand.u32 %v9436, 65535
        %v9467 = vshrl.u32 %v9436, 16
        %v9468 = vmul.u32 %v9464, %v9466
        %v9469 = vmul.u32 %v9464, %v9467
        %v9470 = vmul.u32 %v9465, %v9466
        %v9471 = vmul.u32 %v9465, %v9467
        %v9472 = vshll.u32 %v9469, 16
        %v9473 = vshrl.u32 %v9469, 16
        %v9474 = vshll.u32 %v9470, 16
        %v9475 = vshrl.u32 %v9470, 16
        %vm9476 = vc.u32 %v9468, %v9472
        %v9477 = vsel %vm9476, 1, 0
        %v9478 = vadd.s32 %v9468, %v9472
        %v9479 = vadd.s32 %v9471, %v9477
        %vm9480 = vc.u32 %v9478, %v9474
        %v9481 = vsel %vm9480, 1, 0
        %v9482 = vadd.s32 %v9478, %v9474
        %v9483 = vadd.s32 %v9479, %v9481
        %v9484 = vadd.s32 %v9483, %v9473
        %v9485 = vadd.s32 %v9484, %v9475
        %v9486 = vmul.u32 %v9441, %v9432
        %v9487 = vadd.s32 %v9463, %v9482
        %vm9488 = vc.u32 %v9463, %v9482
        %v9489 = vadd.s32 %v9485, 1
        %v9490 = vsel %vm9488, %v9489, %v9485
        %v9491 = vadd.s32 %v9486, %v9490
        %v9492 = vadd.s32 %v9491, 536870912
        %v9493 = vshrl.u32 %v9492, 30
        %v9494 = vshll.u32 %v9493, 30
        %v9495 = vsub.s32 %v9491, %v9494
        %vm9496 = vcmp.lt.s32.totalorder %v9495, 0
        %v9497 = vsub.s32 0, %v9495
        %v9498 = vsel %vm9496, %v9497, %v9495
        %v9499 = vclz %v9498
        %v9500 = vsub.s32 %v9499, 2
        %vm9501 = vcmp.gt.s32.totalorder 0, %v9500
        %v9502 = vsel %vm9501, 0, %v9500
        %v9503 = vsub.s32 32, %v9502
        %v9504 = vshll.u32 %v9495, %v9502
        %v9505 = vshrl.u32 %v9487, %v9503
        %v9506 = vor.u32 %v9504, %v9505
        %v9507 = vsub.s32 4294967266, %v9502
        %v9508 = vadd.s32 %v9507, 127
        %v9509 = vshll.u32 %v9508, 23
        %v9510 = vor.u32 4788187, %v9509
        %v9511 = vand.u32 2147483647, %v9510
        %v9513 = vcvt.s32.f32 %v9506
        %v9514 = vmul.f32 %v9513, %v9511
        %v9515 = vxor.u32 %v9514, 2147483648
        %v9516 = vsel %vm9395, %v9515, %v9514
        %v9517 = vsub.s32 4, %v9493
        %v9518 = vsel %vm9395, %v9517, %v9493
        %v9519 = vsel %vm9394, %v705, %v9516
        %v9520 = vsel %vm9394, 0, %v9518
        %v9521 = vmul.f32 %v9519, %v9519
        %v9522 = vmul.f32 %v9521, -0.001358992
        %v9523 = vadd.f32 %v9522, 0.041655596
        %v9524 = vmul.f32 %v9521, %v9523
        %v9525 = vadd.f32 %v9524, -0.4999988
        %v9526 = vmul.f32 %v9521, %v9525
        %v9527 = vadd.f32 1.0, %v9526
        %v9528 = vmul.f32 %v9519, %v9519
        %v9529 = vmul.f32 %v9528, -0.00019511016
        %v9530 = vadd.f32 %v9529, 0.008332121
        %v9531 = vmul.f32 %v9528, %v9530
        %v9532 = vadd.f32 %v9531, -0.16666654
        %v9533 = vmul.f32 %v9528, %v9532
        %v9534 = vadd.f32 %v9533, 1.0
        %v9535 = vmul.f32 %v9534, %v9519
        %vm9536 = vweird.f32 %v705
        %v9537 = vadd.s32 %v9520, 3
        %v9538 = vand.u32 %v9537, 3
        %vm9539 = vcmp.lt.s32.totalorder %v9538, 2
        %vm9540 = vcmp.eq.s32.totalorder %v9538, 0
        %v9541 = vxor.u32 %v9535, 2147483648
        %v9542 = vsel %vm9540, %v9527, %v9541
        %vm9543 = vcmp.eq.s32.totalorder %v9538, 2
        %v9544 = vxor.u32 %v9527, 2147483648
        %v9545 = vsel %vm9543, %v9544, %v9535
        %v9546 = vsel %vm9539, %v9542, %v9545
        %v9547 = vsel %vm9536, nan, %v9546
        %v9548 = vand.u32 2147483647, %v706
        %vm9549 = vcmp.le.f32.partialorder %v9548, 0.7853982
        %vm9550 = vcmp.lt.s32.totalorder %v706, 0
        %v9551 = vand.u32 %v706, 2139095040
        %v9552 = vshrl.u32 %v9551, 23
        %v9553 = vsub.s32 %v9552, 127
        %v9554 = vand.u32 2147483647, %v706
        %v9555 = vand.u32 %v9554, 8388607
        %v9556 = vor.u32 %v9555, 8388608
        %v9557 = vsub.s32 0, %v9556
        %v9558 = vadd.s32 %v9553, 1
        %vm9559 = vcmp.gt.s32.totalorder %v9558, 0
        %v9560 = vsel %vm9559, %v9558, 0
        %v9561 = vshrl.u32 %v9560, 5
        %v9562 = vand.u32 %v9560, 31
        %v9563 = vsub.s32 32, %v9562
        %v9564 = vshrl.u32 683565275, %v9563
        %v9565 = vshll.u32 683565275, %v9562
        %v9566 = vshrl.u32 2475754826, %v9563
        %v9567 = vor.u32 %v9565, %v9566
        %v9568 = vshll.u32 2475754826, %v9562
        %v9569 = vshrl.u32 2131351028, %v9563
        %v9570 = vor.u32 %v9568, %v9569
        %v9571 = vshll.u32 2131351028, %v9562
        %v9572 = vshrl.u32 2102212464, %v9563
        %v9573 = vor.u32 %v9571, %v9572
        %v9574 = vshll.u32 2102212464, %v9562
        %v9575 = vshrl.u32 920167782, %v9563
        %v9576 = vor.u32 %v9574, %v9575
        %v9577 = vshll.u32 920167782, %v9562
        %v9578 = vshrl.u32 1326507024, %v9563
        %v9579 = vor.u32 %v9577, %v9578
        %vm9580 = vcmp.lt.s32.totalorder %v9561, 1
        %vm9581 = vcmp.lt.s32.totalorder %v9561, 2
        %vm9582 = vcmp.lt.s32.totalorder %v9561, 3
        %vm9583 = vcmp.lt.s32.totalorder %v9561, 4
        %v9584 = vsel %vm9580, %v9564, %v9567
        %v9585 = vsel %vm9583, %v9573, 2102212464
        %v9586 = vsel %vm9582, %v9570, %v9585
        %v9587 = vsel %vm9581, %v9584, %v9586
        %v9588 = vsel %vm9580, %v9567, %v9570
        %v9589 = vsel %vm9583, %v9576, 920167782
        %v9590 = vsel %vm9582, %v9573, %v9589
        %v9591 = vsel %vm9581, %v9588, %v9590
        %v9592 = vsel %vm9580, %v9570, %v9573
        %v9593 = vsel %vm9583, %v9579, 1326507024
        %v9594 = vsel %vm9582, %v9576, %v9593
        %v9595 = vsel %vm9581, %v9592, %v9594
        %v9596 = vshll.u32 %v9556, 8
        %v9597 = vand.u32 %v9596, 65535
        %v9598 = vshrl.u32 %v9596, 16
        %v9599 = vand.u32 %v9595, 65535
        %v9600 = vshrl.u32 %v9595, 16
        %v9601 = vmul.u32 %v9597, %v9599
        %v9602 = vmul.u32 %v9597, %v9600
        %v9603 = vmul.u32 %v9598, %v9599
        %v9604 = vmul.u32 %v9598, %v9600
        %v9605 = vshll.u32 %v9602, 16
        %v9606 = vshrl.u32 %v9602, 16
        %v9607 = vshll.u32 %v9603, 16
        %v9608 = vshrl.u32 %v9603, 16
        %vm9609 = vc.u32 %v9601, %v9605
        %v9610 = vsel %vm9609, 1, 0
        %v9611 = vadd.s32 %v9601, %v9605
        %v9612 = vadd.s32 %v9604, %v9610
        %vm9613 = vc.u32 %v9611, %v9607
        %v9614 = vsel %vm9613, 1, 0
        %v9615 = vadd.s32 %v9611, %v9607
        %v9616 = vadd.s32 %v9612, %v9614
        %v9617 = vadd.s32 %v9616, %v9606
        %v9618 = vadd.s32 %v9617, %v9608
        %v9619 = vand.u32 %v9596, 65535
        %v9620 = vshrl.u32 %v9596, 16
        %v9621 = vand.u32 %v9591, 65535
        %v9622 = vshrl.u32 %v9591, 16
        %v9623 = vmul.u32 %v9619, %v9621
        %v9624 = vmul.u32 %v9619, %v9622
        %v9625 = vmul.u32 %v9620, %v9621
        %v9626 = vmul.u32 %v9620, %v9622
        %v9627 = vshll.u32 %v9624, 16
        %v9628 = vshrl.u32 %v9624, 16
        %v9629 = vshll.u32 %v9625, 16
        %v9630 = vshrl.u32 %v9625, 16
        %vm9631 = vc.u32 %v9623, %v9627
        %v9632 = vsel %vm9631, 1, 0
        %v9633 = vadd.s32 %v9623, %v9627
        %v9634 = vadd.s32 %v9626, %v9632
        %vm9635 = vc.u32 %v9633, %v9629
        %v9636 = vsel %vm9635, 1, 0
        %v9637 = vadd.s32 %v9633, %v9629
        %v9638 = vadd.s32 %v9634, %v9636
        %v9639 = vadd.s32 %v9638, %v9628
        %v9640 = vadd.s32 %v9639, %v9630
        %v9641 = vmul.u32 %v9596, %v9587
        %v9642 = vadd.s32 %v9618, %v9637
        %vm9643 = vc.u32 %v9618, %v9637
        %v9644 = vadd.s32 %v9640, 1
        %v9645 = vsel %vm9643, %v9644, %v9640
        %v9646 = vadd.s32 %v9641, %v9645
        %v9647 = vadd.s32 %v9646, 536870912
        %v9648 = vshrl.u32 %v9647, 30
        %v9649 = vshll.u32 %v9648, 30
        %v9650 = vsub.s32 %v9646, %v9649
        %vm9651 = vcmp.lt.s32.totalorder %v9650, 0
        %v9652 = vsub.s32 0, %v9650
        %v9653 = vsel %vm9651, %v9652, %v9650
        %v9654 = vclz %v9653
        %v9655 = vsub.s32 %v9654, 2
        %vm9656 = vcmp.gt.s32.totalorder 0, %v9655
        %v9657 = vsel %vm9656, 0, %v9655
        %v9658 = vsub.s32 32, %v9657
        %v9659 = vshll.u32 %v9650, %v9657
        %v9660 = vshrl.u32 %v9642, %v9658
        %v9661 = vor.u32 %v9659, %v9660
        %v9662 = vsub.s32 4294967266, %v9657
        %v9663 = vadd.s32 %v9662, 127
        %v9664 = vshll.u32 %v9663, 23
        %v9665 = vor.u32 4788187, %v9664
        %v9666 = vand.u32 2147483647, %v9665
        %v9668 = vcvt.s32.f32 %v9661
        %v9669 = vmul.f32 %v9668, %v9666
        %v9670 = vxor.u32 %v9669, 2147483648
        %v9671 = vsel %vm9550, %v9670, %v9669
        %v9672 = vsub.s32 4, %v9648
        %v9673 = vsel %vm9550, %v9672, %v9648
        %v9674 = vsel %vm9549, %v706, %v9671
        %v9675 = vsel %vm9549, 0, %v9673
        %v9676 = vmul.f32 %v9674, %v9674
        %v9677 = vmul.f32 %v9676, -0.001358992
        %v9678 = vadd.f32 %v9677, 0.041655596
        %v9679 = vmul.f32 %v9676, %v9678
        %v9680 = vadd.f32 %v9679, -0.4999988
        %v9681 = vmul.f32 %v9676, %v9680
        %v9682 = vadd.f32 1.0, %v9681
        %v9683 = vmul.f32 %v9674, %v9674
        %v9684 = vmul.f32 %v9683, -0.00019511016
        %v9685 = vadd.f32 %v9684, 0.008332121
        %v9686 = vmul.f32 %v9683, %v9685
        %v9687 = vadd.f32 %v9686, -0.16666654
        %v9688 = vmul.f32 %v9683, %v9687
        %v9689 = vadd.f32 %v9688, 1.0
        %v9690 = vmul.f32 %v9689, %v9674
        %vm9691 = vweird.f32 %v706
        %v9692 = vadd.s32 %v9675, 3
        %v9693 = vand.u32 %v9692, 3
        %vm9694 = vcmp.lt.s32.totalorder %v9693, 2
        %vm9695 = vcmp.eq.s32.totalorder %v9693, 0
        %v9696 = vxor.u32 %v9690, 2147483648
        %v9697 = vsel %vm9695, %v9682, %v9696
        %vm9698 = vcmp.eq.s32.totalorder %v9693, 2
        %v9699 = vxor.u32 %v9682, 2147483648
        %v9700 = vsel %vm9698, %v9699, %v9690
        %v9701 = vsel %vm9694, %v9697, %v9700
        %v9702 = vsel %vm9691, nan, %v9701
        %v9703 = vand.u32 2147483647, %v707
        %vm9704 = vcmp.le.f32.partialorder %v9703, 0.7853982
        %vm9705 = vcmp.lt.s32.totalorder %v707, 0
        %v9706 = vand.u32 %v707, 2139095040
        %v9707 = vshrl.u32 %v9706, 23
        %v9708 = vsub.s32 %v9707, 127
        %v9709 = vand.u32 2147483647, %v707
        %v9710 = vand.u32 %v9709, 8388607
        %v9711 = vor.u32 %v9710, 8388608
        %v9712 = vsub.s32 0, %v9711
        %v9713 = vadd.s32 %v9708, 1
        %vm9714 = vcmp.gt.s32.totalorder %v9713, 0
        %v9715 = vsel %vm9714, %v9713, 0
        %v9716 = vshrl.u32 %v9715, 5
        %v9717 = vand.u32 %v9715, 31
        %v9718 = vsub.s32 32, %v9717
        %v9719 = vshrl.u32 683565275, %v9718
        %v9720 = vshll.u32 683565275, %v9717
        %v9721 = vshrl.u32 2475754826, %v9718
        %v9722 = vor.u32 %v9720, %v9721
        %v9723 = vshll.u32 2475754826, %v9717
        %v9724 = vshrl.u32 2131351028, %v9718
        %v9725 = vor.u32 %v9723, %v9724
        %v9726 = vshll.u32 2131351028, %v9717
        %v9727 = vshrl.u32 2102212464, %v9718
        %v9728 = vor.u32 %v9726, %v9727
        %v9729 = vshll.u32 2102212464, %v9717
        %v9730 = vshrl.u32 920167782, %v9718
        %v9731 = vor.u32 %v9729, %v9730
        %v9732 = vshll.u32 920167782, %v9717
        %v9733 = vshrl.u32 1326507024, %v9718
        %v9734 = vor.u32 %v9732, %v9733
        %vm9735 = vcmp.lt.s32.totalorder %v9716, 1
        %vm9736 = vcmp.lt.s32.totalorder %v9716, 2
        %vm9737 = vcmp.lt.s32.totalorder %v9716, 3
        %vm9738 = vcmp.lt.s32.totalorder %v9716, 4
        %v9739 = vsel %vm9735, %v9719, %v9722
        %v9740 = vsel %vm9738, %v9728, 2102212464
        %v9741 = vsel %vm9737, %v9725, %v9740
        %v9742 = vsel %vm9736, %v9739, %v9741
        %v9743 = vsel %vm9735, %v9722, %v9725
        %v9744 = vsel %vm9738, %v9731, 920167782
        %v9745 = vsel %vm9737, %v9728, %v9744
        %v9746 = vsel %vm9736, %v9743, %v9745
        %v9747 = vsel %vm9735, %v9725, %v9728
        %v9748 = vsel %vm9738, %v9734, 1326507024
        %v9749 = vsel %vm9737, %v9731, %v9748
        %v9750 = vsel %vm9736, %v9747, %v9749
        %v9751 = vshll.u32 %v9711, 8
        %v9752 = vand.u32 %v9751, 65535
        %v9753 = vshrl.u32 %v9751, 16
        %v9754 = vand.u32 %v9750, 65535
        %v9755 = vshrl.u32 %v9750, 16
        %v9756 = vmul.u32 %v9752, %v9754
        %v9757 = vmul.u32 %v9752, %v9755
        %v9758 = vmul.u32 %v9753, %v9754
        %v9759 = vmul.u32 %v9753, %v9755
        %v9760 = vshll.u32 %v9757, 16
        %v9761 = vshrl.u32 %v9757, 16
        %v9762 = vshll.u32 %v9758, 16
        %v9763 = vshrl.u32 %v9758, 16
        %vm9764 = vc.u32 %v9756, %v9760
        %v9765 = vsel %vm9764, 1, 0
        %v9766 = vadd.s32 %v9756, %v9760
        %v9767 = vadd.s32 %v9759, %v9765
        %vm9768 = vc.u32 %v9766, %v9762
        %v9769 = vsel %vm9768, 1, 0
        %v9770 = vadd.s32 %v9766, %v9762
        %v9771 = vadd.s32 %v9767, %v9769
        %v9772 = vadd.s32 %v9771, %v9761
        %v9773 = vadd.s32 %v9772, %v9763
        %v9774 = vand.u32 %v9751, 65535
        %v9775 = vshrl.u32 %v9751, 16
        %v9776 = vand.u32 %v9746, 65535
        %v9777 = vshrl.u32 %v9746, 16
        %v9778 = vmul.u32 %v9774, %v9776
        %v9779 = vmul.u32 %v9774, %v9777
        %v9780 = vmul.u32 %v9775, %v9776
        %v9781 = vmul.u32 %v9775, %v9777
        %v9782 = vshll.u32 %v9779, 16
        %v9783 = vshrl.u32 %v9779, 16
        %v9784 = vshll.u32 %v9780, 16
        %v9785 = vshrl.u32 %v9780, 16
        %vm9786 = vc.u32 %v9778, %v9782
        %v9787 = vsel %vm9786, 1, 0
        %v9788 = vadd.s32 %v9778, %v9782
        %v9789 = vadd.s32 %v9781, %v9787
        %vm9790 = vc.u32 %v9788, %v9784
        %v9791 = vsel %vm9790, 1, 0
        %v9792 = vadd.s32 %v9788, %v9784
        %v9793 = vadd.s32 %v9789, %v9791
        %v9794 = vadd.s32 %v9793, %v9783
        %v9795 = vadd.s32 %v9794, %v9785
        %v9796 = vmul.u32 %v9751, %v9742
        %v9797 = vadd.s32 %v9773, %v9792
        %vm9798 = vc.u32 %v9773, %v9792
        %v9799 = vadd.s32 %v9795, 1
        %v9800 = vsel %vm9798, %v9799, %v9795
        %v9801 = vadd.s32 %v9796, %v9800
        %v9802 = vadd.s32 %v9801, 536870912
        %v9803 = vshrl.u32 %v9802, 30
        %v9804 = vshll.u32 %v9803, 30
        %v9805 = vsub.s32 %v9801, %v9804
        %vm9806 = vcmp.lt.s32.totalorder %v9805, 0
        %v9807 = vsub.s32 0, %v9805
        %v9808 = vsel %vm9806, %v9807, %v9805
        %v9809 = vclz %v9808
        %v9810 = vsub.s32 %v9809, 2
        %vm9811 = vcmp.gt.s32.totalorder 0, %v9810
        %v9812 = vsel %vm9811, 0, %v9810
        %v9813 = vsub.s32 32, %v9812
        %v9814 = vshll.u32 %v9805, %v9812
        %v9815 = vshrl.u32 %v9797, %v9813
        %v9816 = vor.u32 %v9814, %v9815
        %v9817 = vsub.s32 4294967266, %v9812
        %v9818 = vadd.s32 %v9817, 127
        %v9819 = vshll.u32 %v9818, 23
        %v9820 = vor.u32 4788187, %v9819
        %v9821 = vand.u32 2147483647, %v9820
        %v9823 = vcvt.s32.f32 %v9816
        %v9824 = vmul.f32 %v9823, %v9821
        %v9825 = vxor.u32 %v9824, 2147483648
        %v9826 = vsel %vm9705, %v9825, %v9824
        %v9827 = vsub.s32 4, %v9803
        %v9828 = vsel %vm9705, %v9827, %v9803
        %v9829 = vsel %vm9704, %v707, %v9826
        %v9830 = vsel %vm9704, 0, %v9828
        %v9831 = vmul.f32 %v9829, %v9829
        %v9832 = vmul.f32 %v9831, -0.001358992
        %v9833 = vadd.f32 %v9832, 0.041655596
        %v9834 = vmul.f32 %v9831, %v9833
        %v9835 = vadd.f32 %v9834, -0.4999988
        %v9836 = vmul.f32 %v9831, %v9835
        %v9837 = vadd.f32 1.0, %v9836
        %v9838 = vmul.f32 %v9829, %v9829
        %v9839 = vmul.f32 %v9838, -0.00019511016
        %v9840 = vadd.f32 %v9839, 0.008332121
        %v9841 = vmul.f32 %v9838, %v9840
        %v9842 = vadd.f32 %v9841, -0.16666654
        %v9843 = vmul.f32 %v9838, %v9842
        %v9844 = vadd.f32 %v9843, 1.0
        %v9845 = vmul.f32 %v9844, %v9829
        %vm9846 = vweird.f32 %v707
        %v9847 = vadd.s32 %v9830, 3
        %v9848 = vand.u32 %v9847, 3
        %vm9849 = vcmp.lt.s32.totalorder %v9848, 2
        %vm9850 = vcmp.eq.s32.totalorder %v9848, 0
        %v9851 = vxor.u32 %v9845, 2147483648
        %v9852 = vsel %vm9850, %v9837, %v9851
        %vm9853 = vcmp.eq.s32.totalorder %v9848, 2
        %v9854 = vxor.u32 %v9837, 2147483648
        %v9855 = vsel %vm9853, %v9854, %v9845
        %v9856 = vsel %vm9849, %v9852, %v9855
        %v9857 = vsel %vm9846, nan, %v9856
        %v9858 = vand.u32 2147483647, %v708
        %vm9859 = vcmp.le.f32.partialorder %v9858, 0.7853982
        %vm9860 = vcmp.lt.s32.totalorder %v708, 0
        %v9861 = vand.u32 %v708, 2139095040
        %v9862 = vshrl.u32 %v9861, 23
        %v9863 = vsub.s32 %v9862, 127
        %v9864 = vand.u32 2147483647, %v708
        %v9865 = vand.u32 %v9864, 8388607
        %v9866 = vor.u32 %v9865, 8388608
        %v9867 = vsub.s32 0, %v9866
        %v9868 = vadd.s32 %v9863, 1
        %vm9869 = vcmp.gt.s32.totalorder %v9868, 0
        %v9870 = vsel %vm9869, %v9868, 0
        %v9871 = vshrl.u32 %v9870, 5
        %v9872 = vand.u32 %v9870, 31
        %v9873 = vsub.s32 32, %v9872
        %v9874 = vshrl.u32 683565275, %v9873
        %v9875 = vshll.u32 683565275, %v9872
        %v9876 = vshrl.u32 2475754826, %v9873
        %v9877 = vor.u32 %v9875, %v9876
        %v9878 = vshll.u32 2475754826, %v9872
        %v9879 = vshrl.u32 2131351028, %v9873
        %v9880 = vor.u32 %v9878, %v9879
        %v9881 = vshll.u32 2131351028, %v9872
        %v9882 = vshrl.u32 2102212464, %v9873
        %v9883 = vor.u32 %v9881, %v9882
        %v9884 = vshll.u32 2102212464, %v9872
        %v9885 = vshrl.u32 920167782, %v9873
        %v9886 = vor.u32 %v9884, %v9885
        %v9887 = vshll.u32 920167782, %v9872
        %v9888 = vshrl.u32 1326507024, %v9873
        %v9889 = vor.u32 %v9887, %v9888
        %vm9890 = vcmp.lt.s32.totalorder %v9871, 1
        %vm9891 = vcmp.lt.s32.totalorder %v9871, 2
        %vm9892 = vcmp.lt.s32.totalorder %v9871, 3
        %vm9893 = vcmp.lt.s32.totalorder %v9871, 4
        %v9894 = vsel %vm9890, %v9874, %v9877
        %v9895 = vsel %vm9893, %v9883, 2102212464
        %v9896 = vsel %vm9892, %v9880, %v9895
        %v9897 = vsel %vm9891, %v9894, %v9896
        %v9898 = vsel %vm9890, %v9877, %v9880
        %v9899 = vsel %vm9893, %v9886, 920167782
        %v9900 = vsel %vm9892, %v9883, %v9899
        %v9901 = vsel %vm9891, %v9898, %v9900
        %v9902 = vsel %vm9890, %v9880, %v9883
        %v9903 = vsel %vm9893, %v9889, 1326507024
        %v9904 = vsel %vm9892, %v9886, %v9903
        %v9905 = vsel %vm9891, %v9902, %v9904
        %v9906 = vshll.u32 %v9866, 8
        %v9907 = vand.u32 %v9906, 65535
        %v9908 = vshrl.u32 %v9906, 16
        %v9909 = vand.u32 %v9905, 65535
        %v9910 = vshrl.u32 %v9905, 16
        %v9911 = vmul.u32 %v9907, %v9909
        %v9912 = vmul.u32 %v9907, %v9910
        %v9913 = vmul.u32 %v9908, %v9909
        %v9914 = vmul.u32 %v9908, %v9910
        %v9915 = vshll.u32 %v9912, 16
        %v9916 = vshrl.u32 %v9912, 16
        %v9917 = vshll.u32 %v9913, 16
        %v9918 = vshrl.u32 %v9913, 16
        %vm9919 = vc.u32 %v9911, %v9915
        %v9920 = vsel %vm9919, 1, 0
        %v9921 = vadd.s32 %v9911, %v9915
        %v9922 = vadd.s32 %v9914, %v9920
        %vm9923 = vc.u32 %v9921, %v9917
        %v9924 = vsel %vm9923, 1, 0
        %v9925 = vadd.s32 %v9921, %v9917
        %v9926 = vadd.s32 %v9922, %v9924
        %v9927 = vadd.s32 %v9926, %v9916
        %v9928 = vadd.s32 %v9927, %v9918
        %v9929 = vand.u32 %v9906, 65535
        %v9930 = vshrl.u32 %v9906, 16
        %v9931 = vand.u32 %v9901, 65535
        %v9932 = vshrl.u32 %v9901, 16
        %v9933 = vmul.u32 %v9929, %v9931
        %v9934 = vmul.u32 %v9929, %v9932
        %v9935 = vmul.u32 %v9930, %v9931
        %v9936 = vmul.u32 %v9930, %v9932
        %v9937 = vshll.u32 %v9934, 16
        %v9938 = vshrl.u32 %v9934, 16
        %v9939 = vshll.u32 %v9935, 16
        %v9940 = vshrl.u32 %v9935, 16
        %vm9941 = vc.u32 %v9933, %v9937
        %v9942 = vsel %vm9941, 1, 0
        %v9943 = vadd.s32 %v9933, %v9937
        %v9944 = vadd.s32 %v9936, %v9942
        %vm9945 = vc.u32 %v9943, %v9939
        %v9946 = vsel %vm9945, 1, 0
        %v9947 = vadd.s32 %v9943, %v9939
        %v9948 = vadd.s32 %v9944, %v9946
        %v9949 = vadd.s32 %v9948, %v9938
        %v9950 = vadd.s32 %v9949, %v9940
        %v9951 = vmul.u32 %v9906, %v9897
        %v9952 = vadd.s32 %v9928, %v9947
        %vm9953 = vc.u32 %v9928, %v9947
        %v9954 = vadd.s32 %v9950, 1
        %v9955 = vsel %vm9953, %v9954, %v9950
        %v9956 = vadd.s32 %v9951, %v9955
        %v9957 = vadd.s32 %v9956, 536870912
        %v9958 = vshrl.u32 %v9957, 30
        %v9959 = vshll.u32 %v9958, 30
        %v9960 = vsub.s32 %v9956, %v9959
        %vm9961 = vcmp.lt.s32.totalorder %v9960, 0
        %v9962 = vsub.s32 0, %v9960
        %v9963 = vsel %vm9961, %v9962, %v9960
        %v9964 = vclz %v9963
        %v9965 = vsub.s32 %v9964, 2
        %vm9966 = vcmp.gt.s32.totalorder 0, %v9965
        %v9967 = vsel %vm9966, 0, %v9965
        %v9968 = vsub.s32 32, %v9967
        %v9969 = vshll.u32 %v9960, %v9967
        %v9970 = vshrl.u32 %v9952, %v9968
        %v9971 = vor.u32 %v9969, %v9970
        %v9972 = vsub.s32 4294967266, %v9967
        %v9973 = vadd.s32 %v9972, 127
        %v9974 = vshll.u32 %v9973, 23
        %v9975 = vor.u32 4788187, %v9974
        %v9976 = vand.u32 2147483647, %v9975
        %v9978 = vcvt.s32.f32 %v9971
        %v9979 = vmul.f32 %v9978, %v9976
        %v9980 = vxor.u32 %v9979, 2147483648
        %v9981 = vsel %vm9860, %v9980, %v9979
        %v9982 = vsub.s32 4, %v9958
        %v9983 = vsel %vm9860, %v9982, %v9958
        %v9984 = vsel %vm9859, %v708, %v9981
        %v9985 = vsel %vm9859, 0, %v9983
        %v9986 = vmul.f32 %v9984, %v9984
        %v9987 = vmul.f32 %v9986, -0.001358992
        %v9988 = vadd.f32 %v9987, 0.041655596
        %v9989 = vmul.f32 %v9986, %v9988
        %v9990 = vadd.f32 %v9989, -0.4999988
        %v9991 = vmul.f32 %v9986, %v9990
        %v9992 = vadd.f32 1.0, %v9991
        %v9993 = vmul.f32 %v9984, %v9984
        %v9994 = vmul.f32 %v9993, -0.00019511016
        %v9995 = vadd.f32 %v9994, 0.008332121
        %v9996 = vmul.f32 %v9993, %v9995
        %v9997 = vadd.f32 %v9996, -0.16666654
        %v9998 = vmul.f32 %v9993, %v9997
        %v9999 = vadd.f32 %v9998, 1.0
        %v10000 = vmul.f32 %v9999, %v9984
        %vm10001 = vweird.f32 %v708
        %v10002 = vadd.s32 %v9985, 3
        %v10003 = vand.u32 %v10002, 3
        %vm10004 = vcmp.lt.s32.totalorder %v10003, 2
        %vm10005 = vcmp.eq.s32.totalorder %v10003, 0
        %v10006 = vxor.u32 %v10000, 2147483648
        %v10007 = vsel %vm10005, %v9992, %v10006
        %vm10008 = vcmp.eq.s32.totalorder %v10003, 2
        %v10009 = vxor.u32 %v9992, 2147483648
        %v10010 = vsel %vm10008, %v10009, %v10000
        %v10011 = vsel %vm10004, %v10007, %v10010
        %v10012 = vsel %vm10001, nan, %v10011
        %v10013 = vand.u32 2147483647, %v709
        %vm10014 = vcmp.le.f32.partialorder %v10013, 0.7853982
        %vm10015 = vcmp.lt.s32.totalorder %v709, 0
        %v10016 = vand.u32 %v709, 2139095040
        %v10017 = vshrl.u32 %v10016, 23
        %v10018 = vsub.s32 %v10017, 127
        %v10019 = vand.u32 2147483647, %v709
        %v10020 = vand.u32 %v10019, 8388607
        %v10021 = vor.u32 %v10020, 8388608
        %v10022 = vsub.s32 0, %v10021
        %v10023 = vadd.s32 %v10018, 1
        %vm10024 = vcmp.gt.s32.totalorder %v10023, 0
        %v10025 = vsel %vm10024, %v10023, 0
        %v10026 = vshrl.u32 %v10025, 5
        %v10027 = vand.u32 %v10025, 31
        %v10028 = vsub.s32 32, %v10027
        %v10029 = vshrl.u32 683565275, %v10028
        %v10030 = vshll.u32 683565275, %v10027
        %v10031 = vshrl.u32 2475754826, %v10028
        %v10032 = vor.u32 %v10030, %v10031
        %v10033 = vshll.u32 2475754826, %v10027
        %v10034 = vshrl.u32 2131351028, %v10028
        %v10035 = vor.u32 %v10033, %v10034
        %v10036 = vshll.u32 2131351028, %v10027
        %v10037 = vshrl.u32 2102212464, %v10028
        %v10038 = vor.u32 %v10036, %v10037
        %v10039 = vshll.u32 2102212464, %v10027
        %v10040 = vshrl.u32 920167782, %v10028
        %v10041 = vor.u32 %v10039, %v10040
        %v10042 = vshll.u32 920167782, %v10027
        %v10043 = vshrl.u32 1326507024, %v10028
        %v10044 = vor.u32 %v10042, %v10043
        %vm10045 = vcmp.lt.s32.totalorder %v10026, 1
        %vm10046 = vcmp.lt.s32.totalorder %v10026, 2
        %vm10047 = vcmp.lt.s32.totalorder %v10026, 3
        %vm10048 = vcmp.lt.s32.totalorder %v10026, 4
        %v10049 = vsel %vm10045, %v10029, %v10032
        %v10050 = vsel %vm10048, %v10038, 2102212464
        %v10051 = vsel %vm10047, %v10035, %v10050
        %v10052 = vsel %vm10046, %v10049, %v10051
        %v10053 = vsel %vm10045, %v10032, %v10035
        %v10054 = vsel %vm10048, %v10041, 920167782
        %v10055 = vsel %vm10047, %v10038, %v10054
        %v10056 = vsel %vm10046, %v10053, %v10055
        %v10057 = vsel %vm10045, %v10035, %v10038
        %v10058 = vsel %vm10048, %v10044, 1326507024
        %v10059 = vsel %vm10047, %v10041, %v10058
        %v10060 = vsel %vm10046, %v10057, %v10059
        %v10061 = vshll.u32 %v10021, 8
        %v10062 = vand.u32 %v10061, 65535
        %v10063 = vshrl.u32 %v10061, 16
        %v10064 = vand.u32 %v10060, 65535
        %v10065 = vshrl.u32 %v10060, 16
        %v10066 = vmul.u32 %v10062, %v10064
        %v10067 = vmul.u32 %v10062, %v10065
        %v10068 = vmul.u32 %v10063, %v10064
        %v10069 = vmul.u32 %v10063, %v10065
        %v10070 = vshll.u32 %v10067, 16
        %v10071 = vshrl.u32 %v10067, 16
        %v10072 = vshll.u32 %v10068, 16
        %v10073 = vshrl.u32 %v10068, 16
        %vm10074 = vc.u32 %v10066, %v10070
        %v10075 = vsel %vm10074, 1, 0
        %v10076 = vadd.s32 %v10066, %v10070
        %v10077 = vadd.s32 %v10069, %v10075
        %vm10078 = vc.u32 %v10076, %v10072
        %v10079 = vsel %vm10078, 1, 0
        %v10080 = vadd.s32 %v10076, %v10072
        %v10081 = vadd.s32 %v10077, %v10079
        %v10082 = vadd.s32 %v10081, %v10071
        %v10083 = vadd.s32 %v10082, %v10073
        %v10084 = vand.u32 %v10061, 65535
        %v10085 = vshrl.u32 %v10061, 16
        %v10086 = vand.u32 %v10056, 65535
        %v10087 = vshrl.u32 %v10056, 16
        %v10088 = vmul.u32 %v10084, %v10086
        %v10089 = vmul.u32 %v10084, %v10087
        %v10090 = vmul.u32 %v10085, %v10086
        %v10091 = vmul.u32 %v10085, %v10087
        %v10092 = vshll.u32 %v10089, 16
        %v10093 = vshrl.u32 %v10089, 16
        %v10094 = vshll.u32 %v10090, 16
        %v10095 = vshrl.u32 %v10090, 16
        %vm10096 = vc.u32 %v10088, %v10092
        %v10097 = vsel %vm10096, 1, 0
        %v10098 = vadd.s32 %v10088, %v10092
        %v10099 = vadd.s32 %v10091, %v10097
        %vm10100 = vc.u32 %v10098, %v10094
        %v10101 = vsel %vm10100, 1, 0
        %v10102 = vadd.s32 %v10098, %v10094
        %v10103 = vadd.s32 %v10099, %v10101
        %v10104 = vadd.s32 %v10103, %v10093
        %v10105 = vadd.s32 %v10104, %v10095
        %v10106 = vmul.u32 %v10061, %v10052
        %v10107 = vadd.s32 %v10083, %v10102
        %vm10108 = vc.u32 %v10083, %v10102
        %v10109 = vadd.s32 %v10105, 1
        %v10110 = vsel %vm10108, %v10109, %v10105
        %v10111 = vadd.s32 %v10106, %v10110
        %v10112 = vadd.s32 %v10111, 536870912
        %v10113 = vshrl.u32 %v10112, 30
        %v10114 = vshll.u32 %v10113, 30
        %v10115 = vsub.s32 %v10111, %v10114
        %vm10116 = vcmp.lt.s32.totalorder %v10115, 0
        %v10117 = vsub.s32 0, %v10115
        %v10118 = vsel %vm10116, %v10117, %v10115
        %v10119 = vclz %v10118
        %v10120 = vsub.s32 %v10119, 2
        %vm10121 = vcmp.gt.s32.totalorder 0, %v10120
        %v10122 = vsel %vm10121, 0, %v10120
        %v10123 = vsub.s32 32, %v10122
        %v10124 = vshll.u32 %v10115, %v10122
        %v10125 = vshrl.u32 %v10107, %v10123
        %v10126 = vor.u32 %v10124, %v10125
        %v10127 = vsub.s32 4294967266, %v10122
        %v10128 = vadd.s32 %v10127, 127
        %v10129 = vshll.u32 %v10128, 23
        %v10130 = vor.u32 4788187, %v10129
        %v10131 = vand.u32 2147483647, %v10130
        %v10133 = vcvt.s32.f32 %v10126
        %v10134 = vmul.f32 %v10133, %v10131
        %v10135 = vxor.u32 %v10134, 2147483648
        %v10136 = vsel %vm10015, %v10135, %v10134
        %v10137 = vsub.s32 4, %v10113
        %v10138 = vsel %vm10015, %v10137, %v10113
        %v10139 = vsel %vm10014, %v709, %v10136
        %v10140 = vsel %vm10014, 0, %v10138
        %v10141 = vmul.f32 %v10139, %v10139
        %v10142 = vmul.f32 %v10141, -0.001358992
        %v10143 = vadd.f32 %v10142, 0.041655596
        %v10144 = vmul.f32 %v10141, %v10143
        %v10145 = vadd.f32 %v10144, -0.4999988
        %v10146 = vmul.f32 %v10141, %v10145
        %v10147 = vadd.f32 1.0, %v10146
        %v10148 = vmul.f32 %v10139, %v10139
        %v10149 = vmul.f32 %v10148, -0.00019511016
        %v10150 = vadd.f32 %v10149, 0.008332121
        %v10151 = vmul.f32 %v10148, %v10150
        %v10152 = vadd.f32 %v10151, -0.16666654
        %v10153 = vmul.f32 %v10148, %v10152
        %v10154 = vadd.f32 %v10153, 1.0
        %v10155 = vmul.f32 %v10154, %v10139
        %vm10156 = vweird.f32 %v709
        %v10157 = vadd.s32 %v10140, 3
        %v10158 = vand.u32 %v10157, 3
        %vm10159 = vcmp.lt.s32.totalorder %v10158, 2
        %vm10160 = vcmp.eq.s32.totalorder %v10158, 0
        %v10161 = vxor.u32 %v10155, 2147483648
        %v10162 = vsel %vm10160, %v10147, %v10161
        %vm10163 = vcmp.eq.s32.totalorder %v10158, 2
        %v10164 = vxor.u32 %v10147, 2147483648
        %v10165 = vsel %vm10163, %v10164, %v10155
        %v10166 = vsel %vm10159, %v10162, %v10165
        %v10167 = vsel %vm10156, nan, %v10166
        %v10168 = vand.u32 2147483647, %v710
        %vm10169 = vcmp.le.f32.partialorder %v10168, 0.7853982
        %vm10170 = vcmp.lt.s32.totalorder %v710, 0
        %v10171 = vand.u32 %v710, 2139095040
        %v10172 = vshrl.u32 %v10171, 23
        %v10173 = vsub.s32 %v10172, 127
        %v10174 = vand.u32 2147483647, %v710
        %v10175 = vand.u32 %v10174, 8388607
        %v10176 = vor.u32 %v10175, 8388608
        %v10177 = vsub.s32 0, %v10176
        %v10178 = vadd.s32 %v10173, 1
        %vm10179 = vcmp.gt.s32.totalorder %v10178, 0
        %v10180 = vsel %vm10179, %v10178, 0
        %v10181 = vshrl.u32 %v10180, 5
        %v10182 = vand.u32 %v10180, 31
        %v10183 = vsub.s32 32, %v10182
        %v10184 = vshrl.u32 683565275, %v10183
        %v10185 = vshll.u32 683565275, %v10182
        %v10186 = vshrl.u32 2475754826, %v10183
        %v10187 = vor.u32 %v10185, %v10186
        %v10188 = vshll.u32 2475754826, %v10182
        %v10189 = vshrl.u32 2131351028, %v10183
        %v10190 = vor.u32 %v10188, %v10189
        %v10191 = vshll.u32 2131351028, %v10182
        %v10192 = vshrl.u32 2102212464, %v10183
        %v10193 = vor.u32 %v10191, %v10192
        %v10194 = vshll.u32 2102212464, %v10182
        %v10195 = vshrl.u32 920167782, %v10183
        %v10196 = vor.u32 %v10194, %v10195
        %v10197 = vshll.u32 920167782, %v10182
        %v10198 = vshrl.u32 1326507024, %v10183
        %v10199 = vor.u32 %v10197, %v10198
        %vm10200 = vcmp.lt.s32.totalorder %v10181, 1
        %vm10201 = vcmp.lt.s32.totalorder %v10181, 2
        %vm10202 = vcmp.lt.s32.totalorder %v10181, 3
        %vm10203 = vcmp.lt.s32.totalorder %v10181, 4
        %v10204 = vsel %vm10200, %v10184, %v10187
        %v10205 = vsel %vm10203, %v10193, 2102212464
        %v10206 = vsel %vm10202, %v10190, %v10205
        %v10207 = vsel %vm10201, %v10204, %v10206
        %v10208 = vsel %vm10200, %v10187, %v10190
        %v10209 = vsel %vm10203, %v10196, 920167782
        %v10210 = vsel %vm10202, %v10193, %v10209
        %v10211 = vsel %vm10201, %v10208, %v10210
        %v10212 = vsel %vm10200, %v10190, %v10193
        %v10213 = vsel %vm10203, %v10199, 1326507024
        %v10214 = vsel %vm10202, %v10196, %v10213
        %v10215 = vsel %vm10201, %v10212, %v10214
        %v10216 = vshll.u32 %v10176, 8
        %v10217 = vand.u32 %v10216, 65535
        %v10218 = vshrl.u32 %v10216, 16
        %v10219 = vand.u32 %v10215, 65535
        %v10220 = vshrl.u32 %v10215, 16
        %v10221 = vmul.u32 %v10217, %v10219
        %v10222 = vmul.u32 %v10217, %v10220
        %v10223 = vmul.u32 %v10218, %v10219
        %v10224 = vmul.u32 %v10218, %v10220
        %v10225 = vshll.u32 %v10222, 16
        %v10226 = vshrl.u32 %v10222, 16
        %v10227 = vshll.u32 %v10223, 16
        %v10228 = vshrl.u32 %v10223, 16
        %vm10229 = vc.u32 %v10221, %v10225
        %v10230 = vsel %vm10229, 1, 0
        %v10231 = vadd.s32 %v10221, %v10225
        %v10232 = vadd.s32 %v10224, %v10230
        %vm10233 = vc.u32 %v10231, %v10227
        %v10234 = vsel %vm10233, 1, 0
        %v10235 = vadd.s32 %v10231, %v10227
        %v10236 = vadd.s32 %v10232, %v10234
        %v10237 = vadd.s32 %v10236, %v10226
        %v10238 = vadd.s32 %v10237, %v10228
        %v10239 = vand.u32 %v10216, 65535
        %v10240 = vshrl.u32 %v10216, 16
        %v10241 = vand.u32 %v10211, 65535
        %v10242 = vshrl.u32 %v10211, 16
        %v10243 = vmul.u32 %v10239, %v10241
        %v10244 = vmul.u32 %v10239, %v10242
        %v10245 = vmul.u32 %v10240, %v10241
        %v10246 = vmul.u32 %v10240, %v10242
        %v10247 = vshll.u32 %v10244, 16
        %v10248 = vshrl.u32 %v10244, 16
        %v10249 = vshll.u32 %v10245, 16
        %v10250 = vshrl.u32 %v10245, 16
        %vm10251 = vc.u32 %v10243, %v10247
        %v10252 = vsel %vm10251, 1, 0
        %v10253 = vadd.s32 %v10243, %v10247
        %v10254 = vadd.s32 %v10246, %v10252
        %vm10255 = vc.u32 %v10253, %v10249
        %v10256 = vsel %vm10255, 1, 0
        %v10257 = vadd.s32 %v10253, %v10249
        %v10258 = vadd.s32 %v10254, %v10256
        %v10259 = vadd.s32 %v10258, %v10248
        %v10260 = vadd.s32 %v10259, %v10250
        %v10261 = vmul.u32 %v10216, %v10207
        %v10262 = vadd.s32 %v10238, %v10257
        %vm10263 = vc.u32 %v10238, %v10257
        %v10264 = vadd.s32 %v10260, 1
        %v10265 = vsel %vm10263, %v10264, %v10260
        %v10266 = vadd.s32 %v10261, %v10265
        %v10267 = vadd.s32 %v10266, 536870912
        %v10268 = vshrl.u32 %v10267, 30
        %v10269 = vshll.u32 %v10268, 30
        %v10270 = vsub.s32 %v10266, %v10269
        %vm10271 = vcmp.lt.s32.totalorder %v10270, 0
        %v10272 = vsub.s32 0, %v10270
        %v10273 = vsel %vm10271, %v10272, %v10270
        %v10274 = vclz %v10273
        %v10275 = vsub.s32 %v10274, 2
        %vm10276 = vcmp.gt.s32.totalorder 0, %v10275
        %v10277 = vsel %vm10276, 0, %v10275
        %v10278 = vsub.s32 32, %v10277
        %v10279 = vshll.u32 %v10270, %v10277
        %v10280 = vshrl.u32 %v10262, %v10278
        %v10281 = vor.u32 %v10279, %v10280
        %v10282 = vsub.s32 4294967266, %v10277
        %v10283 = vadd.s32 %v10282, 127
        %v10284 = vshll.u32 %v10283, 23
        %v10285 = vor.u32 4788187, %v10284
        %v10286 = vand.u32 2147483647, %v10285
        %v10288 = vcvt.s32.f32 %v10281
        %v10289 = vmul.f32 %v10288, %v10286
        %v10290 = vxor.u32 %v10289, 2147483648
        %v10291 = vsel %vm10170, %v10290, %v10289
        %v10292 = vsub.s32 4, %v10268
        %v10293 = vsel %vm10170, %v10292, %v10268
        %v10294 = vsel %vm10169, %v710, %v10291
        %v10295 = vsel %vm10169, 0, %v10293
        %v10296 = vmul.f32 %v10294, %v10294
        %v10297 = vmul.f32 %v10296, -0.001358992
        %v10298 = vadd.f32 %v10297, 0.041655596
        %v10299 = vmul.f32 %v10296, %v10298
        %v10300 = vadd.f32 %v10299, -0.4999988
        %v10301 = vmul.f32 %v10296, %v10300
        %v10302 = vadd.f32 1.0, %v10301
        %v10303 = vmul.f32 %v10294, %v10294
        %v10304 = vmul.f32 %v10303, -0.00019511016
        %v10305 = vadd.f32 %v10304, 0.008332121
        %v10306 = vmul.f32 %v10303, %v10305
        %v10307 = vadd.f32 %v10306, -0.16666654
        %v10308 = vmul.f32 %v10303, %v10307
        %v10309 = vadd.f32 %v10308, 1.0
        %v10310 = vmul.f32 %v10309, %v10294
        %vm10311 = vweird.f32 %v710
        %v10312 = vadd.s32 %v10295, 3
        %v10313 = vand.u32 %v10312, 3
        %vm10314 = vcmp.lt.s32.totalorder %v10313, 2
        %vm10315 = vcmp.eq.s32.totalorder %v10313, 0
        %v10316 = vxor.u32 %v10310, 2147483648
        %v10317 = vsel %vm10315, %v10302, %v10316
        %vm10318 = vcmp.eq.s32.totalorder %v10313, 2
        %v10319 = vxor.u32 %v10302, 2147483648
        %v10320 = vsel %vm10318, %v10319, %v10310
        %v10321 = vsel %vm10314, %v10317, %v10320
        %v10322 = vsel %vm10311, nan, %v10321
        %v10323 = vand.u32 2147483647, %v711
        %vm10324 = vcmp.le.f32.partialorder %v10323, 0.7853982
        %vm10325 = vcmp.lt.s32.totalorder %v711, 0
        %v10326 = vand.u32 %v711, 2139095040
        %v10327 = vshrl.u32 %v10326, 23
        %v10328 = vsub.s32 %v10327, 127
        %v10329 = vand.u32 2147483647, %v711
        %v10330 = vand.u32 %v10329, 8388607
        %v10331 = vor.u32 %v10330, 8388608
        %v10332 = vsub.s32 0, %v10331
        %v10333 = vadd.s32 %v10328, 1
        %vm10334 = vcmp.gt.s32.totalorder %v10333, 0
        %v10335 = vsel %vm10334, %v10333, 0
        %v10336 = vshrl.u32 %v10335, 5
        %v10337 = vand.u32 %v10335, 31
        %v10338 = vsub.s32 32, %v10337
        %v10339 = vshrl.u32 683565275, %v10338
        %v10340 = vshll.u32 683565275, %v10337
        %v10341 = vshrl.u32 2475754826, %v10338
        %v10342 = vor.u32 %v10340, %v10341
        %v10343 = vshll.u32 2475754826, %v10337
        %v10344 = vshrl.u32 2131351028, %v10338
        %v10345 = vor.u32 %v10343, %v10344
        %v10346 = vshll.u32 2131351028, %v10337
        %v10347 = vshrl.u32 2102212464, %v10338
        %v10348 = vor.u32 %v10346, %v10347
        %v10349 = vshll.u32 2102212464, %v10337
        %v10350 = vshrl.u32 920167782, %v10338
        %v10351 = vor.u32 %v10349, %v10350
        %v10352 = vshll.u32 920167782, %v10337
        %v10353 = vshrl.u32 1326507024, %v10338
        %v10354 = vor.u32 %v10352, %v10353
        %vm10355 = vcmp.lt.s32.totalorder %v10336, 1
        %vm10356 = vcmp.lt.s32.totalorder %v10336, 2
        %vm10357 = vcmp.lt.s32.totalorder %v10336, 3
        %vm10358 = vcmp.lt.s32.totalorder %v10336, 4
        %v10359 = vsel %vm10355, %v10339, %v10342
        %v10360 = vsel %vm10358, %v10348, 2102212464
        %v10361 = vsel %vm10357, %v10345, %v10360
        %v10362 = vsel %vm10356, %v10359, %v10361
        %v10363 = vsel %vm10355, %v10342, %v10345
        %v10364 = vsel %vm10358, %v10351, 920167782
        %v10365 = vsel %vm10357, %v10348, %v10364
        %v10366 = vsel %vm10356, %v10363, %v10365
        %v10367 = vsel %vm10355, %v10345, %v10348
        %v10368 = vsel %vm10358, %v10354, 1326507024
        %v10369 = vsel %vm10357, %v10351, %v10368
        %v10370 = vsel %vm10356, %v10367, %v10369
        %v10371 = vshll.u32 %v10331, 8
        %v10372 = vand.u32 %v10371, 65535
        %v10373 = vshrl.u32 %v10371, 16
        %v10374 = vand.u32 %v10370, 65535
        %v10375 = vshrl.u32 %v10370, 16
        %v10376 = vmul.u32 %v10372, %v10374
        %v10377 = vmul.u32 %v10372, %v10375
        %v10378 = vmul.u32 %v10373, %v10374
        %v10379 = vmul.u32 %v10373, %v10375
        %v10380 = vshll.u32 %v10377, 16
        %v10381 = vshrl.u32 %v10377, 16
        %v10382 = vshll.u32 %v10378, 16
        %v10383 = vshrl.u32 %v10378, 16
        %vm10384 = vc.u32 %v10376, %v10380
        %v10385 = vsel %vm10384, 1, 0
        %v10386 = vadd.s32 %v10376, %v10380
        %v10387 = vadd.s32 %v10379, %v10385
        %vm10388 = vc.u32 %v10386, %v10382
        %v10389 = vsel %vm10388, 1, 0
        %v10390 = vadd.s32 %v10386, %v10382
        %v10391 = vadd.s32 %v10387, %v10389
        %v10392 = vadd.s32 %v10391, %v10381
        %v10393 = vadd.s32 %v10392, %v10383
        %v10394 = vand.u32 %v10371, 65535
        %v10395 = vshrl.u32 %v10371, 16
        %v10396 = vand.u32 %v10366, 65535
        %v10397 = vshrl.u32 %v10366, 16
        %v10398 = vmul.u32 %v10394, %v10396
        %v10399 = vmul.u32 %v10394, %v10397
        %v10400 = vmul.u32 %v10395, %v10396
        %v10401 = vmul.u32 %v10395, %v10397
        %v10402 = vshll.u32 %v10399, 16
        %v10403 = vshrl.u32 %v10399, 16
        %v10404 = vshll.u32 %v10400, 16
        %v10405 = vshrl.u32 %v10400, 16
        %vm10406 = vc.u32 %v10398, %v10402
        %v10407 = vsel %vm10406, 1, 0
        %v10408 = vadd.s32 %v10398, %v10402
        %v10409 = vadd.s32 %v10401, %v10407
        %vm10410 = vc.u32 %v10408, %v10404
        %v10411 = vsel %vm10410, 1, 0
        %v10412 = vadd.s32 %v10408, %v10404
        %v10413 = vadd.s32 %v10409, %v10411
        %v10414 = vadd.s32 %v10413, %v10403
        %v10415 = vadd.s32 %v10414, %v10405
        %v10416 = vmul.u32 %v10371, %v10362
        %v10417 = vadd.s32 %v10393, %v10412
        %vm10418 = vc.u32 %v10393, %v10412
        %v10419 = vadd.s32 %v10415, 1
        %v10420 = vsel %vm10418, %v10419, %v10415
        %v10421 = vadd.s32 %v10416, %v10420
        %v10422 = vadd.s32 %v10421, 536870912
        %v10423 = vshrl.u32 %v10422, 30
        %v10424 = vshll.u32 %v10423, 30
        %v10425 = vsub.s32 %v10421, %v10424
        %vm10426 = vcmp.lt.s32.totalorder %v10425, 0
        %v10427 = vsub.s32 0, %v10425
        %v10428 = vsel %vm10426, %v10427, %v10425
        %v10429 = vclz %v10428
        %v10430 = vsub.s32 %v10429, 2
        %vm10431 = vcmp.gt.s32.totalorder 0, %v10430
        %v10432 = vsel %vm10431, 0, %v10430
        %v10433 = vsub.s32 32, %v10432
        %v10434 = vshll.u32 %v10425, %v10432
        %v10435 = vshrl.u32 %v10417, %v10433
        %v10436 = vor.u32 %v10434, %v10435
        %v10437 = vsub.s32 4294967266, %v10432
        %v10438 = vadd.s32 %v10437, 127
        %v10439 = vshll.u32 %v10438, 23
        %v10440 = vor.u32 4788187, %v10439
        %v10441 = vand.u32 2147483647, %v10440
        %v10443 = vcvt.s32.f32 %v10436
        %v10444 = vmul.f32 %v10443, %v10441
        %v10445 = vxor.u32 %v10444, 2147483648
        %v10446 = vsel %vm10325, %v10445, %v10444
        %v10447 = vsub.s32 4, %v10423
        %v10448 = vsel %vm10325, %v10447, %v10423
        %v10449 = vsel %vm10324, %v711, %v10446
        %v10450 = vsel %vm10324, 0, %v10448
        %v10451 = vmul.f32 %v10449, %v10449
        %v10452 = vmul.f32 %v10451, -0.001358992
        %v10453 = vadd.f32 %v10452, 0.041655596
        %v10454 = vmul.f32 %v10451, %v10453
        %v10455 = vadd.f32 %v10454, -0.4999988
        %v10456 = vmul.f32 %v10451, %v10455
        %v10457 = vadd.f32 1.0, %v10456
        %v10458 = vmul.f32 %v10449, %v10449
        %v10459 = vmul.f32 %v10458, -0.00019511016
        %v10460 = vadd.f32 %v10459, 0.008332121
        %v10461 = vmul.f32 %v10458, %v10460
        %v10462 = vadd.f32 %v10461, -0.16666654
        %v10463 = vmul.f32 %v10458, %v10462
        %v10464 = vadd.f32 %v10463, 1.0
        %v10465 = vmul.f32 %v10464, %v10449
        %vm10466 = vweird.f32 %v711
        %v10467 = vadd.s32 %v10450, 3
        %v10468 = vand.u32 %v10467, 3
        %vm10469 = vcmp.lt.s32.totalorder %v10468, 2
        %vm10470 = vcmp.eq.s32.totalorder %v10468, 0
        %v10471 = vxor.u32 %v10465, 2147483648
        %v10472 = vsel %vm10470, %v10457, %v10471
        %vm10473 = vcmp.eq.s32.totalorder %v10468, 2
        %v10474 = vxor.u32 %v10457, 2147483648
        %v10475 = vsel %vm10473, %v10474, %v10465
        %v10476 = vsel %vm10469, %v10472, %v10475
        %v10477 = vsel %vm10466, nan, %v10476
        %v10478 = vand.u32 2147483647, %v712
        %vm10479 = vcmp.le.f32.partialorder %v10478, 0.7853982
        %vm10480 = vcmp.lt.s32.totalorder %v712, 0
        %v10481 = vand.u32 %v712, 2139095040
        %v10482 = vshrl.u32 %v10481, 23
        %v10483 = vsub.s32 %v10482, 127
        %v10484 = vand.u32 2147483647, %v712
        %v10485 = vand.u32 %v10484, 8388607
        %v10486 = vor.u32 %v10485, 8388608
        %v10487 = vsub.s32 0, %v10486
        %v10488 = vadd.s32 %v10483, 1
        %vm10489 = vcmp.gt.s32.totalorder %v10488, 0
        %v10490 = vsel %vm10489, %v10488, 0
        %v10491 = vshrl.u32 %v10490, 5
        %v10492 = vand.u32 %v10490, 31
        %v10493 = vsub.s32 32, %v10492
        %v10494 = vshrl.u32 683565275, %v10493
        %v10495 = vshll.u32 683565275, %v10492
        %v10496 = vshrl.u32 2475754826, %v10493
        %v10497 = vor.u32 %v10495, %v10496
        %v10498 = vshll.u32 2475754826, %v10492
        %v10499 = vshrl.u32 2131351028, %v10493
        %v10500 = vor.u32 %v10498, %v10499
        %v10501 = vshll.u32 2131351028, %v10492
        %v10502 = vshrl.u32 2102212464, %v10493
        %v10503 = vor.u32 %v10501, %v10502
        %v10504 = vshll.u32 2102212464, %v10492
        %v10505 = vshrl.u32 920167782, %v10493
        %v10506 = vor.u32 %v10504, %v10505
        %v10507 = vshll.u32 920167782, %v10492
        %v10508 = vshrl.u32 1326507024, %v10493
        %v10509 = vor.u32 %v10507, %v10508
        %vm10510 = vcmp.lt.s32.totalorder %v10491, 1
        %vm10511 = vcmp.lt.s32.totalorder %v10491, 2
        %vm10512 = vcmp.lt.s32.totalorder %v10491, 3
        %vm10513 = vcmp.lt.s32.totalorder %v10491, 4
        %v10514 = vsel %vm10510, %v10494, %v10497
        %v10515 = vsel %vm10513, %v10503, 2102212464
        %v10516 = vsel %vm10512, %v10500, %v10515
        %v10517 = vsel %vm10511, %v10514, %v10516
        %v10518 = vsel %vm10510, %v10497, %v10500
        %v10519 = vsel %vm10513, %v10506, 920167782
        %v10520 = vsel %vm10512, %v10503, %v10519
        %v10521 = vsel %vm10511, %v10518, %v10520
        %v10522 = vsel %vm10510, %v10500, %v10503
        %v10523 = vsel %vm10513, %v10509, 1326507024
        %v10524 = vsel %vm10512, %v10506, %v10523
        %v10525 = vsel %vm10511, %v10522, %v10524
        %v10526 = vshll.u32 %v10486, 8
        %v10527 = vand.u32 %v10526, 65535
        %v10528 = vshrl.u32 %v10526, 16
        %v10529 = vand.u32 %v10525, 65535
        %v10530 = vshrl.u32 %v10525, 16
        %v10531 = vmul.u32 %v10527, %v10529
        %v10532 = vmul.u32 %v10527, %v10530
        %v10533 = vmul.u32 %v10528, %v10529
        %v10534 = vmul.u32 %v10528, %v10530
        %v10535 = vshll.u32 %v10532, 16
        %v10536 = vshrl.u32 %v10532, 16
        %v10537 = vshll.u32 %v10533, 16
        %v10538 = vshrl.u32 %v10533, 16
        %vm10539 = vc.u32 %v10531, %v10535
        %v10540 = vsel %vm10539, 1, 0
        %v10541 = vadd.s32 %v10531, %v10535
        %v10542 = vadd.s32 %v10534, %v10540
        %vm10543 = vc.u32 %v10541, %v10537
        %v10544 = vsel %vm10543, 1, 0
        %v10545 = vadd.s32 %v10541, %v10537
        %v10546 = vadd.s32 %v10542, %v10544
        %v10547 = vadd.s32 %v10546, %v10536
        %v10548 = vadd.s32 %v10547, %v10538
        %v10549 = vand.u32 %v10526, 65535
        %v10550 = vshrl.u32 %v10526, 16
        %v10551 = vand.u32 %v10521, 65535
        %v10552 = vshrl.u32 %v10521, 16
        %v10553 = vmul.u32 %v10549, %v10551
        %v10554 = vmul.u32 %v10549, %v10552
        %v10555 = vmul.u32 %v10550, %v10551
        %v10556 = vmul.u32 %v10550, %v10552
        %v10557 = vshll.u32 %v10554, 16
        %v10558 = vshrl.u32 %v10554, 16
        %v10559 = vshll.u32 %v10555, 16
        %v10560 = vshrl.u32 %v10555, 16
        %vm10561 = vc.u32 %v10553, %v10557
        %v10562 = vsel %vm10561, 1, 0
        %v10563 = vadd.s32 %v10553, %v10557
        %v10564 = vadd.s32 %v10556, %v10562
        %vm10565 = vc.u32 %v10563, %v10559
        %v10566 = vsel %vm10565, 1, 0
        %v10567 = vadd.s32 %v10563, %v10559
        %v10568 = vadd.s32 %v10564, %v10566
        %v10569 = vadd.s32 %v10568, %v10558
        %v10570 = vadd.s32 %v10569, %v10560
        %v10571 = vmul.u32 %v10526, %v10517
        %v10572 = vadd.s32 %v10548, %v10567
        %vm10573 = vc.u32 %v10548, %v10567
        %v10574 = vadd.s32 %v10570, 1
        %v10575 = vsel %vm10573, %v10574, %v10570
        %v10576 = vadd.s32 %v10571, %v10575
        %v10577 = vadd.s32 %v10576, 536870912
        %v10578 = vshrl.u32 %v10577, 30
        %v10579 = vshll.u32 %v10578, 30
        %v10580 = vsub.s32 %v10576, %v10579
        %vm10581 = vcmp.lt.s32.totalorder %v10580, 0
        %v10582 = vsub.s32 0, %v10580
        %v10583 = vsel %vm10581, %v10582, %v10580
        %v10584 = vclz %v10583
        %v10585 = vsub.s32 %v10584, 2
        %vm10586 = vcmp.gt.s32.totalorder 0, %v10585
        %v10587 = vsel %vm10586, 0, %v10585
        %v10588 = vsub.s32 32, %v10587
        %v10589 = vshll.u32 %v10580, %v10587
        %v10590 = vshrl.u32 %v10572, %v10588
        %v10591 = vor.u32 %v10589, %v10590
        %v10592 = vsub.s32 4294967266, %v10587
        %v10593 = vadd.s32 %v10592, 127
        %v10594 = vshll.u32 %v10593, 23
        %v10595 = vor.u32 4788187, %v10594
        %v10596 = vand.u32 2147483647, %v10595
        %v10598 = vcvt.s32.f32 %v10591
        %v10599 = vmul.f32 %v10598, %v10596
        %v10600 = vxor.u32 %v10599, 2147483648
        %v10601 = vsel %vm10480, %v10600, %v10599
        %v10602 = vsub.s32 4, %v10578
        %v10603 = vsel %vm10480, %v10602, %v10578
        %v10604 = vsel %vm10479, %v712, %v10601
        %v10605 = vsel %vm10479, 0, %v10603
        %v10606 = vmul.f32 %v10604, %v10604
        %v10607 = vmul.f32 %v10606, -0.001358992
        %v10608 = vadd.f32 %v10607, 0.041655596
        %v10609 = vmul.f32 %v10606, %v10608
        %v10610 = vadd.f32 %v10609, -0.4999988
        %v10611 = vmul.f32 %v10606, %v10610
        %v10612 = vadd.f32 1.0, %v10611
        %v10613 = vmul.f32 %v10604, %v10604
        %v10614 = vmul.f32 %v10613, -0.00019511016
        %v10615 = vadd.f32 %v10614, 0.008332121
        %v10616 = vmul.f32 %v10613, %v10615
        %v10617 = vadd.f32 %v10616, -0.16666654
        %v10618 = vmul.f32 %v10613, %v10617
        %v10619 = vadd.f32 %v10618, 1.0
        %v10620 = vmul.f32 %v10619, %v10604
        %vm10621 = vweird.f32 %v712
        %v10622 = vadd.s32 %v10605, 3
        %v10623 = vand.u32 %v10622, 3
        %vm10624 = vcmp.lt.s32.totalorder %v10623, 2
        %vm10625 = vcmp.eq.s32.totalorder %v10623, 0
        %v10626 = vxor.u32 %v10620, 2147483648
        %v10627 = vsel %vm10625, %v10612, %v10626
        %vm10628 = vcmp.eq.s32.totalorder %v10623, 2
        %v10629 = vxor.u32 %v10612, 2147483648
        %v10630 = vsel %vm10628, %v10629, %v10620
        %v10631 = vsel %vm10624, %v10627, %v10630
        %v10632 = vsel %vm10621, nan, %v10631
        %v10633 = vmul.f32 %v867, %v867
        %v10634 = vmul.f32 %v1022, %v1022
        %v10635 = vmul.f32 %v1177, %v1177
        %v10636 = vmul.f32 %v1332, %v1332
        %v10637 = vmul.f32 %v1487, %v1487
        %v10638 = vmul.f32 %v1642, %v1642
        %v10639 = vmul.f32 %v1797, %v1797
        %v10640 = vmul.f32 %v1952, %v1952
        %v10641 = vmul.f32 %v2107, %v2107
        %v10642 = vmul.f32 %v2262, %v2262
        %v10643 = vmul.f32 %v2417, %v2417
        %v10644 = vmul.f32 %v2572, %v2572
        %v10645 = vmul.f32 %v2727, %v2727
        %v10646 = vmul.f32 %v2882, %v2882
        %v10647 = vmul.f32 %v3037, %v3037
        %v10648 = vmul.f32 %v3192, %v3192
        %v10649 = vmul.f32 %v3347, %v3347
        %v10650 = vmul.f32 %v3502, %v3502
        %v10651 = vmul.f32 %v3657, %v3657
        %v10652 = vmul.f32 %v3812, %v3812
        %v10653 = vmul.f32 %v3967, %v3967
        %v10654 = vmul.f32 %v4122, %v4122
        %v10655 = vmul.f32 %v4277, %v4277
        %v10656 = vmul.f32 %v4432, %v4432
        %v10657 = vmul.f32 %v4587, %v4587
        %v10658 = vmul.f32 %v4742, %v4742
        %v10659 = vmul.f32 %v4897, %v4897
        %v10660 = vmul.f32 %v5052, %v5052
        %v10661 = vmul.f32 %v5207, %v5207
        %v10662 = vmul.f32 %v5362, %v5362
        %v10663 = vmul.f32 %v5517, %v5517
        %v10664 = vmul.f32 %v5672, %v5672
        %v10665 = vmul.f32 %v5827, %v5827
        %v10666 = vmul.f32 %v5982, %v5982
        %v10667 = vmul.f32 %v6137, %v6137
        %v10668 = vmul.f32 %v6292, %v6292
        %v10669 = vmul.f32 %v6447, %v6447
        %v10670 = vmul.f32 %v6602, %v6602
        %v10671 = vmul.f32 %v6757, %v6757
        %v10672 = vmul.f32 %v6912, %v6912
        %v10673 = vmul.f32 %v7067, %v7067
        %v10674 = vmul.f32 %v7222, %v7222
        %v10675 = vmul.f32 %v7377, %v7377
        %v10676 = vmul.f32 %v7532, %v7532
        %v10677 = vmul.f32 %v7687, %v7687
        %v10678 = vmul.f32 %v7842, %v7842
        %v10679 = vmul.f32 %v7997, %v7997
        %v10680 = vmul.f32 %v8152, %v8152
        %v10681 = vmul.f32 %v8307, %v8307
        %v10682 = vmul.f32 %v8462, %v8462
        %v10683 = vmul.f32 %v8617, %v8617
        %v10684 = vmul.f32 %v8772, %v8772
        %v10685 = vmul.f32 %v8927, %v8927
        %v10686 = vmul.f32 %v9082, %v9082
        %v10687 = vmul.f32 %v9237, %v9237
        %v10688 = vmul.f32 %v9392, %v9392
        %v10689 = vmul.f32 %v9547, %v9547
        %v10690 = vmul.f32 %v9702, %v9702
        %v10691 = vmul.f32 %v9857, %v9857
        %v10692 = vmul.f32 %v10012, %v10012
        %v10693 = vmul.f32 %v10167, %v10167
        %v10694 = vmul.f32 %v10322, %v10322
        %v10695 = vmul.f32 %v10477, %v10477
        %v10696 = vmul.f32 %v10632, %v10632
        %v10697 = vadd.f32 %v10633, %v585
        %v10698 = vadd.f32 %v10634, %v586
        %v10699 = vadd.f32 %v10635, %v587
        %v10700 = vadd.f32 %v10636, %v588
        %v10701 = vadd.f32 %v10637, %v589
        %v10702 = vadd.f32 %v10638, %v590
        %v10703 = vadd.f32 %v10639, %v591
        %v10704 = vadd.f32 %v10640, %v592
        %v10705 = vadd.f32 %v10641, %v593
        %v10706 = vadd.f32 %v10642, %v594
        %v10707 = vadd.f32 %v10643, %v595
        %v10708 = vadd.f32 %v10644, %v596
        %v10709 = vadd.f32 %v10645, %v597
        %v10710 = vadd.f32 %v10646, %v598
        %v10711 = vadd.f32 %v10647, %v599
        %v10712 = vadd.f32 %v10648, %v600
        %v10713 = vadd.f32 %v10649, %v601
        %v10714 = vadd.f32 %v10650, %v602
        %v10715 = vadd.f32 %v10651, %v603
        %v10716 = vadd.f32 %v10652, %v604
        %v10717 = vadd.f32 %v10653, %v605
        %v10718 = vadd.f32 %v10654, %v606
        %v10719 = vadd.f32 %v10655, %v607
        %v10720 = vadd.f32 %v10656, %v608
        %v10721 = vadd.f32 %v10657, %v609
        %v10722 = vadd.f32 %v10658, %v610
        %v10723 = vadd.f32 %v10659, %v611
        %v10724 = vadd.f32 %v10660, %v612
        %v10725 = vadd.f32 %v10661, %v613
        %v10726 = vadd.f32 %v10662, %v614
        %v10727 = vadd.f32 %v10663, %v615
        %v10728 = vadd.f32 %v10664, %v616
        %v10729 = vadd.f32 %v10665, %v617
        %v10730 = vadd.f32 %v10666, %v618
        %v10731 = vadd.f32 %v10667, %v619
        %v10732 = vadd.f32 %v10668, %v620
        %v10733 = vadd.f32 %v10669, %v621
        %v10734 = vadd.f32 %v10670, %v622
        %v10735 = vadd.f32 %v10671, %v623
        %v10736 = vadd.f32 %v10672, %v624
        %v10737 = vadd.f32 %v10673, %v625
        %v10738 = vadd.f32 %v10674, %v626
        %v10739 = vadd.f32 %v10675, %v627
        %v10740 = vadd.f32 %v10676, %v628
        %v10741 = vadd.f32 %v10677, %v629
        %v10742 = vadd.f32 %v10678, %v630
        %v10743 = vadd.f32 %v10679, %v631
        %v10744 = vadd.f32 %v10680, %v632
        %v10745 = vadd.f32 %v10681, %v633
        %v10746 = vadd.f32 %v10682, %v634
        %v10747 = vadd.f32 %v10683, %v635
        %v10748 = vadd.f32 %v10684, %v636
        %v10749 = vadd.f32 %v10685, %v637
        %v10750 = vadd.f32 %v10686, %v638
        %v10751 = vadd.f32 %v10687, %v639
        %v10752 = vadd.f32 %v10688, %v640
        %v10753 = vadd.f32 %v10689, %v641
        %v10754 = vadd.f32 %v10690, %v642
        %v10755 = vadd.f32 %v10691, %v643
        %v10756 = vadd.f32 %v10692, %v644
        %v10757 = vadd.f32 %v10693, %v645
        %v10758 = vadd.f32 %v10694, %v646
        %v10759 = vadd.f32 %v10695, %v647
        %v10760 = vadd.f32 %v10696, %v648
        %v10761 = vsub.f32 0.0, %v10697
        %v10762 = vsub.f32 0.0, %v10698
        %v10763 = vsub.f32 0.0, %v10699
        %v10764 = vsub.f32 0.0, %v10700
        %v10765 = vsub.f32 0.0, %v10701
        %v10766 = vsub.f32 0.0, %v10702
        %v10767 = vsub.f32 0.0, %v10703
        %v10768 = vsub.f32 0.0, %v10704
        %v10769 = vsub.f32 0.0, %v10705
        %v10770 = vsub.f32 0.0, %v10706
        %v10771 = vsub.f32 0.0, %v10707
        %v10772 = vsub.f32 0.0, %v10708
        %v10773 = vsub.f32 0.0, %v10709
        %v10774 = vsub.f32 0.0, %v10710
        %v10775 = vsub.f32 0.0, %v10711
        %v10776 = vsub.f32 0.0, %v10712
        %v10777 = vsub.f32 0.0, %v10713
        %v10778 = vsub.f32 0.0, %v10714
        %v10779 = vsub.f32 0.0, %v10715
        %v10780 = vsub.f32 0.0, %v10716
        %v10781 = vsub.f32 0.0, %v10717
        %v10782 = vsub.f32 0.0, %v10718
        %v10783 = vsub.f32 0.0, %v10719
        %v10784 = vsub.f32 0.0, %v10720
        %v10785 = vsub.f32 0.0, %v10721
        %v10786 = vsub.f32 0.0, %v10722
        %v10787 = vsub.f32 0.0, %v10723
        %v10788 = vsub.f32 0.0, %v10724
        %v10789 = vsub.f32 0.0, %v10725
        %v10790 = vsub.f32 0.0, %v10726
        %v10791 = vsub.f32 0.0, %v10727
        %v10792 = vsub.f32 0.0, %v10728
        %v10793 = vsub.f32 0.0, %v10729
        %v10794 = vsub.f32 0.0, %v10730
        %v10795 = vsub.f32 0.0, %v10731
        %v10796 = vsub.f32 0.0, %v10732
        %v10797 = vsub.f32 0.0, %v10733
        %v10798 = vsub.f32 0.0, %v10734
        %v10799 = vsub.f32 0.0, %v10735
        %v10800 = vsub.f32 0.0, %v10736
        %v10801 = vsub.f32 0.0, %v10737
        %v10802 = vsub.f32 0.0, %v10738
        %v10803 = vsub.f32 0.0, %v10739
        %v10804 = vsub.f32 0.0, %v10740
        %v10805 = vsub.f32 0.0, %v10741
        %v10806 = vsub.f32 0.0, %v10742
        %v10807 = vsub.f32 0.0, %v10743
        %v10808 = vsub.f32 0.0, %v10744
        %v10809 = vsub.f32 0.0, %v10745
        %v10810 = vsub.f32 0.0, %v10746
        %v10811 = vsub.f32 0.0, %v10747
        %v10812 = vsub.f32 0.0, %v10748
        %v10813 = vsub.f32 0.0, %v10749
        %v10814 = vsub.f32 0.0, %v10750
        %v10815 = vsub.f32 0.0, %v10751
        %v10816 = vsub.f32 0.0, %v10752
        %v10817 = vsub.f32 0.0, %v10753
        %v10818 = vsub.f32 0.0, %v10754
        %v10819 = vsub.f32 0.0, %v10755
        %v10820 = vsub.f32 0.0, %v10756
        %v10821 = vsub.f32 0.0, %v10757
        %v10822 = vsub.f32 0.0, %v10758
        %v10823 = vsub.f32 0.0, %v10759
        %v10824 = vsub.f32 0.0, %v10760
        %v10825 = vmul.f32 %v10761, 1.442695
        %v10826 = vpow.pop %v10825
        %v10827 = vmul.f32 %v10762, 1.442695
        %v10828 = vpow.pop %v10827
        %v10829 = vmul.f32 %v10763, 1.442695
        %v10830 = vpow.pop %v10829
        %v10831 = vmul.f32 %v10764, 1.442695
        %v10832 = vpow.pop %v10831
        %v10833 = vmul.f32 %v10765, 1.442695
        %v10834 = vpow.pop %v10833
        %v10835 = vmul.f32 %v10766, 1.442695
        %v10836 = vpow.pop %v10835
        %v10837 = vmul.f32 %v10767, 1.442695
        %v10838 = vpow.pop %v10837
        %v10839 = vmul.f32 %v10768, 1.442695
        %v10840 = vpow.pop %v10839
        %v10841 = vmul.f32 %v10769, 1.442695
        %v10842 = vpow.pop %v10841
        %v10843 = vmul.f32 %v10770, 1.442695
        %v10844 = vpow.pop %v10843
        %v10845 = vmul.f32 %v10771, 1.442695
        %v10846 = vpow.pop %v10845
        %v10847 = vmul.f32 %v10772, 1.442695
        %v10848 = vpow.pop %v10847
        %v10849 = vmul.f32 %v10773, 1.442695
        %v10850 = vpow.pop %v10849
        %v10851 = vmul.f32 %v10774, 1.442695
        %v10852 = vpow.pop %v10851
        %v10853 = vmul.f32 %v10775, 1.442695
        %v10854 = vpow.pop %v10853
        %v10855 = vmul.f32 %v10776, 1.442695
        %v10856 = vpow.pop %v10855
        %v10857 = vmul.f32 %v10777, 1.442695
        %v10858 = vpow.pop %v10857
        %v10859 = vmul.f32 %v10778, 1.442695
        %v10860 = vpow.pop %v10859
        %v10861 = vmul.f32 %v10779, 1.442695
        %v10862 = vpow.pop %v10861
        %v10863 = vmul.f32 %v10780, 1.442695
        %v10864 = vpow.pop %v10863
        %v10865 = vmul.f32 %v10781, 1.442695
        %v10866 = vpow.pop %v10865
        %v10867 = vmul.f32 %v10782, 1.442695
        %v10868 = vpow.pop %v10867
        %v10869 = vmul.f32 %v10783, 1.442695
        %v10870 = vpow.pop %v10869
        %v10871 = vmul.f32 %v10784, 1.442695
        %v10872 = vpow.pop %v10871
        %v10873 = vmul.f32 %v10785, 1.442695
        %v10874 = vpow.pop %v10873
        %v10875 = vmul.f32 %v10786, 1.442695
        %v10876 = vpow.pop %v10875
        %v10877 = vmul.f32 %v10787, 1.442695
        %v10878 = vpow.pop %v10877
        %v10879 = vmul.f32 %v10788, 1.442695
        %v10880 = vpow.pop %v10879
        %v10881 = vmul.f32 %v10789, 1.442695
        %v10882 = vpow.pop %v10881
        %v10883 = vmul.f32 %v10790, 1.442695
        %v10884 = vpow.pop %v10883
        %v10885 = vmul.f32 %v10791, 1.442695
        %v10886 = vpow.pop %v10885
        %v10887 = vmul.f32 %v10792, 1.442695
        %v10888 = vpow.pop %v10887
        %v10889 = vmul.f32 %v10793, 1.442695
        %v10890 = vpow.pop %v10889
        %v10891 = vmul.f32 %v10794, 1.442695
        %v10892 = vpow.pop %v10891
        %v10893 = vmul.f32 %v10795, 1.442695
        %v10894 = vpow.pop %v10893
        %v10895 = vmul.f32 %v10796, 1.442695
        %v10896 = vpow.pop %v10895
        %v10897 = vmul.f32 %v10797, 1.442695
        %v10898 = vpow.pop %v10897
        %v10899 = vmul.f32 %v10798, 1.442695
        %v10900 = vpow.pop %v10899
        %v10901 = vmul.f32 %v10799, 1.442695
        %v10902 = vpow.pop %v10901
        %v10903 = vmul.f32 %v10800, 1.442695
        %v10904 = vpow.pop %v10903
        %v10905 = vmul.f32 %v10801, 1.442695
        %v10906 = vpow.pop %v10905
        %v10907 = vmul.f32 %v10802, 1.442695
        %v10908 = vpow.pop %v10907
        %v10909 = vmul.f32 %v10803, 1.442695
        %v10910 = vpow.pop %v10909
        %v10911 = vmul.f32 %v10804, 1.442695
        %v10912 = vpow.pop %v10911
        %v10913 = vmul.f32 %v10805, 1.442695
        %v10914 = vpow.pop %v10913
        %v10915 = vmul.f32 %v10806, 1.442695
        %v10916 = vpow.pop %v10915
        %v10917 = vmul.f32 %v10807, 1.442695
        %v10918 = vpow.pop %v10917
        %v10919 = vmul.f32 %v10808, 1.442695
        %v10920 = vpow.pop %v10919
        %v10921 = vmul.f32 %v10809, 1.442695
        %v10922 = vpow.pop %v10921
        %v10923 = vmul.f32 %v10810, 1.442695
        %v10924 = vpow.pop %v10923
        %v10925 = vmul.f32 %v10811, 1.442695
        %v10926 = vpow.pop %v10925
        %v10927 = vmul.f32 %v10812, 1.442695
        %v10928 = vpow.pop %v10927
        %v10929 = vmul.f32 %v10813, 1.442695
        %v10930 = vpow.pop %v10929
        %v10931 = vmul.f32 %v10814, 1.442695
        %v10932 = vpow.pop %v10931
        %v10933 = vmul.f32 %v10815, 1.442695
        %v10934 = vpow.pop %v10933
        %v10935 = vmul.f32 %v10816, 1.442695
        %v10936 = vpow.pop %v10935
        %v10937 = vmul.f32 %v10817, 1.442695
        %v10938 = vpow.pop %v10937
        %v10939 = vmul.f32 %v10818, 1.442695
        %v10940 = vpow.pop %v10939
        %v10941 = vmul.f32 %v10819, 1.442695
        %v10942 = vpow.pop %v10941
        %v10943 = vmul.f32 %v10820, 1.442695
        %v10944 = vpow.pop %v10943
        %v10945 = vmul.f32 %v10821, 1.442695
        %v10946 = vpow.pop %v10945
        %v10947 = vmul.f32 %v10822, 1.442695
        %v10948 = vpow.pop %v10947
        %v10949 = vmul.f32 %v10823, 1.442695
        %v10950 = vpow.pop %v10949
        %v10951 = vmul.f32 %v10824, 1.442695
        %v10952 = vpow.pop %v10951
        %10953 = vst [vmem:[%s196] sm:$0xff] %v10826
        %10954 = vst [vmem:[%s196 + $0x8] sm:$0xff] %v10828
        %10955 = vst [vmem:[%s196 + $0x10] sm:$0xff] %v10830
        %10956 = vst [vmem:[%s196 + $0x18] sm:$0xff] %v10832
        %10957 = vst [vmem:[%s196 + $0x20] sm:$0xff] %v10834
        %10958 = vst [vmem:[%s196 + $0x28] sm:$0xff] %v10836
        %10959 = vst [vmem:[%s196 + $0x30] sm:$0xff] %v10838
        %10960 = vst [vmem:[%s196 + $0x38] sm:$0xff] %v10840
        %10961 = vst [vmem:[%s196 + $0x40] sm:$0xff] %v10842
        %10962 = vst [vmem:[%s196 + $0x48] sm:$0xff] %v10844
        %10963 = vst [vmem:[%s196 + $0x50] sm:$0xff] %v10846
        %10964 = vst [vmem:[%s196 + $0x58] sm:$0xff] %v10848
        %10965 = vst [vmem:[%s196 + $0x60] sm:$0xff] %v10850
        %10966 = vst [vmem:[%s196 + $0x68] sm:$0xff] %v10852
        %10967 = vst [vmem:[%s196 + $0x70] sm:$0xff] %v10854
        %10968 = vst [vmem:[%s196 + $0x78] sm:$0xff] %v10856
        %10969 = vst [vmem:[%s196 + $0x80] sm:$0xff] %v10858
        %10970 = vst [vmem:[%s196 + $0x88] sm:$0xff] %v10860
        %10971 = vst [vmem:[%s196 + $0x90] sm:$0xff] %v10862
        %10972 = vst [vmem:[%s196 + $0x98] sm:$0xff] %v10864
        %10973 = vst [vmem:[%s196 + $0xa0] sm:$0xff] %v10866
        %10974 = vst [vmem:[%s196 + $0xa8] sm:$0xff] %v10868
        %10975 = vst [vmem:[%s196 + $0xb0] sm:$0xff] %v10870
        %10976 = vst [vmem:[%s196 + $0xb8] sm:$0xff] %v10872
        %10977 = vst [vmem:[%s196 + $0xc0] sm:$0xff] %v10874
        %10978 = vst [vmem:[%s196 + $0xc8] sm:$0xff] %v10876
        %10979 = vst [vmem:[%s196 + $0xd0] sm:$0xff] %v10878
        %10980 = vst [vmem:[%s196 + $0xd8] sm:$0xff] %v10880
        %10981 = vst [vmem:[%s196 + $0xe0] sm:$0xff] %v10882
        %10982 = vst [vmem:[%s196 + $0xe8] sm:$0xff] %v10884
        %10983 = vst [vmem:[%s196 + $0xf0] sm:$0xff] %v10886
        %10984 = vst [vmem:[%s196 + $0xf8] sm:$0xff] %v10888
        %10985 = vst [vmem:[%s196 + $0x100] sm:$0xff] %v10890
        %10986 = vst [vmem:[%s196 + $0x108] sm:$0xff] %v10892
        %10987 = vst [vmem:[%s196 + $0x110] sm:$0xff] %v10894
        %10988 = vst [vmem:[%s196 + $0x118] sm:$0xff] %v10896
        %10989 = vst [vmem:[%s196 + $0x120] sm:$0xff] %v10898
        %10990 = vst [vmem:[%s196 + $0x128] sm:$0xff] %v10900
        %10991 = vst [vmem:[%s196 + $0x130] sm:$0xff] %v10902
        %10992 = vst [vmem:[%s196 + $0x138] sm:$0xff] %v10904
        %10993 = vst [vmem:[%s196 + $0x140] sm:$0xff] %v10906
        %10994 = vst [vmem:[%s196 + $0x148] sm:$0xff] %v10908
        %10995 = vst [vmem:[%s196 + $0x150] sm:$0xff] %v10910
        %10996 = vst [vmem:[%s196 + $0x158] sm:$0xff] %v10912
        %10997 = vst [vmem:[%s196 + $0x160] sm:$0xff] %v10914
        %10998 = vst [vmem:[%s196 + $0x168] sm:$0xff] %v10916
        %10999 = vst [vmem:[%s196 + $0x170] sm:$0xff] %v10918
        %11000 = vst [vmem:[%s196 + $0x178] sm:$0xff] %v10920
        %11001 = vst [vmem:[%s196 + $0x180] sm:$0xff] %v10922
        %11002 = vst [vmem:[%s196 + $0x188] sm:$0xff] %v10924
        %11003 = vst [vmem:[%s196 + $0x190] sm:$0xff] %v10926
        %11004 = vst [vmem:[%s196 + $0x198] sm:$0xff] %v10928
        %11005 = vst [vmem:[%s196 + $0x1a0] sm:$0xff] %v10930
        %11006 = vst [vmem:[%s196 + $0x1a8] sm:$0xff] %v10932
        %11007 = vst [vmem:[%s196 + $0x1b0] sm:$0xff] %v10934
        %11008 = vst [vmem:[%s196 + $0x1b8] sm:$0xff] %v10936
        %11009 = vst [vmem:[%s196 + $0x1c0] sm:$0xff] %v10938
        %11010 = vst [vmem:[%s196 + $0x1c8] sm:$0xff] %v10940
        %11011 = vst [vmem:[%s196 + $0x1d0] sm:$0xff] %v10942
        %11012 = vst [vmem:[%s196 + $0x1d8] sm:$0xff] %v10944
        %11013 = vst [vmem:[%s196 + $0x1e0] sm:$0xff] %v10946
        %11014 = vst [vmem:[%s196 + $0x1e8] sm:$0xff] %v10948
        %11015 = vst [vmem:[%s196 + $0x1f0] sm:$0xff] %v10950
        %11016 = vst [vmem:[%s196 + $0x1f8] sm:$0xff] %v10952
        %s11017 = sand.u32 %s103, 1
        %s11018 = scalar_lea.sflag [#allocation3], %s11017
        %s11019 = sand.u32 %s103, 1
        %s11020 = smul.addr %s11019, 512
        %s11021 = scalar_lea.vmem [#allocation2], %s11020
        // Predicated region
        $region29: #{tpu_custom_call.1} parent=27 // pred_check
          %p11022 = pneg %p113
        $region30: #{tpu_custom_call.1} parent=27 // pred_check_branch
          %11024 = sbr.rel (%p11022) target = $region32
        $region31: #{tpu_custom_call.1} parent=27 // pred_region
          %s11025 = smul.u32 32, %s22
          %s11026 = smul.u32 2, %s23
          %11028 = vsyncadd %s11018, 0
          %s11029 = smul.addr %s11025, 2
          %s11030 = sadd.s32 %s11026, %s11029
          %s11031 = smul.addr %s21, 64
          %s11032 = sadd.s32 %s11030, %s11031
          %s11033 = smul.addr %s11032, 8
          %s11034 = scalar_lea.hbm %s2, %s11033
          %s11035 = sshll.u32 %s11021, 4
          %s11036 = int_to_ptr.vmem [resolvable:$true] %s11035
          %s11037 = sshll.u32 %s11034, 4
          %s11038 = int_to_ptr.hbm [resolvable:$true] %s11037
          %11043 = dma.vmem_to_hbm [thread:$0]  %s11036, 8192, %s11038, %s11018, 256, 256, 16
        $region32: #{tpu_custom_call.1} parent=27 // pred_fallthru
          _
      $region28: #{tpu_custom_call.1} parent=5 // pred_fallthru
        _
      %p11044 = scmp.le.s32.totalorder 2, %s11
      // Predicated region
      $region33: #{tpu_custom_call.1} parent=5 // pred_check
        %p11045 = pneg %p11044
      $region34: #{tpu_custom_call.1} parent=5 // pred_check_branch
        %11047 = sbr.rel (%p11045) target = $region36
      $region35: #{tpu_custom_call.1} parent=5 // pred_region
        %s11048 = ssub.s32 %s11, 2
        // Predicated region
        $region37: #{tpu_custom_call.1} parent=35 // pred_check
          %p11049 = pneg %p119
        $region38: #{tpu_custom_call.1} parent=35 // pred_check_branch
          %11051 = sbr.rel (%p11049) target = $region40
        $region39: #{tpu_custom_call.1} parent=35 // pred_region
          %s11052 = sand.u32 %s104, 1
          %s11053 = scalar_lea.sflag [#allocation3], %s11052
          %s11054 = sand.u32 %s104, 1
          %s11055 = smul.addr %s11054, 512
          %s11056 = scalar_lea.vmem [#allocation2], %s11055
          %11058 = dma.done %s11053, 8192
        $region40: #{tpu_custom_call.1} parent=35 // pred_fallthru
          _
      $region36: #{tpu_custom_call.1} parent=5 // pred_fallthru
        _
    $region6: #{tpu_custom_call.1} parent=1 // loop_footer
      %s15 = sadd.s32 1, %s11
    $region7: #{tpu_custom_call.1} parent=1 // loop_footer_branch
      %10 = sbr.rel target = $region3
    $region8: #{tpu_custom_call.1} parent=1 // loop_exit
      _
    %11059 = vsyncpa [#allocation3], 1
    %s11060 = scalar_lea.sflag [#allocation3], 1
    %11061 = vsyncpa %s11060, 1

</llo_original>
